<compile_context>
chip_gen: v7x
topology: tpu7x:2x2x1
jax: 0.10.0
libtpu: 0.0.40
codegen_flags: <defaults>
</compile_context>

<pallas_src>
import math

import jax
import jax.numpy as jnp
from jax import lax
from jax.experimental import pallas as pl
from jax.experimental.pallas import tpu as pltpu


# ----------------------------------------------------------------------------
# small helpers
# ----------------------------------------------------------------------------
def _round_up(x, m):
    return (x + m - 1) // m * m


def _pad2(a, rows, cols):
    r, c = a.shape
    if (r, c) == (rows, cols):
        return a
    return jnp.pad(a, ((0, rows - r), (0, cols - c)))


def _pad_gate_cols(w, H, Hp):
    """(in_dim, 4H) -> (in_dim, 4*Hp); each gate block (i,f,g,o) placed lane-aligned."""
    parts = []
    for g in range(4):
        blk = w[:, g * H:(g + 1) * H]
        parts.append(jnp.pad(blk, ((0, 0), (0, Hp - H))))
    return jnp.concatenate(parts, axis=1)


def _choose_time_block(T):
    # Never fall back to TB=1; the time axis of the gate tensors is zero-padded instead.
    return 8 if T <= 8 else 16


# ----------------------------------------------------------------------------
# Pallas kernels
# ----------------------------------------------------------------------------
def _matmul_bias_kernel(x_ref, w_ref, b_ref, o_ref, acc_ref):
    """o = x @ w + b, tiled over (M, N, K); K is the (arbitrary) reduction axis."""
    k = pl.program_id(2)

    @pl.when(k == 0)
    def _():
        acc_ref[...] = jnp.zeros_like(acc_ref)

    acc_ref[...] += jnp.dot(x_ref[...], w_ref[...],
                            preferred_element_type=jnp.float32)

    @pl.when(k == pl.num_programs(2) - 1)
    def _():
        o_ref[...] = (acc_ref[...] + b_ref[...]).astype(o_ref.dtype)


def _dual_matmul_bias_kernel(x1_ref, w1_ref, x2_ref, w2_ref, b_ref, o_ref, acc_ref):
    """o = x1 @ w1 + x2 @ w2 + b  (used so [h_fwd ; h_bwd] never has to be concatenated).

    The two partial products are fused into ONE accumulator read-modify-write per k-step.
    """
    k = pl.program_id(2)

    @pl.when(k == 0)
    def _():
        acc_ref[...] = jnp.zeros_like(acc_ref)

    acc_ref[...] += (jnp.dot(x1_ref[...], w1_ref[...],
                             preferred_element_type=jnp.float32)
                     + jnp.dot(x2_ref[...], w2_ref[...],
                               preferred_element_type=jnp.float32))

    @pl.when(k == pl.num_programs(2) - 1)
    def _():
        o_ref[...] = (acc_ref[...] + b_ref[...]).astype(o_ref.dtype)


def _sigmoid_via_tanh(x):
    # sigmoid(x) = 0.5 * (tanh(0.5*x) + 1): one EUP op instead of exp + divide.
    return 0.5 * jnp.tanh(0.5 * x) + 0.5


def bidir_lstm_kernel(gf_ref, gb_ref, whh_ref, hf_ref, hb_ref, h_scr, c_scr):
    """Fused bidirectional LSTM recurrence over one time block.

    gf_ref : (TB, Bp, 4*Hp) bf16  precomputed fwd gates (x@W_ih + b), time block i (ascending)
    gb_ref : (TB, Bp, 4*Hp) bf16  precomputed bwd gates, time block NB-1-i
    whh_ref: (2, Hp, 4*Hp)  bf16  recurrent weights [fwd, bwd], gate blocks lane-aligned
    hf_ref : (TB, Bp, Hp)   bf16  fwd hidden outputs for time block i
    hb_ref : (TB, Bp, Hp)   bf16  bwd hidden outputs for time block NB-1-i
    h_scr, c_scr: (2, Bp, Hp) f32 recurrent state, persistent across grid steps
    """
    tb = gf_ref.shape[0]
    hp = h_scr.shape[-1]

    @pl.when(pl.program_id(0) == 0)
    def _():
        h_scr[...] = jnp.zeros_like(h_scr)
        c_scr[...] = jnp.zeros_like(c_scr)

    def cell(gates, c_prev):
        # Hp is a multiple of 128 -> each slice below is whole-vreg lane-aligned.
        i_g = _sigmoid_via_tanh(gates[:, 0 * hp:1 * hp])
        f_g = _sigmoid_via_tanh(gates[:, 1 * hp:2 * hp])
        g_g = jnp.tanh(gates[:, 2 * hp:3 * hp])
        o_g = _sigmoid_via_tanh(gates[:, 3 * hp:4 * hp])
        c_new = f_g * c_prev + i_g * g_g
        h_new = o_g * jnp.tanh(c_new)
        return h_new, c_new

    def step(j, carry):
        h_f, c_f, h_b, c_b = carry
        # forward direction: global time = i*TB + j
        gates_f = gf_ref[j].astype(jnp.float32) + jnp.dot(
            h_f.astype(jnp.bfloat16), whh_ref[0], preferred_element_type=jnp.float32)
        h_f, c_f = cell(gates_f, c_f)
        hf_ref[j] = h_f.astype(hf_ref.dtype)
        # backward direction: global time = Tp-1-(i*TB+j) -> local TB-1-j of block NB-1-i
        gates_b = gb_ref[tb - 1 - j].astype(jnp.float32) + jnp.dot(
            h_b.astype(jnp.bfloat16), whh_ref[1], preferred_element_type=jnp.float32)
        h_b, c_b = cell(gates_b, c_b)
        hb_ref[tb - 1 - j] = h_b.astype(hb_ref.dtype)
        return (h_f, c_f, h_b, c_b)

    # state carried in registers across the unrolled block; scratch touched once per block
    init = (h_scr[0], c_scr[0], h_scr[1], c_scr[1])
    h_f, c_f, h_b, c_b = lax.fori_loop(0, tb, step, init, unroll=True)
    h_scr[0] = h_f
    c_scr[0] = c_f
    h_scr[1] = h_b
    c_scr[1] = c_b


# ----------------------------------------------------------------------------
# pallas_call wrappers
# ----------------------------------------------------------------------------
def matmul_bias(x, w, b, *, out_dtype=jnp.float32, compute_dtype=jnp.bfloat16):
    """Tiled (M,K)@(K,N)+b. bf16 operands on the MXU, f32 accumulation."""
    M, K = x.shape
    _, N = w.shape
    b = b.reshape(1, -1)
    tm = min(256, _round_up(M, 8))
    tk = min(512, _round_up(K, 128))
    tn = min(512, _round_up(N, 128))
    Mp, Kp, Np = _round_up(M, tm), _round_up(K, tk), _round_up(N, tn)
    xp = _pad2(x.astype(compute_dtype), Mp, Kp)
    wp = _pad2(w.astype(compute_dtype), Kp, Np)
    bp = _pad2(b.astype(jnp.float32), 1, Np)

    out = pl.pallas_call(
        _matmul_bias_kernel,
        out_shape=jax.ShapeDtypeStruct((Mp, Np), out_dtype),
        grid_spec=pltpu.PrefetchScalarGridSpec(
            num_scalar_prefetch=0,
            grid=(Mp // tm, Np // tn, Kp // tk),
            in_specs=[
                pl.BlockSpec((tm, tk), lambda i, j, k: (i, k)),
                pl.BlockSpec((tk, tn), lambda i, j, k: (k, j)),
                pl.BlockSpec((1, tn), lambda i, j, k: (0, j)),
            ],
            out_specs=pl.BlockSpec((tm, tn), lambda i, j, k: (i, j)),
            scratch_shapes=[pltpu.VMEM((tm, tn), jnp.float32)],
        ),
        compiler_params=pltpu.CompilerParams(
            dimension_semantics=("parallel", "parallel", "arbitrary")),
    )(xp, wp, bp)
    if (Mp, Np) != (M, N):
        out = out[:M, :N]
    return out


def dual_matmul_bias(x1, w1, x2, w2, b, *, out_dtype=jnp.float32,
                     compute_dtype=jnp.bfloat16):
    """Tiled x1@w1 + x2@w2 + b (avoids materializing concat([x1, x2], -1))."""
    M, K = x1.shape
    _, N = w1.shape
    b = b.reshape(1, -1)
    tm = min(256, _round_up(M, 8))
    tk = min(512, _round_up(K, 128))
    tn = min(512, _round_up(N, 128))
    Mp, Kp, Np = _round_up(M, tm), _round_up(K, tk), _round_up(N, tn)
    x1p = _pad2(x1.astype(compute_dtype), Mp, Kp)
    x2p = _pad2(x2.astype(compute_dtype), Mp, Kp)
    w1p = _pad2(w1.astype(compute_dtype), Kp, Np)
    w2p = _pad2(w2.astype(compute_dtype), Kp, Np)
    bp = _pad2(b.astype(jnp.float32), 1, Np)

    out = pl.pallas_call(
        _dual_matmul_bias_kernel,
        out_shape=jax.ShapeDtypeStruct((Mp, Np), out_dtype),
        grid_spec=pltpu.PrefetchScalarGridSpec(
            num_scalar_prefetch=0,
            grid=(Mp // tm, Np // tn, Kp // tk),
            in_specs=[
                pl.BlockSpec((tm, tk), lambda i, j, k: (i, k)),
                pl.BlockSpec((tk, tn), lambda i, j, k: (k, j)),
                pl.BlockSpec((tm, tk), lambda i, j, k: (i, k)),
                pl.BlockSpec((tk, tn), lambda i, j, k: (k, j)),
                pl.BlockSpec((1, tn), lambda i, j, k: (0, j)),
            ],
            out_specs=pl.BlockSpec((tm, tn), lambda i, j, k: (i, j)),
            scratch_shapes=[pltpu.VMEM((tm, tn), jnp.float32)],
        ),
        compiler_params=pltpu.CompilerParams(
            dimension_semantics=("parallel", "parallel", "arbitrary")),
    )(x1p, w1p, x2p, w2p, bp)
    if (Mp, Np) != (M, N):
        out = out[:M, :N]
    return out


def bidir_lstm_layer(gates_f, gates_b, whh, *, time_block):
    """Run one fused bidirectional LSTM layer given precomputed input-projection gates."""
    Tp, Bp, G = gates_f.shape
    Hp = whh.shape[1]
    TB = time_block
    NB = Tp // TB

    def fwd_idx(i):
        return (i, 0, 0)

    def bwd_idx(i):
        return (NB - 1 - i, 0, 0)

    def const_idx(i):
        return (0, 0, 0)

    hf, hb = pl.pallas_call(
        bidir_lstm_kernel,
        out_shape=(jax.ShapeDtypeStruct((Tp, Bp, Hp), jnp.bfloat16),
                   jax.ShapeDtypeStruct((Tp, Bp, Hp), jnp.bfloat16)),
        grid_spec=pltpu.PrefetchScalarGridSpec(
            num_scalar_prefetch=0,
            grid=(NB,),
            in_specs=[
                pl.BlockSpec((TB, Bp, G), fwd_idx),
                pl.BlockSpec((TB, Bp, G), bwd_idx),
                # bf16 constant-index recurrent weights (footprint already halved vs f32).
                pl.BlockSpec((2, Hp, G), const_idx),
            ],
            out_specs=[
                pl.BlockSpec((TB, Bp, Hp), fwd_idx),
                pl.BlockSpec((TB, Bp, Hp), bwd_idx),
            ],
            scratch_shapes=[
                pltpu.VMEM((2, Bp, Hp), jnp.float32),   # h state (fwd, bwd)
                pltpu.VMEM((2, Bp, Hp), jnp.float32),   # c state (fwd, bwd)
            ],
        ),
        compiler_params=pltpu.CompilerParams(
            dimension_semantics=("arbitrary",)),        # recurrent state across time blocks
    )(gates_f, gates_b, whh)
    return hf, hb


# ----------------------------------------------------------------------------
# parameters (PyTorch-equivalent init, stored pre-transposed and lane-padded)
# ----------------------------------------------------------------------------
def init_params(key, vocab_size, embedding_dim, hidden_dim, num_layers):
    H = hidden_dim
    Hp = _round_up(H, 128)          # lane-pad hidden dim so gate blocks are 128-aligned
    params = {}
    k_emb, k_lstm, k_fcw, k_fcb = jax.random.split(key, 4)

    params["embedding"] = jax.random.normal(
        k_emb, (vocab_size, embedding_dim), dtype=jnp.float32)

    bound = 1.0 / math.sqrt(H)
    lkeys = list(jax.random.split(k_lstm, num_layers * 2 * 4))
    ki = 0
    layers = []
    for layer in range(num_layers):
        in_size = embedding_dim if layer == 0 else 2 * H
        ldict = {}
        whh_dirs = []
        for tag in ("f", "b"):      # forward / backward direction
            w_ih = jax.random.uniform(lkeys[ki], (in_size, 4 * H), jnp.float32, -bound, bound)
            w_hh = jax.random.uniform(lkeys[ki + 1], (H, 4 * H), jnp.float32, -bound, bound)
            b_ih = jax.random.uniform(lkeys[ki + 2], (1, 4 * H), jnp.float32, -bound, bound)
            b_hh = jax.random.uniform(lkeys[ki + 3], (1, 4 * H), jnp.float32, -bound, bound)
            ki += 4
            # combined bias, folded into the hoisted input projection
            ldict[f"b_{tag}"] = _pad_gate_cols(b_ih + b_hh, H, Hp)                 # (1, 4*Hp)
            whh_dirs.append(jnp.pad(_pad_gate_cols(w_hh, H, Hp),
                                    ((0, Hp - H), (0, 0))))                        # (Hp, 4*Hp)
            if layer == 0:
                ldict[f"wih_{tag}"] = _pad_gate_cols(w_ih, H, Hp)                  # (E, 4*Hp)
            else:
                # split the 2H input axis into the fwd-half and bwd-half contributions
                ldict[f"wih_{tag}_top"] = jnp.pad(_pad_gate_cols(w_ih[:H], H, Hp),
                                                  ((0, Hp - H), (0, 0)))           # (Hp, 4*Hp)
                ldict[f"wih_{tag}_bot"] = jnp.pad(_pad_gate_cols(w_ih[H:], H, Hp),
                                                  ((0, Hp - H), (0, 0)))           # (Hp, 4*Hp)
        # recurrent weights stored bf16: native MXU rate, half the VMEM footprint
        ldict["whh"] = jnp.stack(whh_dirs, axis=0).astype(jnp.bfloat16)            # (2, Hp, 4*Hp)
        layers.append(ldict)
    params["lstm"] = layers

    fc_bound = 1.0 / math.sqrt(2 * H)
    fc_w = jax.random.uniform(k_fcw, (2 * H, vocab_size), jnp.float32, -fc_bound, fc_bound)
    fc_b = jax.random.uniform(k_fcb, (vocab_size,), jnp.float32, -fc_bound, fc_bound)
    params["fc_w_top"] = jnp.pad(fc_w[:H], ((0, Hp - H), (0, 0)))   # acts on h_fwd (Hp, V)
    params["fc_w_bot"] = jnp.pad(fc_w[H:], ((0, Hp - H), (0, 0)))   # acts on h_bwd (Hp, V)
    params["fc_b"] = fc_b
    return params


# ----------------------------------------------------------------------------
# forward pass
# ----------------------------------------------------------------------------
def vanilla_lstm_forward(params, input_id):
    """input_id: (B, T) int32 -> logits (B, T, vocab_size)."""
    B, T = input_id.shape
    Bp = _round_up(B, 8)                              # fill sublanes
    lstm_layers = params["lstm"]
    Hp = lstm_layers[0]["whh"].shape[1]
    V = params["fc_b"].shape[0]
    TB = _choose_time_block(T)
    Tp = _round_up(T, TB)

    # Embedding lookup gathered directly time-major; dropout (eval) is identity.
    emb = jnp.take(params["embedding"], input_id.T, axis=0)       # (T, B, E)
    x = jnp.pad(emb, ((0, 0), (0, Bp - B), (0, 0)))               # (T, Bp, E)
    x_flat = x.reshape(T * Bp, -1)

    def pad_time(g):
        # Pad the *gate* tensor with true zeros: padded steps have i=f=o=0.5, g=0 so h/c stay 0
        # (the bias is already folded into the projection, so padding x instead would be wrong).
        g = g.reshape(T, Bp, 4 * Hp)
        if Tp != T:
            g = jnp.pad(g, ((0, Tp - T), (0, 0), (0, 0)))
        return g

    hf_flat = hb_flat = None
    for layer, lp in enumerate(lstm_layers):
        # Hoisted input projection for the whole sequence (bias folded in), bf16 gates.
        if layer == 0:
            gf = matmul_bias(x_flat, lp["wih_f"], lp["b_f"], out_dtype=jnp.bfloat16)
            gb = matmul_bias(x_flat, lp["wih_b"], lp["b_b"], out_dtype=jnp.bfloat16)
        else:
            gf = dual_matmul_bias(hf_flat, lp["wih_f_top"], hb_flat, lp["wih_f_bot"],
                                  lp["b_f"], out_dtype=jnp.bfloat16)
            gb = dual_matmul_bias(hf_flat, lp["wih_b_top"], hb_flat, lp["wih_b_bot"],
                                  lp["b_b"], out_dtype=jnp.bfloat16)
        gf = pad_time(gf)
        gb = pad_time(gb)

        # Fused bidirectional recurrence (time-blocked, state in VMEM scratch / registers).
        hf, hb = bidir_lstm_layer(gf, gb, lp["whh"], time_block=TB)
        # Slice padded time steps off BEFORE the next projection (their biased gates would
        # otherwise contaminate the backward state of the next layer).
        hf_flat = hf[:T].reshape(T * Bp, Hp)
        hb_flat = hb[:T].reshape(T * Bp, Hp)
        # inter-layer / output dropout: eval mode -> identity

    # Final fc on [h_fwd ; h_bwd] without materializing the concat.
    logits_flat = dual_matmul_bias(hf_flat, params["fc_w_top"],
                                   hb_flat, params["fc_w_bot"], params["fc_b"],
                                   out_dtype=jnp.float32)                        # (T*Bp, V)
    # Batch slice before the transpose (smaller copy), then to (B, T, V).
    logits = logits_flat.reshape(T, Bp, V)[:, :B].transpose(1, 0, 2)
    return logits


if __name__ == "__main__":
    vocab_size = 50
    embedding_dim = 32
    hidden_dim = 32
    num_layers = 2
    dropout_rate = 0.0  # eval-mode identity regardless

    batch, seq = 2, 8

    key = jax.random.PRNGKey(0)
    k_params, k_ids = jax.random.split(key)
    params = init_params(k_params, vocab_size, embedding_dim, hidden_dim, num_layers)
    input_id = jax.random.randint(k_ids, (batch, seq), 0, vocab_size, dtype=jnp.int32)

    fwd = jax.jit(vanilla_lstm_forward)
    out = fwd(params, input_id)
    jax.block_until_ready(out)

    assert out.shape == (batch, seq, vocab_size), out.shape
    assert bool(jnp.all(jnp.isfinite(out))), "non-finite logits"
    print("KERNEL_OK")
</pallas_src>

<mosaic_0001>
module attributes {stable_mosaic.version = 11 : i64} {
  func.func @_matmul_bias_kernel(%arg0: i32, %arg1: i32, %arg2: i32, %arg3: memref<64x128xbf16, #tpu.memory_space<vmem>>, %arg4: memref<128x512xbf16, #tpu.memory_space<vmem>>, %arg5: memref<1x512xf32, #tpu.memory_space<vmem>>, %arg6: memref<64x512xbf16, #tpu.memory_space<vmem>>, %arg7: memref<64x512xf32, #tpu.memory_space<vmem>>) attributes {dimension_semantics = [#tpu.dimension_semantics<parallel>, #tpu.dimension_semantics<parallel>, #tpu.dimension_semantics<arbitrary>], iteration_bounds = array<i64: 1, 1, 1>, scalar_prefetch = 0 : i64, scratch_operands = 1 : i64, tpu.core_type = #tpu.core_type<tc>, window_params = [{transform_indices = @transform_0, window_bounds = array<i64: 64, 128>}, {transform_indices = @transform_1, window_bounds = array<i64: 128, 512>}, {transform_indices = @transform_2, window_bounds = array<i64: 1, 512>}, {transform_indices = @transform_3, window_bounds = array<i64: 64, 512>}]} {
    %c0_i32 = arith.constant 0 : i32
    %0 = arith.cmpi eq, %arg2, %c0_i32 : i32
    %1 = arith.extui %0 : i1 to i32
    %c0_i32_0 = arith.constant 0 : i32
    %2 = arith.cmpi ne, %1, %c0_i32_0 : i32
    scf.if %2 {
      %cst_10 = arith.constant 0.000000e+00 : f32
      %12 = vector.broadcast %cst_10 : f32 to vector<64x512xf32>
      %c0_11 = arith.constant 0 : index
      %c0_12 = arith.constant 0 : index
      %13 = vector.load %arg7[%c0_11, %c0_12] : memref<64x512xf32, #tpu.memory_space<vmem>>, vector<64x512xf32>
      tpu.vector_store %arg7[%c0_11, %c0_12], %12 {strides = array<i32>} : memref<64x512xf32, #tpu.memory_space<vmem>>, vector<64x512xf32>,
    } else {
    }
    %c0 = arith.constant 0 : index
    %c0_1 = arith.constant 0 : index
    %3 = vector.load %arg7[%c0, %c0_1] : memref<64x512xf32, #tpu.memory_space<vmem>>, vector<64x512xf32>
    %c0_2 = arith.constant 0 : index
    %c0_3 = arith.constant 0 : index
    %4 = vector.load %arg3[%c0_2, %c0_3] : memref<64x128xbf16, #tpu.memory_space<vmem>>, vector<64x128xbf16>
    %c0_4 = arith.constant 0 : index
    %c0_5 = arith.constant 0 : index
    %5 = vector.load %arg4[%c0_4, %c0_5] : memref<128x512xbf16, #tpu.memory_space<vmem>>, vector<128x512xbf16>
    %cst = arith.constant dense<0.000000e+00> : vector<64x512xf32>
    %6 = tpu.matmul %4, %5, %cst {dimension_numbers = #tpu.dot_dimension_numbers<[1], [0], [0], [1], [0, 0, 1, 1], [], []>} : vector<64x128xbf16>, vector<128x512xbf16>, vector<64x512xf32> -> vector<64x512xf32>
    %7 = arith.addf %3, %6 : vector<64x512xf32>
    %c0_6 = arith.constant 0 : index
    %c0_7 = arith.constant 0 : index
    %8 = vector.load %arg7[%c0_6, %c0_7] : memref<64x512xf32, #tpu.memory_space<vmem>>, vector<64x512xf32>
    tpu.vector_store %arg7[%c0_6, %c0_7], %7 {strides = array<i32>} : memref<64x512xf32, #tpu.memory_space<vmem>>, vector<64x512xf32>,
    %c0_i32_8 = arith.constant 0 : i32
    %9 = arith.cmpi eq, %arg2, %c0_i32_8 : i32
    %10 = arith.extui %9 : i1 to i32
    %c0_i32_9 = arith.constant 0 : i32
    %11 = arith.cmpi ne, %10, %c0_i32_9 : i32
    scf.if %11 {
      %c0_10 = arith.constant 0 : index
      %c0_11 = arith.constant 0 : index
      %12 = vector.load %arg7[%c0_10, %c0_11] : memref<64x512xf32, #tpu.memory_space<vmem>>, vector<64x512xf32>
      %c0_12 = arith.constant 0 : index
      %c0_13 = arith.constant 0 : index
      %13 = vector.load %arg5[%c0_12, %c0_13] : memref<1x512xf32, #tpu.memory_space<vmem>>, vector<1x512xf32>
      %14 = vector.broadcast %13 : vector<1x512xf32> to vector<64x512xf32>
      %15 = arith.addf %12, %14 : vector<64x512xf32>
      %16 = arith.truncf %15 : vector<64x512xf32> to vector<64x512xbf16>
      %c0_14 = arith.constant 0 : index
      %c0_15 = arith.constant 0 : index
      %17 = vector.load %arg6[%c0_14, %c0_15] : memref<64x512xbf16, #tpu.memory_space<vmem>>, vector<64x512xbf16>
      tpu.vector_store %arg6[%c0_14, %c0_15], %16 {strides = array<i32>} : memref<64x512xbf16, #tpu.memory_space<vmem>>, vector<64x512xbf16>,
    } else {
    }
    return
  }
  func.func @transform_0(%arg0: i32, %arg1: i32, %arg2: i32) -> (i32, i32) {
    %c0_i32 = arith.constant 0 : i32
    return %arg0, %arg2 : i32, i32
  }
  func.func @transform_1(%arg0: i32, %arg1: i32, %arg2: i32) -> (i32, i32) {
    %c0_i32 = arith.constant 0 : i32
    return %arg2, %arg1 : i32, i32
  }
  func.func @transform_2(%arg0: i32, %arg1: i32, %arg2: i32) -> (i32, i32) {
    %c0_i32 = arith.constant 0 : i32
    %c0_i32_0 = arith.constant 0 : i32
    return %c0_i32, %arg1 : i32, i32
  }
  func.func @transform_3(%arg0: i32, %arg1: i32, %arg2: i32) -> (i32, i32) {
    %c0_i32 = arith.constant 0 : i32
    return %arg0, %arg1 : i32, i32
  }
}

module attributes {stable_mosaic.version = 11 : i64} {
  func.func @_dual_matmul_bias_kernel(%arg0: i32, %arg1: i32, %arg2: i32, %arg3: memref<64x128xbf16, #tpu.memory_space<vmem>>, %arg4: memref<128x512xbf16, #tpu.memory_space<vmem>>, %arg5: memref<64x128xbf16, #tpu.memory_space<vmem>>, %arg6: memref<128x512xbf16, #tpu.memory_space<vmem>>, %arg7: memref<1x512xf32, #tpu.memory_space<vmem>>, %arg8: memref<64x512xbf16, #tpu.memory_space<vmem>>, %arg9: memref<64x512xf32, #tpu.memory_space<vmem>>) attributes {dimension_semantics = [#tpu.dimension_semantics<parallel>, #tpu.dimension_semantics<parallel>, #tpu.dimension_semantics<arbitrary>], iteration_bounds = array<i64: 1, 1, 1>, scalar_prefetch = 0 : i64, scratch_operands = 1 : i64, tpu.core_type = #tpu.core_type<tc>, window_params = [{transform_indices = @transform_0, window_bounds = array<i64: 64, 128>}, {transform_indices = @transform_1, window_bounds = array<i64: 128, 512>}, {transform_indices = @transform_2, window_bounds = array<i64: 64, 128>}, {transform_indices = @transform_3, window_bounds = array<i64: 128, 512>}, {transform_indices = @transform_4, window_bounds = array<i64: 1, 512>}, {transform_indices = @transform_5, window_bounds = array<i64: 64, 512>}]} {
    %c0_i32 = arith.constant 0 : i32
    %0 = arith.cmpi eq, %arg2, %c0_i32 : i32
    %1 = arith.extui %0 : i1 to i32
    %c0_i32_0 = arith.constant 0 : i32
    %2 = arith.cmpi ne, %1, %c0_i32_0 : i32
    scf.if %2 {
      %cst_15 = arith.constant 0.000000e+00 : f32
      %16 = vector.broadcast %cst_15 : f32 to vector<64x512xf32>
      %c0_16 = arith.constant 0 : index
      %c0_17 = arith.constant 0 : index
      %17 = vector.load %arg9[%c0_16, %c0_17] : memref<64x512xf32, #tpu.memory_space<vmem>>, vector<64x512xf32>
      tpu.vector_store %arg9[%c0_16, %c0_17], %16 {strides = array<i32>} : memref<64x512xf32, #tpu.memory_space<vmem>>, vector<64x512xf32>,
    } else {
    }
    %c0 = arith.constant 0 : index
    %c0_1 = arith.constant 0 : index
    %3 = vector.load %arg9[%c0, %c0_1] : memref<64x512xf32, #tpu.memory_space<vmem>>, vector<64x512xf32>
    %c0_2 = arith.constant 0 : index
    %c0_3 = arith.constant 0 : index
    %4 = vector.load %arg3[%c0_2, %c0_3] : memref<64x128xbf16, #tpu.memory_space<vmem>>, vector<64x128xbf16>
    %c0_4 = arith.constant 0 : index
    %c0_5 = arith.constant 0 : index
    %5 = vector.load %arg4[%c0_4, %c0_5] : memref<128x512xbf16, #tpu.memory_space<vmem>>, vector<128x512xbf16>
    %cst = arith.constant dense<0.000000e+00> : vector<64x512xf32>
    %6 = tpu.matmul %4, %5, %cst {dimension_numbers = #tpu.dot_dimension_numbers<[1], [0], [0], [1], [0, 0, 1, 1], [], []>} : vector<64x128xbf16>, vector<128x512xbf16>, vector<64x512xf32> -> vector<64x512xf32>
    %c0_6 = arith.constant 0 : index
    %c0_7 = arith.constant 0 : index
    %7 = vector.load %arg5[%c0_6, %c0_7] : memref<64x128xbf16, #tpu.memory_space<vmem>>, vector<64x128xbf16>
    %c0_8 = arith.constant 0 : index
    %c0_9 = arith.constant 0 : index
    %8 = vector.load %arg6[%c0_8, %c0_9] : memref<128x512xbf16, #tpu.memory_space<vmem>>, vector<128x512xbf16>
    %cst_10 = arith.constant dense<0.000000e+00> : vector<64x512xf32>
    %9 = tpu.matmul %7, %8, %cst_10 {dimension_numbers = #tpu.dot_dimension_numbers<[1], [0], [0], [1], [0, 0, 1, 1], [], []>} : vector<64x128xbf16>, vector<128x512xbf16>, vector<64x512xf32> -> vector<64x512xf32>
    %10 = arith.addf %6, %9 : vector<64x512xf32>
    %11 = arith.addf %3, %10 : vector<64x512xf32>
    %c0_11 = arith.constant 0 : index
    %c0_12 = arith.constant 0 : index
    %12 = vector.load %arg9[%c0_11, %c0_12] : memref<64x512xf32, #tpu.memory_space<vmem>>, vector<64x512xf32>
    tpu.vector_store %arg9[%c0_11, %c0_12], %11 {strides = array<i32>} : memref<64x512xf32, #tpu.memory_space<vmem>>, vector<64x512xf32>,
    %c0_i32_13 = arith.constant 0 : i32
    %13 = arith.cmpi eq, %arg2, %c0_i32_13 : i32
    %14 = arith.extui %13 : i1 to i32
    %c0_i32_14 = arith.constant 0 : i32
    %15 = arith.cmpi ne, %14, %c0_i32_14 : i32
    scf.if %15 {
      %c0_15 = arith.constant 0 : index
      %c0_16 = arith.constant 0 : index
      %16 = vector.load %arg9[%c0_15, %c0_16] : memref<64x512xf32, #tpu.memory_space<vmem>>, vector<64x512xf32>
      %c0_17 = arith.constant 0 : index
      %c0_18 = arith.constant 0 : index
      %17 = vector.load %arg7[%c0_17, %c0_18] : memref<1x512xf32, #tpu.memory_space<vmem>>, vector<1x512xf32>
      %18 = vector.broadcast %17 : vector<1x512xf32> to vector<64x512xf32>
      %19 = arith.addf %16, %18 : vector<64x512xf32>
      %20 = arith.truncf %19 : vector<64x512xf32> to vector<64x512xbf16>
      %c0_19 = arith.constant 0 : index
      %c0_20 = arith.constant 0 : index
      %21 = vector.load %arg8[%c0_19, %c0_20] : memref<64x512xbf16, #tpu.memory_space<vmem>>, vector<64x512xbf16>
      tpu.vector_store %arg8[%c0_19, %c0_20], %20 {strides = array<i32>} : memref<64x512xbf16, #tpu.memory_space<vmem>>, vector<64x512xbf16>,
    } else {
    }
    return
  }
  func.func @transform_0(%arg0: i32, %arg1: i32, %arg2: i32) -> (i32, i32) {
    %c0_i32 = arith.constant 0 : i32
    return %arg0, %arg2 : i32, i32
  }
  func.func @transform_1(%arg0: i32, %arg1: i32, %arg2: i32) -> (i32, i32) {
    %c0_i32 = arith.constant 0 : i32
    return %arg2, %arg1 : i32, i32
  }
  func.func @transform_2(%arg0: i32, %arg1: i32, %arg2: i32) -> (i32, i32) {
    %c0_i32 = arith.constant 0 : i32
    return %arg0, %arg2 : i32, i32
  }
  func.func @transform_3(%arg0: i32, %arg1: i32, %arg2: i32) -> (i32, i32) {
    %c0_i32 = arith.constant 0 : i32
    return %arg2, %arg1 : i32, i32
  }
  func.func @transform_4(%arg0: i32, %arg1: i32, %arg2: i32) -> (i32, i32) {
    %c0_i32 = arith.constant 0 : i32
    %c0_i32_0 = arith.constant 0 : i32
    return %c0_i32, %arg1 : i32, i32
  }
  func.func @transform_5(%arg0: i32, %arg1: i32, %arg2: i32) -> (i32, i32) {
    %c0_i32 = arith.constant 0 : i32
    return %arg0, %arg1 : i32, i32
  }
}

module attributes {stable_mosaic.version = 11 : i64} {
  func.func @bidir_lstm_kernel(%arg0: i32, %arg1: memref<8x8x512xbf16, #tpu.memory_space<vmem>>, %arg2: memref<8x8x512xbf16, #tpu.memory_space<vmem>>, %arg3: memref<2x128x512xbf16, #tpu.memory_space<vmem>>, %arg4: memref<8x8x128xbf16, #tpu.memory_space<vmem>>, %arg5: memref<8x8x128xbf16, #tpu.memory_space<vmem>>, %arg6: memref<2x8x128xf32, #tpu.memory_space<vmem>>, %arg7: memref<2x8x128xf32, #tpu.memory_space<vmem>>) attributes {dimension_semantics = [#tpu.dimension_semantics<arbitrary>], iteration_bounds = array<i64: 1>, scalar_prefetch = 0 : i64, scratch_operands = 2 : i64, tpu.core_type = #tpu.core_type<tc>, window_params = [{transform_indices = @transform_0, window_bounds = array<i64: 8, 8, 512>}, {transform_indices = @transform_1, window_bounds = array<i64: 8, 8, 512>}, {pipeline_mode = #tpu.pipeline_mode<synchronous>, transform_indices = @transform_2, window_bounds = array<i64: 2, 128, 512>}, {transform_indices = @transform_3, window_bounds = array<i64: 8, 8, 128>}, {transform_indices = @transform_4, window_bounds = array<i64: 8, 8, 128>}]} {
    %c0_i32 = arith.constant 0 : i32
    %0 = arith.cmpi eq, %arg0, %c0_i32 : i32
    %1 = arith.extui %0 : i1 to i32
    %c0_i32_0 = arith.constant 0 : i32
    %2 = arith.cmpi ne, %1, %c0_i32_0 : i32
    scf.if %2 {
      %cst_311 = arith.constant 0.000000e+00 : f32
      %759 = vector.broadcast %cst_311 : f32 to vector<2x8x128xf32>
      %c0_312 = arith.constant 0 : index
      %c0_313 = arith.constant 0 : index
      %c0_314 = arith.constant 0 : index
      %760 = vector.load %arg6[%c0_312, %c0_313, %c0_314] : memref<2x8x128xf32, #tpu.memory_space<vmem>>, vector<2x8x128xf32>
      tpu.vector_store %arg6[%c0_312, %c0_313, %c0_314], %759 {strides = array<i32>} : memref<2x8x128xf32, #tpu.memory_space<vmem>>, vector<2x8x128xf32>,
      %cst_315 = arith.constant 0.000000e+00 : f32
      %761 = vector.broadcast %cst_315 : f32 to vector<2x8x128xf32>
      %c0_316 = arith.constant 0 : index
      %c0_317 = arith.constant 0 : index
      %c0_318 = arith.constant 0 : index
      %762 = vector.load %arg7[%c0_316, %c0_317, %c0_318] : memref<2x8x128xf32, #tpu.memory_space<vmem>>, vector<2x8x128xf32>
      tpu.vector_store %arg7[%c0_316, %c0_317, %c0_318], %761 {strides = array<i32>} : memref<2x8x128xf32, #tpu.memory_space<vmem>>, vector<2x8x128xf32>,
    } else {
    }
    %c0 = arith.constant 0 : index
    %c0_1 = arith.constant 0 : index
    %c0_2 = arith.constant 0 : index
    %3 = vector.load %arg6[%c0, %c0_1, %c0_2] : memref<2x8x128xf32, #tpu.memory_space<vmem>>, vector<1x8x128xf32>
    %4 = vector.shape_cast %3 : vector<1x8x128xf32> to vector<8x128xf32>
    %c0_3 = arith.constant 0 : index
    %c0_4 = arith.constant 0 : index
    %c0_5 = arith.constant 0 : index
    %5 = vector.load %arg7[%c0_3, %c0_4, %c0_5] : memref<2x8x128xf32, #tpu.memory_space<vmem>>, vector<1x8x128xf32>
    %6 = vector.shape_cast %5 : vector<1x8x128xf32> to vector<8x128xf32>
    %c1 = arith.constant 1 : index
    %c0_6 = arith.constant 0 : index
    %c0_7 = arith.constant 0 : index
    %7 = vector.load %arg6[%c1, %c0_6, %c0_7] : memref<2x8x128xf32, #tpu.memory_space<vmem>>, vector<1x8x128xf32>
    %8 = vector.shape_cast %7 : vector<1x8x128xf32> to vector<8x128xf32>
    %c1_8 = arith.constant 1 : index
    %c0_9 = arith.constant 0 : index
    %c0_10 = arith.constant 0 : index
    %9 = vector.load %arg7[%c1_8, %c0_9, %c0_10] : memref<2x8x128xf32, #tpu.memory_space<vmem>>, vector<1x8x128xf32>
    %10 = vector.shape_cast %9 : vector<1x8x128xf32> to vector<8x128xf32>
    %c0_i32_11 = arith.constant 0 : i32
    %11 = arith.index_cast %c0_i32_11 : i32 to index
    %c0_12 = arith.constant 0 : index
    %c0_13 = arith.constant 0 : index
    %12 = vector.load %arg1[%11, %c0_12, %c0_13] : memref<8x8x512xbf16, #tpu.memory_space<vmem>>, vector<1x8x512xbf16>
    %13 = vector.shape_cast %12 : vector<1x8x512xbf16> to vector<8x512xbf16>
    %14 = arith.extf %13 : vector<8x512xbf16> to vector<8x512xf32>
    %15 = arith.truncf %4 : vector<8x128xf32> to vector<8x128xbf16>
    %c0_14 = arith.constant 0 : index
    %c0_15 = arith.constant 0 : index
    %c0_16 = arith.constant 0 : index
    %16 = vector.load %arg3[%c0_14, %c0_15, %c0_16] : memref<2x128x512xbf16, #tpu.memory_space<vmem>>, vector<1x128x512xbf16>
    %17 = vector.shape_cast %16 : vector<1x128x512xbf16> to vector<128x512xbf16>
    %cst = arith.constant dense<0.000000e+00> : vector<8x512xf32>
    %18 = tpu.matmul %15, %17, %cst {dimension_numbers = #tpu.dot_dimension_numbers<[1], [0], [0], [1], [0, 0, 1, 1], [], []>} : vector<8x128xbf16>, vector<128x512xbf16>, vector<8x512xf32> -> vector<8x512xf32>
    %19 = arith.addf %14, %18 : vector<8x512xf32>
    %20 = vector.extract_strided_slice %19 {offsets = [0, 0], sizes = [8, 128], strides = [1, 1]} : vector<8x512xf32> to vector<8x128xf32>
    %cst_17 = arith.constant 5.000000e-01 : f32
    %21 = vector.broadcast %cst_17 : f32 to vector<8x128xf32>
    %22 = arith.mulf %21, %20 : vector<8x128xf32>
    %23 = math.tanh %22 : vector<8x128xf32>
    %cst_18 = arith.constant 5.000000e-01 : f32
    %24 = vector.broadcast %cst_18 : f32 to vector<8x128xf32>
    %25 = arith.mulf %24, %23 : vector<8x128xf32>
    %cst_19 = arith.constant 5.000000e-01 : f32
    %26 = vector.broadcast %cst_19 : f32 to vector<8x128xf32>
    %27 = arith.addf %25, %26 : vector<8x128xf32>
    %28 = vector.extract_strided_slice %19 {offsets = [0, 128], sizes = [8, 128], strides = [1, 1]} : vector<8x512xf32> to vector<8x128xf32>
    %cst_20 = arith.constant 5.000000e-01 : f32
    %29 = vector.broadcast %cst_20 : f32 to vector<8x128xf32>
    %30 = arith.mulf %29, %28 : vector<8x128xf32>
    %31 = math.tanh %30 : vector<8x128xf32>
    %cst_21 = arith.constant 5.000000e-01 : f32
    %32 = vector.broadcast %cst_21 : f32 to vector<8x128xf32>
    %33 = arith.mulf %32, %31 : vector<8x128xf32>
    %cst_22 = arith.constant 5.000000e-01 : f32
    %34 = vector.broadcast %cst_22 : f32 to vector<8x128xf32>
    %35 = arith.addf %33, %34 : vector<8x128xf32>
    %36 = vector.extract_strided_slice %19 {offsets = [0, 256], sizes = [8, 128], strides = [1, 1]} : vector<8x512xf32> to vector<8x128xf32>
    %37 = math.tanh %36 : vector<8x128xf32>
    %38 = vector.extract_strided_slice %19 {offsets = [0, 384], sizes = [8, 128], strides = [1, 1]} : vector<8x512xf32> to vector<8x128xf32>
    %cst_23 = arith.constant 5.000000e-01 : f32
    %39 = vector.broadcast %cst_23 : f32 to vector<8x128xf32>
    %40 = arith.mulf %39, %38 : vector<8x128xf32>
    %41 = math.tanh %40 : vector<8x128xf32>
    %cst_24 = arith.constant 5.000000e-01 : f32
    %42 = vector.broadcast %cst_24 : f32 to vector<8x128xf32>
    %43 = arith.mulf %42, %41 : vector<8x128xf32>
    %cst_25 = arith.constant 5.000000e-01 : f32
    %44 = vector.broadcast %cst_25 : f32 to vector<8x128xf32>
    %45 = arith.addf %43, %44 : vector<8x128xf32>
    %46 = arith.mulf %35, %6 : vector<8x128xf32>
    %47 = arith.mulf %27, %37 : vector<8x128xf32>
    %48 = arith.addf %46, %47 : vector<8x128xf32>
    %49 = math.tanh %48 : vector<8x128xf32>
    %50 = arith.mulf %45, %49 : vector<8x128xf32>
    %51 = arith.truncf %50 : vector<8x128xf32> to vector<8x128xbf16>
    %52 = arith.index_cast %c0_i32_11 : i32 to index
    %c0_26 = arith.constant 0 : index
    %c0_27 = arith.constant 0 : index
    %53 = vector.load %arg4[%52, %c0_26, %c0_27] : memref<8x8x128xbf16, #tpu.memory_space<vmem>>, vector<1x8x128xbf16>
    %54 = vector.shape_cast %53 : vector<1x8x128xbf16> to vector<8x128xbf16>
    %55 = vector.shape_cast %51 : vector<8x128xbf16> to vector<1x8x128xbf16>
    tpu.vector_store %arg4[%52, %c0_26, %c0_27], %55 {strides = array<i32>} : memref<8x8x128xbf16, #tpu.memory_space<vmem>>, vector<1x8x128xbf16>,
    %c7_i32 = arith.constant 7 : i32
    %56 = arith.subi %c7_i32, %c0_i32_11 : i32
    %57 = arith.index_cast %56 : i32 to index
    %c0_28 = arith.constant 0 : index
    %c0_29 = arith.constant 0 : index
    %58 = vector.load %arg2[%57, %c0_28, %c0_29] : memref<8x8x512xbf16, #tpu.memory_space<vmem>>, vector<1x8x512xbf16>
    %59 = vector.shape_cast %58 : vector<1x8x512xbf16> to vector<8x512xbf16>
    %60 = arith.extf %59 : vector<8x512xbf16> to vector<8x512xf32>
    %61 = arith.truncf %8 : vector<8x128xf32> to vector<8x128xbf16>
    %c1_30 = arith.constant 1 : index
    %c0_31 = arith.constant 0 : index
    %c0_32 = arith.constant 0 : index
    %62 = vector.load %arg3[%c1_30, %c0_31, %c0_32] : memref<2x128x512xbf16, #tpu.memory_space<vmem>>, vector<1x128x512xbf16>
    %63 = vector.shape_cast %62 : vector<1x128x512xbf16> to vector<128x512xbf16>
    %cst_33 = arith.constant dense<0.000000e+00> : vector<8x512xf32>
    %64 = tpu.matmul %61, %63, %cst_33 {dimension_numbers = #tpu.dot_dimension_numbers<[1], [0], [0], [1], [0, 0, 1, 1], [], []>} : vector<8x128xbf16>, vector<128x512xbf16>, vector<8x512xf32> -> vector<8x512xf32>
    %65 = arith.addf %60, %64 : vector<8x512xf32>
    %66 = vector.extract_strided_slice %65 {offsets = [0, 0], sizes = [8, 128], strides = [1, 1]} : vector<8x512xf32> to vector<8x128xf32>
    %cst_34 = arith.constant 5.000000e-01 : f32
    %67 = vector.broadcast %cst_34 : f32 to vector<8x128xf32>
    %68 = arith.mulf %67, %66 : vector<8x128xf32>
    %69 = math.tanh %68 : vector<8x128xf32>
    %cst_35 = arith.constant 5.000000e-01 : f32
    %70 = vector.broadcast %cst_35 : f32 to vector<8x128xf32>
    %71 = arith.mulf %70, %69 : vector<8x128xf32>
    %cst_36 = arith.constant 5.000000e-01 : f32
    %72 = vector.broadcast %cst_36 : f32 to vector<8x128xf32>
    %73 = arith.addf %71, %72 : vector<8x128xf32>
    %74 = vector.extract_strided_slice %65 {offsets = [0, 128], sizes = [8, 128], strides = [1, 1]} : vector<8x512xf32> to vector<8x128xf32>
    %cst_37 = arith.constant 5.000000e-01 : f32
    %75 = vector.broadcast %cst_37 : f32 to vector<8x128xf32>
    %76 = arith.mulf %75, %74 : vector<8x128xf32>
    %77 = math.tanh %76 : vector<8x128xf32>
    %cst_38 = arith.constant 5.000000e-01 : f32
    %78 = vector.broadcast %cst_38 : f32 to vector<8x128xf32>
    %79 = arith.mulf %78, %77 : vector<8x128xf32>
    %cst_39 = arith.constant 5.000000e-01 : f32
    %80 = vector.broadcast %cst_39 : f32 to vector<8x128xf32>
    %81 = arith.addf %79, %80 : vector<8x128xf32>
    %82 = vector.extract_strided_slice %65 {offsets = [0, 256], sizes = [8, 128], strides = [1, 1]} : vector<8x512xf32> to vector<8x128xf32>
    %83 = math.tanh %82 : vector<8x128xf32>
    %84 = vector.extract_strided_slice %65 {offsets = [0, 384], sizes = [8, 128], strides = [1, 1]} : vector<8x512xf32> to vector<8x128xf32>
    %cst_40 = arith.constant 5.000000e-01 : f32
    %85 = vector.broadcast %cst_40 : f32 to vector<8x128xf32>
    %86 = arith.mulf %85, %84 : vector<8x128xf32>
    %87 = math.tanh %86 : vector<8x128xf32>
    %cst_41 = arith.constant 5.000000e-01 : f32
    %88 = vector.broadcast %cst_41 : f32 to vector<8x128xf32>
    %89 = arith.mulf %88, %87 : vector<8x128xf32>
    %cst_42 = arith.constant 5.000000e-01 : f32
    %90 = vector.broadcast %cst_42 : f32 to vector<8x128xf32>
    %91 = arith.addf %89, %90 : vector<8x128xf32>
    %92 = arith.mulf %81, %10 : vector<8x128xf32>
    %93 = arith.mulf %73, %83 : vector<8x128xf32>
    %94 = arith.addf %92, %93 : vector<8x128xf32>
    %95 = math.tanh %94 : vector<8x128xf32>
    %96 = arith.mulf %91, %95 : vector<8x128xf32>
    %97 = arith.truncf %96 : vector<8x128xf32> to vector<8x128xbf16>
    %c7_i32_43 = arith.constant 7 : i32
    %98 = arith.subi %c7_i32_43, %c0_i32_11 : i32
    %99 = arith.index_cast %98 : i32 to index
    %c0_44 = arith.constant 0 : index
    %c0_45 = arith.constant 0 : index
    %100 = vector.load %arg5[%99, %c0_44, %c0_45] : memref<8x8x128xbf16, #tpu.memory_space<vmem>>, vector<1x8x128xbf16>
    %101 = vector.shape_cast %100 : vector<1x8x128xbf16> to vector<8x128xbf16>
    %102 = vector.shape_cast %97 : vector<8x128xbf16> to vector<1x8x128xbf16>
    tpu.vector_store %arg5[%99, %c0_44, %c0_45], %102 {strides = array<i32>} : memref<8x8x128xbf16, #tpu.memory_space<vmem>>, vector<1x8x128xbf16>,
    %c1_i32 = arith.constant 1 : i32
    %103 = arith.index_cast %c1_i32 : i32 to index
    %c0_46 = arith.constant 0 : index
    %c0_47 = arith.constant 0 : index
    %104 = vector.load %arg1[%103, %c0_46, %c0_47] : memref<8x8x512xbf16, #tpu.memory_space<vmem>>, vector<1x8x512xbf16>
    %105 = vector.shape_cast %104 : vector<1x8x512xbf16> to vector<8x512xbf16>
    %106 = arith.extf %105 : vector<8x512xbf16> to vector<8x512xf32>
    %107 = arith.truncf %50 : vector<8x128xf32> to vector<8x128xbf16>
    %c0_48 = arith.constant 0 : index
    %c0_49 = arith.constant 0 : index
    %c0_50 = arith.constant 0 : index
    %108 = vector.load %arg3[%c0_48, %c0_49, %c0_50] : memref<2x128x512xbf16, #tpu.memory_space<vmem>>, vector<1x128x512xbf16>
    %109 = vector.shape_cast %108 : vector<1x128x512xbf16> to vector<128x512xbf16>
    %cst_51 = arith.constant dense<0.000000e+00> : vector<8x512xf32>
    %110 = tpu.matmul %107, %109, %cst_51 {dimension_numbers = #tpu.dot_dimension_numbers<[1], [0], [0], [1], [0, 0, 1, 1], [], []>} : vector<8x128xbf16>, vector<128x512xbf16>, vector<8x512xf32> -> vector<8x512xf32>
    %111 = arith.addf %106, %110 : vector<8x512xf32>
    %112 = vector.extract_strided_slice %111 {offsets = [0, 0], sizes = [8, 128], strides = [1, 1]} : vector<8x512xf32> to vector<8x128xf32>
    %cst_52 = arith.constant 5.000000e-01 : f32
    %113 = vector.broadcast %cst_52 : f32 to vector<8x128xf32>
    %114 = arith.mulf %113, %112 : vector<8x128xf32>
    %115 = math.tanh %114 : vector<8x128xf32>
    %cst_53 = arith.constant 5.000000e-01 : f32
    %116 = vector.broadcast %cst_53 : f32 to vector<8x128xf32>
    %117 = arith.mulf %116, %115 : vector<8x128xf32>
    %cst_54 = arith.constant 5.000000e-01 : f32
    %118 = vector.broadcast %cst_54 : f32 to vector<8x128xf32>
    %119 = arith.addf %117, %118 : vector<8x128xf32>
    %120 = vector.extract_strided_slice %111 {offsets = [0, 128], sizes = [8, 128], strides = [1, 1]} : vector<8x512xf32> to vector<8x128xf32>
    %cst_55 = arith.constant 5.000000e-01 : f32
    %121 = vector.broadcast %cst_55 : f32 to vector<8x128xf32>
    %122 = arith.mulf %121, %120 : vector<8x128xf32>
    %123 = math.tanh %122 : vector<8x128xf32>
    %cst_56 = arith.constant 5.000000e-01 : f32
    %124 = vector.broadcast %cst_56 : f32 to vector<8x128xf32>
    %125 = arith.mulf %124, %123 : vector<8x128xf32>
    %cst_57 = arith.constant 5.000000e-01 : f32
    %126 = vector.broadcast %cst_57 : f32 to vector<8x128xf32>
    %127 = arith.addf %125, %126 : vector<8x128xf32>
    %128 = vector.extract_strided_slice %111 {offsets = [0, 256], sizes = [8, 128], strides = [1, 1]} : vector<8x512xf32> to vector<8x128xf32>
    %129 = math.tanh %128 : vector<8x128xf32>
    %130 = vector.extract_strided_slice %111 {offsets = [0, 384], sizes = [8, 128], strides = [1, 1]} : vector<8x512xf32> to vector<8x128xf32>
    %cst_58 = arith.constant 5.000000e-01 : f32
    %131 = vector.broadcast %cst_58 : f32 to vector<8x128xf32>
    %132 = arith.mulf %131, %130 : vector<8x128xf32>
    %133 = math.tanh %132 : vector<8x128xf32>
    %cst_59 = arith.constant 5.000000e-01 : f32
    %134 = vector.broadcast %cst_59 : f32 to vector<8x128xf32>
    %135 = arith.mulf %134, %133 : vector<8x128xf32>
    %cst_60 = arith.constant 5.000000e-01 : f32
    %136 = vector.broadcast %cst_60 : f32 to vector<8x128xf32>
    %137 = arith.addf %135, %136 : vector<8x128xf32>
    %138 = arith.mulf %127, %48 : vector<8x128xf32>
    %139 = arith.mulf %119, %129 : vector<8x128xf32>
    %140 = arith.addf %138, %139 : vector<8x128xf32>
    %141 = math.tanh %140 : vector<8x128xf32>
    %142 = arith.mulf %137, %141 : vector<8x128xf32>
    %143 = arith.truncf %142 : vector<8x128xf32> to vector<8x128xbf16>
    %144 = arith.index_cast %c1_i32 : i32 to index
    %c0_61 = arith.constant 0 : index
    %c0_62 = arith.constant 0 : index
    %145 = vector.load %arg4[%144, %c0_61, %c0_62] : memref<8x8x128xbf16, #tpu.memory_space<vmem>>, vector<1x8x128xbf16>
    %146 = vector.shape_cast %145 : vector<1x8x128xbf16> to vector<8x128xbf16>
    %147 = vector.shape_cast %143 : vector<8x128xbf16> to vector<1x8x128xbf16>
    tpu.vector_store %arg4[%144, %c0_61, %c0_62], %147 {strides = array<i32>} : memref<8x8x128xbf16, #tpu.memory_space<vmem>>, vector<1x8x128xbf16>,
    %c7_i32_63 = arith.constant 7 : i32
    %148 = arith.subi %c7_i32_63, %c1_i32 : i32
    %149 = arith.index_cast %148 : i32 to index
    %c0_64 = arith.constant 0 : index
    %c0_65 = arith.constant 0 : index
    %150 = vector.load %arg2[%149, %c0_64, %c0_65] : memref<8x8x512xbf16, #tpu.memory_space<vmem>>, vector<1x8x512xbf16>
    %151 = vector.shape_cast %150 : vector<1x8x512xbf16> to vector<8x512xbf16>
    %152 = arith.extf %151 : vector<8x512xbf16> to vector<8x512xf32>
    %153 = arith.truncf %96 : vector<8x128xf32> to vector<8x128xbf16>
    %c1_66 = arith.constant 1 : index
    %c0_67 = arith.constant 0 : index
    %c0_68 = arith.constant 0 : index
    %154 = vector.load %arg3[%c1_66, %c0_67, %c0_68] : memref<2x128x512xbf16, #tpu.memory_space<vmem>>, vector<1x128x512xbf16>
    %155 = vector.shape_cast %154 : vector<1x128x512xbf16> to vector<128x512xbf16>
    %cst_69 = arith.constant dense<0.000000e+00> : vector<8x512xf32>
    %156 = tpu.matmul %153, %155, %cst_69 {dimension_numbers = #tpu.dot_dimension_numbers<[1], [0], [0], [1], [0, 0, 1, 1], [], []>} : vector<8x128xbf16>, vector<128x512xbf16>, vector<8x512xf32> -> vector<8x512xf32>
    %157 = arith.addf %152, %156 : vector<8x512xf32>
    %158 = vector.extract_strided_slice %157 {offsets = [0, 0], sizes = [8, 128], strides = [1, 1]} : vector<8x512xf32> to vector<8x128xf32>
    %cst_70 = arith.constant 5.000000e-01 : f32
    %159 = vector.broadcast %cst_70 : f32 to vector<8x128xf32>
    %160 = arith.mulf %159, %158 : vector<8x128xf32>
    %161 = math.tanh %160 : vector<8x128xf32>
    %cst_71 = arith.constant 5.000000e-01 : f32
    %162 = vector.broadcast %cst_71 : f32 to vector<8x128xf32>
    %163 = arith.mulf %162, %161 : vector<8x128xf32>
    %cst_72 = arith.constant 5.000000e-01 : f32
    %164 = vector.broadcast %cst_72 : f32 to vector<8x128xf32>
    %165 = arith.addf %163, %164 : vector<8x128xf32>
    %166 = vector.extract_strided_slice %157 {offsets = [0, 128], sizes = [8, 128], strides = [1, 1]} : vector<8x512xf32> to vector<8x128xf32>
    %cst_73 = arith.constant 5.000000e-01 : f32
    %167 = vector.broadcast %cst_73 : f32 to vector<8x128xf32>
    %168 = arith.mulf %167, %166 : vector<8x128xf32>
    %169 = math.tanh %168 : vector<8x128xf32>
    %cst_74 = arith.constant 5.000000e-01 : f32
    %170 = vector.broadcast %cst_74 : f32 to vector<8x128xf32>
    %171 = arith.mulf %170, %169 : vector<8x128xf32>
    %cst_75 = arith.constant 5.000000e-01 : f32
    %172 = vector.broadcast %cst_75 : f32 to vector<8x128xf32>
    %173 = arith.addf %171, %172 : vector<8x128xf32>
    %174 = vector.extract_strided_slice %157 {offsets = [0, 256], sizes = [8, 128], strides = [1, 1]} : vector<8x512xf32> to vector<8x128xf32>
    %175 = math.tanh %174 : vector<8x128xf32>
    %176 = vector.extract_strided_slice %157 {offsets = [0, 384], sizes = [8, 128], strides = [1, 1]} : vector<8x512xf32> to vector<8x128xf32>
    %cst_76 = arith.constant 5.000000e-01 : f32
    %177 = vector.broadcast %cst_76 : f32 to vector<8x128xf32>
    %178 = arith.mulf %177, %176 : vector<8x128xf32>
    %179 = math.tanh %178 : vector<8x128xf32>
    %cst_77 = arith.constant 5.000000e-01 : f32
    %180 = vector.broadcast %cst_77 : f32 to vector<8x128xf32>
    %181 = arith.mulf %180, %179 : vector<8x128xf32>
    %cst_78 = arith.constant 5.000000e-01 : f32
    %182 = vector.broadcast %cst_78 : f32 to vector<8x128xf32>
    %183 = arith.addf %181, %182 : vector<8x128xf32>
    %184 = arith.mulf %173, %94 : vector<8x128xf32>
    %185 = arith.mulf %165, %175 : vector<8x128xf32>
    %186 = arith.addf %184, %185 : vector<8x128xf32>
    %187 = math.tanh %186 : vector<8x128xf32>
    %188 = arith.mulf %183, %187 : vector<8x128xf32>
    %189 = arith.truncf %188 : vector<8x128xf32> to vector<8x128xbf16>
    %c7_i32_79 = arith.constant 7 : i32
    %190 = arith.subi %c7_i32_79, %c1_i32 : i32
    %191 = arith.index_cast %190 : i32 to index
    %c0_80 = arith.constant 0 : index
    %c0_81 = arith.constant 0 : index
    %192 = vector.load %arg5[%191, %c0_80, %c0_81] : memref<8x8x128xbf16, #tpu.memory_space<vmem>>, vector<1x8x128xbf16>
    %193 = vector.shape_cast %192 : vector<1x8x128xbf16> to vector<8x128xbf16>
    %194 = vector.shape_cast %189 : vector<8x128xbf16> to vector<1x8x128xbf16>
    tpu.vector_store %arg5[%191, %c0_80, %c0_81], %194 {strides = array<i32>} : memref<8x8x128xbf16, #tpu.memory_space<vmem>>, vector<1x8x128xbf16>,
    %c2_i32 = arith.constant 2 : i32
    %195 = arith.index_cast %c2_i32 : i32 to index
    %c0_82 = arith.constant 0 : index
    %c0_83 = arith.constant 0 : index
    %196 = vector.load %arg1[%195, %c0_82, %c0_83] : memref<8x8x512xbf16, #tpu.memory_space<vmem>>, vector<1x8x512xbf16>
    %197 = vector.shape_cast %196 : vector<1x8x512xbf16> to vector<8x512xbf16>
    %198 = arith.extf %197 : vector<8x512xbf16> to vector<8x512xf32>
    %199 = arith.truncf %142 : vector<8x128xf32> to vector<8x128xbf16>
    %c0_84 = arith.constant 0 : index
    %c0_85 = arith.constant 0 : index
    %c0_86 = arith.constant 0 : index
    %200 = vector.load %arg3[%c0_84, %c0_85, %c0_86] : memref<2x128x512xbf16, #tpu.memory_space<vmem>>, vector<1x128x512xbf16>
    %201 = vector.shape_cast %200 : vector<1x128x512xbf16> to vector<128x512xbf16>
    %cst_87 = arith.constant dense<0.000000e+00> : vector<8x512xf32>
    %202 = tpu.matmul %199, %201, %cst_87 {dimension_numbers = #tpu.dot_dimension_numbers<[1], [0], [0], [1], [0, 0, 1, 1], [], []>} : vector<8x128xbf16>, vector<128x512xbf16>, vector<8x512xf32> -> vector<8x512xf32>
    %203 = arith.addf %198, %202 : vector<8x512xf32>
    %204 = vector.extract_strided_slice %203 {offsets = [0, 0], sizes = [8, 128], strides = [1, 1]} : vector<8x512xf32> to vector<8x128xf32>
    %cst_88 = arith.constant 5.000000e-01 : f32
    %205 = vector.broadcast %cst_88 : f32 to vector<8x128xf32>
    %206 = arith.mulf %205, %204 : vector<8x128xf32>
    %207 = math.tanh %206 : vector<8x128xf32>
    %cst_89 = arith.constant 5.000000e-01 : f32
    %208 = vector.broadcast %cst_89 : f32 to vector<8x128xf32>
    %209 = arith.mulf %208, %207 : vector<8x128xf32>
    %cst_90 = arith.constant 5.000000e-01 : f32
    %210 = vector.broadcast %cst_90 : f32 to vector<8x128xf32>
    %211 = arith.addf %209, %210 : vector<8x128xf32>
    %212 = vector.extract_strided_slice %203 {offsets = [0, 128], sizes = [8, 128], strides = [1, 1]} : vector<8x512xf32> to vector<8x128xf32>
    %cst_91 = arith.constant 5.000000e-01 : f32
    %213 = vector.broadcast %cst_91 : f32 to vector<8x128xf32>
    %214 = arith.mulf %213, %212 : vector<8x128xf32>
    %215 = math.tanh %214 : vector<8x128xf32>
    %cst_92 = arith.constant 5.000000e-01 : f32
    %216 = vector.broadcast %cst_92 : f32 to vector<8x128xf32>
    %217 = arith.mulf %216, %215 : vector<8x128xf32>
    %cst_93 = arith.constant 5.000000e-01 : f32
    %218 = vector.broadcast %cst_93 : f32 to vector<8x128xf32>
    %219 = arith.addf %217, %218 : vector<8x128xf32>
    %220 = vector.extract_strided_slice %203 {offsets = [0, 256], sizes = [8, 128], strides = [1, 1]} : vector<8x512xf32> to vector<8x128xf32>
    %221 = math.tanh %220 : vector<8x128xf32>
    %222 = vector.extract_strided_slice %203 {offsets = [0, 384], sizes = [8, 128], strides = [1, 1]} : vector<8x512xf32> to vector<8x128xf32>
    %cst_94 = arith.constant 5.000000e-01 : f32
    %223 = vector.broadcast %cst_94 : f32 to vector<8x128xf32>
    %224 = arith.mulf %223, %222 : vector<8x128xf32>
    %225 = math.tanh %224 : vector<8x128xf32>
    %cst_95 = arith.constant 5.000000e-01 : f32
    %226 = vector.broadcast %cst_95 : f32 to vector<8x128xf32>
    %227 = arith.mulf %226, %225 : vector<8x128xf32>
    %cst_96 = arith.constant 5.000000e-01 : f32
    %228 = vector.broadcast %cst_96 : f32 to vector<8x128xf32>
    %229 = arith.addf %227, %228 : vector<8x128xf32>
    %230 = arith.mulf %219, %140 : vector<8x128xf32>
    %231 = arith.mulf %211, %221 : vector<8x128xf32>
    %232 = arith.addf %230, %231 : vector<8x128xf32>
    %233 = math.tanh %232 : vector<8x128xf32>
    %234 = arith.mulf %229, %233 : vector<8x128xf32>
    %235 = arith.truncf %234 : vector<8x128xf32> to vector<8x128xbf16>
    %236 = arith.index_cast %c2_i32 : i32 to index
    %c0_97 = arith.constant 0 : index
    %c0_98 = arith.constant 0 : index
    %237 = vector.load %arg4[%236, %c0_97, %c0_98] : memref<8x8x128xbf16, #tpu.memory_space<vmem>>, vector<1x8x128xbf16>
    %238 = vector.shape_cast %237 : vector<1x8x128xbf16> to vector<8x128xbf16>
    %239 = vector.shape_cast %235 : vector<8x128xbf16> to vector<1x8x128xbf16>
    tpu.vector_store %arg4[%236, %c0_97, %c0_98], %239 {strides = array<i32>} : memref<8x8x128xbf16, #tpu.memory_space<vmem>>, vector<1x8x128xbf16>,
    %c7_i32_99 = arith.constant 7 : i32
    %240 = arith.subi %c7_i32_99, %c2_i32 : i32
    %241 = arith.index_cast %240 : i32 to index
    %c0_100 = arith.constant 0 : index
    %c0_101 = arith.constant 0 : index
    %242 = vector.load %arg2[%241, %c0_100, %c0_101] : memref<8x8x512xbf16, #tpu.memory_space<vmem>>, vector<1x8x512xbf16>
    %243 = vector.shape_cast %242 : vector<1x8x512xbf16> to vector<8x512xbf16>
    %244 = arith.extf %243 : vector<8x512xbf16> to vector<8x512xf32>
    %245 = arith.truncf %188 : vector<8x128xf32> to vector<8x128xbf16>
    %c1_102 = arith.constant 1 : index
    %c0_103 = arith.constant 0 : index
    %c0_104 = arith.constant 0 : index
    %246 = vector.load %arg3[%c1_102, %c0_103, %c0_104] : memref<2x128x512xbf16, #tpu.memory_space<vmem>>, vector<1x128x512xbf16>
    %247 = vector.shape_cast %246 : vector<1x128x512xbf16> to vector<128x512xbf16>
    %cst_105 = arith.constant dense<0.000000e+00> : vector<8x512xf32>
    %248 = tpu.matmul %245, %247, %cst_105 {dimension_numbers = #tpu.dot_dimension_numbers<[1], [0], [0], [1], [0, 0, 1, 1], [], []>} : vector<8x128xbf16>, vector<128x512xbf16>, vector<8x512xf32> -> vector<8x512xf32>
    %249 = arith.addf %244, %248 : vector<8x512xf32>
    %250 = vector.extract_strided_slice %249 {offsets = [0, 0], sizes = [8, 128], strides = [1, 1]} : vector<8x512xf32> to vector<8x128xf32>
    %cst_106 = arith.constant 5.000000e-01 : f32
    %251 = vector.broadcast %cst_106 : f32 to vector<8x128xf32>
    %252 = arith.mulf %251, %250 : vector<8x128xf32>
    %253 = math.tanh %252 : vector<8x128xf32>
    %cst_107 = arith.constant 5.000000e-01 : f32
    %254 = vector.broadcast %cst_107 : f32 to vector<8x128xf32>
    %255 = arith.mulf %254, %253 : vector<8x128xf32>
    %cst_108 = arith.constant 5.000000e-01 : f32
    %256 = vector.broadcast %cst_108 : f32 to vector<8x128xf32>
    %257 = arith.addf %255, %256 : vector<8x128xf32>
    %258 = vector.extract_strided_slice %249 {offsets = [0, 128], sizes = [8, 128], strides = [1, 1]} : vector<8x512xf32> to vector<8x128xf32>
    %cst_109 = arith.constant 5.000000e-01 : f32
    %259 = vector.broadcast %cst_109 : f32 to vector<8x128xf32>
    %260 = arith.mulf %259, %258 : vector<8x128xf32>
    %261 = math.tanh %260 : vector<8x128xf32>
    %cst_110 = arith.constant 5.000000e-01 : f32
    %262 = vector.broadcast %cst_110 : f32 to vector<8x128xf32>
    %263 = arith.mulf %262, %261 : vector<8x128xf32>
    %cst_111 = arith.constant 5.000000e-01 : f32
    %264 = vector.broadcast %cst_111 : f32 to vector<8x128xf32>
    %265 = arith.addf %263, %264 : vector<8x128xf32>
    %266 = vector.extract_strided_slice %249 {offsets = [0, 256], sizes = [8, 128], strides = [1, 1]} : vector<8x512xf32> to vector<8x128xf32>
    %267 = math.tanh %266 : vector<8x128xf32>
    %268 = vector.extract_strided_slice %249 {offsets = [0, 384], sizes = [8, 128], strides = [1, 1]} : vector<8x512xf32> to vector<8x128xf32>
    %cst_112 = arith.constant 5.000000e-01 : f32
    %269 = vector.broadcast %cst_112 : f32 to vector<8x128xf32>
    %270 = arith.mulf %269, %268 : vector<8x128xf32>
    %271 = math.tanh %270 : vector<8x128xf32>
    %cst_113 = arith.constant 5.000000e-01 : f32
    %272 = vector.broadcast %cst_113 : f32 to vector<8x128xf32>
    %273 = arith.mulf %272, %271 : vector<8x128xf32>
    %cst_114 = arith.constant 5.000000e-01 : f32
    %274 = vector.broadcast %cst_114 : f32 to vector<8x128xf32>
    %275 = arith.addf %273, %274 : vector<8x128xf32>
    %276 = arith.mulf %265, %186 : vector<8x128xf32>
    %277 = arith.mulf %257, %267 : vector<8x128xf32>
    %278 = arith.addf %276, %277 : vector<8x128xf32>
    %279 = math.tanh %278 : vector<8x128xf32>
    %280 = arith.mulf %275, %279 : vector<8x128xf32>
    %281 = arith.truncf %280 : vector<8x128xf32> to vector<8x128xbf16>
    %c7_i32_115 = arith.constant 7 : i32
    %282 = arith.subi %c7_i32_115, %c2_i32 : i32
    %283 = arith.index_cast %282 : i32 to index
    %c0_116 = arith.constant 0 : index
    %c0_117 = arith.constant 0 : index
    %284 = vector.load %arg5[%283, %c0_116, %c0_117] : memref<8x8x128xbf16, #tpu.memory_space<vmem>>, vector<1x8x128xbf16>
    %285 = vector.shape_cast %284 : vector<1x8x128xbf16> to vector<8x128xbf16>
    %286 = vector.shape_cast %281 : vector<8x128xbf16> to vector<1x8x128xbf16>
    tpu.vector_store %arg5[%283, %c0_116, %c0_117], %286 {strides = array<i32>} : memref<8x8x128xbf16, #tpu.memory_space<vmem>>, vector<1x8x128xbf16>,
    %c3_i32 = arith.constant 3 : i32
    %287 = arith.index_cast %c3_i32 : i32 to index
    %c0_118 = arith.constant 0 : index
    %c0_119 = arith.constant 0 : index
    %288 = vector.load %arg1[%287, %c0_118, %c0_119] : memref<8x8x512xbf16, #tpu.memory_space<vmem>>, vector<1x8x512xbf16>
    %289 = vector.shape_cast %288 : vector<1x8x512xbf16> to vector<8x512xbf16>
    %290 = arith.extf %289 : vector<8x512xbf16> to vector<8x512xf32>
    %291 = arith.truncf %234 : vector<8x128xf32> to vector<8x128xbf16>
    %c0_120 = arith.constant 0 : index
    %c0_121 = arith.constant 0 : index
    %c0_122 = arith.constant 0 : index
    %292 = vector.load %arg3[%c0_120, %c0_121, %c0_122] : memref<2x128x512xbf16, #tpu.memory_space<vmem>>, vector<1x128x512xbf16>
    %293 = vector.shape_cast %292 : vector<1x128x512xbf16> to vector<128x512xbf16>
    %cst_123 = arith.constant dense<0.000000e+00> : vector<8x512xf32>
    %294 = tpu.matmul %291, %293, %cst_123 {dimension_numbers = #tpu.dot_dimension_numbers<[1], [0], [0], [1], [0, 0, 1, 1], [], []>} : vector<8x128xbf16>, vector<128x512xbf16>, vector<8x512xf32> -> vector<8x512xf32>
    %295 = arith.addf %290, %294 : vector<8x512xf32>
    %296 = vector.extract_strided_slice %295 {offsets = [0, 0], sizes = [8, 128], strides = [1, 1]} : vector<8x512xf32> to vector<8x128xf32>
    %cst_124 = arith.constant 5.000000e-01 : f32
    %297 = vector.broadcast %cst_124 : f32 to vector<8x128xf32>
    %298 = arith.mulf %297, %296 : vector<8x128xf32>
    %299 = math.tanh %298 : vector<8x128xf32>
    %cst_125 = arith.constant 5.000000e-01 : f32
    %300 = vector.broadcast %cst_125 : f32 to vector<8x128xf32>
    %301 = arith.mulf %300, %299 : vector<8x128xf32>
    %cst_126 = arith.constant 5.000000e-01 : f32
    %302 = vector.broadcast %cst_126 : f32 to vector<8x128xf32>
    %303 = arith.addf %301, %302 : vector<8x128xf32>
    %304 = vector.extract_strided_slice %295 {offsets = [0, 128], sizes = [8, 128], strides = [1, 1]} : vector<8x512xf32> to vector<8x128xf32>
    %cst_127 = arith.constant 5.000000e-01 : f32
    %305 = vector.broadcast %cst_127 : f32 to vector<8x128xf32>
    %306 = arith.mulf %305, %304 : vector<8x128xf32>
    %307 = math.tanh %306 : vector<8x128xf32>
    %cst_128 = arith.constant 5.000000e-01 : f32
    %308 = vector.broadcast %cst_128 : f32 to vector<8x128xf32>
    %309 = arith.mulf %308, %307 : vector<8x128xf32>
    %cst_129 = arith.constant 5.000000e-01 : f32
    %310 = vector.broadcast %cst_129 : f32 to vector<8x128xf32>
    %311 = arith.addf %309, %310 : vector<8x128xf32>
    %312 = vector.extract_strided_slice %295 {offsets = [0, 256], sizes = [8, 128], strides = [1, 1]} : vector<8x512xf32> to vector<8x128xf32>
    %313 = math.tanh %312 : vector<8x128xf32>
    %314 = vector.extract_strided_slice %295 {offsets = [0, 384], sizes = [8, 128], strides = [1, 1]} : vector<8x512xf32> to vector<8x128xf32>
    %cst_130 = arith.constant 5.000000e-01 : f32
    %315 = vector.broadcast %cst_130 : f32 to vector<8x128xf32>
    %316 = arith.mulf %315, %314 : vector<8x128xf32>
    %317 = math.tanh %316 : vector<8x128xf32>
    %cst_131 = arith.constant 5.000000e-01 : f32
    %318 = vector.broadcast %cst_131 : f32 to vector<8x128xf32>
    %319 = arith.mulf %318, %317 : vector<8x128xf32>
    %cst_132 = arith.constant 5.000000e-01 : f32
    %320 = vector.broadcast %cst_132 : f32 to vector<8x128xf32>
    %321 = arith.addf %319, %320 : vector<8x128xf32>
    %322 = arith.mulf %311, %232 : vector<8x128xf32>
    %323 = arith.mulf %303, %313 : vector<8x128xf32>
    %324 = arith.addf %322, %323 : vector<8x128xf32>
    %325 = math.tanh %324 : vector<8x128xf32>
    %326 = arith.mulf %321, %325 : vector<8x128xf32>
    %327 = arith.truncf %326 : vector<8x128xf32> to vector<8x128xbf16>
    %328 = arith.index_cast %c3_i32 : i32 to index
    %c0_133 = arith.constant 0 : index
    %c0_134 = arith.constant 0 : index
    %329 = vector.load %arg4[%328, %c0_133, %c0_134] : memref<8x8x128xbf16, #tpu.memory_space<vmem>>, vector<1x8x128xbf16>
    %330 = vector.shape_cast %329 : vector<1x8x128xbf16> to vector<8x128xbf16>
    %331 = vector.shape_cast %327 : vector<8x128xbf16> to vector<1x8x128xbf16>
    tpu.vector_store %arg4[%328, %c0_133, %c0_134], %331 {strides = array<i32>} : memref<8x8x128xbf16, #tpu.memory_space<vmem>>, vector<1x8x128xbf16>,
    %c7_i32_135 = arith.constant 7 : i32
    %332 = arith.subi %c7_i32_135, %c3_i32 : i32
    %333 = arith.index_cast %332 : i32 to index
    %c0_136 = arith.constant 0 : index
    %c0_137 = arith.constant 0 : index
    %334 = vector.load %arg2[%333, %c0_136, %c0_137] : memref<8x8x512xbf16, #tpu.memory_space<vmem>>, vector<1x8x512xbf16>
    %335 = vector.shape_cast %334 : vector<1x8x512xbf16> to vector<8x512xbf16>
    %336 = arith.extf %335 : vector<8x512xbf16> to vector<8x512xf32>
    %337 = arith.truncf %280 : vector<8x128xf32> to vector<8x128xbf16>
    %c1_138 = arith.constant 1 : index
    %c0_139 = arith.constant 0 : index
    %c0_140 = arith.constant 0 : index
    %338 = vector.load %arg3[%c1_138, %c0_139, %c0_140] : memref<2x128x512xbf16, #tpu.memory_space<vmem>>, vector<1x128x512xbf16>
    %339 = vector.shape_cast %338 : vector<1x128x512xbf16> to vector<128x512xbf16>
    %cst_141 = arith.constant dense<0.000000e+00> : vector<8x512xf32>
    %340 = tpu.matmul %337, %339, %cst_141 {dimension_numbers = #tpu.dot_dimension_numbers<[1], [0], [0], [1], [0, 0, 1, 1], [], []>} : vector<8x128xbf16>, vector<128x512xbf16>, vector<8x512xf32> -> vector<8x512xf32>
    %341 = arith.addf %336, %340 : vector<8x512xf32>
    %342 = vector.extract_strided_slice %341 {offsets = [0, 0], sizes = [8, 128], strides = [1, 1]} : vector<8x512xf32> to vector<8x128xf32>
    %cst_142 = arith.constant 5.000000e-01 : f32
    %343 = vector.broadcast %cst_142 : f32 to vector<8x128xf32>
    %344 = arith.mulf %343, %342 : vector<8x128xf32>
    %345 = math.tanh %344 : vector<8x128xf32>
    %cst_143 = arith.constant 5.000000e-01 : f32
    %346 = vector.broadcast %cst_143 : f32 to vector<8x128xf32>
    %347 = arith.mulf %346, %345 : vector<8x128xf32>
    %cst_144 = arith.constant 5.000000e-01 : f32
    %348 = vector.broadcast %cst_144 : f32 to vector<8x128xf32>
    %349 = arith.addf %347, %348 : vector<8x128xf32>
    %350 = vector.extract_strided_slice %341 {offsets = [0, 128], sizes = [8, 128], strides = [1, 1]} : vector<8x512xf32> to vector<8x128xf32>
    %cst_145 = arith.constant 5.000000e-01 : f32
    %351 = vector.broadcast %cst_145 : f32 to vector<8x128xf32>
    %352 = arith.mulf %351, %350 : vector<8x128xf32>
    %353 = math.tanh %352 : vector<8x128xf32>
    %cst_146 = arith.constant 5.000000e-01 : f32
    %354 = vector.broadcast %cst_146 : f32 to vector<8x128xf32>
    %355 = arith.mulf %354, %353 : vector<8x128xf32>
    %cst_147 = arith.constant 5.000000e-01 : f32
    %356 = vector.broadcast %cst_147 : f32 to vector<8x128xf32>
    %357 = arith.addf %355, %356 : vector<8x128xf32>
    %358 = vector.extract_strided_slice %341 {offsets = [0, 256], sizes = [8, 128], strides = [1, 1]} : vector<8x512xf32> to vector<8x128xf32>
    %359 = math.tanh %358 : vector<8x128xf32>
    %360 = vector.extract_strided_slice %341 {offsets = [0, 384], sizes = [8, 128], strides = [1, 1]} : vector<8x512xf32> to vector<8x128xf32>
    %cst_148 = arith.constant 5.000000e-01 : f32
    %361 = vector.broadcast %cst_148 : f32 to vector<8x128xf32>
    %362 = arith.mulf %361, %360 : vector<8x128xf32>
    %363 = math.tanh %362 : vector<8x128xf32>
    %cst_149 = arith.constant 5.000000e-01 : f32
    %364 = vector.broadcast %cst_149 : f32 to vector<8x128xf32>
    %365 = arith.mulf %364, %363 : vector<8x128xf32>
    %cst_150 = arith.constant 5.000000e-01 : f32
    %366 = vector.broadcast %cst_150 : f32 to vector<8x128xf32>
    %367 = arith.addf %365, %366 : vector<8x128xf32>
    %368 = arith.mulf %357, %278 : vector<8x128xf32>
    %369 = arith.mulf %349, %359 : vector<8x128xf32>
    %370 = arith.addf %368, %369 : vector<8x128xf32>
    %371 = math.tanh %370 : vector<8x128xf32>
    %372 = arith.mulf %367, %371 : vector<8x128xf32>
    %373 = arith.truncf %372 : vector<8x128xf32> to vector<8x128xbf16>
    %c7_i32_151 = arith.constant 7 : i32
    %374 = arith.subi %c7_i32_151, %c3_i32 : i32
    %375 = arith.index_cast %374 : i32 to index
    %c0_152 = arith.constant 0 : index
    %c0_153 = arith.constant 0 : index
    %376 = vector.load %arg5[%375, %c0_152, %c0_153] : memref<8x8x128xbf16, #tpu.memory_space<vmem>>, vector<1x8x128xbf16>
    %377 = vector.shape_cast %376 : vector<1x8x128xbf16> to vector<8x128xbf16>
    %378 = vector.shape_cast %373 : vector<8x128xbf16> to vector<1x8x128xbf16>
    tpu.vector_store %arg5[%375, %c0_152, %c0_153], %378 {strides = array<i32>} : memref<8x8x128xbf16, #tpu.memory_space<vmem>>, vector<1x8x128xbf16>,
    %c4_i32 = arith.constant 4 : i32
    %379 = arith.index_cast %c4_i32 : i32 to index
    %c0_154 = arith.constant 0 : index
    %c0_155 = arith.constant 0 : index
    %380 = vector.load %arg1[%379, %c0_154, %c0_155] : memref<8x8x512xbf16, #tpu.memory_space<vmem>>, vector<1x8x512xbf16>
    %381 = vector.shape_cast %380 : vector<1x8x512xbf16> to vector<8x512xbf16>
    %382 = arith.extf %381 : vector<8x512xbf16> to vector<8x512xf32>
    %383 = arith.truncf %326 : vector<8x128xf32> to vector<8x128xbf16>
    %c0_156 = arith.constant 0 : index
    %c0_157 = arith.constant 0 : index
    %c0_158 = arith.constant 0 : index
    %384 = vector.load %arg3[%c0_156, %c0_157, %c0_158] : memref<2x128x512xbf16, #tpu.memory_space<vmem>>, vector<1x128x512xbf16>
    %385 = vector.shape_cast %384 : vector<1x128x512xbf16> to vector<128x512xbf16>
    %cst_159 = arith.constant dense<0.000000e+00> : vector<8x512xf32>
    %386 = tpu.matmul %383, %385, %cst_159 {dimension_numbers = #tpu.dot_dimension_numbers<[1], [0], [0], [1], [0, 0, 1, 1], [], []>} : vector<8x128xbf16>, vector<128x512xbf16>, vector<8x512xf32> -> vector<8x512xf32>
    %387 = arith.addf %382, %386 : vector<8x512xf32>
    %388 = vector.extract_strided_slice %387 {offsets = [0, 0], sizes = [8, 128], strides = [1, 1]} : vector<8x512xf32> to vector<8x128xf32>
    %cst_160 = arith.constant 5.000000e-01 : f32
    %389 = vector.broadcast %cst_160 : f32 to vector<8x128xf32>
    %390 = arith.mulf %389, %388 : vector<8x128xf32>
    %391 = math.tanh %390 : vector<8x128xf32>
    %cst_161 = arith.constant 5.000000e-01 : f32
    %392 = vector.broadcast %cst_161 : f32 to vector<8x128xf32>
    %393 = arith.mulf %392, %391 : vector<8x128xf32>
    %cst_162 = arith.constant 5.000000e-01 : f32
    %394 = vector.broadcast %cst_162 : f32 to vector<8x128xf32>
    %395 = arith.addf %393, %394 : vector<8x128xf32>
    %396 = vector.extract_strided_slice %387 {offsets = [0, 128], sizes = [8, 128], strides = [1, 1]} : vector<8x512xf32> to vector<8x128xf32>
    %cst_163 = arith.constant 5.000000e-01 : f32
    %397 = vector.broadcast %cst_163 : f32 to vector<8x128xf32>
    %398 = arith.mulf %397, %396 : vector<8x128xf32>
    %399 = math.tanh %398 : vector<8x128xf32>
    %cst_164 = arith.constant 5.000000e-01 : f32
    %400 = vector.broadcast %cst_164 : f32 to vector<8x128xf32>
    %401 = arith.mulf %400, %399 : vector<8x128xf32>
    %cst_165 = arith.constant 5.000000e-01 : f32
    %402 = vector.broadcast %cst_165 : f32 to vector<8x128xf32>
    %403 = arith.addf %401, %402 : vector<8x128xf32>
    %404 = vector.extract_strided_slice %387 {offsets = [0, 256], sizes = [8, 128], strides = [1, 1]} : vector<8x512xf32> to vector<8x128xf32>
    %405 = math.tanh %404 : vector<8x128xf32>
    %406 = vector.extract_strided_slice %387 {offsets = [0, 384], sizes = [8, 128], strides = [1, 1]} : vector<8x512xf32> to vector<8x128xf32>
    %cst_166 = arith.constant 5.000000e-01 : f32
    %407 = vector.broadcast %cst_166 : f32 to vector<8x128xf32>
    %408 = arith.mulf %407, %406 : vector<8x128xf32>
    %409 = math.tanh %408 : vector<8x128xf32>
    %cst_167 = arith.constant 5.000000e-01 : f32
    %410 = vector.broadcast %cst_167 : f32 to vector<8x128xf32>
    %411 = arith.mulf %410, %409 : vector<8x128xf32>
    %cst_168 = arith.constant 5.000000e-01 : f32
    %412 = vector.broadcast %cst_168 : f32 to vector<8x128xf32>
    %413 = arith.addf %411, %412 : vector<8x128xf32>
    %414 = arith.mulf %403, %324 : vector<8x128xf32>
    %415 = arith.mulf %395, %405 : vector<8x128xf32>
    %416 = arith.addf %414, %415 : vector<8x128xf32>
    %417 = math.tanh %416 : vector<8x128xf32>
    %418 = arith.mulf %413, %417 : vector<8x128xf32>
    %419 = arith.truncf %418 : vector<8x128xf32> to vector<8x128xbf16>
    %420 = arith.index_cast %c4_i32 : i32 to index
    %c0_169 = arith.constant 0 : index
    %c0_170 = arith.constant 0 : index
    %421 = vector.load %arg4[%420, %c0_169, %c0_170] : memref<8x8x128xbf16, #tpu.memory_space<vmem>>, vector<1x8x128xbf16>
    %422 = vector.shape_cast %421 : vector<1x8x128xbf16> to vector<8x128xbf16>
    %423 = vector.shape_cast %419 : vector<8x128xbf16> to vector<1x8x128xbf16>
    tpu.vector_store %arg4[%420, %c0_169, %c0_170], %423 {strides = array<i32>} : memref<8x8x128xbf16, #tpu.memory_space<vmem>>, vector<1x8x128xbf16>,
    %c7_i32_171 = arith.constant 7 : i32
    %424 = arith.subi %c7_i32_171, %c4_i32 : i32
    %425 = arith.index_cast %424 : i32 to index
    %c0_172 = arith.constant 0 : index
    %c0_173 = arith.constant 0 : index
    %426 = vector.load %arg2[%425, %c0_172, %c0_173] : memref<8x8x512xbf16, #tpu.memory_space<vmem>>, vector<1x8x512xbf16>
    %427 = vector.shape_cast %426 : vector<1x8x512xbf16> to vector<8x512xbf16>
    %428 = arith.extf %427 : vector<8x512xbf16> to vector<8x512xf32>
    %429 = arith.truncf %372 : vector<8x128xf32> to vector<8x128xbf16>
    %c1_174 = arith.constant 1 : index
    %c0_175 = arith.constant 0 : index
    %c0_176 = arith.constant 0 : index
    %430 = vector.load %arg3[%c1_174, %c0_175, %c0_176] : memref<2x128x512xbf16, #tpu.memory_space<vmem>>, vector<1x128x512xbf16>
    %431 = vector.shape_cast %430 : vector<1x128x512xbf16> to vector<128x512xbf16>
    %cst_177 = arith.constant dense<0.000000e+00> : vector<8x512xf32>
    %432 = tpu.matmul %429, %431, %cst_177 {dimension_numbers = #tpu.dot_dimension_numbers<[1], [0], [0], [1], [0, 0, 1, 1], [], []>} : vector<8x128xbf16>, vector<128x512xbf16>, vector<8x512xf32> -> vector<8x512xf32>
    %433 = arith.addf %428, %432 : vector<8x512xf32>
    %434 = vector.extract_strided_slice %433 {offsets = [0, 0], sizes = [8, 128], strides = [1, 1]} : vector<8x512xf32> to vector<8x128xf32>
    %cst_178 = arith.constant 5.000000e-01 : f32
    %435 = vector.broadcast %cst_178 : f32 to vector<8x128xf32>
    %436 = arith.mulf %435, %434 : vector<8x128xf32>
    %437 = math.tanh %436 : vector<8x128xf32>
    %cst_179 = arith.constant 5.000000e-01 : f32
    %438 = vector.broadcast %cst_179 : f32 to vector<8x128xf32>
    %439 = arith.mulf %438, %437 : vector<8x128xf32>
    %cst_180 = arith.constant 5.000000e-01 : f32
    %440 = vector.broadcast %cst_180 : f32 to vector<8x128xf32>
    %441 = arith.addf %439, %440 : vector<8x128xf32>
    %442 = vector.extract_strided_slice %433 {offsets = [0, 128], sizes = [8, 128], strides = [1, 1]} : vector<8x512xf32> to vector<8x128xf32>
    %cst_181 = arith.constant 5.000000e-01 : f32
    %443 = vector.broadcast %cst_181 : f32 to vector<8x128xf32>
    %444 = arith.mulf %443, %442 : vector<8x128xf32>
    %445 = math.tanh %444 : vector<8x128xf32>
    %cst_182 = arith.constant 5.000000e-01 : f32
    %446 = vector.broadcast %cst_182 : f32 to vector<8x128xf32>
    %447 = arith.mulf %446, %445 : vector<8x128xf32>
    %cst_183 = arith.constant 5.000000e-01 : f32
    %448 = vector.broadcast %cst_183 : f32 to vector<8x128xf32>
    %449 = arith.addf %447, %448 : vector<8x128xf32>
    %450 = vector.extract_strided_slice %433 {offsets = [0, 256], sizes = [8, 128], strides = [1, 1]} : vector<8x512xf32> to vector<8x128xf32>
    %451 = math.tanh %450 : vector<8x128xf32>
    %452 = vector.extract_strided_slice %433 {offsets = [0, 384], sizes = [8, 128], strides = [1, 1]} : vector<8x512xf32> to vector<8x128xf32>
    %cst_184 = arith.constant 5.000000e-01 : f32
    %453 = vector.broadcast %cst_184 : f32 to vector<8x128xf32>
    %454 = arith.mulf %453, %452 : vector<8x128xf32>
    %455 = math.tanh %454 : vector<8x128xf32>
    %cst_185 = arith.constant 5.000000e-01 : f32
    %456 = vector.broadcast %cst_185 : f32 to vector<8x128xf32>
    %457 = arith.mulf %456, %455 : vector<8x128xf32>
    %cst_186 = arith.constant 5.000000e-01 : f32
    %458 = vector.broadcast %cst_186 : f32 to vector<8x128xf32>
    %459 = arith.addf %457, %458 : vector<8x128xf32>
    %460 = arith.mulf %449, %370 : vector<8x128xf32>
    %461 = arith.mulf %441, %451 : vector<8x128xf32>
    %462 = arith.addf %460, %461 : vector<8x128xf32>
    %463 = math.tanh %462 : vector<8x128xf32>
    %464 = arith.mulf %459, %463 : vector<8x128xf32>
    %465 = arith.truncf %464 : vector<8x128xf32> to vector<8x128xbf16>
    %c7_i32_187 = arith.constant 7 : i32
    %466 = arith.subi %c7_i32_187, %c4_i32 : i32
    %467 = arith.index_cast %466 : i32 to index
    %c0_188 = arith.constant 0 : index
    %c0_189 = arith.constant 0 : index
    %468 = vector.load %arg5[%467, %c0_188, %c0_189] : memref<8x8x128xbf16, #tpu.memory_space<vmem>>, vector<1x8x128xbf16>
    %469 = vector.shape_cast %468 : vector<1x8x128xbf16> to vector<8x128xbf16>
    %470 = vector.shape_cast %465 : vector<8x128xbf16> to vector<1x8x128xbf16>
    tpu.vector_store %arg5[%467, %c0_188, %c0_189], %470 {strides = array<i32>} : memref<8x8x128xbf16, #tpu.memory_space<vmem>>, vector<1x8x128xbf16>,
    %c5_i32 = arith.constant 5 : i32
    %471 = arith.index_cast %c5_i32 : i32 to index
    %c0_190 = arith.constant 0 : index
    %c0_191 = arith.constant 0 : index
    %472 = vector.load %arg1[%471, %c0_190, %c0_191] : memref<8x8x512xbf16, #tpu.memory_space<vmem>>, vector<1x8x512xbf16>
    %473 = vector.shape_cast %472 : vector<1x8x512xbf16> to vector<8x512xbf16>
    %474 = arith.extf %473 : vector<8x512xbf16> to vector<8x512xf32>
    %475 = arith.truncf %418 : vector<8x128xf32> to vector<8x128xbf16>
    %c0_192 = arith.constant 0 : index
    %c0_193 = arith.constant 0 : index
    %c0_194 = arith.constant 0 : index
    %476 = vector.load %arg3[%c0_192, %c0_193, %c0_194] : memref<2x128x512xbf16, #tpu.memory_space<vmem>>, vector<1x128x512xbf16>
    %477 = vector.shape_cast %476 : vector<1x128x512xbf16> to vector<128x512xbf16>
    %cst_195 = arith.constant dense<0.000000e+00> : vector<8x512xf32>
    %478 = tpu.matmul %475, %477, %cst_195 {dimension_numbers = #tpu.dot_dimension_numbers<[1], [0], [0], [1], [0, 0, 1, 1], [], []>} : vector<8x128xbf16>, vector<128x512xbf16>, vector<8x512xf32> -> vector<8x512xf32>
    %479 = arith.addf %474, %478 : vector<8x512xf32>
    %480 = vector.extract_strided_slice %479 {offsets = [0, 0], sizes = [8, 128], strides = [1, 1]} : vector<8x512xf32> to vector<8x128xf32>
    %cst_196 = arith.constant 5.000000e-01 : f32
    %481 = vector.broadcast %cst_196 : f32 to vector<8x128xf32>
    %482 = arith.mulf %481, %480 : vector<8x128xf32>
    %483 = math.tanh %482 : vector<8x128xf32>
    %cst_197 = arith.constant 5.000000e-01 : f32
    %484 = vector.broadcast %cst_197 : f32 to vector<8x128xf32>
    %485 = arith.mulf %484, %483 : vector<8x128xf32>
    %cst_198 = arith.constant 5.000000e-01 : f32
    %486 = vector.broadcast %cst_198 : f32 to vector<8x128xf32>
    %487 = arith.addf %485, %486 : vector<8x128xf32>
    %488 = vector.extract_strided_slice %479 {offsets = [0, 128], sizes = [8, 128], strides = [1, 1]} : vector<8x512xf32> to vector<8x128xf32>
    %cst_199 = arith.constant 5.000000e-01 : f32
    %489 = vector.broadcast %cst_199 : f32 to vector<8x128xf32>
    %490 = arith.mulf %489, %488 : vector<8x128xf32>
    %491 = math.tanh %490 : vector<8x128xf32>
    %cst_200 = arith.constant 5.000000e-01 : f32
    %492 = vector.broadcast %cst_200 : f32 to vector<8x128xf32>
    %493 = arith.mulf %492, %491 : vector<8x128xf32>
    %cst_201 = arith.constant 5.000000e-01 : f32
    %494 = vector.broadcast %cst_201 : f32 to vector<8x128xf32>
    %495 = arith.addf %493, %494 : vector<8x128xf32>
    %496 = vector.extract_strided_slice %479 {offsets = [0, 256], sizes = [8, 128], strides = [1, 1]} : vector<8x512xf32> to vector<8x128xf32>
    %497 = math.tanh %496 : vector<8x128xf32>
    %498 = vector.extract_strided_slice %479 {offsets = [0, 384], sizes = [8, 128], strides = [1, 1]} : vector<8x512xf32> to vector<8x128xf32>
    %cst_202 = arith.constant 5.000000e-01 : f32
    %499 = vector.broadcast %cst_202 : f32 to vector<8x128xf32>
    %500 = arith.mulf %499, %498 : vector<8x128xf32>
    %501 = math.tanh %500 : vector<8x128xf32>
    %cst_203 = arith.constant 5.000000e-01 : f32
    %502 = vector.broadcast %cst_203 : f32 to vector<8x128xf32>
    %503 = arith.mulf %502, %501 : vector<8x128xf32>
    %cst_204 = arith.constant 5.000000e-01 : f32
    %504 = vector.broadcast %cst_204 : f32 to vector<8x128xf32>
    %505 = arith.addf %503, %504 : vector<8x128xf32>
    %506 = arith.mulf %495, %416 : vector<8x128xf32>
    %507 = arith.mulf %487, %497 : vector<8x128xf32>
    %508 = arith.addf %506, %507 : vector<8x128xf32>
    %509 = math.tanh %508 : vector<8x128xf32>
    %510 = arith.mulf %505, %509 : vector<8x128xf32>
    %511 = arith.truncf %510 : vector<8x128xf32> to vector<8x128xbf16>
    %512 = arith.index_cast %c5_i32 : i32 to index
    %c0_205 = arith.constant 0 : index
    %c0_206 = arith.constant 0 : index
    %513 = vector.load %arg4[%512, %c0_205, %c0_206] : memref<8x8x128xbf16, #tpu.memory_space<vmem>>, vector<1x8x128xbf16>
    %514 = vector.shape_cast %513 : vector<1x8x128xbf16> to vector<8x128xbf16>
    %515 = vector.shape_cast %511 : vector<8x128xbf16> to vector<1x8x128xbf16>
    tpu.vector_store %arg4[%512, %c0_205, %c0_206], %515 {strides = array<i32>} : memref<8x8x128xbf16, #tpu.memory_space<vmem>>, vector<1x8x128xbf16>,
    %c7_i32_207 = arith.constant 7 : i32
    %516 = arith.subi %c7_i32_207, %c5_i32 : i32
    %517 = arith.index_cast %516 : i32 to index
    %c0_208 = arith.constant 0 : index
    %c0_209 = arith.constant 0 : index
    %518 = vector.load %arg2[%517, %c0_208, %c0_209] : memref<8x8x512xbf16, #tpu.memory_space<vmem>>, vector<1x8x512xbf16>
    %519 = vector.shape_cast %518 : vector<1x8x512xbf16> to vector<8x512xbf16>
    %520 = arith.extf %519 : vector<8x512xbf16> to vector<8x512xf32>
    %521 = arith.truncf %464 : vector<8x128xf32> to vector<8x128xbf16>
    %c1_210 = arith.constant 1 : index
    %c0_211 = arith.constant 0 : index
    %c0_212 = arith.constant 0 : index
    %522 = vector.load %arg3[%c1_210, %c0_211, %c0_212] : memref<2x128x512xbf16, #tpu.memory_space<vmem>>, vector<1x128x512xbf16>
    %523 = vector.shape_cast %522 : vector<1x128x512xbf16> to vector<128x512xbf16>
    %cst_213 = arith.constant dense<0.000000e+00> : vector<8x512xf32>
    %524 = tpu.matmul %521, %523, %cst_213 {dimension_numbers = #tpu.dot_dimension_numbers<[1], [0], [0], [1], [0, 0, 1, 1], [], []>} : vector<8x128xbf16>, vector<128x512xbf16>, vector<8x512xf32> -> vector<8x512xf32>
    %525 = arith.addf %520, %524 : vector<8x512xf32>
    %526 = vector.extract_strided_slice %525 {offsets = [0, 0], sizes = [8, 128], strides = [1, 1]} : vector<8x512xf32> to vector<8x128xf32>
    %cst_214 = arith.constant 5.000000e-01 : f32
    %527 = vector.broadcast %cst_214 : f32 to vector<8x128xf32>
    %528 = arith.mulf %527, %526 : vector<8x128xf32>
    %529 = math.tanh %528 : vector<8x128xf32>
    %cst_215 = arith.constant 5.000000e-01 : f32
    %530 = vector.broadcast %cst_215 : f32 to vector<8x128xf32>
    %531 = arith.mulf %530, %529 : vector<8x128xf32>
    %cst_216 = arith.constant 5.000000e-01 : f32
    %532 = vector.broadcast %cst_216 : f32 to vector<8x128xf32>
    %533 = arith.addf %531, %532 : vector<8x128xf32>
    %534 = vector.extract_strided_slice %525 {offsets = [0, 128], sizes = [8, 128], strides = [1, 1]} : vector<8x512xf32> to vector<8x128xf32>
    %cst_217 = arith.constant 5.000000e-01 : f32
    %535 = vector.broadcast %cst_217 : f32 to vector<8x128xf32>
    %536 = arith.mulf %535, %534 : vector<8x128xf32>
    %537 = math.tanh %536 : vector<8x128xf32>
    %cst_218 = arith.constant 5.000000e-01 : f32
    %538 = vector.broadcast %cst_218 : f32 to vector<8x128xf32>
    %539 = arith.mulf %538, %537 : vector<8x128xf32>
    %cst_219 = arith.constant 5.000000e-01 : f32
    %540 = vector.broadcast %cst_219 : f32 to vector<8x128xf32>
    %541 = arith.addf %539, %540 : vector<8x128xf32>
    %542 = vector.extract_strided_slice %525 {offsets = [0, 256], sizes = [8, 128], strides = [1, 1]} : vector<8x512xf32> to vector<8x128xf32>
    %543 = math.tanh %542 : vector<8x128xf32>
    %544 = vector.extract_strided_slice %525 {offsets = [0, 384], sizes = [8, 128], strides = [1, 1]} : vector<8x512xf32> to vector<8x128xf32>
    %cst_220 = arith.constant 5.000000e-01 : f32
    %545 = vector.broadcast %cst_220 : f32 to vector<8x128xf32>
    %546 = arith.mulf %545, %544 : vector<8x128xf32>
    %547 = math.tanh %546 : vector<8x128xf32>
    %cst_221 = arith.constant 5.000000e-01 : f32
    %548 = vector.broadcast %cst_221 : f32 to vector<8x128xf32>
    %549 = arith.mulf %548, %547 : vector<8x128xf32>
    %cst_222 = arith.constant 5.000000e-01 : f32
    %550 = vector.broadcast %cst_222 : f32 to vector<8x128xf32>
    %551 = arith.addf %549, %550 : vector<8x128xf32>
    %552 = arith.mulf %541, %462 : vector<8x128xf32>
    %553 = arith.mulf %533, %543 : vector<8x128xf32>
    %554 = arith.addf %552, %553 : vector<8x128xf32>
    %555 = math.tanh %554 : vector<8x128xf32>
    %556 = arith.mulf %551, %555 : vector<8x128xf32>
    %557 = arith.truncf %556 : vector<8x128xf32> to vector<8x128xbf16>
    %c7_i32_223 = arith.constant 7 : i32
    %558 = arith.subi %c7_i32_223, %c5_i32 : i32
    %559 = arith.index_cast %558 : i32 to index
    %c0_224 = arith.constant 0 : index
    %c0_225 = arith.constant 0 : index
    %560 = vector.load %arg5[%559, %c0_224, %c0_225] : memref<8x8x128xbf16, #tpu.memory_space<vmem>>, vector<1x8x128xbf16>
    %561 = vector.shape_cast %560 : vector<1x8x128xbf16> to vector<8x128xbf16>
    %562 = vector.shape_cast %557 : vector<8x128xbf16> to vector<1x8x128xbf16>
    tpu.vector_store %arg5[%559, %c0_224, %c0_225], %562 {strides = array<i32>} : memref<8x8x128xbf16, #tpu.memory_space<vmem>>, vector<1x8x128xbf16>,
    %c6_i32 = arith.constant 6 : i32
    %563 = arith.index_cast %c6_i32 : i32 to index
    %c0_226 = arith.constant 0 : index
    %c0_227 = arith.constant 0 : index
    %564 = vector.load %arg1[%563, %c0_226, %c0_227] : memref<8x8x512xbf16, #tpu.memory_space<vmem>>, vector<1x8x512xbf16>
    %565 = vector.shape_cast %564 : vector<1x8x512xbf16> to vector<8x512xbf16>
    %566 = arith.extf %565 : vector<8x512xbf16> to vector<8x512xf32>
    %567 = arith.truncf %510 : vector<8x128xf32> to vector<8x128xbf16>
    %c0_228 = arith.constant 0 : index
    %c0_229 = arith.constant 0 : index
    %c0_230 = arith.constant 0 : index
    %568 = vector.load %arg3[%c0_228, %c0_229, %c0_230] : memref<2x128x512xbf16, #tpu.memory_space<vmem>>, vector<1x128x512xbf16>
    %569 = vector.shape_cast %568 : vector<1x128x512xbf16> to vector<128x512xbf16>
    %cst_231 = arith.constant dense<0.000000e+00> : vector<8x512xf32>
    %570 = tpu.matmul %567, %569, %cst_231 {dimension_numbers = #tpu.dot_dimension_numbers<[1], [0], [0], [1], [0, 0, 1, 1], [], []>} : vector<8x128xbf16>, vector<128x512xbf16>, vector<8x512xf32> -> vector<8x512xf32>
    %571 = arith.addf %566, %570 : vector<8x512xf32>
    %572 = vector.extract_strided_slice %571 {offsets = [0, 0], sizes = [8, 128], strides = [1, 1]} : vector<8x512xf32> to vector<8x128xf32>
    %cst_232 = arith.constant 5.000000e-01 : f32
    %573 = vector.broadcast %cst_232 : f32 to vector<8x128xf32>
    %574 = arith.mulf %573, %572 : vector<8x128xf32>
    %575 = math.tanh %574 : vector<8x128xf32>
    %cst_233 = arith.constant 5.000000e-01 : f32
    %576 = vector.broadcast %cst_233 : f32 to vector<8x128xf32>
    %577 = arith.mulf %576, %575 : vector<8x128xf32>
    %cst_234 = arith.constant 5.000000e-01 : f32
    %578 = vector.broadcast %cst_234 : f32 to vector<8x128xf32>
    %579 = arith.addf %577, %578 : vector<8x128xf32>
    %580 = vector.extract_strided_slice %571 {offsets = [0, 128], sizes = [8, 128], strides = [1, 1]} : vector<8x512xf32> to vector<8x128xf32>
    %cst_235 = arith.constant 5.000000e-01 : f32
    %581 = vector.broadcast %cst_235 : f32 to vector<8x128xf32>
    %582 = arith.mulf %581, %580 : vector<8x128xf32>
    %583 = math.tanh %582 : vector<8x128xf32>
    %cst_236 = arith.constant 5.000000e-01 : f32
    %584 = vector.broadcast %cst_236 : f32 to vector<8x128xf32>
    %585 = arith.mulf %584, %583 : vector<8x128xf32>
    %cst_237 = arith.constant 5.000000e-01 : f32
    %586 = vector.broadcast %cst_237 : f32 to vector<8x128xf32>
    %587 = arith.addf %585, %586 : vector<8x128xf32>
    %588 = vector.extract_strided_slice %571 {offsets = [0, 256], sizes = [8, 128], strides = [1, 1]} : vector<8x512xf32> to vector<8x128xf32>
    %589 = math.tanh %588 : vector<8x128xf32>
    %590 = vector.extract_strided_slice %571 {offsets = [0, 384], sizes = [8, 128], strides = [1, 1]} : vector<8x512xf32> to vector<8x128xf32>
    %cst_238 = arith.constant 5.000000e-01 : f32
    %591 = vector.broadcast %cst_238 : f32 to vector<8x128xf32>
    %592 = arith.mulf %591, %590 : vector<8x128xf32>
    %593 = math.tanh %592 : vector<8x128xf32>
    %cst_239 = arith.constant 5.000000e-01 : f32
    %594 = vector.broadcast %cst_239 : f32 to vector<8x128xf32>
    %595 = arith.mulf %594, %593 : vector<8x128xf32>
    %cst_240 = arith.constant 5.000000e-01 : f32
    %596 = vector.broadcast %cst_240 : f32 to vector<8x128xf32>
    %597 = arith.addf %595, %596 : vector<8x128xf32>
    %598 = arith.mulf %587, %508 : vector<8x128xf32>
    %599 = arith.mulf %579, %589 : vector<8x128xf32>
    %600 = arith.addf %598, %599 : vector<8x128xf32>
    %601 = math.tanh %600 : vector<8x128xf32>
    %602 = arith.mulf %597, %601 : vector<8x128xf32>
    %603 = arith.truncf %602 : vector<8x128xf32> to vector<8x128xbf16>
    %604 = arith.index_cast %c6_i32 : i32 to index
    %c0_241 = arith.constant 0 : index
    %c0_242 = arith.constant 0 : index
    %605 = vector.load %arg4[%604, %c0_241, %c0_242] : memref<8x8x128xbf16, #tpu.memory_space<vmem>>, vector<1x8x128xbf16>
    %606 = vector.shape_cast %605 : vector<1x8x128xbf16> to vector<8x128xbf16>
    %607 = vector.shape_cast %603 : vector<8x128xbf16> to vector<1x8x128xbf16>
    tpu.vector_store %arg4[%604, %c0_241, %c0_242], %607 {strides = array<i32>} : memref<8x8x128xbf16, #tpu.memory_space<vmem>>, vector<1x8x128xbf16>,
    %c7_i32_243 = arith.constant 7 : i32
    %608 = arith.subi %c7_i32_243, %c6_i32 : i32
    %609 = arith.index_cast %608 : i32 to index
    %c0_244 = arith.constant 0 : index
    %c0_245 = arith.constant 0 : index
    %610 = vector.load %arg2[%609, %c0_244, %c0_245] : memref<8x8x512xbf16, #tpu.memory_space<vmem>>, vector<1x8x512xbf16>
    %611 = vector.shape_cast %610 : vector<1x8x512xbf16> to vector<8x512xbf16>
    %612 = arith.extf %611 : vector<8x512xbf16> to vector<8x512xf32>
    %613 = arith.truncf %556 : vector<8x128xf32> to vector<8x128xbf16>
    %c1_246 = arith.constant 1 : index
    %c0_247 = arith.constant 0 : index
    %c0_248 = arith.constant 0 : index
    %614 = vector.load %arg3[%c1_246, %c0_247, %c0_248] : memref<2x128x512xbf16, #tpu.memory_space<vmem>>, vector<1x128x512xbf16>
    %615 = vector.shape_cast %614 : vector<1x128x512xbf16> to vector<128x512xbf16>
    %cst_249 = arith.constant dense<0.000000e+00> : vector<8x512xf32>
    %616 = tpu.matmul %613, %615, %cst_249 {dimension_numbers = #tpu.dot_dimension_numbers<[1], [0], [0], [1], [0, 0, 1, 1], [], []>} : vector<8x128xbf16>, vector<128x512xbf16>, vector<8x512xf32> -> vector<8x512xf32>
    %617 = arith.addf %612, %616 : vector<8x512xf32>
    %618 = vector.extract_strided_slice %617 {offsets = [0, 0], sizes = [8, 128], strides = [1, 1]} : vector<8x512xf32> to vector<8x128xf32>
    %cst_250 = arith.constant 5.000000e-01 : f32
    %619 = vector.broadcast %cst_250 : f32 to vector<8x128xf32>
    %620 = arith.mulf %619, %618 : vector<8x128xf32>
    %621 = math.tanh %620 : vector<8x128xf32>
    %cst_251 = arith.constant 5.000000e-01 : f32
    %622 = vector.broadcast %cst_251 : f32 to vector<8x128xf32>
    %623 = arith.mulf %622, %621 : vector<8x128xf32>
    %cst_252 = arith.constant 5.000000e-01 : f32
    %624 = vector.broadcast %cst_252 : f32 to vector<8x128xf32>
    %625 = arith.addf %623, %624 : vector<8x128xf32>
    %626 = vector.extract_strided_slice %617 {offsets = [0, 128], sizes = [8, 128], strides = [1, 1]} : vector<8x512xf32> to vector<8x128xf32>
    %cst_253 = arith.constant 5.000000e-01 : f32
    %627 = vector.broadcast %cst_253 : f32 to vector<8x128xf32>
    %628 = arith.mulf %627, %626 : vector<8x128xf32>
    %629 = math.tanh %628 : vector<8x128xf32>
    %cst_254 = arith.constant 5.000000e-01 : f32
    %630 = vector.broadcast %cst_254 : f32 to vector<8x128xf32>
    %631 = arith.mulf %630, %629 : vector<8x128xf32>
    %cst_255 = arith.constant 5.000000e-01 : f32
    %632 = vector.broadcast %cst_255 : f32 to vector<8x128xf32>
    %633 = arith.addf %631, %632 : vector<8x128xf32>
    %634 = vector.extract_strided_slice %617 {offsets = [0, 256], sizes = [8, 128], strides = [1, 1]} : vector<8x512xf32> to vector<8x128xf32>
    %635 = math.tanh %634 : vector<8x128xf32>
    %636 = vector.extract_strided_slice %617 {offsets = [0, 384], sizes = [8, 128], strides = [1, 1]} : vector<8x512xf32> to vector<8x128xf32>
    %cst_256 = arith.constant 5.000000e-01 : f32
    %637 = vector.broadcast %cst_256 : f32 to vector<8x128xf32>
    %638 = arith.mulf %637, %636 : vector<8x128xf32>
    %639 = math.tanh %638 : vector<8x128xf32>
    %cst_257 = arith.constant 5.000000e-01 : f32
    %640 = vector.broadcast %cst_257 : f32 to vector<8x128xf32>
    %641 = arith.mulf %640, %639 : vector<8x128xf32>
    %cst_258 = arith.constant 5.000000e-01 : f32
    %642 = vector.broadcast %cst_258 : f32 to vector<8x128xf32>
    %643 = arith.addf %641, %642 : vector<8x128xf32>
    %644 = arith.mulf %633, %554 : vector<8x128xf32>
    %645 = arith.mulf %625, %635 : vector<8x128xf32>
    %646 = arith.addf %644, %645 : vector<8x128xf32>
    %647 = math.tanh %646 : vector<8x128xf32>
    %648 = arith.mulf %643, %647 : vector<8x128xf32>
    %649 = arith.truncf %648 : vector<8x128xf32> to vector<8x128xbf16>
    %c7_i32_259 = arith.constant 7 : i32
    %650 = arith.subi %c7_i32_259, %c6_i32 : i32
    %651 = arith.index_cast %650 : i32 to index
    %c0_260 = arith.constant 0 : index
    %c0_261 = arith.constant 0 : index
    %652 = vector.load %arg5[%651, %c0_260, %c0_261] : memref<8x8x128xbf16, #tpu.memory_space<vmem>>, vector<1x8x128xbf16>
    %653 = vector.shape_cast %652 : vector<1x8x128xbf16> to vector<8x128xbf16>
    %654 = vector.shape_cast %649 : vector<8x128xbf16> to vector<1x8x128xbf16>
    tpu.vector_store %arg5[%651, %c0_260, %c0_261], %654 {strides = array<i32>} : memref<8x8x128xbf16, #tpu.memory_space<vmem>>, vector<1x8x128xbf16>,
    %c7_i32_262 = arith.constant 7 : i32
    %655 = arith.index_cast %c7_i32_262 : i32 to index
    %c0_263 = arith.constant 0 : index
    %c0_264 = arith.constant 0 : index
    %656 = vector.load %arg1[%655, %c0_263, %c0_264] : memref<8x8x512xbf16, #tpu.memory_space<vmem>>, vector<1x8x512xbf16>
    %657 = vector.shape_cast %656 : vector<1x8x512xbf16> to vector<8x512xbf16>
    %658 = arith.extf %657 : vector<8x512xbf16> to vector<8x512xf32>
    %659 = arith.truncf %602 : vector<8x128xf32> to vector<8x128xbf16>
    %c0_265 = arith.constant 0 : index
    %c0_266 = arith.constant 0 : index
    %c0_267 = arith.constant 0 : index
    %660 = vector.load %arg3[%c0_265, %c0_266, %c0_267] : memref<2x128x512xbf16, #tpu.memory_space<vmem>>, vector<1x128x512xbf16>
    %661 = vector.shape_cast %660 : vector<1x128x512xbf16> to vector<128x512xbf16>
    %cst_268 = arith.constant dense<0.000000e+00> : vector<8x512xf32>
    %662 = tpu.matmul %659, %661, %cst_268 {dimension_numbers = #tpu.dot_dimension_numbers<[1], [0], [0], [1], [0, 0, 1, 1], [], []>} : vector<8x128xbf16>, vector<128x512xbf16>, vector<8x512xf32> -> vector<8x512xf32>
    %663 = arith.addf %658, %662 : vector<8x512xf32>
    %664 = vector.extract_strided_slice %663 {offsets = [0, 0], sizes = [8, 128], strides = [1, 1]} : vector<8x512xf32> to vector<8x128xf32>
    %cst_269 = arith.constant 5.000000e-01 : f32
    %665 = vector.broadcast %cst_269 : f32 to vector<8x128xf32>
    %666 = arith.mulf %665, %664 : vector<8x128xf32>
    %667 = math.tanh %666 : vector<8x128xf32>
    %cst_270 = arith.constant 5.000000e-01 : f32
    %668 = vector.broadcast %cst_270 : f32 to vector<8x128xf32>
    %669 = arith.mulf %668, %667 : vector<8x128xf32>
    %cst_271 = arith.constant 5.000000e-01 : f32
    %670 = vector.broadcast %cst_271 : f32 to vector<8x128xf32>
    %671 = arith.addf %669, %670 : vector<8x128xf32>
    %672 = vector.extract_strided_slice %663 {offsets = [0, 128], sizes = [8, 128], strides = [1, 1]} : vector<8x512xf32> to vector<8x128xf32>
    %cst_272 = arith.constant 5.000000e-01 : f32
    %673 = vector.broadcast %cst_272 : f32 to vector<8x128xf32>
    %674 = arith.mulf %673, %672 : vector<8x128xf32>
    %675 = math.tanh %674 : vector<8x128xf32>
    %cst_273 = arith.constant 5.000000e-01 : f32
    %676 = vector.broadcast %cst_273 : f32 to vector<8x128xf32>
    %677 = arith.mulf %676, %675 : vector<8x128xf32>
    %cst_274 = arith.constant 5.000000e-01 : f32
    %678 = vector.broadcast %cst_274 : f32 to vector<8x128xf32>
    %679 = arith.addf %677, %678 : vector<8x128xf32>
    %680 = vector.extract_strided_slice %663 {offsets = [0, 256], sizes = [8, 128], strides = [1, 1]} : vector<8x512xf32> to vector<8x128xf32>
    %681 = math.tanh %680 : vector<8x128xf32>
    %682 = vector.extract_strided_slice %663 {offsets = [0, 384], sizes = [8, 128], strides = [1, 1]} : vector<8x512xf32> to vector<8x128xf32>
    %cst_275 = arith.constant 5.000000e-01 : f32
    %683 = vector.broadcast %cst_275 : f32 to vector<8x128xf32>
    %684 = arith.mulf %683, %682 : vector<8x128xf32>
    %685 = math.tanh %684 : vector<8x128xf32>
    %cst_276 = arith.constant 5.000000e-01 : f32
    %686 = vector.broadcast %cst_276 : f32 to vector<8x128xf32>
    %687 = arith.mulf %686, %685 : vector<8x128xf32>
    %cst_277 = arith.constant 5.000000e-01 : f32
    %688 = vector.broadcast %cst_277 : f32 to vector<8x128xf32>
    %689 = arith.addf %687, %688 : vector<8x128xf32>
    %690 = arith.mulf %679, %600 : vector<8x128xf32>
    %691 = arith.mulf %671, %681 : vector<8x128xf32>
    %692 = arith.addf %690, %691 : vector<8x128xf32>
    %693 = math.tanh %692 : vector<8x128xf32>
    %694 = arith.mulf %689, %693 : vector<8x128xf32>
    %695 = arith.truncf %694 : vector<8x128xf32> to vector<8x128xbf16>
    %696 = arith.index_cast %c7_i32_262 : i32 to index
    %c0_278 = arith.constant 0 : index
    %c0_279 = arith.constant 0 : index
    %697 = vector.load %arg4[%696, %c0_278, %c0_279] : memref<8x8x128xbf16, #tpu.memory_space<vmem>>, vector<1x8x128xbf16>
    %698 = vector.shape_cast %697 : vector<1x8x128xbf16> to vector<8x128xbf16>
    %699 = vector.shape_cast %695 : vector<8x128xbf16> to vector<1x8x128xbf16>
    tpu.vector_store %arg4[%696, %c0_278, %c0_279], %699 {strides = array<i32>} : memref<8x8x128xbf16, #tpu.memory_space<vmem>>, vector<1x8x128xbf16>,
    %c7_i32_280 = arith.constant 7 : i32
    %700 = arith.subi %c7_i32_280, %c7_i32_262 : i32
    %701 = arith.index_cast %700 : i32 to index
    %c0_281 = arith.constant 0 : index
    %c0_282 = arith.constant 0 : index
    %702 = vector.load %arg2[%701, %c0_281, %c0_282] : memref<8x8x512xbf16, #tpu.memory_space<vmem>>, vector<1x8x512xbf16>
    %703 = vector.shape_cast %702 : vector<1x8x512xbf16> to vector<8x512xbf16>
    %704 = arith.extf %703 : vector<8x512xbf16> to vector<8x512xf32>
    %705 = arith.truncf %648 : vector<8x128xf32> to vector<8x128xbf16>
    %c1_283 = arith.constant 1 : index
    %c0_284 = arith.constant 0 : index
    %c0_285 = arith.constant 0 : index
    %706 = vector.load %arg3[%c1_283, %c0_284, %c0_285] : memref<2x128x512xbf16, #tpu.memory_space<vmem>>, vector<1x128x512xbf16>
    %707 = vector.shape_cast %706 : vector<1x128x512xbf16> to vector<128x512xbf16>
    %cst_286 = arith.constant dense<0.000000e+00> : vector<8x512xf32>
    %708 = tpu.matmul %705, %707, %cst_286 {dimension_numbers = #tpu.dot_dimension_numbers<[1], [0], [0], [1], [0, 0, 1, 1], [], []>} : vector<8x128xbf16>, vector<128x512xbf16>, vector<8x512xf32> -> vector<8x512xf32>
    %709 = arith.addf %704, %708 : vector<8x512xf32>
    %710 = vector.extract_strided_slice %709 {offsets = [0, 0], sizes = [8, 128], strides = [1, 1]} : vector<8x512xf32> to vector<8x128xf32>
    %cst_287 = arith.constant 5.000000e-01 : f32
    %711 = vector.broadcast %cst_287 : f32 to vector<8x128xf32>
    %712 = arith.mulf %711, %710 : vector<8x128xf32>
    %713 = math.tanh %712 : vector<8x128xf32>
    %cst_288 = arith.constant 5.000000e-01 : f32
    %714 = vector.broadcast %cst_288 : f32 to vector<8x128xf32>
    %715 = arith.mulf %714, %713 : vector<8x128xf32>
    %cst_289 = arith.constant 5.000000e-01 : f32
    %716 = vector.broadcast %cst_289 : f32 to vector<8x128xf32>
    %717 = arith.addf %715, %716 : vector<8x128xf32>
    %718 = vector.extract_strided_slice %709 {offsets = [0, 128], sizes = [8, 128], strides = [1, 1]} : vector<8x512xf32> to vector<8x128xf32>
    %cst_290 = arith.constant 5.000000e-01 : f32
    %719 = vector.broadcast %cst_290 : f32 to vector<8x128xf32>
    %720 = arith.mulf %719, %718 : vector<8x128xf32>
    %721 = math.tanh %720 : vector<8x128xf32>
    %cst_291 = arith.constant 5.000000e-01 : f32
    %722 = vector.broadcast %cst_291 : f32 to vector<8x128xf32>
    %723 = arith.mulf %722, %721 : vector<8x128xf32>
    %cst_292 = arith.constant 5.000000e-01 : f32
    %724 = vector.broadcast %cst_292 : f32 to vector<8x128xf32>
    %725 = arith.addf %723, %724 : vector<8x128xf32>
    %726 = vector.extract_strided_slice %709 {offsets = [0, 256], sizes = [8, 128], strides = [1, 1]} : vector<8x512xf32> to vector<8x128xf32>
    %727 = math.tanh %726 : vector<8x128xf32>
    %728 = vector.extract_strided_slice %709 {offsets = [0, 384], sizes = [8, 128], strides = [1, 1]} : vector<8x512xf32> to vector<8x128xf32>
    %cst_293 = arith.constant 5.000000e-01 : f32
    %729 = vector.broadcast %cst_293 : f32 to vector<8x128xf32>
    %730 = arith.mulf %729, %728 : vector<8x128xf32>
    %731 = math.tanh %730 : vector<8x128xf32>
    %cst_294 = arith.constant 5.000000e-01 : f32
    %732 = vector.broadcast %cst_294 : f32 to vector<8x128xf32>
    %733 = arith.mulf %732, %731 : vector<8x128xf32>
    %cst_295 = arith.constant 5.000000e-01 : f32
    %734 = vector.broadcast %cst_295 : f32 to vector<8x128xf32>
    %735 = arith.addf %733, %734 : vector<8x128xf32>
    %736 = arith.mulf %725, %646 : vector<8x128xf32>
    %737 = arith.mulf %717, %727 : vector<8x128xf32>
    %738 = arith.addf %736, %737 : vector<8x128xf32>
    %739 = math.tanh %738 : vector<8x128xf32>
    %740 = arith.mulf %735, %739 : vector<8x128xf32>
    %741 = arith.truncf %740 : vector<8x128xf32> to vector<8x128xbf16>
    %c7_i32_296 = arith.constant 7 : i32
    %742 = arith.subi %c7_i32_296, %c7_i32_262 : i32
    %743 = arith.index_cast %742 : i32 to index
    %c0_297 = arith.constant 0 : index
    %c0_298 = arith.constant 0 : index
    %744 = vector.load %arg5[%743, %c0_297, %c0_298] : memref<8x8x128xbf16, #tpu.memory_space<vmem>>, vector<1x8x128xbf16>
    %745 = vector.shape_cast %744 : vector<1x8x128xbf16> to vector<8x128xbf16>
    %746 = vector.shape_cast %741 : vector<8x128xbf16> to vector<1x8x128xbf16>
    tpu.vector_store %arg5[%743, %c0_297, %c0_298], %746 {strides = array<i32>} : memref<8x8x128xbf16, #tpu.memory_space<vmem>>, vector<1x8x128xbf16>,
    %c8_i32 = arith.constant 8 : i32
    %c0_299 = arith.constant 0 : index
    %c0_300 = arith.constant 0 : index
    %c0_301 = arith.constant 0 : index
    %747 = vector.load %arg6[%c0_299, %c0_300, %c0_301] : memref<2x8x128xf32, #tpu.memory_space<vmem>>, vector<1x8x128xf32>
    %748 = vector.shape_cast %747 : vector<1x8x128xf32> to vector<8x128xf32>
    %749 = vector.shape_cast %694 : vector<8x128xf32> to vector<1x8x128xf32>
    tpu.vector_store %arg6[%c0_299, %c0_300, %c0_301], %749 {strides = array<i32>} : memref<2x8x128xf32, #tpu.memory_space<vmem>>, vector<1x8x128xf32>,
    %c0_302 = arith.constant 0 : index
    %c0_303 = arith.constant 0 : index
    %c0_304 = arith.constant 0 : index
    %750 = vector.load %arg7[%c0_302, %c0_303, %c0_304] : memref<2x8x128xf32, #tpu.memory_space<vmem>>, vector<1x8x128xf32>
    %751 = vector.shape_cast %750 : vector<1x8x128xf32> to vector<8x128xf32>
    %752 = vector.shape_cast %692 : vector<8x128xf32> to vector<1x8x128xf32>
    tpu.vector_store %arg7[%c0_302, %c0_303, %c0_304], %752 {strides = array<i32>} : memref<2x8x128xf32, #tpu.memory_space<vmem>>, vector<1x8x128xf32>,
    %c1_305 = arith.constant 1 : index
    %c0_306 = arith.constant 0 : index
    %c0_307 = arith.constant 0 : index
    %753 = vector.load %arg6[%c1_305, %c0_306, %c0_307] : memref<2x8x128xf32, #tpu.memory_space<vmem>>, vector<1x8x128xf32>
    %754 = vector.shape_cast %753 : vector<1x8x128xf32> to vector<8x128xf32>
    %755 = vector.shape_cast %740 : vector<8x128xf32> to vector<1x8x128xf32>
    tpu.vector_store %arg6[%c1_305, %c0_306, %c0_307], %755 {strides = array<i32>} : memref<2x8x128xf32, #tpu.memory_space<vmem>>, vector<1x8x128xf32>,
    %c1_308 = arith.constant 1 : index
    %c0_309 = arith.constant 0 : index
    %c0_310 = arith.constant 0 : index
    %756 = vector.load %arg7[%c1_308, %c0_309, %c0_310] : memref<2x8x128xf32, #tpu.memory_space<vmem>>, vector<1x8x128xf32>
    %757 = vector.shape_cast %756 : vector<1x8x128xf32> to vector<8x128xf32>
    %758 = vector.shape_cast %738 : vector<8x128xf32> to vector<1x8x128xf32>
    tpu.vector_store %arg7[%c1_308, %c0_309, %c0_310], %758 {strides = array<i32>} : memref<2x8x128xf32, #tpu.memory_space<vmem>>, vector<1x8x128xf32>,
    return
  }
  func.func @transform_0(%arg0: i32) -> (i32, i32, i32) {
    %c0_i32 = arith.constant 0 : i32
    %c0_i32_0 = arith.constant 0 : i32
    %c0_i32_1 = arith.constant 0 : i32
    return %arg0, %c0_i32, %c0_i32_0 : i32, i32, i32
  }
  func.func @transform_1(%arg0: i32) -> (i32, i32, i32) {
    %c0_i32 = arith.constant 0 : i32
    %0 = arith.subi %c0_i32, %arg0 : i32
    %c0_i32_0 = arith.constant 0 : i32
    %c0_i32_1 = arith.constant 0 : i32
    %c0_i32_2 = arith.constant 0 : i32
    return %0, %c0_i32_0, %c0_i32_1 : i32, i32, i32
  }
  func.func @transform_2(%arg0: i32) -> (i32, i32, i32) {
    %c0_i32 = arith.constant 0 : i32
    %c0_i32_0 = arith.constant 0 : i32
    %c0_i32_1 = arith.constant 0 : i32
    %c0_i32_2 = arith.constant 0 : i32
    return %c0_i32, %c0_i32_0, %c0_i32_1 : i32, i32, i32
  }
  func.func @transform_3(%arg0: i32) -> (i32, i32, i32) {
    %c0_i32 = arith.constant 0 : i32
    %c0_i32_0 = arith.constant 0 : i32
    %c0_i32_1 = arith.constant 0 : i32
    return %arg0, %c0_i32, %c0_i32_0 : i32, i32, i32
  }
  func.func @transform_4(%arg0: i32) -> (i32, i32, i32) {
    %c0_i32 = arith.constant 0 : i32
    %0 = arith.subi %c0_i32, %arg0 : i32
    %c0_i32_0 = arith.constant 0 : i32
    %c0_i32_1 = arith.constant 0 : i32
    %c0_i32_2 = arith.constant 0 : i32
    return %0, %c0_i32_0, %c0_i32_1 : i32, i32, i32
  }
}

module attributes {stable_mosaic.version = 11 : i64} {
  func.func @_dual_matmul_bias_kernel(%arg0: i32, %arg1: i32, %arg2: i32, %arg3: memref<64x128xbf16, #tpu.memory_space<vmem>>, %arg4: memref<128x128xbf16, #tpu.memory_space<vmem>>, %arg5: memref<64x128xbf16, #tpu.memory_space<vmem>>, %arg6: memref<128x128xbf16, #tpu.memory_space<vmem>>, %arg7: memref<1x128xf32, #tpu.memory_space<vmem>>, %arg8: memref<64x128xf32, #tpu.memory_space<vmem>>, %arg9: memref<64x128xf32, #tpu.memory_space<vmem>>) attributes {dimension_semantics = [#tpu.dimension_semantics<parallel>, #tpu.dimension_semantics<parallel>, #tpu.dimension_semantics<arbitrary>], iteration_bounds = array<i64: 1, 1, 1>, scalar_prefetch = 0 : i64, scratch_operands = 1 : i64, tpu.core_type = #tpu.core_type<tc>, window_params = [{transform_indices = @transform_0, window_bounds = array<i64: 64, 128>}, {transform_indices = @transform_1, window_bounds = array<i64: 128, 128>}, {transform_indices = @transform_2, window_bounds = array<i64: 64, 128>}, {transform_indices = @transform_3, window_bounds = array<i64: 128, 128>}, {transform_indices = @transform_4, window_bounds = array<i64: 1, 128>}, {transform_indices = @transform_5, window_bounds = array<i64: 64, 128>}]} {
    %c0_i32 = arith.constant 0 : i32
    %0 = arith.cmpi eq, %arg2, %c0_i32 : i32
    %1 = arith.extui %0 : i1 to i32
    %c0_i32_0 = arith.constant 0 : i32
    %2 = arith.cmpi ne, %1, %c0_i32_0 : i32
    scf.if %2 {
      %cst_15 = arith.constant 0.000000e+00 : f32
      %16 = vector.broadcast %cst_15 : f32 to vector<64x128xf32>
      %c0_16 = arith.constant 0 : index
      %c0_17 = arith.constant 0 : index
      %17 = vector.load %arg9[%c0_16, %c0_17] : memref<64x128xf32, #tpu.memory_space<vmem>>, vector<64x128xf32>
      tpu.vector_store %arg9[%c0_16, %c0_17], %16 {strides = array<i32>} : memref<64x128xf32, #tpu.memory_space<vmem>>, vector<64x128xf32>,
    } else {
    }
    %c0 = arith.constant 0 : index
    %c0_1 = arith.constant 0 : index
    %3 = vector.load %arg9[%c0, %c0_1] : memref<64x128xf32, #tpu.memory_space<vmem>>, vector<64x128xf32>
    %c0_2 = arith.constant 0 : index
    %c0_3 = arith.constant 0 : index
    %4 = vector.load %arg3[%c0_2, %c0_3] : memref<64x128xbf16, #tpu.memory_space<vmem>>, vector<64x128xbf16>
    %c0_4 = arith.constant 0 : index
    %c0_5 = arith.constant 0 : index
    %5 = vector.load %arg4[%c0_4, %c0_5] : memref<128x128xbf16, #tpu.memory_space<vmem>>, vector<128x128xbf16>
    %cst = arith.constant dense<0.000000e+00> : vector<64x128xf32>
    %6 = tpu.matmul %4, %5, %cst {dimension_numbers = #tpu.dot_dimension_numbers<[1], [0], [0], [1], [0, 0, 1, 1], [], []>} : vector<64x128xbf16>, vector<128x128xbf16>, vector<64x128xf32> -> vector<64x128xf32>
    %c0_6 = arith.constant 0 : index
    %c0_7 = arith.constant 0 : index
    %7 = vector.load %arg5[%c0_6, %c0_7] : memref<64x128xbf16, #tpu.memory_space<vmem>>, vector<64x128xbf16>
    %c0_8 = arith.constant 0 : index
    %c0_9 = arith.constant 0 : index
    %8 = vector.load %arg6[%c0_8, %c0_9] : memref<128x128xbf16, #tpu.memory_space<vmem>>, vector<128x128xbf16>
    %cst_10 = arith.constant dense<0.000000e+00> : vector<64x128xf32>
    %9 = tpu.matmul %7, %8, %cst_10 {dimension_numbers = #tpu.dot_dimension_numbers<[1], [0], [0], [1], [0, 0, 1, 1], [], []>} : vector<64x128xbf16>, vector<128x128xbf16>, vector<64x128xf32> -> vector<64x128xf32>
    %10 = arith.addf %6, %9 : vector<64x128xf32>
    %11 = arith.addf %3, %10 : vector<64x128xf32>
    %c0_11 = arith.constant 0 : index
    %c0_12 = arith.constant 0 : index
    %12 = vector.load %arg9[%c0_11, %c0_12] : memref<64x128xf32, #tpu.memory_space<vmem>>, vector<64x128xf32>
    tpu.vector_store %arg9[%c0_11, %c0_12], %11 {strides = array<i32>} : memref<64x128xf32, #tpu.memory_space<vmem>>, vector<64x128xf32>,
    %c0_i32_13 = arith.constant 0 : i32
    %13 = arith.cmpi eq, %arg2, %c0_i32_13 : i32
    %14 = arith.extui %13 : i1 to i32
    %c0_i32_14 = arith.constant 0 : i32
    %15 = arith.cmpi ne, %14, %c0_i32_14 : i32
    scf.if %15 {
      %c0_15 = arith.constant 0 : index
      %c0_16 = arith.constant 0 : index
      %16 = vector.load %arg9[%c0_15, %c0_16] : memref<64x128xf32, #tpu.memory_space<vmem>>, vector<64x128xf32>
      %c0_17 = arith.constant 0 : index
      %c0_18 = arith.constant 0 : index
      %17 = vector.load %arg7[%c0_17, %c0_18] : memref<1x128xf32, #tpu.memory_space<vmem>>, vector<1x128xf32>
      %18 = vector.broadcast %17 : vector<1x128xf32> to vector<64x128xf32>
      %19 = arith.addf %16, %18 : vector<64x128xf32>
      %c0_19 = arith.constant 0 : index
      %c0_20 = arith.constant 0 : index
      %20 = vector.load %arg8[%c0_19, %c0_20] : memref<64x128xf32, #tpu.memory_space<vmem>>, vector<64x128xf32>
      tpu.vector_store %arg8[%c0_19, %c0_20], %19 {strides = array<i32>} : memref<64x128xf32, #tpu.memory_space<vmem>>, vector<64x128xf32>,
    } else {
    }
    return
  }
  func.func @transform_0(%arg0: i32, %arg1: i32, %arg2: i32) -> (i32, i32) {
    %c0_i32 = arith.constant 0 : i32
    return %arg0, %arg2 : i32, i32
  }
  func.func @transform_1(%arg0: i32, %arg1: i32, %arg2: i32) -> (i32, i32) {
    %c0_i32 = arith.constant 0 : i32
    return %arg2, %arg1 : i32, i32
  }
  func.func @transform_2(%arg0: i32, %arg1: i32, %arg2: i32) -> (i32, i32) {
    %c0_i32 = arith.constant 0 : i32
    return %arg0, %arg2 : i32, i32
  }
  func.func @transform_3(%arg0: i32, %arg1: i32, %arg2: i32) -> (i32, i32) {
    %c0_i32 = arith.constant 0 : i32
    return %arg2, %arg1 : i32, i32
  }
  func.func @transform_4(%arg0: i32, %arg1: i32, %arg2: i32) -> (i32, i32) {
    %c0_i32 = arith.constant 0 : i32
    %c0_i32_0 = arith.constant 0 : i32
    return %c0_i32, %arg1 : i32, i32
  }
  func.func @transform_5(%arg0: i32, %arg1: i32, %arg2: i32) -> (i32, i32) {
    %c0_i32 = arith.constant 0 : i32
    return %arg0, %arg1 : i32, i32
  }
}

</mosaic_0001>

<llo_original>
// kernel: vanilla_lstm_forward.13
$region0: #{vanilla_lstm_forward.13}
  #allocation0 [shape = 'u32[]', space=smem, size = 0x4, offset = 0x4, fixed_abs, tag = 'smem constant byte address 0x4 - core index']
  #allocation1 [shape = 'u32[144,128]{1,0:T(1,128)}', space=vmem, size = 0x12000, scoped, tag = 'internal scratch']
  #allocation2 [shape = 'f32[64,128]{1,0:T(8,128)}', space=vmem, size = 0x8000, scoped, tag = 'scratch operand']
  %s0 = inlined_call_operand.vmem [shape: bf16[64,128], index: 0, kind: input, shape index: {}]
  %s1 = inlined_call_operand.vmem [shape: bf16[128,128], index: 1, kind: input, shape index: {}]
  %s2 = inlined_call_operand.vmem [shape: bf16[64,128], index: 2, kind: input, shape index: {}]
  %s3 = inlined_call_operand.vmem [shape: bf16[128,128], index: 3, kind: input, shape index: {}]
  %s4 = inlined_call_operand.vmem [shape: f32[1,128], index: 4, kind: input, shape index: {}]
  %s5 = inlined_call_operand.vmem [shape: f32[64,128], index: 5, kind: output, shape index: {}]
  %s6 = sld [smem:[#allocation0]]
  $region38: #{vanilla_lstm_forward.13} parent=0
    _
  %s8 = ssub.s32 1, %s6
  %s9 = scalar_select 0, %s8, %s6
  // Predicated region
  $region2: #{vanilla_lstm_forward.13} parent=0 // pred_check
    _
  $region3: #{vanilla_lstm_forward.13} parent=0 // pred_check_branch
    %11 = sbr.rel (0) target = $region5
  $region4: #{vanilla_lstm_forward.13} parent=0 // pred_region
    _
  $region5: #{vanilla_lstm_forward.13} parent=0 // pred_fallthru
    _
  // Predicated region
  $region6: #{vanilla_lstm_forward.13} parent=0 // pred_check
    _
  $region7: #{vanilla_lstm_forward.13} parent=0 // pred_check_branch
    %13 = sbr.rel (0) target = $region9
  $region8: #{vanilla_lstm_forward.13} parent=0 // pred_region
    _
  $region9: #{vanilla_lstm_forward.13} parent=0 // pred_fallthru
    _
  // Predicated region
  $region10: #{vanilla_lstm_forward.13} parent=0 // pred_check
    _
  $region11: #{vanilla_lstm_forward.13} parent=0 // pred_check_branch
    %15 = sbr.rel (0) target = $region13
  $region12: #{vanilla_lstm_forward.13} parent=0 // pred_region
    _
  $region13: #{vanilla_lstm_forward.13} parent=0 // pred_fallthru
    _
  // Predicated region
  $region14: #{vanilla_lstm_forward.13} parent=0 // pred_check
    _
  $region15: #{vanilla_lstm_forward.13} parent=0 // pred_check_branch
    %17 = sbr.rel (0) target = $region17
  $region16: #{vanilla_lstm_forward.13} parent=0 // pred_region
    _
  $region17: #{vanilla_lstm_forward.13} parent=0 // pred_fallthru
    _
  // Predicated region
  $region18: #{vanilla_lstm_forward.13} parent=0 // pred_check
    _
  $region19: #{vanilla_lstm_forward.13} parent=0 // pred_check_branch
    %19 = sbr.rel (0) target = $region21
  $region20: #{vanilla_lstm_forward.13} parent=0 // pred_region
    _
  $region21: #{vanilla_lstm_forward.13} parent=0 // pred_fallthru
    _
  %p21 = scmp.eq.s32.totalorder 0, 0
  // Predicated region
  $region22: #{vanilla_lstm_forward.13} parent=0 // pred_check
    %p22 = pneg %p21
  $region23: #{vanilla_lstm_forward.13} parent=0 // pred_check_branch
    %24 = sbr.rel (%p22) target = $region25
  $region24: #{vanilla_lstm_forward.13} parent=0 // pred_region
    %25 = vst [vmem:[#allocation2] sm:$0xff] 0.0
    %26 = vst [vmem:[#allocation2 + $0x8] sm:$0xff] 0.0
    %27 = vst [vmem:[#allocation2 + $0x10] sm:$0xff] 0.0
    %28 = vst [vmem:[#allocation2 + $0x18] sm:$0xff] 0.0
    %29 = vst [vmem:[#allocation2 + $0x20] sm:$0xff] 0.0
    %30 = vst [vmem:[#allocation2 + $0x28] sm:$0xff] 0.0
    %31 = vst [vmem:[#allocation2 + $0x30] sm:$0xff] 0.0
    %32 = vst [vmem:[#allocation2 + $0x38] sm:$0xff] 0.0
  $region25: #{vanilla_lstm_forward.13} parent=0 // pred_fallthru
    _
  %v33 = vld [vmem:[#allocation2] sm:$0xff]
  %v34 = vld [vmem:[#allocation2 + $0x8] sm:$0xff]
  %v35 = vld [vmem:[#allocation2 + $0x10] sm:$0xff]
  %v36 = vld [vmem:[#allocation2 + $0x18] sm:$0xff]
  %v37 = vld [vmem:[#allocation2 + $0x20] sm:$0xff]
  %v38 = vld [vmem:[#allocation2 + $0x28] sm:$0xff]
  %v39 = vld [vmem:[#allocation2 + $0x30] sm:$0xff]
  %v40 = vld [vmem:[#allocation2 + $0x38] sm:$0xff]
  %v41 = vld [vmem:[%s0] sm:$0xf]
  %v42 = vld [vmem:[%s0 + $0x4] sm:$0xf]
  %v43 = vld [vmem:[%s0 + $0x8] sm:$0xf]
  %v44 = vld [vmem:[%s0 + $0xc] sm:$0xf]
  %v45 = vld [vmem:[%s0 + $0x10] sm:$0xf]
  %v46 = vld [vmem:[%s0 + $0x14] sm:$0xf]
  %v47 = vld [vmem:[%s0 + $0x18] sm:$0xf]
  %v48 = vld [vmem:[%s0 + $0x1c] sm:$0xf]
  %v49 = vld [vmem:[%s1] sm:$0xf]
  %v50 = vld [vmem:[%s1 + $0x4] sm:$0xf]
  %v51 = vld [vmem:[%s1 + $0x8] sm:$0xf]
  %v52 = vld [vmem:[%s1 + $0xc] sm:$0xf]
  %v53 = vld [vmem:[%s1 + $0x10] sm:$0xf]
  %v54 = vld [vmem:[%s1 + $0x14] sm:$0xf]
  %v55 = vld [vmem:[%s1 + $0x18] sm:$0xf]
  %v56 = vld [vmem:[%s1 + $0x1c] sm:$0xf]
  %v57 = vld [vmem:[%s1 + $0x20] sm:$0xf]
  %v58 = vld [vmem:[%s1 + $0x24] sm:$0xf]
  %v59 = vld [vmem:[%s1 + $0x28] sm:$0xf]
  %v60 = vld [vmem:[%s1 + $0x2c] sm:$0xf]
  %v61 = vld [vmem:[%s1 + $0x30] sm:$0xf]
  %v62 = vld [vmem:[%s1 + $0x34] sm:$0xf]
  %v63 = vld [vmem:[%s1 + $0x38] sm:$0xf]
  %v64 = vld [vmem:[%s1 + $0x3c] sm:$0xf]
  %v65 = vld [vmem:[%s2] sm:$0xf]
  %v66 = vld [vmem:[%s2 + $0x4] sm:$0xf]
  %v67 = vld [vmem:[%s2 + $0x8] sm:$0xf]
  %v68 = vld [vmem:[%s2 + $0xc] sm:$0xf]
  %v69 = vld [vmem:[%s2 + $0x10] sm:$0xf]
  %v70 = vld [vmem:[%s2 + $0x14] sm:$0xf]
  %v71 = vld [vmem:[%s2 + $0x18] sm:$0xf]
  %v72 = vld [vmem:[%s2 + $0x1c] sm:$0xf]
  %v73 = vld [vmem:[%s3] sm:$0xf]
  %v74 = vld [vmem:[%s3 + $0x4] sm:$0xf]
  %v75 = vld [vmem:[%s3 + $0x8] sm:$0xf]
  %v76 = vld [vmem:[%s3 + $0xc] sm:$0xf]
  %v77 = vld [vmem:[%s3 + $0x10] sm:$0xf]
  %v78 = vld [vmem:[%s3 + $0x14] sm:$0xf]
  %v79 = vld [vmem:[%s3 + $0x18] sm:$0xf]
  %v80 = vld [vmem:[%s3 + $0x1c] sm:$0xf]
  %v81 = vld [vmem:[%s3 + $0x20] sm:$0xf]
  %v82 = vld [vmem:[%s3 + $0x24] sm:$0xf]
  %v83 = vld [vmem:[%s3 + $0x28] sm:$0xf]
  %v84 = vld [vmem:[%s3 + $0x2c] sm:$0xf]
  %v85 = vld [vmem:[%s3 + $0x30] sm:$0xf]
  %v86 = vld [vmem:[%s3 + $0x34] sm:$0xf]
  %v87 = vld [vmem:[%s3 + $0x38] sm:$0xf]
  %v88 = vld [vmem:[%s3 + $0x3c] sm:$0xf]
  %v97 = vunpack.c.l.b16 %v65
  %v98 = vunpack.c.l.b16 %v66
  %v99 = vunpack.c.l.b16 %v67
  %v100 = vunpack.c.l.b16 %v68
  %v101 = vunpack.c.l.b16 %v69
  %v102 = vunpack.c.l.b16 %v70
  %v103 = vunpack.c.l.b16 %v71
  %v104 = vunpack.c.l.b16 %v72
  %v105 = vpack.c.b16 %v98, %v97
  %v106 = vpack.c.b16 %v100, %v99
  %v107 = vpack.c.b16 %v102, %v101
  %v108 = vpack.c.b16 %v104, %v103
  %v129 = vunpack.c.l.b16 %v73
  %v130 = vunpack.c.l.b16 %v74
  %v131 = vunpack.c.l.b16 %v75
  %v132 = vunpack.c.l.b16 %v76
  %v133 = vunpack.c.l.b16 %v77
  %v134 = vunpack.c.l.b16 %v78
  %v135 = vunpack.c.l.b16 %v79
  %v136 = vunpack.c.l.b16 %v80
  %v137 = vunpack.c.l.b16 %v81
  %v138 = vunpack.c.l.b16 %v82
  %v139 = vunpack.c.l.b16 %v83
  %v140 = vunpack.c.l.b16 %v84
  %v141 = vunpack.c.l.b16 %v85
  %v142 = vunpack.c.l.b16 %v86
  %v143 = vunpack.c.l.b16 %v87
  %v144 = vunpack.c.l.b16 %v88
  %v145 = vpack.c.b16 %v130, %v129
  %v146 = vpack.c.b16 %v132, %v131
  %v147 = vpack.c.b16 %v134, %v133
  %v148 = vpack.c.b16 %v136, %v135
  %v149 = vpack.c.b16 %v138, %v137
  %v150 = vpack.c.b16 %v140, %v139
  %v151 = vpack.c.b16 %v142, %v141
  %v152 = vpack.c.b16 %v144, %v143
  %161 = vmatprep.subr.bf16.mxu0 0
  %162 = vmatpush1.bf16.msra.mxu0 %v145
  %163 = vmatprep.subr.bf16.mxu0 0
  %164 = vmatpush1.bf16.msra.mxu0 %v146
  %165 = vmatprep.subr.bf16.mxu0 0
  %166 = vmatpush1.bf16.msra.mxu0 %v147
  %167 = vmatprep.subr.bf16.mxu0 0
  %168 = vmatpush1.bf16.msra.mxu0 %v148
  %169 = vmatprep.subr.bf16.mxu0 0
  %170 = vmatpush1.bf16.msra.mxu0 %v149
  %171 = vmatprep.subr.bf16.mxu0 0
  %172 = vmatpush1.bf16.msra.mxu0 %v150
  %173 = vmatprep.subr.bf16.mxu0 0
  %174 = vmatpush1.bf16.msra.mxu0 %v151
  %175 = vmatprep.subr.bf16.mxu0 0
  %176 = vmatpush1.bf16.msra.mxu0 %v152
  %177 = vmatprep.subr.bf16.mxu0 0
  %178 = vmatpush1.bf16.msra.mxu0 0
  %179 = vmatprep.subr.bf16.mxu0 0
  %180 = vmatpush1.bf16.msra.mxu0 0
  %181 = vmatprep.subr.bf16.mxu0 0
  %182 = vmatpush1.bf16.msra.mxu0 0
  %183 = vmatprep.subr.bf16.mxu0 0
  %184 = vmatpush1.bf16.msra.mxu0 0
  %185 = vmatprep.subr.bf16.mxu0 0
  %186 = vmatpush1.bf16.msra.mxu0 0
  %187 = vmatprep.subr.bf16.mxu0 0
  %188 = vmatpush1.bf16.msra.mxu0 0
  %189 = vmatprep.subr.bf16.mxu0 0
  %190 = vmatpush1.bf16.msra.mxu0 0
  %191 = vmatprep.subr.bf16.mxu0 0
  %192 = vmatpush1.bf16.msra.mxu0 0
  %193 = vmatprep.mubr.bf16.mxu0 0
  %194 = vmatmul.mubr.bf16.gmra.mrb[0].mxu0 %v105
  %v195 = vpop.f32.mrb[0].mxu0
  %v196 = vadd.f32 0.0, %v195
  %v197 = vpop.f32.mrb[0].mxu0
  %v198 = vpop.f32.mrb[0].mxu0
  %v199 = vadd.f32 0.0, %v198
  %v200 = vpop.f32.mrb[0].mxu0
  %201 = vmatprep.mubr.bf16.mxu0 0
  %202 = vmatmul.mubr.bf16.gmra.mrb[0].mxu0 %v106
  %v203 = vpop.f32.mrb[0].mxu0
  %v204 = vadd.f32 0.0, %v203
  %v205 = vpop.f32.mrb[0].mxu0
  %v206 = vpop.f32.mrb[0].mxu0
  %v207 = vadd.f32 0.0, %v206
  %v208 = vpop.f32.mrb[0].mxu0
  %209 = vmatprep.mubr.bf16.mxu0 0
  %210 = vmatmul.mubr.bf16.gmra.mrb[0].mxu0 %v107
  %v211 = vpop.f32.mrb[0].mxu0
  %v212 = vadd.f32 0.0, %v211
  %v213 = vpop.f32.mrb[0].mxu0
  %v214 = vpop.f32.mrb[0].mxu0
  %v215 = vadd.f32 0.0, %v214
  %v216 = vpop.f32.mrb[0].mxu0
  %217 = vmatprep.mubr.bf16.mxu0 0
  %218 = vmatmul.mubr.bf16.gmra.mrb[0].mxu0 %v108
  %v219 = vpop.f32.mrb[0].mxu0
  %v220 = vadd.f32 0.0, %v219
  %v221 = vpop.f32.mrb[0].mxu0
  %v222 = vpop.f32.mrb[0].mxu0
  %v223 = vadd.f32 0.0, %v222
  %v224 = vpop.f32.mrb[0].mxu0
  %225 = vdwg.mxu0
  %v234 = vunpack.c.l.b16 %v41
  %v235 = vunpack.c.l.b16 %v42
  %v236 = vunpack.c.l.b16 %v43
  %v237 = vunpack.c.l.b16 %v44
  %v238 = vunpack.c.l.b16 %v45
  %v239 = vunpack.c.l.b16 %v46
  %v240 = vunpack.c.l.b16 %v47
  %v241 = vunpack.c.l.b16 %v48
  %v242 = vpack.c.b16 %v235, %v234
  %v243 = vpack.c.b16 %v237, %v236
  %v244 = vpack.c.b16 %v239, %v238
  %v245 = vpack.c.b16 %v241, %v240
  %v266 = vunpack.c.l.b16 %v49
  %v267 = vunpack.c.l.b16 %v50
  %v268 = vunpack.c.l.b16 %v51
  %v269 = vunpack.c.l.b16 %v52
  %v270 = vunpack.c.l.b16 %v53
  %v271 = vunpack.c.l.b16 %v54
  %v272 = vunpack.c.l.b16 %v55
  %v273 = vunpack.c.l.b16 %v56
  %v274 = vunpack.c.l.b16 %v57
  %v275 = vunpack.c.l.b16 %v58
  %v276 = vunpack.c.l.b16 %v59
  %v277 = vunpack.c.l.b16 %v60
  %v278 = vunpack.c.l.b16 %v61
  %v279 = vunpack.c.l.b16 %v62
  %v280 = vunpack.c.l.b16 %v63
  %v281 = vunpack.c.l.b16 %v64
  %v282 = vpack.c.b16 %v267, %v266
  %v283 = vpack.c.b16 %v269, %v268
  %v284 = vpack.c.b16 %v271, %v270
  %v285 = vpack.c.b16 %v273, %v272
  %v286 = vpack.c.b16 %v275, %v274
  %v287 = vpack.c.b16 %v277, %v276
  %v288 = vpack.c.b16 %v279, %v278
  %v289 = vpack.c.b16 %v281, %v280
  %298 = vmatprep.subr.bf16.mxu0 0
  %299 = vmatpush1.bf16.msra.mxu0 %v282
  %300 = vmatprep.subr.bf16.mxu0 0
  %301 = vmatpush1.bf16.msra.mxu0 %v283
  %302 = vmatprep.subr.bf16.mxu0 0
  %303 = vmatpush1.bf16.msra.mxu0 %v284
  %304 = vmatprep.subr.bf16.mxu0 0
  %305 = vmatpush1.bf16.msra.mxu0 %v285
  %306 = vmatprep.subr.bf16.mxu0 0
  %307 = vmatpush1.bf16.msra.mxu0 %v286
  %308 = vmatprep.subr.bf16.mxu0 0
  %309 = vmatpush1.bf16.msra.mxu0 %v287
  %310 = vmatprep.subr.bf16.mxu0 0
  %311 = vmatpush1.bf16.msra.mxu0 %v288
  %312 = vmatprep.subr.bf16.mxu0 0
  %313 = vmatpush1.bf16.msra.mxu0 %v289
  %314 = vmatprep.subr.bf16.mxu0 0
  %315 = vmatpush1.bf16.msra.mxu0 0
  %316 = vmatprep.subr.bf16.mxu0 0
  %317 = vmatpush1.bf16.msra.mxu0 0
  %318 = vmatprep.subr.bf16.mxu0 0
  %319 = vmatpush1.bf16.msra.mxu0 0
  %320 = vmatprep.subr.bf16.mxu0 0
  %321 = vmatpush1.bf16.msra.mxu0 0
  %322 = vmatprep.subr.bf16.mxu0 0
  %323 = vmatpush1.bf16.msra.mxu0 0
  %324 = vmatprep.subr.bf16.mxu0 0
  %325 = vmatpush1.bf16.msra.mxu0 0
  %326 = vmatprep.subr.bf16.mxu0 0
  %327 = vmatpush1.bf16.msra.mxu0 0
  %328 = vmatprep.subr.bf16.mxu0 0
  %329 = vmatpush1.bf16.msra.mxu0 0
  %330 = vmatprep.mubr.bf16.mxu0 0
  %331 = vmatmul.mubr.bf16.gmra.mrb[0].mxu0 %v242
  %v332 = vpop.f32.mrb[0].mxu0
  %v333 = vadd.f32 %v196, %v332
  %v334 = vpop.f32.mrb[0].mxu0
  %v335 = vpop.f32.mrb[0].mxu0
  %v336 = vadd.f32 %v199, %v335
  %v337 = vpop.f32.mrb[0].mxu0
  %338 = vmatprep.mubr.bf16.mxu0 0
  %339 = vmatmul.mubr.bf16.gmra.mrb[0].mxu0 %v243
  %v340 = vpop.f32.mrb[0].mxu0
  %v341 = vadd.f32 %v204, %v340
  %v342 = vpop.f32.mrb[0].mxu0
  %v343 = vpop.f32.mrb[0].mxu0
  %v344 = vadd.f32 %v207, %v343
  %v345 = vpop.f32.mrb[0].mxu0
  %346 = vmatprep.mubr.bf16.mxu0 0
  %347 = vmatmul.mubr.bf16.gmra.mrb[0].mxu0 %v244
  %v348 = vpop.f32.mrb[0].mxu0
  %v349 = vadd.f32 %v212, %v348
  %v350 = vpop.f32.mrb[0].mxu0
  %v351 = vpop.f32.mrb[0].mxu0
  %v352 = vadd.f32 %v215, %v351
  %v353 = vpop.f32.mrb[0].mxu0
  %354 = vmatprep.mubr.bf16.mxu0 0
  %355 = vmatmul.mubr.bf16.gmra.mrb[0].mxu0 %v245
  %v356 = vpop.f32.mrb[0].mxu0
  %v357 = vadd.f32 %v220, %v356
  %v358 = vpop.f32.mrb[0].mxu0
  %v359 = vpop.f32.mrb[0].mxu0
  %v360 = vadd.f32 %v223, %v359
  %v361 = vpop.f32.mrb[0].mxu0
  %362 = vdwg.mxu0
  %v363 = vadd.f32 %v33, %v333
  %v364 = vadd.f32 %v34, %v336
  %v365 = vadd.f32 %v35, %v341
  %v366 = vadd.f32 %v36, %v344
  %v367 = vadd.f32 %v37, %v349
  %v368 = vadd.f32 %v38, %v352
  %v369 = vadd.f32 %v39, %v357
  %v370 = vadd.f32 %v40, %v360
  %371 = vst [vmem:[#allocation2] sm:$0xff] %v363
  %372 = vst [vmem:[#allocation2 + $0x8] sm:$0xff] %v364
  %373 = vst [vmem:[#allocation2 + $0x10] sm:$0xff] %v365
  %374 = vst [vmem:[#allocation2 + $0x18] sm:$0xff] %v366
  %375 = vst [vmem:[#allocation2 + $0x20] sm:$0xff] %v367
  %376 = vst [vmem:[#allocation2 + $0x28] sm:$0xff] %v368
  %377 = vst [vmem:[#allocation2 + $0x30] sm:$0xff] %v369
  %378 = vst [vmem:[#allocation2 + $0x38] sm:$0xff] %v370
  // Predicated region
  $region26: #{vanilla_lstm_forward.13} parent=0 // pred_check
    %p379 = pneg %p21
  $region27: #{vanilla_lstm_forward.13} parent=0 // pred_check_branch
    %381 = sbr.rel (%p379) target = $region29
  $region28: #{vanilla_lstm_forward.13} parent=0 // pred_region
    %v382 = vld [vmem:[#allocation2] sm:$0xff]
    %v383 = vld [vmem:[#allocation2 + $0x8] sm:$0xff]
    %v384 = vld [vmem:[#allocation2 + $0x10] sm:$0xff]
    %v385 = vld [vmem:[#allocation2 + $0x18] sm:$0xff]
    %v386 = vld [vmem:[#allocation2 + $0x20] sm:$0xff]
    %v387 = vld [vmem:[#allocation2 + $0x28] sm:$0xff]
    %v388 = vld [vmem:[#allocation2 + $0x30] sm:$0xff]
    %v389 = vld [vmem:[#allocation2 + $0x38] sm:$0xff]
    %v390 = vld [vmem:[%s4] sm:$0x1]
    %v392 = vlaneseq
    %v393 = vshrl.u32 %v392, 7
    %v394 = vsub.s32 0, %v393
    %v395 = vrot.slane %v390, %v394
    %v397 = vadd.f32 %v382, %v395
    %v398 = vadd.f32 %v383, %v395
    %v399 = vadd.f32 %v384, %v395
    %v400 = vadd.f32 %v385, %v395
    %v401 = vadd.f32 %v386, %v395
    %v402 = vadd.f32 %v387, %v395
    %v403 = vadd.f32 %v388, %v395
    %v404 = vadd.f32 %v389, %v395
    %405 = vst [vmem:[%s5] sm:$0xff] %v397
    %406 = vst [vmem:[%s5 + $0x8] sm:$0xff] %v398
    %407 = vst [vmem:[%s5 + $0x10] sm:$0xff] %v399
    %408 = vst [vmem:[%s5 + $0x18] sm:$0xff] %v400
    %409 = vst [vmem:[%s5 + $0x20] sm:$0xff] %v401
    %410 = vst [vmem:[%s5 + $0x28] sm:$0xff] %v402
    %411 = vst [vmem:[%s5 + $0x30] sm:$0xff] %v403
    %412 = vst [vmem:[%s5 + $0x38] sm:$0xff] %v404
  $region29: #{vanilla_lstm_forward.13} parent=0 // pred_fallthru
    _
  // Predicated region
  $region30: #{vanilla_lstm_forward.13} parent=0 // pred_check
    _
  $region31: #{vanilla_lstm_forward.13} parent=0 // pred_check_branch
    %414 = sbr.rel (0) target = $region33
  $region32: #{vanilla_lstm_forward.13} parent=0 // pred_region
    _
  $region33: #{vanilla_lstm_forward.13} parent=0 // pred_fallthru
    _
  // Predicated region
  $region34: #{vanilla_lstm_forward.13} parent=0 // pred_check
    _
  $region35: #{vanilla_lstm_forward.13} parent=0 // pred_check_branch
    %416 = sbr.rel (0) target = $region37
  $region36: #{vanilla_lstm_forward.13} parent=0 // pred_region
    _
  $region37: #{vanilla_lstm_forward.13} parent=0 // pred_fallthru
    _

// kernel: vanilla_lstm_forward.7
$region0: #{vanilla_lstm_forward.7}
  #allocation0 [shape = 'u32[]', space=smem, size = 0x4, offset = 0x4, fixed_abs, tag = 'smem constant byte address 0x4 - core index']
  #allocation1 [shape = 'u32[144,128]{1,0:T(1,128)}', space=vmem, size = 0x12000, scoped, tag = 'internal scratch']
  #allocation2 [shape = 'f32[64,512]{1,0:T(8,128)}', space=vmem, size = 0x20000, scoped, tag = 'scratch operand']
  %s0 = inlined_call_operand.vmem [shape: bf16[64,128], index: 0, kind: input, shape index: {}]
  %s1 = inlined_call_operand.vmem [shape: bf16[128,512], index: 1, kind: input, shape index: {}]
  %s2 = inlined_call_operand.vmem [shape: f32[1,512], index: 2, kind: input, shape index: {}]
  %s3 = inlined_call_operand.vmem [shape: bf16[64,512], index: 3, kind: output, shape index: {}]
  %s4 = sld [smem:[#allocation0]]
  $region30: #{vanilla_lstm_forward.7} parent=0
    _
  %s6 = ssub.s32 1, %s4
  %s7 = scalar_select 0, %s6, %s4
  // Predicated region
  $region2: #{vanilla_lstm_forward.7} parent=0 // pred_check
    _
  $region3: #{vanilla_lstm_forward.7} parent=0 // pred_check_branch
    %9 = sbr.rel (0) target = $region5
  $region4: #{vanilla_lstm_forward.7} parent=0 // pred_region
    _
  $region5: #{vanilla_lstm_forward.7} parent=0 // pred_fallthru
    _
  // Predicated region
  $region6: #{vanilla_lstm_forward.7} parent=0 // pred_check
    _
  $region7: #{vanilla_lstm_forward.7} parent=0 // pred_check_branch
    %11 = sbr.rel (0) target = $region9
  $region8: #{vanilla_lstm_forward.7} parent=0 // pred_region
    _
  $region9: #{vanilla_lstm_forward.7} parent=0 // pred_fallthru
    _
  // Predicated region
  $region10: #{vanilla_lstm_forward.7} parent=0 // pred_check
    _
  $region11: #{vanilla_lstm_forward.7} parent=0 // pred_check_branch
    %13 = sbr.rel (0) target = $region13
  $region12: #{vanilla_lstm_forward.7} parent=0 // pred_region
    _
  $region13: #{vanilla_lstm_forward.7} parent=0 // pred_fallthru
    _
  %p15 = scmp.eq.s32.totalorder 0, 0
  // Predicated region
  $region14: #{vanilla_lstm_forward.7} parent=0 // pred_check
    %p16 = pneg %p15
  $region15: #{vanilla_lstm_forward.7} parent=0 // pred_check_branch
    %18 = sbr.rel (%p16) target = $region17
  $region16: #{vanilla_lstm_forward.7} parent=0 // pred_region
    %19 = vst [vmem:[#allocation2] sm:$0xff] 0.0
    %20 = vst [vmem:[#allocation2 + $0x8] sm:$0xff] 0.0
    %21 = vst [vmem:[#allocation2 + $0x10] sm:$0xff] 0.0
    %22 = vst [vmem:[#allocation2 + $0x18] sm:$0xff] 0.0
    %23 = vst [vmem:[#allocation2 + $0x20] sm:$0xff] 0.0
    %24 = vst [vmem:[#allocation2 + $0x28] sm:$0xff] 0.0
    %25 = vst [vmem:[#allocation2 + $0x30] sm:$0xff] 0.0
    %26 = vst [vmem:[#allocation2 + $0x38] sm:$0xff] 0.0
    %27 = vst [vmem:[#allocation2 + $0x40] sm:$0xff] 0.0
    %28 = vst [vmem:[#allocation2 + $0x48] sm:$0xff] 0.0
    %29 = vst [vmem:[#allocation2 + $0x50] sm:$0xff] 0.0
    %30 = vst [vmem:[#allocation2 + $0x58] sm:$0xff] 0.0
    %31 = vst [vmem:[#allocation2 + $0x60] sm:$0xff] 0.0
    %32 = vst [vmem:[#allocation2 + $0x68] sm:$0xff] 0.0
    %33 = vst [vmem:[#allocation2 + $0x70] sm:$0xff] 0.0
    %34 = vst [vmem:[#allocation2 + $0x78] sm:$0xff] 0.0
    %35 = vst [vmem:[#allocation2 + $0x80] sm:$0xff] 0.0
    %36 = vst [vmem:[#allocation2 + $0x88] sm:$0xff] 0.0
    %37 = vst [vmem:[#allocation2 + $0x90] sm:$0xff] 0.0
    %38 = vst [vmem:[#allocation2 + $0x98] sm:$0xff] 0.0
    %39 = vst [vmem:[#allocation2 + $0xa0] sm:$0xff] 0.0
    %40 = vst [vmem:[#allocation2 + $0xa8] sm:$0xff] 0.0
    %41 = vst [vmem:[#allocation2 + $0xb0] sm:$0xff] 0.0
    %42 = vst [vmem:[#allocation2 + $0xb8] sm:$0xff] 0.0
    %43 = vst [vmem:[#allocation2 + $0xc0] sm:$0xff] 0.0
    %44 = vst [vmem:[#allocation2 + $0xc8] sm:$0xff] 0.0
    %45 = vst [vmem:[#allocation2 + $0xd0] sm:$0xff] 0.0
    %46 = vst [vmem:[#allocation2 + $0xd8] sm:$0xff] 0.0
    %47 = vst [vmem:[#allocation2 + $0xe0] sm:$0xff] 0.0
    %48 = vst [vmem:[#allocation2 + $0xe8] sm:$0xff] 0.0
    %49 = vst [vmem:[#allocation2 + $0xf0] sm:$0xff] 0.0
    %50 = vst [vmem:[#allocation2 + $0xf8] sm:$0xff] 0.0
  $region17: #{vanilla_lstm_forward.7} parent=0 // pred_fallthru
    _
  %v51 = vld [vmem:[#allocation2] sm:$0xff]
  %v52 = vld [vmem:[#allocation2 + $0x8] sm:$0xff]
  %v53 = vld [vmem:[#allocation2 + $0x10] sm:$0xff]
  %v54 = vld [vmem:[#allocation2 + $0x18] sm:$0xff]
  %v55 = vld [vmem:[#allocation2 + $0x20] sm:$0xff]
  %v56 = vld [vmem:[#allocation2 + $0x28] sm:$0xff]
  %v57 = vld [vmem:[#allocation2 + $0x30] sm:$0xff]
  %v58 = vld [vmem:[#allocation2 + $0x38] sm:$0xff]
  %v59 = vld [vmem:[#allocation2 + $0x40] sm:$0xff]
  %v60 = vld [vmem:[#allocation2 + $0x48] sm:$0xff]
  %v61 = vld [vmem:[#allocation2 + $0x50] sm:$0xff]
  %v62 = vld [vmem:[#allocation2 + $0x58] sm:$0xff]
  %v63 = vld [vmem:[#allocation2 + $0x60] sm:$0xff]
  %v64 = vld [vmem:[#allocation2 + $0x68] sm:$0xff]
  %v65 = vld [vmem:[#allocation2 + $0x70] sm:$0xff]
  %v66 = vld [vmem:[#allocation2 + $0x78] sm:$0xff]
  %v67 = vld [vmem:[#allocation2 + $0x80] sm:$0xff]
  %v68 = vld [vmem:[#allocation2 + $0x88] sm:$0xff]
  %v69 = vld [vmem:[#allocation2 + $0x90] sm:$0xff]
  %v70 = vld [vmem:[#allocation2 + $0x98] sm:$0xff]
  %v71 = vld [vmem:[#allocation2 + $0xa0] sm:$0xff]
  %v72 = vld [vmem:[#allocation2 + $0xa8] sm:$0xff]
  %v73 = vld [vmem:[#allocation2 + $0xb0] sm:$0xff]
  %v74 = vld [vmem:[#allocation2 + $0xb8] sm:$0xff]
  %v75 = vld [vmem:[#allocation2 + $0xc0] sm:$0xff]
  %v76 = vld [vmem:[#allocation2 + $0xc8] sm:$0xff]
  %v77 = vld [vmem:[#allocation2 + $0xd0] sm:$0xff]
  %v78 = vld [vmem:[#allocation2 + $0xd8] sm:$0xff]
  %v79 = vld [vmem:[#allocation2 + $0xe0] sm:$0xff]
  %v80 = vld [vmem:[#allocation2 + $0xe8] sm:$0xff]
  %v81 = vld [vmem:[#allocation2 + $0xf0] sm:$0xff]
  %v82 = vld [vmem:[#allocation2 + $0xf8] sm:$0xff]
  %v83 = vld [vmem:[%s0] sm:$0xf]
  %v84 = vld [vmem:[%s0 + $0x4] sm:$0xf]
  %v85 = vld [vmem:[%s0 + $0x8] sm:$0xf]
  %v86 = vld [vmem:[%s0 + $0xc] sm:$0xf]
  %v87 = vld [vmem:[%s0 + $0x10] sm:$0xf]
  %v88 = vld [vmem:[%s0 + $0x14] sm:$0xf]
  %v89 = vld [vmem:[%s0 + $0x18] sm:$0xf]
  %v90 = vld [vmem:[%s0 + $0x1c] sm:$0xf]
  %v91 = vld [vmem:[%s1] sm:$0xff]
  %v92 = vld [vmem:[%s1 + $0x8] sm:$0xff]
  %v93 = vld [vmem:[%s1 + $0x10] sm:$0xff]
  %v94 = vld [vmem:[%s1 + $0x18] sm:$0xff]
  %v95 = vld [vmem:[%s1 + $0x20] sm:$0xff]
  %v96 = vld [vmem:[%s1 + $0x28] sm:$0xff]
  %v97 = vld [vmem:[%s1 + $0x30] sm:$0xff]
  %v98 = vld [vmem:[%s1 + $0x38] sm:$0xff]
  %v99 = vld [vmem:[%s1 + $0x40] sm:$0xff]
  %v100 = vld [vmem:[%s1 + $0x48] sm:$0xff]
  %v101 = vld [vmem:[%s1 + $0x50] sm:$0xff]
  %v102 = vld [vmem:[%s1 + $0x58] sm:$0xff]
  %v103 = vld [vmem:[%s1 + $0x60] sm:$0xff]
  %v104 = vld [vmem:[%s1 + $0x68] sm:$0xff]
  %v105 = vld [vmem:[%s1 + $0x70] sm:$0xff]
  %v106 = vld [vmem:[%s1 + $0x78] sm:$0xff]
  %v107 = vld [vmem:[%s1 + $0x80] sm:$0xff]
  %v108 = vld [vmem:[%s1 + $0x88] sm:$0xff]
  %v109 = vld [vmem:[%s1 + $0x90] sm:$0xff]
  %v110 = vld [vmem:[%s1 + $0x98] sm:$0xff]
  %v111 = vld [vmem:[%s1 + $0xa0] sm:$0xff]
  %v112 = vld [vmem:[%s1 + $0xa8] sm:$0xff]
  %v113 = vld [vmem:[%s1 + $0xb0] sm:$0xff]
  %v114 = vld [vmem:[%s1 + $0xb8] sm:$0xff]
  %v115 = vld [vmem:[%s1 + $0xc0] sm:$0xff]
  %v116 = vld [vmem:[%s1 + $0xc8] sm:$0xff]
  %v117 = vld [vmem:[%s1 + $0xd0] sm:$0xff]
  %v118 = vld [vmem:[%s1 + $0xd8] sm:$0xff]
  %v119 = vld [vmem:[%s1 + $0xe0] sm:$0xff]
  %v120 = vld [vmem:[%s1 + $0xe8] sm:$0xff]
  %v121 = vld [vmem:[%s1 + $0xf0] sm:$0xff]
  %v122 = vld [vmem:[%s1 + $0xf8] sm:$0xff]
  %v131 = vunpack.c.l.b16 %v83
  %v132 = vunpack.c.l.b16 %v84
  %v133 = vunpack.c.l.b16 %v85
  %v134 = vunpack.c.l.b16 %v86
  %v135 = vunpack.c.l.b16 %v87
  %v136 = vunpack.c.l.b16 %v88
  %v137 = vunpack.c.l.b16 %v89
  %v138 = vunpack.c.l.b16 %v90
  %v139 = vpack.c.b16 %v132, %v131
  %v140 = vpack.c.b16 %v134, %v133
  %v141 = vpack.c.b16 %v136, %v135
  %v142 = vpack.c.b16 %v138, %v137
  %v179 = vunpack.c.l.b16 %v91
  %v180 = vunpack.c.h.b16 %v91
  %v181 = vunpack.c.l.b16 %v92
  %v182 = vunpack.c.h.b16 %v92
  %v183 = vunpack.c.l.b16 %v93
  %v184 = vunpack.c.h.b16 %v93
  %v185 = vunpack.c.l.b16 %v94
  %v186 = vunpack.c.h.b16 %v94
  %v187 = vunpack.c.l.b16 %v95
  %v188 = vunpack.c.h.b16 %v95
  %v189 = vunpack.c.l.b16 %v96
  %v190 = vunpack.c.h.b16 %v96
  %v191 = vunpack.c.l.b16 %v97
  %v192 = vunpack.c.h.b16 %v97
  %v193 = vunpack.c.l.b16 %v98
  %v194 = vunpack.c.h.b16 %v98
  %v195 = vunpack.c.l.b16 %v99
  %v196 = vunpack.c.h.b16 %v99
  %v197 = vunpack.c.l.b16 %v100
  %v198 = vunpack.c.h.b16 %v100
  %v199 = vunpack.c.l.b16 %v101
  %v200 = vunpack.c.h.b16 %v101
  %v201 = vunpack.c.l.b16 %v102
  %v202 = vunpack.c.h.b16 %v102
  %v203 = vunpack.c.l.b16 %v103
  %v204 = vunpack.c.h.b16 %v103
  %v205 = vunpack.c.l.b16 %v104
  %v206 = vunpack.c.h.b16 %v104
  %v207 = vunpack.c.l.b16 %v105
  %v208 = vunpack.c.h.b16 %v105
  %v209 = vunpack.c.l.b16 %v106
  %v210 = vunpack.c.h.b16 %v106
  %v211 = vunpack.c.l.b16 %v107
  %v212 = vunpack.c.h.b16 %v107
  %v213 = vunpack.c.l.b16 %v108
  %v214 = vunpack.c.h.b16 %v108
  %v215 = vunpack.c.l.b16 %v109
  %v216 = vunpack.c.h.b16 %v109
  %v217 = vunpack.c.l.b16 %v110
  %v218 = vunpack.c.h.b16 %v110
  %v219 = vunpack.c.l.b16 %v111
  %v220 = vunpack.c.h.b16 %v111
  %v221 = vunpack.c.l.b16 %v112
  %v222 = vunpack.c.h.b16 %v112
  %v223 = vunpack.c.l.b16 %v113
  %v224 = vunpack.c.h.b16 %v113
  %v225 = vunpack.c.l.b16 %v114
  %v226 = vunpack.c.h.b16 %v114
  %v227 = vunpack.c.l.b16 %v115
  %v228 = vunpack.c.h.b16 %v115
  %v229 = vunpack.c.l.b16 %v116
  %v230 = vunpack.c.h.b16 %v116
  %v231 = vunpack.c.l.b16 %v117
  %v232 = vunpack.c.h.b16 %v117
  %v233 = vunpack.c.l.b16 %v118
  %v234 = vunpack.c.h.b16 %v118
  %v235 = vunpack.c.l.b16 %v119
  %v236 = vunpack.c.h.b16 %v119
  %v237 = vunpack.c.l.b16 %v120
  %v238 = vunpack.c.h.b16 %v120
  %v239 = vunpack.c.l.b16 %v121
  %v240 = vunpack.c.h.b16 %v121
  %v241 = vunpack.c.l.b16 %v122
  %v242 = vunpack.c.h.b16 %v122
  %v243 = vpack.c.b16 %v183, %v179
  %v244 = vpack.c.b16 %v184, %v180
  %v245 = vpack.c.b16 %v185, %v181
  %v246 = vpack.c.b16 %v186, %v182
  %v247 = vpack.c.b16 %v191, %v187
  %v248 = vpack.c.b16 %v192, %v188
  %v249 = vpack.c.b16 %v193, %v189
  %v250 = vpack.c.b16 %v194, %v190
  %v251 = vpack.c.b16 %v199, %v195
  %v252 = vpack.c.b16 %v200, %v196
  %v253 = vpack.c.b16 %v201, %v197
  %v254 = vpack.c.b16 %v202, %v198
  %v255 = vpack.c.b16 %v207, %v203
  %v256 = vpack.c.b16 %v208, %v204
  %v257 = vpack.c.b16 %v209, %v205
  %v258 = vpack.c.b16 %v210, %v206
  %v259 = vpack.c.b16 %v215, %v211
  %v260 = vpack.c.b16 %v216, %v212
  %v261 = vpack.c.b16 %v217, %v213
  %v262 = vpack.c.b16 %v218, %v214
  %v263 = vpack.c.b16 %v223, %v219
  %v264 = vpack.c.b16 %v224, %v220
  %v265 = vpack.c.b16 %v225, %v221
  %v266 = vpack.c.b16 %v226, %v222
  %v267 = vpack.c.b16 %v231, %v227
  %v268 = vpack.c.b16 %v232, %v228
  %v269 = vpack.c.b16 %v233, %v229
  %v270 = vpack.c.b16 %v234, %v230
  %v271 = vpack.c.b16 %v239, %v235
  %v272 = vpack.c.b16 %v240, %v236
  %v273 = vpack.c.b16 %v241, %v237
  %v274 = vpack.c.b16 %v242, %v238
  %307 = vmatprep.subr.bf16.mxu0 %v244
  %308 = vmatpush1.bf16.msra.mxu0 %v243
  %309 = vmatprep.subr.bf16.mxu0 %v248
  %310 = vmatpush1.bf16.msra.mxu0 %v247
  %311 = vmatprep.subr.bf16.mxu0 %v252
  %312 = vmatpush1.bf16.msra.mxu0 %v251
  %313 = vmatprep.subr.bf16.mxu0 %v256
  %314 = vmatpush1.bf16.msra.mxu0 %v255
  %315 = vmatprep.subr.bf16.mxu0 %v260
  %316 = vmatpush1.bf16.msra.mxu0 %v259
  %317 = vmatprep.subr.bf16.mxu0 %v264
  %318 = vmatpush1.bf16.msra.mxu0 %v263
  %319 = vmatprep.subr.bf16.mxu0 %v268
  %320 = vmatpush1.bf16.msra.mxu0 %v267
  %321 = vmatprep.subr.bf16.mxu0 %v272
  %322 = vmatpush1.bf16.msra.mxu0 %v271
  %323 = vmatprep.subr.bf16.mxu0 0
  %324 = vmatpush1.bf16.msra.mxu0 0
  %325 = vmatprep.subr.bf16.mxu0 0
  %326 = vmatpush1.bf16.msra.mxu0 0
  %327 = vmatprep.subr.bf16.mxu0 0
  %328 = vmatpush1.bf16.msra.mxu0 0
  %329 = vmatprep.subr.bf16.mxu0 0
  %330 = vmatpush1.bf16.msra.mxu0 0
  %331 = vmatprep.subr.bf16.mxu0 0
  %332 = vmatpush1.bf16.msra.mxu0 0
  %333 = vmatprep.subr.bf16.mxu0 0
  %334 = vmatpush1.bf16.msra.mxu0 0
  %335 = vmatprep.subr.bf16.mxu0 0
  %336 = vmatpush1.bf16.msra.mxu0 0
  %337 = vmatprep.subr.bf16.mxu0 0
  %338 = vmatpush1.bf16.msra.mxu0 0
  %339 = vmatprep.mubr.bf16.mxu0 0
  %340 = vmatmul.mubr.bf16.gmra.mrb[0].mxu0 %v139
  %v341 = vpop.f32.mrb[0].mxu0
  %v342 = vadd.f32 0.0, %v341
  %v343 = vpop.f32.mrb[0].mxu0
  %v344 = vadd.f32 0.0, %v343
  %v345 = vpop.f32.mrb[0].mxu0
  %v346 = vadd.f32 0.0, %v345
  %v347 = vpop.f32.mrb[0].mxu0
  %v348 = vadd.f32 0.0, %v347
  %349 = vmatprep.mubr.bf16.mxu0 0
  %350 = vmatmul.mubr.bf16.gmra.mrb[0].mxu0 %v140
  %v351 = vpop.f32.mrb[0].mxu0
  %v352 = vadd.f32 0.0, %v351
  %v353 = vpop.f32.mrb[0].mxu0
  %v354 = vadd.f32 0.0, %v353
  %v355 = vpop.f32.mrb[0].mxu0
  %v356 = vadd.f32 0.0, %v355
  %v357 = vpop.f32.mrb[0].mxu0
  %v358 = vadd.f32 0.0, %v357
  %359 = vmatprep.mubr.bf16.mxu0 0
  %360 = vmatmul.mubr.bf16.gmra.mrb[0].mxu0 %v141
  %v361 = vpop.f32.mrb[0].mxu0
  %v362 = vadd.f32 0.0, %v361
  %v363 = vpop.f32.mrb[0].mxu0
  %v364 = vadd.f32 0.0, %v363
  %v365 = vpop.f32.mrb[0].mxu0
  %v366 = vadd.f32 0.0, %v365
  %v367 = vpop.f32.mrb[0].mxu0
  %v368 = vadd.f32 0.0, %v367
  %369 = vmatprep.mubr.bf16.mxu0 0
  %370 = vmatmul.mubr.bf16.gmra.mrb[0].mxu0 %v142
  %v371 = vpop.f32.mrb[0].mxu0
  %v372 = vadd.f32 0.0, %v371
  %v373 = vpop.f32.mrb[0].mxu0
  %v374 = vadd.f32 0.0, %v373
  %v375 = vpop.f32.mrb[0].mxu0
  %v376 = vadd.f32 0.0, %v375
  %v377 = vpop.f32.mrb[0].mxu0
  %v378 = vadd.f32 0.0, %v377
  %379 = vdwg.mxu0
  %380 = vmatprep.subr.bf16.mxu0 %v246
  %381 = vmatpush1.bf16.msra.mxu0 %v245
  %382 = vmatprep.subr.bf16.mxu0 %v250
  %383 = vmatpush1.bf16.msra.mxu0 %v249
  %384 = vmatprep.subr.bf16.mxu0 %v254
  %385 = vmatpush1.bf16.msra.mxu0 %v253
  %386 = vmatprep.subr.bf16.mxu0 %v258
  %387 = vmatpush1.bf16.msra.mxu0 %v257
  %388 = vmatprep.subr.bf16.mxu0 %v262
  %389 = vmatpush1.bf16.msra.mxu0 %v261
  %390 = vmatprep.subr.bf16.mxu0 %v266
  %391 = vmatpush1.bf16.msra.mxu0 %v265
  %392 = vmatprep.subr.bf16.mxu0 %v270
  %393 = vmatpush1.bf16.msra.mxu0 %v269
  %394 = vmatprep.subr.bf16.mxu0 %v274
  %395 = vmatpush1.bf16.msra.mxu0 %v273
  %396 = vmatprep.subr.bf16.mxu0 0
  %397 = vmatpush1.bf16.msra.mxu0 0
  %398 = vmatprep.subr.bf16.mxu0 0
  %399 = vmatpush1.bf16.msra.mxu0 0
  %400 = vmatprep.subr.bf16.mxu0 0
  %401 = vmatpush1.bf16.msra.mxu0 0
  %402 = vmatprep.subr.bf16.mxu0 0
  %403 = vmatpush1.bf16.msra.mxu0 0
  %404 = vmatprep.subr.bf16.mxu0 0
  %405 = vmatpush1.bf16.msra.mxu0 0
  %406 = vmatprep.subr.bf16.mxu0 0
  %407 = vmatpush1.bf16.msra.mxu0 0
  %408 = vmatprep.subr.bf16.mxu0 0
  %409 = vmatpush1.bf16.msra.mxu0 0
  %410 = vmatprep.subr.bf16.mxu0 0
  %411 = vmatpush1.bf16.msra.mxu0 0
  %412 = vmatprep.mubr.bf16.mxu0 0
  %413 = vmatmul.mubr.bf16.gmra.mrb[0].mxu0 %v139
  %v414 = vpop.f32.mrb[0].mxu0
  %v415 = vadd.f32 0.0, %v414
  %v416 = vpop.f32.mrb[0].mxu0
  %v417 = vadd.f32 0.0, %v416
  %v418 = vpop.f32.mrb[0].mxu0
  %v419 = vadd.f32 0.0, %v418
  %v420 = vpop.f32.mrb[0].mxu0
  %v421 = vadd.f32 0.0, %v420
  %422 = vmatprep.mubr.bf16.mxu0 0
  %423 = vmatmul.mubr.bf16.gmra.mrb[0].mxu0 %v140
  %v424 = vpop.f32.mrb[0].mxu0
  %v425 = vadd.f32 0.0, %v424
  %v426 = vpop.f32.mrb[0].mxu0
  %v427 = vadd.f32 0.0, %v426
  %v428 = vpop.f32.mrb[0].mxu0
  %v429 = vadd.f32 0.0, %v428
  %v430 = vpop.f32.mrb[0].mxu0
  %v431 = vadd.f32 0.0, %v430
  %432 = vmatprep.mubr.bf16.mxu0 0
  %433 = vmatmul.mubr.bf16.gmra.mrb[0].mxu0 %v141
  %v434 = vpop.f32.mrb[0].mxu0
  %v435 = vadd.f32 0.0, %v434
  %v436 = vpop.f32.mrb[0].mxu0
  %v437 = vadd.f32 0.0, %v436
  %v438 = vpop.f32.mrb[0].mxu0
  %v439 = vadd.f32 0.0, %v438
  %v440 = vpop.f32.mrb[0].mxu0
  %v441 = vadd.f32 0.0, %v440
  %442 = vmatprep.mubr.bf16.mxu0 0
  %443 = vmatmul.mubr.bf16.gmra.mrb[0].mxu0 %v142
  %v444 = vpop.f32.mrb[0].mxu0
  %v445 = vadd.f32 0.0, %v444
  %v446 = vpop.f32.mrb[0].mxu0
  %v447 = vadd.f32 0.0, %v446
  %v448 = vpop.f32.mrb[0].mxu0
  %v449 = vadd.f32 0.0, %v448
  %v450 = vpop.f32.mrb[0].mxu0
  %v451 = vadd.f32 0.0, %v450
  %452 = vdwg.mxu0
  %v453 = vadd.f32 %v51, %v342
  %v454 = vadd.f32 %v52, %v344
  %v455 = vadd.f32 %v53, %v415
  %v456 = vadd.f32 %v54, %v417
  %v457 = vadd.f32 %v55, %v346
  %v458 = vadd.f32 %v56, %v348
  %v459 = vadd.f32 %v57, %v419
  %v460 = vadd.f32 %v58, %v421
  %v461 = vadd.f32 %v59, %v352
  %v462 = vadd.f32 %v60, %v354
  %v463 = vadd.f32 %v61, %v425
  %v464 = vadd.f32 %v62, %v427
  %v465 = vadd.f32 %v63, %v356
  %v466 = vadd.f32 %v64, %v358
  %v467 = vadd.f32 %v65, %v429
  %v468 = vadd.f32 %v66, %v431
  %v469 = vadd.f32 %v67, %v362
  %v470 = vadd.f32 %v68, %v364
  %v471 = vadd.f32 %v69, %v435
  %v472 = vadd.f32 %v70, %v437
  %v473 = vadd.f32 %v71, %v366
  %v474 = vadd.f32 %v72, %v368
  %v475 = vadd.f32 %v73, %v439
  %v476 = vadd.f32 %v74, %v441
  %v477 = vadd.f32 %v75, %v372
  %v478 = vadd.f32 %v76, %v374
  %v479 = vadd.f32 %v77, %v445
  %v480 = vadd.f32 %v78, %v447
  %v481 = vadd.f32 %v79, %v376
  %v482 = vadd.f32 %v80, %v378
  %v483 = vadd.f32 %v81, %v449
  %v484 = vadd.f32 %v82, %v451
  %485 = vst [vmem:[#allocation2] sm:$0xff] %v453
  %486 = vst [vmem:[#allocation2 + $0x8] sm:$0xff] %v454
  %487 = vst [vmem:[#allocation2 + $0x10] sm:$0xff] %v455
  %488 = vst [vmem:[#allocation2 + $0x18] sm:$0xff] %v456
  %489 = vst [vmem:[#allocation2 + $0x20] sm:$0xff] %v457
  %490 = vst [vmem:[#allocation2 + $0x28] sm:$0xff] %v458
  %491 = vst [vmem:[#allocation2 + $0x30] sm:$0xff] %v459
  %492 = vst [vmem:[#allocation2 + $0x38] sm:$0xff] %v460
  %493 = vst [vmem:[#allocation2 + $0x40] sm:$0xff] %v461
  %494 = vst [vmem:[#allocation2 + $0x48] sm:$0xff] %v462
  %495 = vst [vmem:[#allocation2 + $0x50] sm:$0xff] %v463
  %496 = vst [vmem:[#allocation2 + $0x58] sm:$0xff] %v464
  %497 = vst [vmem:[#allocation2 + $0x60] sm:$0xff] %v465
  %498 = vst [vmem:[#allocation2 + $0x68] sm:$0xff] %v466
  %499 = vst [vmem:[#allocation2 + $0x70] sm:$0xff] %v467
  %500 = vst [vmem:[#allocation2 + $0x78] sm:$0xff] %v468
  %501 = vst [vmem:[#allocation2 + $0x80] sm:$0xff] %v469
  %502 = vst [vmem:[#allocation2 + $0x88] sm:$0xff] %v470
  %503 = vst [vmem:[#allocation2 + $0x90] sm:$0xff] %v471
  %504 = vst [vmem:[#allocation2 + $0x98] sm:$0xff] %v472
  %505 = vst [vmem:[#allocation2 + $0xa0] sm:$0xff] %v473
  %506 = vst [vmem:[#allocation2 + $0xa8] sm:$0xff] %v474
  %507 = vst [vmem:[#allocation2 + $0xb0] sm:$0xff] %v475
  %508 = vst [vmem:[#allocation2 + $0xb8] sm:$0xff] %v476
  %509 = vst [vmem:[#allocation2 + $0xc0] sm:$0xff] %v477
  %510 = vst [vmem:[#allocation2 + $0xc8] sm:$0xff] %v478
  %511 = vst [vmem:[#allocation2 + $0xd0] sm:$0xff] %v479
  %512 = vst [vmem:[#allocation2 + $0xd8] sm:$0xff] %v480
  %513 = vst [vmem:[#allocation2 + $0xe0] sm:$0xff] %v481
  %514 = vst [vmem:[#allocation2 + $0xe8] sm:$0xff] %v482
  %515 = vst [vmem:[#allocation2 + $0xf0] sm:$0xff] %v483
  %516 = vst [vmem:[#allocation2 + $0xf8] sm:$0xff] %v484
  // Predicated region
  $region18: #{vanilla_lstm_forward.7} parent=0 // pred_check
    %p517 = pneg %p15
  $region19: #{vanilla_lstm_forward.7} parent=0 // pred_check_branch
    %519 = sbr.rel (%p517) target = $region21
  $region20: #{vanilla_lstm_forward.7} parent=0 // pred_region
    %v520 = vld [vmem:[#allocation2] sm:$0xff]
    %v521 = vld [vmem:[#allocation2 + $0x8] sm:$0xff]
    %v522 = vld [vmem:[#allocation2 + $0x10] sm:$0xff]
    %v523 = vld [vmem:[#allocation2 + $0x18] sm:$0xff]
    %v524 = vld [vmem:[#allocation2 + $0x20] sm:$0xff]
    %v525 = vld [vmem:[#allocation2 + $0x28] sm:$0xff]
    %v526 = vld [vmem:[#allocation2 + $0x30] sm:$0xff]
    %v527 = vld [vmem:[#allocation2 + $0x38] sm:$0xff]
    %v528 = vld [vmem:[#allocation2 + $0x40] sm:$0xff]
    %v529 = vld [vmem:[#allocation2 + $0x48] sm:$0xff]
    %v530 = vld [vmem:[#allocation2 + $0x50] sm:$0xff]
    %v531 = vld [vmem:[#allocation2 + $0x58] sm:$0xff]
    %v532 = vld [vmem:[#allocation2 + $0x60] sm:$0xff]
    %v533 = vld [vmem:[#allocation2 + $0x68] sm:$0xff]
    %v534 = vld [vmem:[#allocation2 + $0x70] sm:$0xff]
    %v535 = vld [vmem:[#allocation2 + $0x78] sm:$0xff]
    %v536 = vld [vmem:[#allocation2 + $0x80] sm:$0xff]
    %v537 = vld [vmem:[#allocation2 + $0x88] sm:$0xff]
    %v538 = vld [vmem:[#allocation2 + $0x90] sm:$0xff]
    %v539 = vld [vmem:[#allocation2 + $0x98] sm:$0xff]
    %v540 = vld [vmem:[#allocation2 + $0xa0] sm:$0xff]
    %v541 = vld [vmem:[#allocation2 + $0xa8] sm:$0xff]
    %v542 = vld [vmem:[#allocation2 + $0xb0] sm:$0xff]
    %v543 = vld [vmem:[#allocation2 + $0xb8] sm:$0xff]
    %v544 = vld [vmem:[#allocation2 + $0xc0] sm:$0xff]
    %v545 = vld [vmem:[#allocation2 + $0xc8] sm:$0xff]
    %v546 = vld [vmem:[#allocation2 + $0xd0] sm:$0xff]
    %v547 = vld [vmem:[#allocation2 + $0xd8] sm:$0xff]
    %v548 = vld [vmem:[#allocation2 + $0xe0] sm:$0xff]
    %v549 = vld [vmem:[#allocation2 + $0xe8] sm:$0xff]
    %v550 = vld [vmem:[#allocation2 + $0xf0] sm:$0xff]
    %v551 = vld [vmem:[#allocation2 + $0xf8] sm:$0xff]
    %v552 = vld [vmem:[%s2] sm:$0xf]
    %v554 = vlaneseq
    %v555 = vshrl.u32 %v554, 7
    %v556 = vsub.s32 0, %v555
    %v557 = vrot.slane %v552, %v556
    %v558 = vlaneseq
    %v559 = vshrl.u32 %v558, 7
    %v560 = vsub.s32 1, %v559
    %v561 = vrot.slane %v552, %v560
    %v562 = vlaneseq
    %v563 = vshrl.u32 %v562, 7
    %v564 = vsub.s32 2, %v563
    %v565 = vrot.slane %v552, %v564
    %v566 = vlaneseq
    %v567 = vshrl.u32 %v566, 7
    %v568 = vsub.s32 3, %v567
    %v569 = vrot.slane %v552, %v568
    %v574 = vadd.f32 %v520, %v557
    %v575 = vadd.f32 %v521, %v561
    %v576 = vadd.f32 %v522, %v565
    %v577 = vadd.f32 %v523, %v569
    %v578 = vadd.f32 %v524, %v557
    %v579 = vadd.f32 %v525, %v561
    %v580 = vadd.f32 %v526, %v565
    %v581 = vadd.f32 %v527, %v569
    %v582 = vadd.f32 %v528, %v557
    %v583 = vadd.f32 %v529, %v561
    %v584 = vadd.f32 %v530, %v565
    %v585 = vadd.f32 %v531, %v569
    %v586 = vadd.f32 %v532, %v557
    %v587 = vadd.f32 %v533, %v561
    %v588 = vadd.f32 %v534, %v565
    %v589 = vadd.f32 %v535, %v569
    %v590 = vadd.f32 %v536, %v557
    %v591 = vadd.f32 %v537, %v561
    %v592 = vadd.f32 %v538, %v565
    %v593 = vadd.f32 %v539, %v569
    %v594 = vadd.f32 %v540, %v557
    %v595 = vadd.f32 %v541, %v561
    %v596 = vadd.f32 %v542, %v565
    %v597 = vadd.f32 %v543, %v569
    %v598 = vadd.f32 %v544, %v557
    %v599 = vadd.f32 %v545, %v561
    %v600 = vadd.f32 %v546, %v565
    %v601 = vadd.f32 %v547, %v569
    %v602 = vadd.f32 %v548, %v557
    %v603 = vadd.f32 %v549, %v561
    %v604 = vadd.f32 %v550, %v565
    %v605 = vadd.f32 %v551, %v569
    %v606 = vpack.c.bf16 %v578, %v574
    %v607 = vpack.c.bf16 %v579, %v575
    %v608 = vpack.c.bf16 %v580, %v576
    %v609 = vpack.c.bf16 %v581, %v577
    %v610 = vpack.c.bf16 %v586, %v582
    %v611 = vpack.c.bf16 %v587, %v583
    %v612 = vpack.c.bf16 %v588, %v584
    %v613 = vpack.c.bf16 %v589, %v585
    %v614 = vpack.c.bf16 %v594, %v590
    %v615 = vpack.c.bf16 %v595, %v591
    %v616 = vpack.c.bf16 %v596, %v592
    %v617 = vpack.c.bf16 %v597, %v593
    %v618 = vpack.c.bf16 %v602, %v598
    %v619 = vpack.c.bf16 %v603, %v599
    %v620 = vpack.c.bf16 %v604, %v600
    %v621 = vpack.c.bf16 %v605, %v601
    %v638 = vunpack.c.l.b16 %v606
    %v639 = vunpack.c.l.b16 %v607
    %v640 = vunpack.c.l.b16 %v608
    %v641 = vunpack.c.l.b16 %v609
    %v642 = vunpack.c.h.b16 %v606
    %v643 = vunpack.c.h.b16 %v607
    %v644 = vunpack.c.h.b16 %v608
    %v645 = vunpack.c.h.b16 %v609
    %v646 = vunpack.c.l.b16 %v610
    %v647 = vunpack.c.l.b16 %v611
    %v648 = vunpack.c.l.b16 %v612
    %v649 = vunpack.c.l.b16 %v613
    %v650 = vunpack.c.h.b16 %v610
    %v651 = vunpack.c.h.b16 %v611
    %v652 = vunpack.c.h.b16 %v612
    %v653 = vunpack.c.h.b16 %v613
    %v654 = vunpack.c.l.b16 %v614
    %v655 = vunpack.c.l.b16 %v615
    %v656 = vunpack.c.l.b16 %v616
    %v657 = vunpack.c.l.b16 %v617
    %v658 = vunpack.c.h.b16 %v614
    %v659 = vunpack.c.h.b16 %v615
    %v660 = vunpack.c.h.b16 %v616
    %v661 = vunpack.c.h.b16 %v617
    %v662 = vunpack.c.l.b16 %v618
    %v663 = vunpack.c.l.b16 %v619
    %v664 = vunpack.c.l.b16 %v620
    %v665 = vunpack.c.l.b16 %v621
    %v666 = vunpack.c.h.b16 %v618
    %v667 = vunpack.c.h.b16 %v619
    %v668 = vunpack.c.h.b16 %v620
    %v669 = vunpack.c.h.b16 %v621
    %v670 = vpack.c.b16 %v639, %v638
    %v671 = vpack.c.b16 %v641, %v640
    %v672 = vpack.c.b16 %v643, %v642
    %v673 = vpack.c.b16 %v645, %v644
    %v674 = vpack.c.b16 %v647, %v646
    %v675 = vpack.c.b16 %v649, %v648
    %v676 = vpack.c.b16 %v651, %v650
    %v677 = vpack.c.b16 %v653, %v652
    %v678 = vpack.c.b16 %v655, %v654
    %v679 = vpack.c.b16 %v657, %v656
    %v680 = vpack.c.b16 %v659, %v658
    %v681 = vpack.c.b16 %v661, %v660
    %v682 = vpack.c.b16 %v663, %v662
    %v683 = vpack.c.b16 %v665, %v664
    %v684 = vpack.c.b16 %v667, %v666
    %v685 = vpack.c.b16 %v669, %v668
    %702 = vst [vmem:[%s3] sm:$0xff] %v670
    %703 = vst [vmem:[%s3 + $0x8] sm:$0xff] %v671
    %704 = vst [vmem:[%s3 + $0x10] sm:$0xff] %v672
    %705 = vst [vmem:[%s3 + $0x18] sm:$0xff] %v673
    %706 = vst [vmem:[%s3 + $0x20] sm:$0xff] %v674
    %707 = vst [vmem:[%s3 + $0x28] sm:$0xff] %v675
    %708 = vst [vmem:[%s3 + $0x30] sm:$0xff] %v676
    %709 = vst [vmem:[%s3 + $0x38] sm:$0xff] %v677
    %710 = vst [vmem:[%s3 + $0x40] sm:$0xff] %v678
    %711 = vst [vmem:[%s3 + $0x48] sm:$0xff] %v679
    %712 = vst [vmem:[%s3 + $0x50] sm:$0xff] %v680
    %713 = vst [vmem:[%s3 + $0x58] sm:$0xff] %v681
    %714 = vst [vmem:[%s3 + $0x60] sm:$0xff] %v682
    %715 = vst [vmem:[%s3 + $0x68] sm:$0xff] %v683
    %716 = vst [vmem:[%s3 + $0x70] sm:$0xff] %v684
    %717 = vst [vmem:[%s3 + $0x78] sm:$0xff] %v685
  $region21: #{vanilla_lstm_forward.7} parent=0 // pred_fallthru
    _
  // Predicated region
  $region22: #{vanilla_lstm_forward.7} parent=0 // pred_check
    _
  $region23: #{vanilla_lstm_forward.7} parent=0 // pred_check_branch
    %719 = sbr.rel (0) target = $region25
  $region24: #{vanilla_lstm_forward.7} parent=0 // pred_region
    _
  $region25: #{vanilla_lstm_forward.7} parent=0 // pred_fallthru
    _
  // Predicated region
  $region26: #{vanilla_lstm_forward.7} parent=0 // pred_check
    _
  $region27: #{vanilla_lstm_forward.7} parent=0 // pred_check_branch
    %721 = sbr.rel (0) target = $region29
  $region28: #{vanilla_lstm_forward.7} parent=0 // pred_region
    _
  $region29: #{vanilla_lstm_forward.7} parent=0 // pred_fallthru
    _

// kernel: vanilla_lstm_forward.11
$region0: #{vanilla_lstm_forward.11}
  #allocation0 [shape = 'u32[]', space=smem, size = 0x4, offset = 0x4, fixed_abs, tag = 'smem constant byte address 0x4 - core index']
  #allocation1 [shape = 'u32[144,128]{1,0:T(1,128)}', space=vmem, size = 0x12000, scoped, tag = 'internal scratch']
  #allocation2 [shape = 'f32[64,512]{1,0:T(8,128)}', space=vmem, size = 0x20000, scoped, tag = 'scratch operand']
  %s0 = inlined_call_operand.vmem [shape: bf16[64,128], index: 0, kind: input, shape index: {}]
  %s1 = inlined_call_operand.vmem [shape: bf16[128,512], index: 1, kind: input, shape index: {}]
  %s2 = inlined_call_operand.vmem [shape: bf16[64,128], index: 2, kind: input, shape index: {}]
  %s3 = inlined_call_operand.vmem [shape: bf16[128,512], index: 3, kind: input, shape index: {}]
  %s4 = inlined_call_operand.vmem [shape: f32[1,512], index: 4, kind: input, shape index: {}]
  %s5 = inlined_call_operand.vmem [shape: bf16[64,512], index: 5, kind: output, shape index: {}]
  %s6 = sld [smem:[#allocation0]]
  $region38: #{vanilla_lstm_forward.11} parent=0
    _
  %s8 = ssub.s32 1, %s6
  %s9 = scalar_select 0, %s8, %s6
  // Predicated region
  $region2: #{vanilla_lstm_forward.11} parent=0 // pred_check
    _
  $region3: #{vanilla_lstm_forward.11} parent=0 // pred_check_branch
    %11 = sbr.rel (0) target = $region5
  $region4: #{vanilla_lstm_forward.11} parent=0 // pred_region
    _
  $region5: #{vanilla_lstm_forward.11} parent=0 // pred_fallthru
    _
  // Predicated region
  $region6: #{vanilla_lstm_forward.11} parent=0 // pred_check
    _
  $region7: #{vanilla_lstm_forward.11} parent=0 // pred_check_branch
    %13 = sbr.rel (0) target = $region9
  $region8: #{vanilla_lstm_forward.11} parent=0 // pred_region
    _
  $region9: #{vanilla_lstm_forward.11} parent=0 // pred_fallthru
    _
  // Predicated region
  $region10: #{vanilla_lstm_forward.11} parent=0 // pred_check
    _
  $region11: #{vanilla_lstm_forward.11} parent=0 // pred_check_branch
    %15 = sbr.rel (0) target = $region13
  $region12: #{vanilla_lstm_forward.11} parent=0 // pred_region
    _
  $region13: #{vanilla_lstm_forward.11} parent=0 // pred_fallthru
    _
  // Predicated region
  $region14: #{vanilla_lstm_forward.11} parent=0 // pred_check
    _
  $region15: #{vanilla_lstm_forward.11} parent=0 // pred_check_branch
    %17 = sbr.rel (0) target = $region17
  $region16: #{vanilla_lstm_forward.11} parent=0 // pred_region
    _
  $region17: #{vanilla_lstm_forward.11} parent=0 // pred_fallthru
    _
  // Predicated region
  $region18: #{vanilla_lstm_forward.11} parent=0 // pred_check
    _
  $region19: #{vanilla_lstm_forward.11} parent=0 // pred_check_branch
    %19 = sbr.rel (0) target = $region21
  $region20: #{vanilla_lstm_forward.11} parent=0 // pred_region
    _
  $region21: #{vanilla_lstm_forward.11} parent=0 // pred_fallthru
    _
  %p21 = scmp.eq.s32.totalorder 0, 0
  // Predicated region
  $region22: #{vanilla_lstm_forward.11} parent=0 // pred_check
    %p22 = pneg %p21
  $region23: #{vanilla_lstm_forward.11} parent=0 // pred_check_branch
    %24 = sbr.rel (%p22) target = $region25
  $region24: #{vanilla_lstm_forward.11} parent=0 // pred_region
    %25 = vst [vmem:[#allocation2] sm:$0xff] 0.0
    %26 = vst [vmem:[#allocation2 + $0x8] sm:$0xff] 0.0
    %27 = vst [vmem:[#allocation2 + $0x10] sm:$0xff] 0.0
    %28 = vst [vmem:[#allocation2 + $0x18] sm:$0xff] 0.0
    %29 = vst [vmem:[#allocation2 + $0x20] sm:$0xff] 0.0
    %30 = vst [vmem:[#allocation2 + $0x28] sm:$0xff] 0.0
    %31 = vst [vmem:[#allocation2 + $0x30] sm:$0xff] 0.0
    %32 = vst [vmem:[#allocation2 + $0x38] sm:$0xff] 0.0
    %33 = vst [vmem:[#allocation2 + $0x40] sm:$0xff] 0.0
    %34 = vst [vmem:[#allocation2 + $0x48] sm:$0xff] 0.0
    %35 = vst [vmem:[#allocation2 + $0x50] sm:$0xff] 0.0
    %36 = vst [vmem:[#allocation2 + $0x58] sm:$0xff] 0.0
    %37 = vst [vmem:[#allocation2 + $0x60] sm:$0xff] 0.0
    %38 = vst [vmem:[#allocation2 + $0x68] sm:$0xff] 0.0
    %39 = vst [vmem:[#allocation2 + $0x70] sm:$0xff] 0.0
    %40 = vst [vmem:[#allocation2 + $0x78] sm:$0xff] 0.0
    %41 = vst [vmem:[#allocation2 + $0x80] sm:$0xff] 0.0
    %42 = vst [vmem:[#allocation2 + $0x88] sm:$0xff] 0.0
    %43 = vst [vmem:[#allocation2 + $0x90] sm:$0xff] 0.0
    %44 = vst [vmem:[#allocation2 + $0x98] sm:$0xff] 0.0
    %45 = vst [vmem:[#allocation2 + $0xa0] sm:$0xff] 0.0
    %46 = vst [vmem:[#allocation2 + $0xa8] sm:$0xff] 0.0
    %47 = vst [vmem:[#allocation2 + $0xb0] sm:$0xff] 0.0
    %48 = vst [vmem:[#allocation2 + $0xb8] sm:$0xff] 0.0
    %49 = vst [vmem:[#allocation2 + $0xc0] sm:$0xff] 0.0
    %50 = vst [vmem:[#allocation2 + $0xc8] sm:$0xff] 0.0
    %51 = vst [vmem:[#allocation2 + $0xd0] sm:$0xff] 0.0
    %52 = vst [vmem:[#allocation2 + $0xd8] sm:$0xff] 0.0
    %53 = vst [vmem:[#allocation2 + $0xe0] sm:$0xff] 0.0
    %54 = vst [vmem:[#allocation2 + $0xe8] sm:$0xff] 0.0
    %55 = vst [vmem:[#allocation2 + $0xf0] sm:$0xff] 0.0
    %56 = vst [vmem:[#allocation2 + $0xf8] sm:$0xff] 0.0
  $region25: #{vanilla_lstm_forward.11} parent=0 // pred_fallthru
    _
  %v57 = vld [vmem:[#allocation2] sm:$0xff]
  %v58 = vld [vmem:[#allocation2 + $0x8] sm:$0xff]
  %v59 = vld [vmem:[#allocation2 + $0x10] sm:$0xff]
  %v60 = vld [vmem:[#allocation2 + $0x18] sm:$0xff]
  %v61 = vld [vmem:[#allocation2 + $0x20] sm:$0xff]
  %v62 = vld [vmem:[#allocation2 + $0x28] sm:$0xff]
  %v63 = vld [vmem:[#allocation2 + $0x30] sm:$0xff]
  %v64 = vld [vmem:[#allocation2 + $0x38] sm:$0xff]
  %v65 = vld [vmem:[#allocation2 + $0x40] sm:$0xff]
  %v66 = vld [vmem:[#allocation2 + $0x48] sm:$0xff]
  %v67 = vld [vmem:[#allocation2 + $0x50] sm:$0xff]
  %v68 = vld [vmem:[#allocation2 + $0x58] sm:$0xff]
  %v69 = vld [vmem:[#allocation2 + $0x60] sm:$0xff]
  %v70 = vld [vmem:[#allocation2 + $0x68] sm:$0xff]
  %v71 = vld [vmem:[#allocation2 + $0x70] sm:$0xff]
  %v72 = vld [vmem:[#allocation2 + $0x78] sm:$0xff]
  %v73 = vld [vmem:[#allocation2 + $0x80] sm:$0xff]
  %v74 = vld [vmem:[#allocation2 + $0x88] sm:$0xff]
  %v75 = vld [vmem:[#allocation2 + $0x90] sm:$0xff]
  %v76 = vld [vmem:[#allocation2 + $0x98] sm:$0xff]
  %v77 = vld [vmem:[#allocation2 + $0xa0] sm:$0xff]
  %v78 = vld [vmem:[#allocation2 + $0xa8] sm:$0xff]
  %v79 = vld [vmem:[#allocation2 + $0xb0] sm:$0xff]
  %v80 = vld [vmem:[#allocation2 + $0xb8] sm:$0xff]
  %v81 = vld [vmem:[#allocation2 + $0xc0] sm:$0xff]
  %v82 = vld [vmem:[#allocation2 + $0xc8] sm:$0xff]
  %v83 = vld [vmem:[#allocation2 + $0xd0] sm:$0xff]
  %v84 = vld [vmem:[#allocation2 + $0xd8] sm:$0xff]
  %v85 = vld [vmem:[#allocation2 + $0xe0] sm:$0xff]
  %v86 = vld [vmem:[#allocation2 + $0xe8] sm:$0xff]
  %v87 = vld [vmem:[#allocation2 + $0xf0] sm:$0xff]
  %v88 = vld [vmem:[#allocation2 + $0xf8] sm:$0xff]
  %v89 = vld [vmem:[%s0] sm:$0xf]
  %v90 = vld [vmem:[%s0 + $0x4] sm:$0xf]
  %v91 = vld [vmem:[%s0 + $0x8] sm:$0xf]
  %v92 = vld [vmem:[%s0 + $0xc] sm:$0xf]
  %v93 = vld [vmem:[%s0 + $0x10] sm:$0xf]
  %v94 = vld [vmem:[%s0 + $0x14] sm:$0xf]
  %v95 = vld [vmem:[%s0 + $0x18] sm:$0xf]
  %v96 = vld [vmem:[%s0 + $0x1c] sm:$0xf]
  %v97 = vld [vmem:[%s1] sm:$0xff]
  %v98 = vld [vmem:[%s1 + $0x8] sm:$0xff]
  %v99 = vld [vmem:[%s1 + $0x10] sm:$0xff]
  %v100 = vld [vmem:[%s1 + $0x18] sm:$0xff]
  %v101 = vld [vmem:[%s1 + $0x20] sm:$0xff]
  %v102 = vld [vmem:[%s1 + $0x28] sm:$0xff]
  %v103 = vld [vmem:[%s1 + $0x30] sm:$0xff]
  %v104 = vld [vmem:[%s1 + $0x38] sm:$0xff]
  %v105 = vld [vmem:[%s1 + $0x40] sm:$0xff]
  %v106 = vld [vmem:[%s1 + $0x48] sm:$0xff]
  %v107 = vld [vmem:[%s1 + $0x50] sm:$0xff]
  %v108 = vld [vmem:[%s1 + $0x58] sm:$0xff]
  %v109 = vld [vmem:[%s1 + $0x60] sm:$0xff]
  %v110 = vld [vmem:[%s1 + $0x68] sm:$0xff]
  %v111 = vld [vmem:[%s1 + $0x70] sm:$0xff]
  %v112 = vld [vmem:[%s1 + $0x78] sm:$0xff]
  %v113 = vld [vmem:[%s1 + $0x80] sm:$0xff]
  %v114 = vld [vmem:[%s1 + $0x88] sm:$0xff]
  %v115 = vld [vmem:[%s1 + $0x90] sm:$0xff]
  %v116 = vld [vmem:[%s1 + $0x98] sm:$0xff]
  %v117 = vld [vmem:[%s1 + $0xa0] sm:$0xff]
  %v118 = vld [vmem:[%s1 + $0xa8] sm:$0xff]
  %v119 = vld [vmem:[%s1 + $0xb0] sm:$0xff]
  %v120 = vld [vmem:[%s1 + $0xb8] sm:$0xff]
  %v121 = vld [vmem:[%s1 + $0xc0] sm:$0xff]
  %v122 = vld [vmem:[%s1 + $0xc8] sm:$0xff]
  %v123 = vld [vmem:[%s1 + $0xd0] sm:$0xff]
  %v124 = vld [vmem:[%s1 + $0xd8] sm:$0xff]
  %v125 = vld [vmem:[%s1 + $0xe0] sm:$0xff]
  %v126 = vld [vmem:[%s1 + $0xe8] sm:$0xff]
  %v127 = vld [vmem:[%s1 + $0xf0] sm:$0xff]
  %v128 = vld [vmem:[%s1 + $0xf8] sm:$0xff]
  %v129 = vld [vmem:[%s2] sm:$0xf]
  %v130 = vld [vmem:[%s2 + $0x4] sm:$0xf]
  %v131 = vld [vmem:[%s2 + $0x8] sm:$0xf]
  %v132 = vld [vmem:[%s2 + $0xc] sm:$0xf]
  %v133 = vld [vmem:[%s2 + $0x10] sm:$0xf]
  %v134 = vld [vmem:[%s2 + $0x14] sm:$0xf]
  %v135 = vld [vmem:[%s2 + $0x18] sm:$0xf]
  %v136 = vld [vmem:[%s2 + $0x1c] sm:$0xf]
  %v137 = vld [vmem:[%s3] sm:$0xff]
  %v138 = vld [vmem:[%s3 + $0x8] sm:$0xff]
  %v139 = vld [vmem:[%s3 + $0x10] sm:$0xff]
  %v140 = vld [vmem:[%s3 + $0x18] sm:$0xff]
  %v141 = vld [vmem:[%s3 + $0x20] sm:$0xff]
  %v142 = vld [vmem:[%s3 + $0x28] sm:$0xff]
  %v143 = vld [vmem:[%s3 + $0x30] sm:$0xff]
  %v144 = vld [vmem:[%s3 + $0x38] sm:$0xff]
  %v145 = vld [vmem:[%s3 + $0x40] sm:$0xff]
  %v146 = vld [vmem:[%s3 + $0x48] sm:$0xff]
  %v147 = vld [vmem:[%s3 + $0x50] sm:$0xff]
  %v148 = vld [vmem:[%s3 + $0x58] sm:$0xff]
  %v149 = vld [vmem:[%s3 + $0x60] sm:$0xff]
  %v150 = vld [vmem:[%s3 + $0x68] sm:$0xff]
  %v151 = vld [vmem:[%s3 + $0x70] sm:$0xff]
  %v152 = vld [vmem:[%s3 + $0x78] sm:$0xff]
  %v153 = vld [vmem:[%s3 + $0x80] sm:$0xff]
  %v154 = vld [vmem:[%s3 + $0x88] sm:$0xff]
  %v155 = vld [vmem:[%s3 + $0x90] sm:$0xff]
  %v156 = vld [vmem:[%s3 + $0x98] sm:$0xff]
  %v157 = vld [vmem:[%s3 + $0xa0] sm:$0xff]
  %v158 = vld [vmem:[%s3 + $0xa8] sm:$0xff]
  %v159 = vld [vmem:[%s3 + $0xb0] sm:$0xff]
  %v160 = vld [vmem:[%s3 + $0xb8] sm:$0xff]
  %v161 = vld [vmem:[%s3 + $0xc0] sm:$0xff]
  %v162 = vld [vmem:[%s3 + $0xc8] sm:$0xff]
  %v163 = vld [vmem:[%s3 + $0xd0] sm:$0xff]
  %v164 = vld [vmem:[%s3 + $0xd8] sm:$0xff]
  %v165 = vld [vmem:[%s3 + $0xe0] sm:$0xff]
  %v166 = vld [vmem:[%s3 + $0xe8] sm:$0xff]
  %v167 = vld [vmem:[%s3 + $0xf0] sm:$0xff]
  %v168 = vld [vmem:[%s3 + $0xf8] sm:$0xff]
  %v177 = vunpack.c.l.b16 %v129
  %v178 = vunpack.c.l.b16 %v130
  %v179 = vunpack.c.l.b16 %v131
  %v180 = vunpack.c.l.b16 %v132
  %v181 = vunpack.c.l.b16 %v133
  %v182 = vunpack.c.l.b16 %v134
  %v183 = vunpack.c.l.b16 %v135
  %v184 = vunpack.c.l.b16 %v136
  %v185 = vpack.c.b16 %v178, %v177
  %v186 = vpack.c.b16 %v180, %v179
  %v187 = vpack.c.b16 %v182, %v181
  %v188 = vpack.c.b16 %v184, %v183
  %v225 = vunpack.c.l.b16 %v137
  %v226 = vunpack.c.h.b16 %v137
  %v227 = vunpack.c.l.b16 %v138
  %v228 = vunpack.c.h.b16 %v138
  %v229 = vunpack.c.l.b16 %v139
  %v230 = vunpack.c.h.b16 %v139
  %v231 = vunpack.c.l.b16 %v140
  %v232 = vunpack.c.h.b16 %v140
  %v233 = vunpack.c.l.b16 %v141
  %v234 = vunpack.c.h.b16 %v141
  %v235 = vunpack.c.l.b16 %v142
  %v236 = vunpack.c.h.b16 %v142
  %v237 = vunpack.c.l.b16 %v143
  %v238 = vunpack.c.h.b16 %v143
  %v239 = vunpack.c.l.b16 %v144
  %v240 = vunpack.c.h.b16 %v144
  %v241 = vunpack.c.l.b16 %v145
  %v242 = vunpack.c.h.b16 %v145
  %v243 = vunpack.c.l.b16 %v146
  %v244 = vunpack.c.h.b16 %v146
  %v245 = vunpack.c.l.b16 %v147
  %v246 = vunpack.c.h.b16 %v147
  %v247 = vunpack.c.l.b16 %v148
  %v248 = vunpack.c.h.b16 %v148
  %v249 = vunpack.c.l.b16 %v149
  %v250 = vunpack.c.h.b16 %v149
  %v251 = vunpack.c.l.b16 %v150
  %v252 = vunpack.c.h.b16 %v150
  %v253 = vunpack.c.l.b16 %v151
  %v254 = vunpack.c.h.b16 %v151
  %v255 = vunpack.c.l.b16 %v152
  %v256 = vunpack.c.h.b16 %v152
  %v257 = vunpack.c.l.b16 %v153
  %v258 = vunpack.c.h.b16 %v153
  %v259 = vunpack.c.l.b16 %v154
  %v260 = vunpack.c.h.b16 %v154
  %v261 = vunpack.c.l.b16 %v155
  %v262 = vunpack.c.h.b16 %v155
  %v263 = vunpack.c.l.b16 %v156
  %v264 = vunpack.c.h.b16 %v156
  %v265 = vunpack.c.l.b16 %v157
  %v266 = vunpack.c.h.b16 %v157
  %v267 = vunpack.c.l.b16 %v158
  %v268 = vunpack.c.h.b16 %v158
  %v269 = vunpack.c.l.b16 %v159
  %v270 = vunpack.c.h.b16 %v159
  %v271 = vunpack.c.l.b16 %v160
  %v272 = vunpack.c.h.b16 %v160
  %v273 = vunpack.c.l.b16 %v161
  %v274 = vunpack.c.h.b16 %v161
  %v275 = vunpack.c.l.b16 %v162
  %v276 = vunpack.c.h.b16 %v162
  %v277 = vunpack.c.l.b16 %v163
  %v278 = vunpack.c.h.b16 %v163
  %v279 = vunpack.c.l.b16 %v164
  %v280 = vunpack.c.h.b16 %v164
  %v281 = vunpack.c.l.b16 %v165
  %v282 = vunpack.c.h.b16 %v165
  %v283 = vunpack.c.l.b16 %v166
  %v284 = vunpack.c.h.b16 %v166
  %v285 = vunpack.c.l.b16 %v167
  %v286 = vunpack.c.h.b16 %v167
  %v287 = vunpack.c.l.b16 %v168
  %v288 = vunpack.c.h.b16 %v168
  %v289 = vpack.c.b16 %v229, %v225
  %v290 = vpack.c.b16 %v230, %v226
  %v291 = vpack.c.b16 %v231, %v227
  %v292 = vpack.c.b16 %v232, %v228
  %v293 = vpack.c.b16 %v237, %v233
  %v294 = vpack.c.b16 %v238, %v234
  %v295 = vpack.c.b16 %v239, %v235
  %v296 = vpack.c.b16 %v240, %v236
  %v297 = vpack.c.b16 %v245, %v241
  %v298 = vpack.c.b16 %v246, %v242
  %v299 = vpack.c.b16 %v247, %v243
  %v300 = vpack.c.b16 %v248, %v244
  %v301 = vpack.c.b16 %v253, %v249
  %v302 = vpack.c.b16 %v254, %v250
  %v303 = vpack.c.b16 %v255, %v251
  %v304 = vpack.c.b16 %v256, %v252
  %v305 = vpack.c.b16 %v261, %v257
  %v306 = vpack.c.b16 %v262, %v258
  %v307 = vpack.c.b16 %v263, %v259
  %v308 = vpack.c.b16 %v264, %v260
  %v309 = vpack.c.b16 %v269, %v265
  %v310 = vpack.c.b16 %v270, %v266
  %v311 = vpack.c.b16 %v271, %v267
  %v312 = vpack.c.b16 %v272, %v268
  %v313 = vpack.c.b16 %v277, %v273
  %v314 = vpack.c.b16 %v278, %v274
  %v315 = vpack.c.b16 %v279, %v275
  %v316 = vpack.c.b16 %v280, %v276
  %v317 = vpack.c.b16 %v285, %v281
  %v318 = vpack.c.b16 %v286, %v282
  %v319 = vpack.c.b16 %v287, %v283
  %v320 = vpack.c.b16 %v288, %v284
  %353 = vmatprep.subr.bf16.mxu0 %v290
  %354 = vmatpush1.bf16.msra.mxu0 %v289
  %355 = vmatprep.subr.bf16.mxu0 %v294
  %356 = vmatpush1.bf16.msra.mxu0 %v293
  %357 = vmatprep.subr.bf16.mxu0 %v298
  %358 = vmatpush1.bf16.msra.mxu0 %v297
  %359 = vmatprep.subr.bf16.mxu0 %v302
  %360 = vmatpush1.bf16.msra.mxu0 %v301
  %361 = vmatprep.subr.bf16.mxu0 %v306
  %362 = vmatpush1.bf16.msra.mxu0 %v305
  %363 = vmatprep.subr.bf16.mxu0 %v310
  %364 = vmatpush1.bf16.msra.mxu0 %v309
  %365 = vmatprep.subr.bf16.mxu0 %v314
  %366 = vmatpush1.bf16.msra.mxu0 %v313
  %367 = vmatprep.subr.bf16.mxu0 %v318
  %368 = vmatpush1.bf16.msra.mxu0 %v317
  %369 = vmatprep.subr.bf16.mxu0 0
  %370 = vmatpush1.bf16.msra.mxu0 0
  %371 = vmatprep.subr.bf16.mxu0 0
  %372 = vmatpush1.bf16.msra.mxu0 0
  %373 = vmatprep.subr.bf16.mxu0 0
  %374 = vmatpush1.bf16.msra.mxu0 0
  %375 = vmatprep.subr.bf16.mxu0 0
  %376 = vmatpush1.bf16.msra.mxu0 0
  %377 = vmatprep.subr.bf16.mxu0 0
  %378 = vmatpush1.bf16.msra.mxu0 0
  %379 = vmatprep.subr.bf16.mxu0 0
  %380 = vmatpush1.bf16.msra.mxu0 0
  %381 = vmatprep.subr.bf16.mxu0 0
  %382 = vmatpush1.bf16.msra.mxu0 0
  %383 = vmatprep.subr.bf16.mxu0 0
  %384 = vmatpush1.bf16.msra.mxu0 0
  %385 = vmatprep.mubr.bf16.mxu0 0
  %386 = vmatmul.mubr.bf16.gmra.mrb[0].mxu0 %v185
  %v387 = vpop.f32.mrb[0].mxu0
  %v388 = vadd.f32 0.0, %v387
  %v389 = vpop.f32.mrb[0].mxu0
  %v390 = vadd.f32 0.0, %v389
  %v391 = vpop.f32.mrb[0].mxu0
  %v392 = vadd.f32 0.0, %v391
  %v393 = vpop.f32.mrb[0].mxu0
  %v394 = vadd.f32 0.0, %v393
  %395 = vmatprep.mubr.bf16.mxu0 0
  %396 = vmatmul.mubr.bf16.gmra.mrb[0].mxu0 %v186
  %v397 = vpop.f32.mrb[0].mxu0
  %v398 = vadd.f32 0.0, %v397
  %v399 = vpop.f32.mrb[0].mxu0
  %v400 = vadd.f32 0.0, %v399
  %v401 = vpop.f32.mrb[0].mxu0
  %v402 = vadd.f32 0.0, %v401
  %v403 = vpop.f32.mrb[0].mxu0
  %v404 = vadd.f32 0.0, %v403
  %405 = vmatprep.mubr.bf16.mxu0 0
  %406 = vmatmul.mubr.bf16.gmra.mrb[0].mxu0 %v187
  %v407 = vpop.f32.mrb[0].mxu0
  %v408 = vadd.f32 0.0, %v407
  %v409 = vpop.f32.mrb[0].mxu0
  %v410 = vadd.f32 0.0, %v409
  %v411 = vpop.f32.mrb[0].mxu0
  %v412 = vadd.f32 0.0, %v411
  %v413 = vpop.f32.mrb[0].mxu0
  %v414 = vadd.f32 0.0, %v413
  %415 = vmatprep.mubr.bf16.mxu0 0
  %416 = vmatmul.mubr.bf16.gmra.mrb[0].mxu0 %v188
  %v417 = vpop.f32.mrb[0].mxu0
  %v418 = vadd.f32 0.0, %v417
  %v419 = vpop.f32.mrb[0].mxu0
  %v420 = vadd.f32 0.0, %v419
  %v421 = vpop.f32.mrb[0].mxu0
  %v422 = vadd.f32 0.0, %v421
  %v423 = vpop.f32.mrb[0].mxu0
  %v424 = vadd.f32 0.0, %v423
  %425 = vdwg.mxu0
  %426 = vmatprep.subr.bf16.mxu0 %v292
  %427 = vmatpush1.bf16.msra.mxu0 %v291
  %428 = vmatprep.subr.bf16.mxu0 %v296
  %429 = vmatpush1.bf16.msra.mxu0 %v295
  %430 = vmatprep.subr.bf16.mxu0 %v300
  %431 = vmatpush1.bf16.msra.mxu0 %v299
  %432 = vmatprep.subr.bf16.mxu0 %v304
  %433 = vmatpush1.bf16.msra.mxu0 %v303
  %434 = vmatprep.subr.bf16.mxu0 %v308
  %435 = vmatpush1.bf16.msra.mxu0 %v307
  %436 = vmatprep.subr.bf16.mxu0 %v312
  %437 = vmatpush1.bf16.msra.mxu0 %v311
  %438 = vmatprep.subr.bf16.mxu0 %v316
  %439 = vmatpush1.bf16.msra.mxu0 %v315
  %440 = vmatprep.subr.bf16.mxu0 %v320
  %441 = vmatpush1.bf16.msra.mxu0 %v319
  %442 = vmatprep.subr.bf16.mxu0 0
  %443 = vmatpush1.bf16.msra.mxu0 0
  %444 = vmatprep.subr.bf16.mxu0 0
  %445 = vmatpush1.bf16.msra.mxu0 0
  %446 = vmatprep.subr.bf16.mxu0 0
  %447 = vmatpush1.bf16.msra.mxu0 0
  %448 = vmatprep.subr.bf16.mxu0 0
  %449 = vmatpush1.bf16.msra.mxu0 0
  %450 = vmatprep.subr.bf16.mxu0 0
  %451 = vmatpush1.bf16.msra.mxu0 0
  %452 = vmatprep.subr.bf16.mxu0 0
  %453 = vmatpush1.bf16.msra.mxu0 0
  %454 = vmatprep.subr.bf16.mxu0 0
  %455 = vmatpush1.bf16.msra.mxu0 0
  %456 = vmatprep.subr.bf16.mxu0 0
  %457 = vmatpush1.bf16.msra.mxu0 0
  %458 = vmatprep.mubr.bf16.mxu0 0
  %459 = vmatmul.mubr.bf16.gmra.mrb[0].mxu0 %v185
  %v460 = vpop.f32.mrb[0].mxu0
  %v461 = vadd.f32 0.0, %v460
  %v462 = vpop.f32.mrb[0].mxu0
  %v463 = vadd.f32 0.0, %v462
  %v464 = vpop.f32.mrb[0].mxu0
  %v465 = vadd.f32 0.0, %v464
  %v466 = vpop.f32.mrb[0].mxu0
  %v467 = vadd.f32 0.0, %v466
  %468 = vmatprep.mubr.bf16.mxu0 0
  %469 = vmatmul.mubr.bf16.gmra.mrb[0].mxu0 %v186
  %v470 = vpop.f32.mrb[0].mxu0
  %v471 = vadd.f32 0.0, %v470
  %v472 = vpop.f32.mrb[0].mxu0
  %v473 = vadd.f32 0.0, %v472
  %v474 = vpop.f32.mrb[0].mxu0
  %v475 = vadd.f32 0.0, %v474
  %v476 = vpop.f32.mrb[0].mxu0
  %v477 = vadd.f32 0.0, %v476
  %478 = vmatprep.mubr.bf16.mxu0 0
  %479 = vmatmul.mubr.bf16.gmra.mrb[0].mxu0 %v187
  %v480 = vpop.f32.mrb[0].mxu0
  %v481 = vadd.f32 0.0, %v480
  %v482 = vpop.f32.mrb[0].mxu0
  %v483 = vadd.f32 0.0, %v482
  %v484 = vpop.f32.mrb[0].mxu0
  %v485 = vadd.f32 0.0, %v484
  %v486 = vpop.f32.mrb[0].mxu0
  %v487 = vadd.f32 0.0, %v486
  %488 = vmatprep.mubr.bf16.mxu0 0
  %489 = vmatmul.mubr.bf16.gmra.mrb[0].mxu0 %v188
  %v490 = vpop.f32.mrb[0].mxu0
  %v491 = vadd.f32 0.0, %v490
  %v492 = vpop.f32.mrb[0].mxu0
  %v493 = vadd.f32 0.0, %v492
  %v494 = vpop.f32.mrb[0].mxu0
  %v495 = vadd.f32 0.0, %v494
  %v496 = vpop.f32.mrb[0].mxu0
  %v497 = vadd.f32 0.0, %v496
  %498 = vdwg.mxu0
  %v507 = vunpack.c.l.b16 %v89
  %v508 = vunpack.c.l.b16 %v90
  %v509 = vunpack.c.l.b16 %v91
  %v510 = vunpack.c.l.b16 %v92
  %v511 = vunpack.c.l.b16 %v93
  %v512 = vunpack.c.l.b16 %v94
  %v513 = vunpack.c.l.b16 %v95
  %v514 = vunpack.c.l.b16 %v96
  %v515 = vpack.c.b16 %v508, %v507
  %v516 = vpack.c.b16 %v510, %v509
  %v517 = vpack.c.b16 %v512, %v511
  %v518 = vpack.c.b16 %v514, %v513
  %v555 = vunpack.c.l.b16 %v97
  %v556 = vunpack.c.h.b16 %v97
  %v557 = vunpack.c.l.b16 %v98
  %v558 = vunpack.c.h.b16 %v98
  %v559 = vunpack.c.l.b16 %v99
  %v560 = vunpack.c.h.b16 %v99
  %v561 = vunpack.c.l.b16 %v100
  %v562 = vunpack.c.h.b16 %v100
  %v563 = vunpack.c.l.b16 %v101
  %v564 = vunpack.c.h.b16 %v101
  %v565 = vunpack.c.l.b16 %v102
  %v566 = vunpack.c.h.b16 %v102
  %v567 = vunpack.c.l.b16 %v103
  %v568 = vunpack.c.h.b16 %v103
  %v569 = vunpack.c.l.b16 %v104
  %v570 = vunpack.c.h.b16 %v104
  %v571 = vunpack.c.l.b16 %v105
  %v572 = vunpack.c.h.b16 %v105
  %v573 = vunpack.c.l.b16 %v106
  %v574 = vunpack.c.h.b16 %v106
  %v575 = vunpack.c.l.b16 %v107
  %v576 = vunpack.c.h.b16 %v107
  %v577 = vunpack.c.l.b16 %v108
  %v578 = vunpack.c.h.b16 %v108
  %v579 = vunpack.c.l.b16 %v109
  %v580 = vunpack.c.h.b16 %v109
  %v581 = vunpack.c.l.b16 %v110
  %v582 = vunpack.c.h.b16 %v110
  %v583 = vunpack.c.l.b16 %v111
  %v584 = vunpack.c.h.b16 %v111
  %v585 = vunpack.c.l.b16 %v112
  %v586 = vunpack.c.h.b16 %v112
  %v587 = vunpack.c.l.b16 %v113
  %v588 = vunpack.c.h.b16 %v113
  %v589 = vunpack.c.l.b16 %v114
  %v590 = vunpack.c.h.b16 %v114
  %v591 = vunpack.c.l.b16 %v115
  %v592 = vunpack.c.h.b16 %v115
  %v593 = vunpack.c.l.b16 %v116
  %v594 = vunpack.c.h.b16 %v116
  %v595 = vunpack.c.l.b16 %v117
  %v596 = vunpack.c.h.b16 %v117
  %v597 = vunpack.c.l.b16 %v118
  %v598 = vunpack.c.h.b16 %v118
  %v599 = vunpack.c.l.b16 %v119
  %v600 = vunpack.c.h.b16 %v119
  %v601 = vunpack.c.l.b16 %v120
  %v602 = vunpack.c.h.b16 %v120
  %v603 = vunpack.c.l.b16 %v121
  %v604 = vunpack.c.h.b16 %v121
  %v605 = vunpack.c.l.b16 %v122
  %v606 = vunpack.c.h.b16 %v122
  %v607 = vunpack.c.l.b16 %v123
  %v608 = vunpack.c.h.b16 %v123
  %v609 = vunpack.c.l.b16 %v124
  %v610 = vunpack.c.h.b16 %v124
  %v611 = vunpack.c.l.b16 %v125
  %v612 = vunpack.c.h.b16 %v125
  %v613 = vunpack.c.l.b16 %v126
  %v614 = vunpack.c.h.b16 %v126
  %v615 = vunpack.c.l.b16 %v127
  %v616 = vunpack.c.h.b16 %v127
  %v617 = vunpack.c.l.b16 %v128
  %v618 = vunpack.c.h.b16 %v128
  %v619 = vpack.c.b16 %v559, %v555
  %v620 = vpack.c.b16 %v560, %v556
  %v621 = vpack.c.b16 %v561, %v557
  %v622 = vpack.c.b16 %v562, %v558
  %v623 = vpack.c.b16 %v567, %v563
  %v624 = vpack.c.b16 %v568, %v564
  %v625 = vpack.c.b16 %v569, %v565
  %v626 = vpack.c.b16 %v570, %v566
  %v627 = vpack.c.b16 %v575, %v571
  %v628 = vpack.c.b16 %v576, %v572
  %v629 = vpack.c.b16 %v577, %v573
  %v630 = vpack.c.b16 %v578, %v574
  %v631 = vpack.c.b16 %v583, %v579
  %v632 = vpack.c.b16 %v584, %v580
  %v633 = vpack.c.b16 %v585, %v581
  %v634 = vpack.c.b16 %v586, %v582
  %v635 = vpack.c.b16 %v591, %v587
  %v636 = vpack.c.b16 %v592, %v588
  %v637 = vpack.c.b16 %v593, %v589
  %v638 = vpack.c.b16 %v594, %v590
  %v639 = vpack.c.b16 %v599, %v595
  %v640 = vpack.c.b16 %v600, %v596
  %v641 = vpack.c.b16 %v601, %v597
  %v642 = vpack.c.b16 %v602, %v598
  %v643 = vpack.c.b16 %v607, %v603
  %v644 = vpack.c.b16 %v608, %v604
  %v645 = vpack.c.b16 %v609, %v605
  %v646 = vpack.c.b16 %v610, %v606
  %v647 = vpack.c.b16 %v615, %v611
  %v648 = vpack.c.b16 %v616, %v612
  %v649 = vpack.c.b16 %v617, %v613
  %v650 = vpack.c.b16 %v618, %v614
  %683 = vmatprep.subr.bf16.mxu0 %v620
  %684 = vmatpush1.bf16.msra.mxu0 %v619
  %685 = vmatprep.subr.bf16.mxu0 %v624
  %686 = vmatpush1.bf16.msra.mxu0 %v623
  %687 = vmatprep.subr.bf16.mxu0 %v628
  %688 = vmatpush1.bf16.msra.mxu0 %v627
  %689 = vmatprep.subr.bf16.mxu0 %v632
  %690 = vmatpush1.bf16.msra.mxu0 %v631
  %691 = vmatprep.subr.bf16.mxu0 %v636
  %692 = vmatpush1.bf16.msra.mxu0 %v635
  %693 = vmatprep.subr.bf16.mxu0 %v640
  %694 = vmatpush1.bf16.msra.mxu0 %v639
  %695 = vmatprep.subr.bf16.mxu0 %v644
  %696 = vmatpush1.bf16.msra.mxu0 %v643
  %697 = vmatprep.subr.bf16.mxu0 %v648
  %698 = vmatpush1.bf16.msra.mxu0 %v647
  %699 = vmatprep.subr.bf16.mxu0 0
  %700 = vmatpush1.bf16.msra.mxu0 0
  %701 = vmatprep.subr.bf16.mxu0 0
  %702 = vmatpush1.bf16.msra.mxu0 0
  %703 = vmatprep.subr.bf16.mxu0 0
  %704 = vmatpush1.bf16.msra.mxu0 0
  %705 = vmatprep.subr.bf16.mxu0 0
  %706 = vmatpush1.bf16.msra.mxu0 0
  %707 = vmatprep.subr.bf16.mxu0 0
  %708 = vmatpush1.bf16.msra.mxu0 0
  %709 = vmatprep.subr.bf16.mxu0 0
  %710 = vmatpush1.bf16.msra.mxu0 0
  %711 = vmatprep.subr.bf16.mxu0 0
  %712 = vmatpush1.bf16.msra.mxu0 0
  %713 = vmatprep.subr.bf16.mxu0 0
  %714 = vmatpush1.bf16.msra.mxu0 0
  %715 = vmatprep.mubr.bf16.mxu0 0
  %716 = vmatmul.mubr.bf16.gmra.mrb[0].mxu0 %v515
  %v717 = vpop.f32.mrb[0].mxu0
  %v718 = vadd.f32 %v388, %v717
  %v719 = vpop.f32.mrb[0].mxu0
  %v720 = vadd.f32 %v390, %v719
  %v721 = vpop.f32.mrb[0].mxu0
  %v722 = vadd.f32 %v392, %v721
  %v723 = vpop.f32.mrb[0].mxu0
  %v724 = vadd.f32 %v394, %v723
  %725 = vmatprep.mubr.bf16.mxu0 0
  %726 = vmatmul.mubr.bf16.gmra.mrb[0].mxu0 %v516
  %v727 = vpop.f32.mrb[0].mxu0
  %v728 = vadd.f32 %v398, %v727
  %v729 = vpop.f32.mrb[0].mxu0
  %v730 = vadd.f32 %v400, %v729
  %v731 = vpop.f32.mrb[0].mxu0
  %v732 = vadd.f32 %v402, %v731
  %v733 = vpop.f32.mrb[0].mxu0
  %v734 = vadd.f32 %v404, %v733
  %735 = vmatprep.mubr.bf16.mxu0 0
  %736 = vmatmul.mubr.bf16.gmra.mrb[0].mxu0 %v517
  %v737 = vpop.f32.mrb[0].mxu0
  %v738 = vadd.f32 %v408, %v737
  %v739 = vpop.f32.mrb[0].mxu0
  %v740 = vadd.f32 %v410, %v739
  %v741 = vpop.f32.mrb[0].mxu0
  %v742 = vadd.f32 %v412, %v741
  %v743 = vpop.f32.mrb[0].mxu0
  %v744 = vadd.f32 %v414, %v743
  %745 = vmatprep.mubr.bf16.mxu0 0
  %746 = vmatmul.mubr.bf16.gmra.mrb[0].mxu0 %v518
  %v747 = vpop.f32.mrb[0].mxu0
  %v748 = vadd.f32 %v418, %v747
  %v749 = vpop.f32.mrb[0].mxu0
  %v750 = vadd.f32 %v420, %v749
  %v751 = vpop.f32.mrb[0].mxu0
  %v752 = vadd.f32 %v422, %v751
  %v753 = vpop.f32.mrb[0].mxu0
  %v754 = vadd.f32 %v424, %v753
  %755 = vdwg.mxu0
  %756 = vmatprep.subr.bf16.mxu0 %v622
  %757 = vmatpush1.bf16.msra.mxu0 %v621
  %758 = vmatprep.subr.bf16.mxu0 %v626
  %759 = vmatpush1.bf16.msra.mxu0 %v625
  %760 = vmatprep.subr.bf16.mxu0 %v630
  %761 = vmatpush1.bf16.msra.mxu0 %v629
  %762 = vmatprep.subr.bf16.mxu0 %v634
  %763 = vmatpush1.bf16.msra.mxu0 %v633
  %764 = vmatprep.subr.bf16.mxu0 %v638
  %765 = vmatpush1.bf16.msra.mxu0 %v637
  %766 = vmatprep.subr.bf16.mxu0 %v642
  %767 = vmatpush1.bf16.msra.mxu0 %v641
  %768 = vmatprep.subr.bf16.mxu0 %v646
  %769 = vmatpush1.bf16.msra.mxu0 %v645
  %770 = vmatprep.subr.bf16.mxu0 %v650
  %771 = vmatpush1.bf16.msra.mxu0 %v649
  %772 = vmatprep.subr.bf16.mxu0 0
  %773 = vmatpush1.bf16.msra.mxu0 0
  %774 = vmatprep.subr.bf16.mxu0 0
  %775 = vmatpush1.bf16.msra.mxu0 0
  %776 = vmatprep.subr.bf16.mxu0 0
  %777 = vmatpush1.bf16.msra.mxu0 0
  %778 = vmatprep.subr.bf16.mxu0 0
  %779 = vmatpush1.bf16.msra.mxu0 0
  %780 = vmatprep.subr.bf16.mxu0 0
  %781 = vmatpush1.bf16.msra.mxu0 0
  %782 = vmatprep.subr.bf16.mxu0 0
  %783 = vmatpush1.bf16.msra.mxu0 0
  %784 = vmatprep.subr.bf16.mxu0 0
  %785 = vmatpush1.bf16.msra.mxu0 0
  %786 = vmatprep.subr.bf16.mxu0 0
  %787 = vmatpush1.bf16.msra.mxu0 0
  %788 = vmatprep.mubr.bf16.mxu0 0
  %789 = vmatmul.mubr.bf16.gmra.mrb[0].mxu0 %v515
  %v790 = vpop.f32.mrb[0].mxu0
  %v791 = vadd.f32 %v461, %v790
  %v792 = vpop.f32.mrb[0].mxu0
  %v793 = vadd.f32 %v463, %v792
  %v794 = vpop.f32.mrb[0].mxu0
  %v795 = vadd.f32 %v465, %v794
  %v796 = vpop.f32.mrb[0].mxu0
  %v797 = vadd.f32 %v467, %v796
  %798 = vmatprep.mubr.bf16.mxu0 0
  %799 = vmatmul.mubr.bf16.gmra.mrb[0].mxu0 %v516
  %v800 = vpop.f32.mrb[0].mxu0
  %v801 = vadd.f32 %v471, %v800
  %v802 = vpop.f32.mrb[0].mxu0
  %v803 = vadd.f32 %v473, %v802
  %v804 = vpop.f32.mrb[0].mxu0
  %v805 = vadd.f32 %v475, %v804
  %v806 = vpop.f32.mrb[0].mxu0
  %v807 = vadd.f32 %v477, %v806
  %808 = vmatprep.mubr.bf16.mxu0 0
  %809 = vmatmul.mubr.bf16.gmra.mrb[0].mxu0 %v517
  %v810 = vpop.f32.mrb[0].mxu0
  %v811 = vadd.f32 %v481, %v810
  %v812 = vpop.f32.mrb[0].mxu0
  %v813 = vadd.f32 %v483, %v812
  %v814 = vpop.f32.mrb[0].mxu0
  %v815 = vadd.f32 %v485, %v814
  %v816 = vpop.f32.mrb[0].mxu0
  %v817 = vadd.f32 %v487, %v816
  %818 = vmatprep.mubr.bf16.mxu0 0
  %819 = vmatmul.mubr.bf16.gmra.mrb[0].mxu0 %v518
  %v820 = vpop.f32.mrb[0].mxu0
  %v821 = vadd.f32 %v491, %v820
  %v822 = vpop.f32.mrb[0].mxu0
  %v823 = vadd.f32 %v493, %v822
  %v824 = vpop.f32.mrb[0].mxu0
  %v825 = vadd.f32 %v495, %v824
  %v826 = vpop.f32.mrb[0].mxu0
  %v827 = vadd.f32 %v497, %v826
  %828 = vdwg.mxu0
  %v829 = vadd.f32 %v57, %v718
  %v830 = vadd.f32 %v58, %v720
  %v831 = vadd.f32 %v59, %v791
  %v832 = vadd.f32 %v60, %v793
  %v833 = vadd.f32 %v61, %v722
  %v834 = vadd.f32 %v62, %v724
  %v835 = vadd.f32 %v63, %v795
  %v836 = vadd.f32 %v64, %v797
  %v837 = vadd.f32 %v65, %v728
  %v838 = vadd.f32 %v66, %v730
  %v839 = vadd.f32 %v67, %v801
  %v840 = vadd.f32 %v68, %v803
  %v841 = vadd.f32 %v69, %v732
  %v842 = vadd.f32 %v70, %v734
  %v843 = vadd.f32 %v71, %v805
  %v844 = vadd.f32 %v72, %v807
  %v845 = vadd.f32 %v73, %v738
  %v846 = vadd.f32 %v74, %v740
  %v847 = vadd.f32 %v75, %v811
  %v848 = vadd.f32 %v76, %v813
  %v849 = vadd.f32 %v77, %v742
  %v850 = vadd.f32 %v78, %v744
  %v851 = vadd.f32 %v79, %v815
  %v852 = vadd.f32 %v80, %v817
  %v853 = vadd.f32 %v81, %v748
  %v854 = vadd.f32 %v82, %v750
  %v855 = vadd.f32 %v83, %v821
  %v856 = vadd.f32 %v84, %v823
  %v857 = vadd.f32 %v85, %v752
  %v858 = vadd.f32 %v86, %v754
  %v859 = vadd.f32 %v87, %v825
  %v860 = vadd.f32 %v88, %v827
  %861 = vst [vmem:[#allocation2] sm:$0xff] %v829
  %862 = vst [vmem:[#allocation2 + $0x8] sm:$0xff] %v830
  %863 = vst [vmem:[#allocation2 + $0x10] sm:$0xff] %v831
  %864 = vst [vmem:[#allocation2 + $0x18] sm:$0xff] %v832
  %865 = vst [vmem:[#allocation2 + $0x20] sm:$0xff] %v833
  %866 = vst [vmem:[#allocation2 + $0x28] sm:$0xff] %v834
  %867 = vst [vmem:[#allocation2 + $0x30] sm:$0xff] %v835
  %868 = vst [vmem:[#allocation2 + $0x38] sm:$0xff] %v836
  %869 = vst [vmem:[#allocation2 + $0x40] sm:$0xff] %v837
  %870 = vst [vmem:[#allocation2 + $0x48] sm:$0xff] %v838
  %871 = vst [vmem:[#allocation2 + $0x50] sm:$0xff] %v839
  %872 = vst [vmem:[#allocation2 + $0x58] sm:$0xff] %v840
  %873 = vst [vmem:[#allocation2 + $0x60] sm:$0xff] %v841
  %874 = vst [vmem:[#allocation2 + $0x68] sm:$0xff] %v842
  %875 = vst [vmem:[#allocation2 + $0x70] sm:$0xff] %v843
  %876 = vst [vmem:[#allocation2 + $0x78] sm:$0xff] %v844
  %877 = vst [vmem:[#allocation2 + $0x80] sm:$0xff] %v845
  %878 = vst [vmem:[#allocation2 + $0x88] sm:$0xff] %v846
  %879 = vst [vmem:[#allocation2 + $0x90] sm:$0xff] %v847
  %880 = vst [vmem:[#allocation2 + $0x98] sm:$0xff] %v848
  %881 = vst [vmem:[#allocation2 + $0xa0] sm:$0xff] %v849
  %882 = vst [vmem:[#allocation2 + $0xa8] sm:$0xff] %v850
  %883 = vst [vmem:[#allocation2 + $0xb0] sm:$0xff] %v851
  %884 = vst [vmem:[#allocation2 + $0xb8] sm:$0xff] %v852
  %885 = vst [vmem:[#allocation2 + $0xc0] sm:$0xff] %v853
  %886 = vst [vmem:[#allocation2 + $0xc8] sm:$0xff] %v854
  %887 = vst [vmem:[#allocation2 + $0xd0] sm:$0xff] %v855
  %888 = vst [vmem:[#allocation2 + $0xd8] sm:$0xff] %v856
  %889 = vst [vmem:[#allocation2 + $0xe0] sm:$0xff] %v857
  %890 = vst [vmem:[#allocation2 + $0xe8] sm:$0xff] %v858
  %891 = vst [vmem:[#allocation2 + $0xf0] sm:$0xff] %v859
  %892 = vst [vmem:[#allocation2 + $0xf8] sm:$0xff] %v860
  // Predicated region
  $region26: #{vanilla_lstm_forward.11} parent=0 // pred_check
    %p893 = pneg %p21
  $region27: #{vanilla_lstm_forward.11} parent=0 // pred_check_branch
    %895 = sbr.rel (%p893) target = $region29
  $region28: #{vanilla_lstm_forward.11} parent=0 // pred_region
    %v896 = vld [vmem:[#allocation2] sm:$0xff]
    %v897 = vld [vmem:[#allocation2 + $0x8] sm:$0xff]
    %v898 = vld [vmem:[#allocation2 + $0x10] sm:$0xff]
    %v899 = vld [vmem:[#allocation2 + $0x18] sm:$0xff]
    %v900 = vld [vmem:[#allocation2 + $0x20] sm:$0xff]
    %v901 = vld [vmem:[#allocation2 + $0x28] sm:$0xff]
    %v902 = vld [vmem:[#allocation2 + $0x30] sm:$0xff]
    %v903 = vld [vmem:[#allocation2 + $0x38] sm:$0xff]
    %v904 = vld [vmem:[#allocation2 + $0x40] sm:$0xff]
    %v905 = vld [vmem:[#allocation2 + $0x48] sm:$0xff]
    %v906 = vld [vmem:[#allocation2 + $0x50] sm:$0xff]
    %v907 = vld [vmem:[#allocation2 + $0x58] sm:$0xff]
    %v908 = vld [vmem:[#allocation2 + $0x60] sm:$0xff]
    %v909 = vld [vmem:[#allocation2 + $0x68] sm:$0xff]
    %v910 = vld [vmem:[#allocation2 + $0x70] sm:$0xff]
    %v911 = vld [vmem:[#allocation2 + $0x78] sm:$0xff]
    %v912 = vld [vmem:[#allocation2 + $0x80] sm:$0xff]
    %v913 = vld [vmem:[#allocation2 + $0x88] sm:$0xff]
    %v914 = vld [vmem:[#allocation2 + $0x90] sm:$0xff]
    %v915 = vld [vmem:[#allocation2 + $0x98] sm:$0xff]
    %v916 = vld [vmem:[#allocation2 + $0xa0] sm:$0xff]
    %v917 = vld [vmem:[#allocation2 + $0xa8] sm:$0xff]
    %v918 = vld [vmem:[#allocation2 + $0xb0] sm:$0xff]
    %v919 = vld [vmem:[#allocation2 + $0xb8] sm:$0xff]
    %v920 = vld [vmem:[#allocation2 + $0xc0] sm:$0xff]
    %v921 = vld [vmem:[#allocation2 + $0xc8] sm:$0xff]
    %v922 = vld [vmem:[#allocation2 + $0xd0] sm:$0xff]
    %v923 = vld [vmem:[#allocation2 + $0xd8] sm:$0xff]
    %v924 = vld [vmem:[#allocation2 + $0xe0] sm:$0xff]
    %v925 = vld [vmem:[#allocation2 + $0xe8] sm:$0xff]
    %v926 = vld [vmem:[#allocation2 + $0xf0] sm:$0xff]
    %v927 = vld [vmem:[#allocation2 + $0xf8] sm:$0xff]
    %v928 = vld [vmem:[%s4] sm:$0xf]
    %v930 = vlaneseq
    %v931 = vshrl.u32 %v930, 7
    %v932 = vsub.s32 0, %v931
    %v933 = vrot.slane %v928, %v932
    %v934 = vlaneseq
    %v935 = vshrl.u32 %v934, 7
    %v936 = vsub.s32 1, %v935
    %v937 = vrot.slane %v928, %v936
    %v938 = vlaneseq
    %v939 = vshrl.u32 %v938, 7
    %v940 = vsub.s32 2, %v939
    %v941 = vrot.slane %v928, %v940
    %v942 = vlaneseq
    %v943 = vshrl.u32 %v942, 7
    %v944 = vsub.s32 3, %v943
    %v945 = vrot.slane %v928, %v944
    %v950 = vadd.f32 %v896, %v933
    %v951 = vadd.f32 %v897, %v937
    %v952 = vadd.f32 %v898, %v941
    %v953 = vadd.f32 %v899, %v945
    %v954 = vadd.f32 %v900, %v933
    %v955 = vadd.f32 %v901, %v937
    %v956 = vadd.f32 %v902, %v941
    %v957 = vadd.f32 %v903, %v945
    %v958 = vadd.f32 %v904, %v933
    %v959 = vadd.f32 %v905, %v937
    %v960 = vadd.f32 %v906, %v941
    %v961 = vadd.f32 %v907, %v945
    %v962 = vadd.f32 %v908, %v933
    %v963 = vadd.f32 %v909, %v937
    %v964 = vadd.f32 %v910, %v941
    %v965 = vadd.f32 %v911, %v945
    %v966 = vadd.f32 %v912, %v933
    %v967 = vadd.f32 %v913, %v937
    %v968 = vadd.f32 %v914, %v941
    %v969 = vadd.f32 %v915, %v945
    %v970 = vadd.f32 %v916, %v933
    %v971 = vadd.f32 %v917, %v937
    %v972 = vadd.f32 %v918, %v941
    %v973 = vadd.f32 %v919, %v945
    %v974 = vadd.f32 %v920, %v933
    %v975 = vadd.f32 %v921, %v937
    %v976 = vadd.f32 %v922, %v941
    %v977 = vadd.f32 %v923, %v945
    %v978 = vadd.f32 %v924, %v933
    %v979 = vadd.f32 %v925, %v937
    %v980 = vadd.f32 %v926, %v941
    %v981 = vadd.f32 %v927, %v945
    %v982 = vpack.c.bf16 %v954, %v950
    %v983 = vpack.c.bf16 %v955, %v951
    %v984 = vpack.c.bf16 %v956, %v952
    %v985 = vpack.c.bf16 %v957, %v953
    %v986 = vpack.c.bf16 %v962, %v958
    %v987 = vpack.c.bf16 %v963, %v959
    %v988 = vpack.c.bf16 %v964, %v960
    %v989 = vpack.c.bf16 %v965, %v961
    %v990 = vpack.c.bf16 %v970, %v966
    %v991 = vpack.c.bf16 %v971, %v967
    %v992 = vpack.c.bf16 %v972, %v968
    %v993 = vpack.c.bf16 %v973, %v969
    %v994 = vpack.c.bf16 %v978, %v974
    %v995 = vpack.c.bf16 %v979, %v975
    %v996 = vpack.c.bf16 %v980, %v976
    %v997 = vpack.c.bf16 %v981, %v977
    %v1014 = vunpack.c.l.b16 %v982
    %v1015 = vunpack.c.l.b16 %v983
    %v1016 = vunpack.c.l.b16 %v984
    %v1017 = vunpack.c.l.b16 %v985
    %v1018 = vunpack.c.h.b16 %v982
    %v1019 = vunpack.c.h.b16 %v983
    %v1020 = vunpack.c.h.b16 %v984
    %v1021 = vunpack.c.h.b16 %v985
    %v1022 = vunpack.c.l.b16 %v986
    %v1023 = vunpack.c.l.b16 %v987
    %v1024 = vunpack.c.l.b16 %v988
    %v1025 = vunpack.c.l.b16 %v989
    %v1026 = vunpack.c.h.b16 %v986
    %v1027 = vunpack.c.h.b16 %v987
    %v1028 = vunpack.c.h.b16 %v988
    %v1029 = vunpack.c.h.b16 %v989
    %v1030 = vunpack.c.l.b16 %v990
    %v1031 = vunpack.c.l.b16 %v991
    %v1032 = vunpack.c.l.b16 %v992
    %v1033 = vunpack.c.l.b16 %v993
    %v1034 = vunpack.c.h.b16 %v990
    %v1035 = vunpack.c.h.b16 %v991
    %v1036 = vunpack.c.h.b16 %v992
    %v1037 = vunpack.c.h.b16 %v993
    %v1038 = vunpack.c.l.b16 %v994
    %v1039 = vunpack.c.l.b16 %v995
    %v1040 = vunpack.c.l.b16 %v996
    %v1041 = vunpack.c.l.b16 %v997
    %v1042 = vunpack.c.h.b16 %v994
    %v1043 = vunpack.c.h.b16 %v995
    %v1044 = vunpack.c.h.b16 %v996
    %v1045 = vunpack.c.h.b16 %v997
    %v1046 = vpack.c.b16 %v1015, %v1014
    %v1047 = vpack.c.b16 %v1017, %v1016
    %v1048 = vpack.c.b16 %v1019, %v1018
    %v1049 = vpack.c.b16 %v1021, %v1020
    %v1050 = vpack.c.b16 %v1023, %v1022
    %v1051 = vpack.c.b16 %v1025, %v1024
    %v1052 = vpack.c.b16 %v1027, %v1026
    %v1053 = vpack.c.b16 %v1029, %v1028
    %v1054 = vpack.c.b16 %v1031, %v1030
    %v1055 = vpack.c.b16 %v1033, %v1032
    %v1056 = vpack.c.b16 %v1035, %v1034
    %v1057 = vpack.c.b16 %v1037, %v1036
    %v1058 = vpack.c.b16 %v1039, %v1038
    %v1059 = vpack.c.b16 %v1041, %v1040
    %v1060 = vpack.c.b16 %v1043, %v1042
    %v1061 = vpack.c.b16 %v1045, %v1044
    %1078 = vst [vmem:[%s5] sm:$0xff] %v1046
    %1079 = vst [vmem:[%s5 + $0x8] sm:$0xff] %v1047
    %1080 = vst [vmem:[%s5 + $0x10] sm:$0xff] %v1048
    %1081 = vst [vmem:[%s5 + $0x18] sm:$0xff] %v1049
    %1082 = vst [vmem:[%s5 + $0x20] sm:$0xff] %v1050
    %1083 = vst [vmem:[%s5 + $0x28] sm:$0xff] %v1051
    %1084 = vst [vmem:[%s5 + $0x30] sm:$0xff] %v1052
    %1085 = vst [vmem:[%s5 + $0x38] sm:$0xff] %v1053
    %1086 = vst [vmem:[%s5 + $0x40] sm:$0xff] %v1054
    %1087 = vst [vmem:[%s5 + $0x48] sm:$0xff] %v1055
    %1088 = vst [vmem:[%s5 + $0x50] sm:$0xff] %v1056
    %1089 = vst [vmem:[%s5 + $0x58] sm:$0xff] %v1057
    %1090 = vst [vmem:[%s5 + $0x60] sm:$0xff] %v1058
    %1091 = vst [vmem:[%s5 + $0x68] sm:$0xff] %v1059
    %1092 = vst [vmem:[%s5 + $0x70] sm:$0xff] %v1060
    %1093 = vst [vmem:[%s5 + $0x78] sm:$0xff] %v1061
  $region29: #{vanilla_lstm_forward.11} parent=0 // pred_fallthru
    _
  // Predicated region
  $region30: #{vanilla_lstm_forward.11} parent=0 // pred_check
    _
  $region31: #{vanilla_lstm_forward.11} parent=0 // pred_check_branch
    %1095 = sbr.rel (0) target = $region33
  $region32: #{vanilla_lstm_forward.11} parent=0 // pred_region
    _
  $region33: #{vanilla_lstm_forward.11} parent=0 // pred_fallthru
    _
  // Predicated region
  $region34: #{vanilla_lstm_forward.11} parent=0 // pred_check
    _
  $region35: #{vanilla_lstm_forward.11} parent=0 // pred_check_branch
    %1097 = sbr.rel (0) target = $region37
  $region36: #{vanilla_lstm_forward.11} parent=0 // pred_region
    _
  $region37: #{vanilla_lstm_forward.11} parent=0 // pred_fallthru
    _

// kernel: vanilla_lstm_forward.9
$region0: #{vanilla_lstm_forward.9}
  #allocation0 [shape = 'u32[]', space=smem, size = 0x4, offset = 0x4, fixed_abs, tag = 'smem constant byte address 0x4 - core index']
  #allocation1 [shape = 'u32[144,128]{1,0:T(1,128)}', space=vmem, size = 0x12000, scoped, tag = 'internal scratch']
  #allocation2 [shape = 'f32[2,8,128]{2,1,0:T(8,128)}', space=vmem, size = 0x2000, scoped, tag = 'scratch operand']
  #allocation3 [shape = 'f32[2,8,128]{2,1,0:T(8,128)}', space=vmem, size = 0x2000, scoped, tag = 'scratch operand']
  %s0 = inlined_call_operand.vmem [shape: bf16[8,8,512], index: 0, kind: input, shape index: {}]
  %s1 = inlined_call_operand.vmem [shape: bf16[8,8,512], index: 1, kind: input, shape index: {}]
  %s2 = inlined_call_operand.vmem [shape: bf16[2,128,512], index: 2, kind: input, shape index: {}]
  %s3 = inlined_call_operand.vmem [shape: bf16[8,8,128], index: 3, kind: output, shape index: {0}]
  %s4 = inlined_call_operand.vmem [shape: bf16[8,8,128], index: 4, kind: output, shape index: {1}]
  %5 = xla_tuple %s3, %s4
  %s6 = sld [smem:[#allocation0]]
  $region34: #{vanilla_lstm_forward.9} parent=0
    _
  %s8 = ssub.s32 1, %s6
  %s9 = scalar_select 0, %s8, %s6
  // Predicated region
  $region2: #{vanilla_lstm_forward.9} parent=0 // pred_check
    _
  $region3: #{vanilla_lstm_forward.9} parent=0 // pred_check_branch
    %11 = sbr.rel (0) target = $region5
  $region4: #{vanilla_lstm_forward.9} parent=0 // pred_region
    _
  $region5: #{vanilla_lstm_forward.9} parent=0 // pred_fallthru
    _
  // Predicated region
  $region6: #{vanilla_lstm_forward.9} parent=0 // pred_check
    _
  $region7: #{vanilla_lstm_forward.9} parent=0 // pred_check_branch
    %13 = sbr.rel (0) target = $region9
  $region8: #{vanilla_lstm_forward.9} parent=0 // pred_region
    %s14 = ssub.s32 0, 0
    %s15 = smul.u32 8, %s14
    %p16 = scmp.lt.s32.totalorder %s15, 7
    %s17 = scalar_select %p16, %s15, 7
    %s18 = smul.addr %s17, 4
    %s19 = smul.addr %s18, 4
    %s20 = scalar_lea.vmem %s1, %s19
    %s21 = ssub.s32 0, 0
    %s22 = smul.u32 8, %s21
  $region9: #{vanilla_lstm_forward.9} parent=0 // pred_fallthru
    _
  // Predicated region
  $region10: #{vanilla_lstm_forward.9} parent=0 // pred_check
    _
  $region11: #{vanilla_lstm_forward.9} parent=0 // pred_check_branch
    %24 = sbr.rel (0) target = $region13
  $region12: #{vanilla_lstm_forward.9} parent=0 // pred_region
    _
  $region13: #{vanilla_lstm_forward.9} parent=0 // pred_fallthru
    _
  %s25 = ssub.s32 0, 0
  %s26 = smul.u32 8, %s25
  %p27 = scmp.lt.s32.totalorder %s26, 7
  %s28 = scalar_select %p27, %s26, 7
  %s29 = smul.addr %s28, 4
  %s30 = smul.addr %s29, 4
  %s31 = scalar_lea.vmem %s1, %s30
  %s32 = ssub.s32 0, 0
  %s33 = smul.u32 8, %s32
  %p34 = scmp.lt.s32.totalorder %s33, 7
  %s35 = scalar_select %p34, %s33, 7
  %s36 = smul.addr %s35, 4
  %s37 = scalar_lea.vmem %s4, %s36
  %s38 = ssub.s32 0, 0
  %s39 = smul.u32 8, %s38
  %p40 = scmp.lt.s32.totalorder %s39, 7
  %s41 = scalar_select %p40, %s39, 7
  %s42 = smul.addr %s41, 4
  %s43 = smul.addr %s42, 4
  %s44 = scalar_lea.vmem %s1, %s43
  %s45 = ssub.s32 0, 0
  %s46 = smul.u32 8, %s45
  %s47 = ssub.s32 0, 0
  %s48 = smul.u32 8, %s47
  %p49 = scmp.lt.s32.totalorder %s48, 7
  %s50 = scalar_select %p49, %s48, 7
  %s51 = smul.addr %s50, 4
  %s52 = scalar_lea.vmem %s4, %s51
  %s53 = ssub.s32 0, 0
  %s54 = smul.u32 8, %s53
  %p56 = scmp.eq.s32.totalorder 0, 0
  // Predicated region
  $region14: #{vanilla_lstm_forward.9} parent=0 // pred_check
    %p57 = pneg %p56
  $region15: #{vanilla_lstm_forward.9} parent=0 // pred_check_branch
    %59 = sbr.rel (%p57) target = $region17
  $region16: #{vanilla_lstm_forward.9} parent=0 // pred_region
    %60 = vst [vmem:[#allocation2] sm:$0xff] 0.0
    %61 = vst [vmem:[#allocation2 + $0x8] sm:$0xff] 0.0
    %62 = vst [vmem:[#allocation3] sm:$0xff] 0.0
    %63 = vst [vmem:[#allocation3 + $0x8] sm:$0xff] 0.0
  $region17: #{vanilla_lstm_forward.9} parent=0 // pred_fallthru
    _
  %v64 = vld [vmem:[#allocation2] sm:$0xff]
  %v65 = vld [vmem:[#allocation3] sm:$0xff]
  %s66 = scalar_lea.vmem [#allocation2], 8
  %v67 = vld [vmem:[%s66] sm:$0xff]
  %s68 = scalar_lea.vmem [#allocation3], 8
  %v69 = vld [vmem:[%s68] sm:$0xff]
  %v70 = vld [vmem:[%s0] sm:$0xff]
  %v71 = vld [vmem:[%s0 + $0x8] sm:$0xff]
  %v72 = vunpack.c.l.bf16 %v70
  %v73 = vunpack.c.h.bf16 %v70
  %v74 = vunpack.c.l.bf16 %v71
  %v75 = vunpack.c.h.bf16 %v71
  %v76 = vpack.c.bf16 %v64, %v64
  %v77 = vld [vmem:[%s2] sm:$0xff]
  %v78 = vld [vmem:[%s2 + $0x8] sm:$0xff]
  %v79 = vld [vmem:[%s2 + $0x10] sm:$0xff]
  %v80 = vld [vmem:[%s2 + $0x18] sm:$0xff]
  %v81 = vld [vmem:[%s2 + $0x20] sm:$0xff]
  %v82 = vld [vmem:[%s2 + $0x28] sm:$0xff]
  %v83 = vld [vmem:[%s2 + $0x30] sm:$0xff]
  %v84 = vld [vmem:[%s2 + $0x38] sm:$0xff]
  %v85 = vld [vmem:[%s2 + $0x40] sm:$0xff]
  %v86 = vld [vmem:[%s2 + $0x48] sm:$0xff]
  %v87 = vld [vmem:[%s2 + $0x50] sm:$0xff]
  %v88 = vld [vmem:[%s2 + $0x58] sm:$0xff]
  %v89 = vld [vmem:[%s2 + $0x60] sm:$0xff]
  %v90 = vld [vmem:[%s2 + $0x68] sm:$0xff]
  %v91 = vld [vmem:[%s2 + $0x70] sm:$0xff]
  %v92 = vld [vmem:[%s2 + $0x78] sm:$0xff]
  %v93 = vld [vmem:[%s2 + $0x80] sm:$0xff]
  %v94 = vld [vmem:[%s2 + $0x88] sm:$0xff]
  %v95 = vld [vmem:[%s2 + $0x90] sm:$0xff]
  %v96 = vld [vmem:[%s2 + $0x98] sm:$0xff]
  %v97 = vld [vmem:[%s2 + $0xa0] sm:$0xff]
  %v98 = vld [vmem:[%s2 + $0xa8] sm:$0xff]
  %v99 = vld [vmem:[%s2 + $0xb0] sm:$0xff]
  %v100 = vld [vmem:[%s2 + $0xb8] sm:$0xff]
  %v101 = vld [vmem:[%s2 + $0xc0] sm:$0xff]
  %v102 = vld [vmem:[%s2 + $0xc8] sm:$0xff]
  %v103 = vld [vmem:[%s2 + $0xd0] sm:$0xff]
  %v104 = vld [vmem:[%s2 + $0xd8] sm:$0xff]
  %v105 = vld [vmem:[%s2 + $0xe0] sm:$0xff]
  %v106 = vld [vmem:[%s2 + $0xe8] sm:$0xff]
  %v107 = vld [vmem:[%s2 + $0xf0] sm:$0xff]
  %v108 = vld [vmem:[%s2 + $0xf8] sm:$0xff]
  %v141 = vunpack.c.l.b16 %v77
  %v142 = vunpack.c.h.b16 %v77
  %v143 = vunpack.c.l.b16 %v78
  %v144 = vunpack.c.h.b16 %v78
  %v145 = vunpack.c.l.b16 %v79
  %v146 = vunpack.c.h.b16 %v79
  %v147 = vunpack.c.l.b16 %v80
  %v148 = vunpack.c.h.b16 %v80
  %v149 = vunpack.c.l.b16 %v81
  %v150 = vunpack.c.h.b16 %v81
  %v151 = vunpack.c.l.b16 %v82
  %v152 = vunpack.c.h.b16 %v82
  %v153 = vunpack.c.l.b16 %v83
  %v154 = vunpack.c.h.b16 %v83
  %v155 = vunpack.c.l.b16 %v84
  %v156 = vunpack.c.h.b16 %v84
  %v157 = vunpack.c.l.b16 %v85
  %v158 = vunpack.c.h.b16 %v85
  %v159 = vunpack.c.l.b16 %v86
  %v160 = vunpack.c.h.b16 %v86
  %v161 = vunpack.c.l.b16 %v87
  %v162 = vunpack.c.h.b16 %v87
  %v163 = vunpack.c.l.b16 %v88
  %v164 = vunpack.c.h.b16 %v88
  %v165 = vunpack.c.l.b16 %v89
  %v166 = vunpack.c.h.b16 %v89
  %v167 = vunpack.c.l.b16 %v90
  %v168 = vunpack.c.h.b16 %v90
  %v169 = vunpack.c.l.b16 %v91
  %v170 = vunpack.c.h.b16 %v91
  %v171 = vunpack.c.l.b16 %v92
  %v172 = vunpack.c.h.b16 %v92
  %v173 = vunpack.c.l.b16 %v93
  %v174 = vunpack.c.h.b16 %v93
  %v175 = vunpack.c.l.b16 %v94
  %v176 = vunpack.c.h.b16 %v94
  %v177 = vunpack.c.l.b16 %v95
  %v178 = vunpack.c.h.b16 %v95
  %v179 = vunpack.c.l.b16 %v96
  %v180 = vunpack.c.h.b16 %v96
  %v181 = vunpack.c.l.b16 %v97
  %v182 = vunpack.c.h.b16 %v97
  %v183 = vunpack.c.l.b16 %v98
  %v184 = vunpack.c.h.b16 %v98
  %v185 = vunpack.c.l.b16 %v99
  %v186 = vunpack.c.h.b16 %v99
  %v187 = vunpack.c.l.b16 %v100
  %v188 = vunpack.c.h.b16 %v100
  %v189 = vunpack.c.l.b16 %v101
  %v190 = vunpack.c.h.b16 %v101
  %v191 = vunpack.c.l.b16 %v102
  %v192 = vunpack.c.h.b16 %v102
  %v193 = vunpack.c.l.b16 %v103
  %v194 = vunpack.c.h.b16 %v103
  %v195 = vunpack.c.l.b16 %v104
  %v196 = vunpack.c.h.b16 %v104
  %v197 = vunpack.c.l.b16 %v105
  %v198 = vunpack.c.h.b16 %v105
  %v199 = vunpack.c.l.b16 %v106
  %v200 = vunpack.c.h.b16 %v106
  %v201 = vunpack.c.l.b16 %v107
  %v202 = vunpack.c.h.b16 %v107
  %v203 = vunpack.c.l.b16 %v108
  %v204 = vunpack.c.h.b16 %v108
  %v205 = vpack.c.b16 %v145, %v141
  %v206 = vpack.c.b16 %v146, %v142
  %v207 = vpack.c.b16 %v147, %v143
  %v208 = vpack.c.b16 %v148, %v144
  %v209 = vpack.c.b16 %v153, %v149
  %v210 = vpack.c.b16 %v154, %v150
  %v211 = vpack.c.b16 %v155, %v151
  %v212 = vpack.c.b16 %v156, %v152
  %v213 = vpack.c.b16 %v161, %v157
  %v214 = vpack.c.b16 %v162, %v158
  %v215 = vpack.c.b16 %v163, %v159
  %v216 = vpack.c.b16 %v164, %v160
  %v217 = vpack.c.b16 %v169, %v165
  %v218 = vpack.c.b16 %v170, %v166
  %v219 = vpack.c.b16 %v171, %v167
  %v220 = vpack.c.b16 %v172, %v168
  %v221 = vpack.c.b16 %v177, %v173
  %v222 = vpack.c.b16 %v178, %v174
  %v223 = vpack.c.b16 %v179, %v175
  %v224 = vpack.c.b16 %v180, %v176
  %v225 = vpack.c.b16 %v185, %v181
  %v226 = vpack.c.b16 %v186, %v182
  %v227 = vpack.c.b16 %v187, %v183
  %v228 = vpack.c.b16 %v188, %v184
  %v229 = vpack.c.b16 %v193, %v189
  %v230 = vpack.c.b16 %v194, %v190
  %v231 = vpack.c.b16 %v195, %v191
  %v232 = vpack.c.b16 %v196, %v192
  %v233 = vpack.c.b16 %v201, %v197
  %v234 = vpack.c.b16 %v202, %v198
  %v235 = vpack.c.b16 %v203, %v199
  %v236 = vpack.c.b16 %v204, %v200
  %269 = vmatprep.subr.bf16.mxu0 %v206
  %270 = vmatpush1.bf16.msra.mxu0 %v205
  %271 = vmatprep.subr.bf16.mxu0 %v210
  %272 = vmatpush1.bf16.msra.mxu0 %v209
  %273 = vmatprep.subr.bf16.mxu0 %v214
  %274 = vmatpush1.bf16.msra.mxu0 %v213
  %275 = vmatprep.subr.bf16.mxu0 %v218
  %276 = vmatpush1.bf16.msra.mxu0 %v217
  %277 = vmatprep.subr.bf16.mxu0 %v222
  %278 = vmatpush1.bf16.msra.mxu0 %v221
  %279 = vmatprep.subr.bf16.mxu0 %v226
  %280 = vmatpush1.bf16.msra.mxu0 %v225
  %281 = vmatprep.subr.bf16.mxu0 %v230
  %282 = vmatpush1.bf16.msra.mxu0 %v229
  %283 = vmatprep.subr.bf16.mxu0 %v234
  %284 = vmatpush1.bf16.msra.mxu0 %v233
  %285 = vmatprep.subr.bf16.mxu0 0
  %286 = vmatpush1.bf16.msra.mxu0 0
  %287 = vmatprep.subr.bf16.mxu0 0
  %288 = vmatpush1.bf16.msra.mxu0 0
  %289 = vmatprep.subr.bf16.mxu0 0
  %290 = vmatpush1.bf16.msra.mxu0 0
  %291 = vmatprep.subr.bf16.mxu0 0
  %292 = vmatpush1.bf16.msra.mxu0 0
  %293 = vmatprep.subr.bf16.mxu0 0
  %294 = vmatpush1.bf16.msra.mxu0 0
  %295 = vmatprep.subr.bf16.mxu0 0
  %296 = vmatpush1.bf16.msra.mxu0 0
  %297 = vmatprep.subr.bf16.mxu0 0
  %298 = vmatpush1.bf16.msra.mxu0 0
  %299 = vmatprep.subr.bf16.mxu0 0
  %300 = vmatpush1.bf16.msra.mxu0 0
  %301 = vmatprep.mubr.bf16.mxu0 0
  %302 = vmatmul.mubr.bf16.gmra.mrb[0].mxu0 %v76
  %v303 = vpop.f32.mrb[0].mxu0
  %v304 = vadd.f32 0.0, %v303
  %v305 = vpop.f32.mrb[0].mxu0
  %v306 = vadd.f32 0.0, %v305
  %v307 = vpop.f32.mrb[0].mxu0
  %v308 = vpop.f32.mrb[0].mxu0
  %309 = vdwg.mxu0
  %310 = vmatprep.subr.bf16.mxu0 %v208
  %311 = vmatpush1.bf16.msra.mxu0 %v207
  %312 = vmatprep.subr.bf16.mxu0 %v212
  %313 = vmatpush1.bf16.msra.mxu0 %v211
  %314 = vmatprep.subr.bf16.mxu0 %v216
  %315 = vmatpush1.bf16.msra.mxu0 %v215
  %316 = vmatprep.subr.bf16.mxu0 %v220
  %317 = vmatpush1.bf16.msra.mxu0 %v219
  %318 = vmatprep.subr.bf16.mxu0 %v224
  %319 = vmatpush1.bf16.msra.mxu0 %v223
  %320 = vmatprep.subr.bf16.mxu0 %v228
  %321 = vmatpush1.bf16.msra.mxu0 %v227
  %322 = vmatprep.subr.bf16.mxu0 %v232
  %323 = vmatpush1.bf16.msra.mxu0 %v231
  %324 = vmatprep.subr.bf16.mxu0 %v236
  %325 = vmatpush1.bf16.msra.mxu0 %v235
  %326 = vmatprep.subr.bf16.mxu0 0
  %327 = vmatpush1.bf16.msra.mxu0 0
  %328 = vmatprep.subr.bf16.mxu0 0
  %329 = vmatpush1.bf16.msra.mxu0 0
  %330 = vmatprep.subr.bf16.mxu0 0
  %331 = vmatpush1.bf16.msra.mxu0 0
  %332 = vmatprep.subr.bf16.mxu0 0
  %333 = vmatpush1.bf16.msra.mxu0 0
  %334 = vmatprep.subr.bf16.mxu0 0
  %335 = vmatpush1.bf16.msra.mxu0 0
  %336 = vmatprep.subr.bf16.mxu0 0
  %337 = vmatpush1.bf16.msra.mxu0 0
  %338 = vmatprep.subr.bf16.mxu0 0
  %339 = vmatpush1.bf16.msra.mxu0 0
  %340 = vmatprep.subr.bf16.mxu0 0
  %341 = vmatpush1.bf16.msra.mxu0 0
  %342 = vmatprep.mubr.bf16.mxu0 0
  %343 = vmatmul.mubr.bf16.gmra.mrb[0].mxu0 %v76
  %v344 = vpop.f32.mrb[0].mxu0
  %v345 = vadd.f32 0.0, %v344
  %v346 = vpop.f32.mrb[0].mxu0
  %v347 = vadd.f32 0.0, %v346
  %v348 = vpop.f32.mrb[0].mxu0
  %v349 = vpop.f32.mrb[0].mxu0
  %350 = vdwg.mxu0
  %v351 = vadd.f32 %v72, %v304
  %v352 = vadd.f32 %v73, %v306
  %v353 = vadd.f32 %v74, %v345
  %v354 = vadd.f32 %v75, %v347
  %v355 = vmul.f32 %v351, 0.5
  %v356 = vtanh.pop %v355
  %v357 = vmul.f32 %v356, 0.5
  %v358 = vadd.f32 %v357, 0.5
  %v359 = vmul.f32 %v352, 0.5
  %v360 = vtanh.pop %v359
  %v361 = vmul.f32 %v360, 0.5
  %v362 = vadd.f32 %v361, 0.5
  %v363 = vtanh.pop %v353
  %v364 = vmul.f32 %v354, 0.5
  %v365 = vtanh.pop %v364
  %v366 = vmul.f32 %v365, 0.5
  %v367 = vadd.f32 %v366, 0.5
  %v368 = vmul.f32 %v362, %v65
  %v369 = vmul.f32 %v358, %v363
  %v370 = vadd.f32 %v368, %v369
  %v371 = vtanh.pop %v370
  %v372 = vmul.f32 %v367, %v371
  %v373 = vpack.c.bf16 %v372, %v372
  %374 = vst [vmem:[%s3] sm:$0xf] %v373
  %s375 = scalar_lea.vmem %s44, 112
  %v376 = vld [vmem:[%s375] sm:$0xff]
  %v377 = vld [vmem:[%s375 + $0x8] sm:$0xff]
  %v378 = vunpack.c.l.bf16 %v376
  %v379 = vunpack.c.h.bf16 %v376
  %v380 = vunpack.c.l.bf16 %v377
  %v381 = vunpack.c.h.bf16 %v377
  %v382 = vpack.c.bf16 %v67, %v67
  %s383 = scalar_lea.vmem %s2, 256
  %v384 = vld [vmem:[%s383] sm:$0xff]
  %v385 = vld [vmem:[%s383 + $0x8] sm:$0xff]
  %v386 = vld [vmem:[%s383 + $0x10] sm:$0xff]
  %v387 = vld [vmem:[%s383 + $0x18] sm:$0xff]
  %v388 = vld [vmem:[%s383 + $0x20] sm:$0xff]
  %v389 = vld [vmem:[%s383 + $0x28] sm:$0xff]
  %v390 = vld [vmem:[%s383 + $0x30] sm:$0xff]
  %v391 = vld [vmem:[%s383 + $0x38] sm:$0xff]
  %v392 = vld [vmem:[%s383 + $0x40] sm:$0xff]
  %v393 = vld [vmem:[%s383 + $0x48] sm:$0xff]
  %v394 = vld [vmem:[%s383 + $0x50] sm:$0xff]
  %v395 = vld [vmem:[%s383 + $0x58] sm:$0xff]
  %v396 = vld [vmem:[%s383 + $0x60] sm:$0xff]
  %v397 = vld [vmem:[%s383 + $0x68] sm:$0xff]
  %v398 = vld [vmem:[%s383 + $0x70] sm:$0xff]
  %v399 = vld [vmem:[%s383 + $0x78] sm:$0xff]
  %v400 = vld [vmem:[%s383 + $0x80] sm:$0xff]
  %v401 = vld [vmem:[%s383 + $0x88] sm:$0xff]
  %v402 = vld [vmem:[%s383 + $0x90] sm:$0xff]
  %v403 = vld [vmem:[%s383 + $0x98] sm:$0xff]
  %v404 = vld [vmem:[%s383 + $0xa0] sm:$0xff]
  %v405 = vld [vmem:[%s383 + $0xa8] sm:$0xff]
  %v406 = vld [vmem:[%s383 + $0xb0] sm:$0xff]
  %v407 = vld [vmem:[%s383 + $0xb8] sm:$0xff]
  %v408 = vld [vmem:[%s383 + $0xc0] sm:$0xff]
  %v409 = vld [vmem:[%s383 + $0xc8] sm:$0xff]
  %v410 = vld [vmem:[%s383 + $0xd0] sm:$0xff]
  %v411 = vld [vmem:[%s383 + $0xd8] sm:$0xff]
  %v412 = vld [vmem:[%s383 + $0xe0] sm:$0xff]
  %v413 = vld [vmem:[%s383 + $0xe8] sm:$0xff]
  %v414 = vld [vmem:[%s383 + $0xf0] sm:$0xff]
  %v415 = vld [vmem:[%s383 + $0xf8] sm:$0xff]
  %v448 = vunpack.c.l.b16 %v384
  %v449 = vunpack.c.h.b16 %v384
  %v450 = vunpack.c.l.b16 %v385
  %v451 = vunpack.c.h.b16 %v385
  %v452 = vunpack.c.l.b16 %v386
  %v453 = vunpack.c.h.b16 %v386
  %v454 = vunpack.c.l.b16 %v387
  %v455 = vunpack.c.h.b16 %v387
  %v456 = vunpack.c.l.b16 %v388
  %v457 = vunpack.c.h.b16 %v388
  %v458 = vunpack.c.l.b16 %v389
  %v459 = vunpack.c.h.b16 %v389
  %v460 = vunpack.c.l.b16 %v390
  %v461 = vunpack.c.h.b16 %v390
  %v462 = vunpack.c.l.b16 %v391
  %v463 = vunpack.c.h.b16 %v391
  %v464 = vunpack.c.l.b16 %v392
  %v465 = vunpack.c.h.b16 %v392
  %v466 = vunpack.c.l.b16 %v393
  %v467 = vunpack.c.h.b16 %v393
  %v468 = vunpack.c.l.b16 %v394
  %v469 = vunpack.c.h.b16 %v394
  %v470 = vunpack.c.l.b16 %v395
  %v471 = vunpack.c.h.b16 %v395
  %v472 = vunpack.c.l.b16 %v396
  %v473 = vunpack.c.h.b16 %v396
  %v474 = vunpack.c.l.b16 %v397
  %v475 = vunpack.c.h.b16 %v397
  %v476 = vunpack.c.l.b16 %v398
  %v477 = vunpack.c.h.b16 %v398
  %v478 = vunpack.c.l.b16 %v399
  %v479 = vunpack.c.h.b16 %v399
  %v480 = vunpack.c.l.b16 %v400
  %v481 = vunpack.c.h.b16 %v400
  %v482 = vunpack.c.l.b16 %v401
  %v483 = vunpack.c.h.b16 %v401
  %v484 = vunpack.c.l.b16 %v402
  %v485 = vunpack.c.h.b16 %v402
  %v486 = vunpack.c.l.b16 %v403
  %v487 = vunpack.c.h.b16 %v403
  %v488 = vunpack.c.l.b16 %v404
  %v489 = vunpack.c.h.b16 %v404
  %v490 = vunpack.c.l.b16 %v405
  %v491 = vunpack.c.h.b16 %v405
  %v492 = vunpack.c.l.b16 %v406
  %v493 = vunpack.c.h.b16 %v406
  %v494 = vunpack.c.l.b16 %v407
  %v495 = vunpack.c.h.b16 %v407
  %v496 = vunpack.c.l.b16 %v408
  %v497 = vunpack.c.h.b16 %v408
  %v498 = vunpack.c.l.b16 %v409
  %v499 = vunpack.c.h.b16 %v409
  %v500 = vunpack.c.l.b16 %v410
  %v501 = vunpack.c.h.b16 %v410
  %v502 = vunpack.c.l.b16 %v411
  %v503 = vunpack.c.h.b16 %v411
  %v504 = vunpack.c.l.b16 %v412
  %v505 = vunpack.c.h.b16 %v412
  %v506 = vunpack.c.l.b16 %v413
  %v507 = vunpack.c.h.b16 %v413
  %v508 = vunpack.c.l.b16 %v414
  %v509 = vunpack.c.h.b16 %v414
  %v510 = vunpack.c.l.b16 %v415
  %v511 = vunpack.c.h.b16 %v415
  %v512 = vpack.c.b16 %v452, %v448
  %v513 = vpack.c.b16 %v453, %v449
  %v514 = vpack.c.b16 %v454, %v450
  %v515 = vpack.c.b16 %v455, %v451
  %v516 = vpack.c.b16 %v460, %v456
  %v517 = vpack.c.b16 %v461, %v457
  %v518 = vpack.c.b16 %v462, %v458
  %v519 = vpack.c.b16 %v463, %v459
  %v520 = vpack.c.b16 %v468, %v464
  %v521 = vpack.c.b16 %v469, %v465
  %v522 = vpack.c.b16 %v470, %v466
  %v523 = vpack.c.b16 %v471, %v467
  %v524 = vpack.c.b16 %v476, %v472
  %v525 = vpack.c.b16 %v477, %v473
  %v526 = vpack.c.b16 %v478, %v474
  %v527 = vpack.c.b16 %v479, %v475
  %v528 = vpack.c.b16 %v484, %v480
  %v529 = vpack.c.b16 %v485, %v481
  %v530 = vpack.c.b16 %v486, %v482
  %v531 = vpack.c.b16 %v487, %v483
  %v532 = vpack.c.b16 %v492, %v488
  %v533 = vpack.c.b16 %v493, %v489
  %v534 = vpack.c.b16 %v494, %v490
  %v535 = vpack.c.b16 %v495, %v491
  %v536 = vpack.c.b16 %v500, %v496
  %v537 = vpack.c.b16 %v501, %v497
  %v538 = vpack.c.b16 %v502, %v498
  %v539 = vpack.c.b16 %v503, %v499
  %v540 = vpack.c.b16 %v508, %v504
  %v541 = vpack.c.b16 %v509, %v505
  %v542 = vpack.c.b16 %v510, %v506
  %v543 = vpack.c.b16 %v511, %v507
  %576 = vmatprep.subr.bf16.mxu0 %v513
  %577 = vmatpush1.bf16.msra.mxu0 %v512
  %578 = vmatprep.subr.bf16.mxu0 %v517
  %579 = vmatpush1.bf16.msra.mxu0 %v516
  %580 = vmatprep.subr.bf16.mxu0 %v521
  %581 = vmatpush1.bf16.msra.mxu0 %v520
  %582 = vmatprep.subr.bf16.mxu0 %v525
  %583 = vmatpush1.bf16.msra.mxu0 %v524
  %584 = vmatprep.subr.bf16.mxu0 %v529
  %585 = vmatpush1.bf16.msra.mxu0 %v528
  %586 = vmatprep.subr.bf16.mxu0 %v533
  %587 = vmatpush1.bf16.msra.mxu0 %v532
  %588 = vmatprep.subr.bf16.mxu0 %v537
  %589 = vmatpush1.bf16.msra.mxu0 %v536
  %590 = vmatprep.subr.bf16.mxu0 %v541
  %591 = vmatpush1.bf16.msra.mxu0 %v540
  %592 = vmatprep.subr.bf16.mxu0 0
  %593 = vmatpush1.bf16.msra.mxu0 0
  %594 = vmatprep.subr.bf16.mxu0 0
  %595 = vmatpush1.bf16.msra.mxu0 0
  %596 = vmatprep.subr.bf16.mxu0 0
  %597 = vmatpush1.bf16.msra.mxu0 0
  %598 = vmatprep.subr.bf16.mxu0 0
  %599 = vmatpush1.bf16.msra.mxu0 0
  %600 = vmatprep.subr.bf16.mxu0 0
  %601 = vmatpush1.bf16.msra.mxu0 0
  %602 = vmatprep.subr.bf16.mxu0 0
  %603 = vmatpush1.bf16.msra.mxu0 0
  %604 = vmatprep.subr.bf16.mxu0 0
  %605 = vmatpush1.bf16.msra.mxu0 0
  %606 = vmatprep.subr.bf16.mxu0 0
  %607 = vmatpush1.bf16.msra.mxu0 0
  %608 = vmatprep.mubr.bf16.mxu0 0
  %609 = vmatmul.mubr.bf16.gmra.mrb[0].mxu0 %v382
  %v610 = vpop.f32.mrb[0].mxu0
  %v611 = vadd.f32 0.0, %v610
  %v612 = vpop.f32.mrb[0].mxu0
  %v613 = vadd.f32 0.0, %v612
  %v614 = vpop.f32.mrb[0].mxu0
  %v615 = vpop.f32.mrb[0].mxu0
  %616 = vdwg.mxu0
  %617 = vmatprep.subr.bf16.mxu0 %v515
  %618 = vmatpush1.bf16.msra.mxu0 %v514
  %619 = vmatprep.subr.bf16.mxu0 %v519
  %620 = vmatpush1.bf16.msra.mxu0 %v518
  %621 = vmatprep.subr.bf16.mxu0 %v523
  %622 = vmatpush1.bf16.msra.mxu0 %v522
  %623 = vmatprep.subr.bf16.mxu0 %v527
  %624 = vmatpush1.bf16.msra.mxu0 %v526
  %625 = vmatprep.subr.bf16.mxu0 %v531
  %626 = vmatpush1.bf16.msra.mxu0 %v530
  %627 = vmatprep.subr.bf16.mxu0 %v535
  %628 = vmatpush1.bf16.msra.mxu0 %v534
  %629 = vmatprep.subr.bf16.mxu0 %v539
  %630 = vmatpush1.bf16.msra.mxu0 %v538
  %631 = vmatprep.subr.bf16.mxu0 %v543
  %632 = vmatpush1.bf16.msra.mxu0 %v542
  %633 = vmatprep.subr.bf16.mxu0 0
  %634 = vmatpush1.bf16.msra.mxu0 0
  %635 = vmatprep.subr.bf16.mxu0 0
  %636 = vmatpush1.bf16.msra.mxu0 0
  %637 = vmatprep.subr.bf16.mxu0 0
  %638 = vmatpush1.bf16.msra.mxu0 0
  %639 = vmatprep.subr.bf16.mxu0 0
  %640 = vmatpush1.bf16.msra.mxu0 0
  %641 = vmatprep.subr.bf16.mxu0 0
  %642 = vmatpush1.bf16.msra.mxu0 0
  %643 = vmatprep.subr.bf16.mxu0 0
  %644 = vmatpush1.bf16.msra.mxu0 0
  %645 = vmatprep.subr.bf16.mxu0 0
  %646 = vmatpush1.bf16.msra.mxu0 0
  %647 = vmatprep.subr.bf16.mxu0 0
  %648 = vmatpush1.bf16.msra.mxu0 0
  %649 = vmatprep.mubr.bf16.mxu0 0
  %650 = vmatmul.mubr.bf16.gmra.mrb[0].mxu0 %v382
  %v651 = vpop.f32.mrb[0].mxu0
  %v652 = vadd.f32 0.0, %v651
  %v653 = vpop.f32.mrb[0].mxu0
  %v654 = vadd.f32 0.0, %v653
  %v655 = vpop.f32.mrb[0].mxu0
  %v656 = vpop.f32.mrb[0].mxu0
  %657 = vdwg.mxu0
  %v658 = vadd.f32 %v378, %v611
  %v659 = vadd.f32 %v379, %v613
  %v660 = vadd.f32 %v380, %v652
  %v661 = vadd.f32 %v381, %v654
  %v662 = vmul.f32 %v658, 0.5
  %v663 = vtanh.pop %v662
  %v664 = vmul.f32 %v663, 0.5
  %v665 = vadd.f32 %v664, 0.5
  %v666 = vmul.f32 %v659, 0.5
  %v667 = vtanh.pop %v666
  %v668 = vmul.f32 %v667, 0.5
  %v669 = vadd.f32 %v668, 0.5
  %v670 = vtanh.pop %v660
  %v671 = vmul.f32 %v661, 0.5
  %v672 = vtanh.pop %v671
  %v673 = vmul.f32 %v672, 0.5
  %v674 = vadd.f32 %v673, 0.5
  %v675 = vmul.f32 %v669, %v69
  %v676 = vmul.f32 %v665, %v670
  %v677 = vadd.f32 %v675, %v676
  %v678 = vtanh.pop %v677
  %v679 = vmul.f32 %v674, %v678
  %v680 = vpack.c.bf16 %v679, %v679
  %s681 = scalar_lea.vmem %s52, 28
  %682 = vst [vmem:[%s681] sm:$0xf] %v680
  %s683 = scalar_lea.vmem %s0, 16
  %v684 = vld [vmem:[%s683] sm:$0xff]
  %v685 = vld [vmem:[%s683 + $0x8] sm:$0xff]
  %v686 = vunpack.c.l.bf16 %v684
  %v687 = vunpack.c.h.bf16 %v684
  %v688 = vunpack.c.l.bf16 %v685
  %v689 = vunpack.c.h.bf16 %v685
  %v690 = vld [vmem:[%s2] sm:$0xff]
  %v691 = vld [vmem:[%s2 + $0x8] sm:$0xff]
  %v692 = vld [vmem:[%s2 + $0x10] sm:$0xff]
  %v693 = vld [vmem:[%s2 + $0x18] sm:$0xff]
  %v694 = vld [vmem:[%s2 + $0x20] sm:$0xff]
  %v695 = vld [vmem:[%s2 + $0x28] sm:$0xff]
  %v696 = vld [vmem:[%s2 + $0x30] sm:$0xff]
  %v697 = vld [vmem:[%s2 + $0x38] sm:$0xff]
  %v698 = vld [vmem:[%s2 + $0x40] sm:$0xff]
  %v699 = vld [vmem:[%s2 + $0x48] sm:$0xff]
  %v700 = vld [vmem:[%s2 + $0x50] sm:$0xff]
  %v701 = vld [vmem:[%s2 + $0x58] sm:$0xff]
  %v702 = vld [vmem:[%s2 + $0x60] sm:$0xff]
  %v703 = vld [vmem:[%s2 + $0x68] sm:$0xff]
  %v704 = vld [vmem:[%s2 + $0x70] sm:$0xff]
  %v705 = vld [vmem:[%s2 + $0x78] sm:$0xff]
  %v706 = vld [vmem:[%s2 + $0x80] sm:$0xff]
  %v707 = vld [vmem:[%s2 + $0x88] sm:$0xff]
  %v708 = vld [vmem:[%s2 + $0x90] sm:$0xff]
  %v709 = vld [vmem:[%s2 + $0x98] sm:$0xff]
  %v710 = vld [vmem:[%s2 + $0xa0] sm:$0xff]
  %v711 = vld [vmem:[%s2 + $0xa8] sm:$0xff]
  %v712 = vld [vmem:[%s2 + $0xb0] sm:$0xff]
  %v713 = vld [vmem:[%s2 + $0xb8] sm:$0xff]
  %v714 = vld [vmem:[%s2 + $0xc0] sm:$0xff]
  %v715 = vld [vmem:[%s2 + $0xc8] sm:$0xff]
  %v716 = vld [vmem:[%s2 + $0xd0] sm:$0xff]
  %v717 = vld [vmem:[%s2 + $0xd8] sm:$0xff]
  %v718 = vld [vmem:[%s2 + $0xe0] sm:$0xff]
  %v719 = vld [vmem:[%s2 + $0xe8] sm:$0xff]
  %v720 = vld [vmem:[%s2 + $0xf0] sm:$0xff]
  %v721 = vld [vmem:[%s2 + $0xf8] sm:$0xff]
  %v754 = vunpack.c.l.b16 %v690
  %v755 = vunpack.c.h.b16 %v690
  %v756 = vunpack.c.l.b16 %v691
  %v757 = vunpack.c.h.b16 %v691
  %v758 = vunpack.c.l.b16 %v692
  %v759 = vunpack.c.h.b16 %v692
  %v760 = vunpack.c.l.b16 %v693
  %v761 = vunpack.c.h.b16 %v693
  %v762 = vunpack.c.l.b16 %v694
  %v763 = vunpack.c.h.b16 %v694
  %v764 = vunpack.c.l.b16 %v695
  %v765 = vunpack.c.h.b16 %v695
  %v766 = vunpack.c.l.b16 %v696
  %v767 = vunpack.c.h.b16 %v696
  %v768 = vunpack.c.l.b16 %v697
  %v769 = vunpack.c.h.b16 %v697
  %v770 = vunpack.c.l.b16 %v698
  %v771 = vunpack.c.h.b16 %v698
  %v772 = vunpack.c.l.b16 %v699
  %v773 = vunpack.c.h.b16 %v699
  %v774 = vunpack.c.l.b16 %v700
  %v775 = vunpack.c.h.b16 %v700
  %v776 = vunpack.c.l.b16 %v701
  %v777 = vunpack.c.h.b16 %v701
  %v778 = vunpack.c.l.b16 %v702
  %v779 = vunpack.c.h.b16 %v702
  %v780 = vunpack.c.l.b16 %v703
  %v781 = vunpack.c.h.b16 %v703
  %v782 = vunpack.c.l.b16 %v704
  %v783 = vunpack.c.h.b16 %v704
  %v784 = vunpack.c.l.b16 %v705
  %v785 = vunpack.c.h.b16 %v705
  %v786 = vunpack.c.l.b16 %v706
  %v787 = vunpack.c.h.b16 %v706
  %v788 = vunpack.c.l.b16 %v707
  %v789 = vunpack.c.h.b16 %v707
  %v790 = vunpack.c.l.b16 %v708
  %v791 = vunpack.c.h.b16 %v708
  %v792 = vunpack.c.l.b16 %v709
  %v793 = vunpack.c.h.b16 %v709
  %v794 = vunpack.c.l.b16 %v710
  %v795 = vunpack.c.h.b16 %v710
  %v796 = vunpack.c.l.b16 %v711
  %v797 = vunpack.c.h.b16 %v711
  %v798 = vunpack.c.l.b16 %v712
  %v799 = vunpack.c.h.b16 %v712
  %v800 = vunpack.c.l.b16 %v713
  %v801 = vunpack.c.h.b16 %v713
  %v802 = vunpack.c.l.b16 %v714
  %v803 = vunpack.c.h.b16 %v714
  %v804 = vunpack.c.l.b16 %v715
  %v805 = vunpack.c.h.b16 %v715
  %v806 = vunpack.c.l.b16 %v716
  %v807 = vunpack.c.h.b16 %v716
  %v808 = vunpack.c.l.b16 %v717
  %v809 = vunpack.c.h.b16 %v717
  %v810 = vunpack.c.l.b16 %v718
  %v811 = vunpack.c.h.b16 %v718
  %v812 = vunpack.c.l.b16 %v719
  %v813 = vunpack.c.h.b16 %v719
  %v814 = vunpack.c.l.b16 %v720
  %v815 = vunpack.c.h.b16 %v720
  %v816 = vunpack.c.l.b16 %v721
  %v817 = vunpack.c.h.b16 %v721
  %v818 = vpack.c.b16 %v758, %v754
  %v819 = vpack.c.b16 %v759, %v755
  %v820 = vpack.c.b16 %v760, %v756
  %v821 = vpack.c.b16 %v761, %v757
  %v822 = vpack.c.b16 %v766, %v762
  %v823 = vpack.c.b16 %v767, %v763
  %v824 = vpack.c.b16 %v768, %v764
  %v825 = vpack.c.b16 %v769, %v765
  %v826 = vpack.c.b16 %v774, %v770
  %v827 = vpack.c.b16 %v775, %v771
  %v828 = vpack.c.b16 %v776, %v772
  %v829 = vpack.c.b16 %v777, %v773
  %v830 = vpack.c.b16 %v782, %v778
  %v831 = vpack.c.b16 %v783, %v779
  %v832 = vpack.c.b16 %v784, %v780
  %v833 = vpack.c.b16 %v785, %v781
  %v834 = vpack.c.b16 %v790, %v786
  %v835 = vpack.c.b16 %v791, %v787
  %v836 = vpack.c.b16 %v792, %v788
  %v837 = vpack.c.b16 %v793, %v789
  %v838 = vpack.c.b16 %v798, %v794
  %v839 = vpack.c.b16 %v799, %v795
  %v840 = vpack.c.b16 %v800, %v796
  %v841 = vpack.c.b16 %v801, %v797
  %v842 = vpack.c.b16 %v806, %v802
  %v843 = vpack.c.b16 %v807, %v803
  %v844 = vpack.c.b16 %v808, %v804
  %v845 = vpack.c.b16 %v809, %v805
  %v846 = vpack.c.b16 %v814, %v810
  %v847 = vpack.c.b16 %v815, %v811
  %v848 = vpack.c.b16 %v816, %v812
  %v849 = vpack.c.b16 %v817, %v813
  %882 = vmatprep.subr.bf16.mxu0 %v819
  %883 = vmatpush1.bf16.msra.mxu0 %v818
  %884 = vmatprep.subr.bf16.mxu0 %v823
  %885 = vmatpush1.bf16.msra.mxu0 %v822
  %886 = vmatprep.subr.bf16.mxu0 %v827
  %887 = vmatpush1.bf16.msra.mxu0 %v826
  %888 = vmatprep.subr.bf16.mxu0 %v831
  %889 = vmatpush1.bf16.msra.mxu0 %v830
  %890 = vmatprep.subr.bf16.mxu0 %v835
  %891 = vmatpush1.bf16.msra.mxu0 %v834
  %892 = vmatprep.subr.bf16.mxu0 %v839
  %893 = vmatpush1.bf16.msra.mxu0 %v838
  %894 = vmatprep.subr.bf16.mxu0 %v843
  %895 = vmatpush1.bf16.msra.mxu0 %v842
  %896 = vmatprep.subr.bf16.mxu0 %v847
  %897 = vmatpush1.bf16.msra.mxu0 %v846
  %898 = vmatprep.subr.bf16.mxu0 0
  %899 = vmatpush1.bf16.msra.mxu0 0
  %900 = vmatprep.subr.bf16.mxu0 0
  %901 = vmatpush1.bf16.msra.mxu0 0
  %902 = vmatprep.subr.bf16.mxu0 0
  %903 = vmatpush1.bf16.msra.mxu0 0
  %904 = vmatprep.subr.bf16.mxu0 0
  %905 = vmatpush1.bf16.msra.mxu0 0
  %906 = vmatprep.subr.bf16.mxu0 0
  %907 = vmatpush1.bf16.msra.mxu0 0
  %908 = vmatprep.subr.bf16.mxu0 0
  %909 = vmatpush1.bf16.msra.mxu0 0
  %910 = vmatprep.subr.bf16.mxu0 0
  %911 = vmatpush1.bf16.msra.mxu0 0
  %912 = vmatprep.subr.bf16.mxu0 0
  %913 = vmatpush1.bf16.msra.mxu0 0
  %914 = vmatprep.mubr.bf16.mxu0 0
  %915 = vmatmul.mubr.bf16.gmra.mrb[0].mxu0 %v373
  %v916 = vpop.f32.mrb[0].mxu0
  %v917 = vadd.f32 0.0, %v916
  %v918 = vpop.f32.mrb[0].mxu0
  %v919 = vadd.f32 0.0, %v918
  %v920 = vpop.f32.mrb[0].mxu0
  %v921 = vpop.f32.mrb[0].mxu0
  %922 = vdwg.mxu0
  %923 = vmatprep.subr.bf16.mxu0 %v821
  %924 = vmatpush1.bf16.msra.mxu0 %v820
  %925 = vmatprep.subr.bf16.mxu0 %v825
  %926 = vmatpush1.bf16.msra.mxu0 %v824
  %927 = vmatprep.subr.bf16.mxu0 %v829
  %928 = vmatpush1.bf16.msra.mxu0 %v828
  %929 = vmatprep.subr.bf16.mxu0 %v833
  %930 = vmatpush1.bf16.msra.mxu0 %v832
  %931 = vmatprep.subr.bf16.mxu0 %v837
  %932 = vmatpush1.bf16.msra.mxu0 %v836
  %933 = vmatprep.subr.bf16.mxu0 %v841
  %934 = vmatpush1.bf16.msra.mxu0 %v840
  %935 = vmatprep.subr.bf16.mxu0 %v845
  %936 = vmatpush1.bf16.msra.mxu0 %v844
  %937 = vmatprep.subr.bf16.mxu0 %v849
  %938 = vmatpush1.bf16.msra.mxu0 %v848
  %939 = vmatprep.subr.bf16.mxu0 0
  %940 = vmatpush1.bf16.msra.mxu0 0
  %941 = vmatprep.subr.bf16.mxu0 0
  %942 = vmatpush1.bf16.msra.mxu0 0
  %943 = vmatprep.subr.bf16.mxu0 0
  %944 = vmatpush1.bf16.msra.mxu0 0
  %945 = vmatprep.subr.bf16.mxu0 0
  %946 = vmatpush1.bf16.msra.mxu0 0
  %947 = vmatprep.subr.bf16.mxu0 0
  %948 = vmatpush1.bf16.msra.mxu0 0
  %949 = vmatprep.subr.bf16.mxu0 0
  %950 = vmatpush1.bf16.msra.mxu0 0
  %951 = vmatprep.subr.bf16.mxu0 0
  %952 = vmatpush1.bf16.msra.mxu0 0
  %953 = vmatprep.subr.bf16.mxu0 0
  %954 = vmatpush1.bf16.msra.mxu0 0
  %955 = vmatprep.mubr.bf16.mxu0 0
  %956 = vmatmul.mubr.bf16.gmra.mrb[0].mxu0 %v373
  %v957 = vpop.f32.mrb[0].mxu0
  %v958 = vadd.f32 0.0, %v957
  %v959 = vpop.f32.mrb[0].mxu0
  %v960 = vadd.f32 0.0, %v959
  %v961 = vpop.f32.mrb[0].mxu0
  %v962 = vpop.f32.mrb[0].mxu0
  %963 = vdwg.mxu0
  %v964 = vadd.f32 %v686, %v917
  %v965 = vadd.f32 %v687, %v919
  %v966 = vadd.f32 %v688, %v958
  %v967 = vadd.f32 %v689, %v960
  %v968 = vmul.f32 %v964, 0.5
  %v969 = vtanh.pop %v968
  %v970 = vmul.f32 %v969, 0.5
  %v971 = vadd.f32 %v970, 0.5
  %v972 = vmul.f32 %v965, 0.5
  %v973 = vtanh.pop %v972
  %v974 = vmul.f32 %v973, 0.5
  %v975 = vadd.f32 %v974, 0.5
  %v976 = vtanh.pop %v966
  %v977 = vmul.f32 %v967, 0.5
  %v978 = vtanh.pop %v977
  %v979 = vmul.f32 %v978, 0.5
  %v980 = vadd.f32 %v979, 0.5
  %v981 = vmul.f32 %v975, %v370
  %v982 = vmul.f32 %v971, %v976
  %v983 = vadd.f32 %v981, %v982
  %v984 = vtanh.pop %v983
  %v985 = vmul.f32 %v980, %v984
  %v986 = vpack.c.bf16 %v985, %v985
  %s987 = scalar_lea.vmem %s3, 4
  %988 = vst [vmem:[%s987] sm:$0xf] %v986
  %s989 = scalar_lea.vmem %s44, 96
  %v990 = vld [vmem:[%s989] sm:$0xff]
  %v991 = vld [vmem:[%s989 + $0x8] sm:$0xff]
  %v992 = vunpack.c.l.bf16 %v990
  %v993 = vunpack.c.h.bf16 %v990
  %v994 = vunpack.c.l.bf16 %v991
  %v995 = vunpack.c.h.bf16 %v991
  %v996 = vld [vmem:[%s383] sm:$0xff]
  %v997 = vld [vmem:[%s383 + $0x8] sm:$0xff]
  %v998 = vld [vmem:[%s383 + $0x10] sm:$0xff]
  %v999 = vld [vmem:[%s383 + $0x18] sm:$0xff]
  %v1000 = vld [vmem:[%s383 + $0x20] sm:$0xff]
  %v1001 = vld [vmem:[%s383 + $0x28] sm:$0xff]
  %v1002 = vld [vmem:[%s383 + $0x30] sm:$0xff]
  %v1003 = vld [vmem:[%s383 + $0x38] sm:$0xff]
  %v1004 = vld [vmem:[%s383 + $0x40] sm:$0xff]
  %v1005 = vld [vmem:[%s383 + $0x48] sm:$0xff]
  %v1006 = vld [vmem:[%s383 + $0x50] sm:$0xff]
  %v1007 = vld [vmem:[%s383 + $0x58] sm:$0xff]
  %v1008 = vld [vmem:[%s383 + $0x60] sm:$0xff]
  %v1009 = vld [vmem:[%s383 + $0x68] sm:$0xff]
  %v1010 = vld [vmem:[%s383 + $0x70] sm:$0xff]
  %v1011 = vld [vmem:[%s383 + $0x78] sm:$0xff]
  %v1012 = vld [vmem:[%s383 + $0x80] sm:$0xff]
  %v1013 = vld [vmem:[%s383 + $0x88] sm:$0xff]
  %v1014 = vld [vmem:[%s383 + $0x90] sm:$0xff]
  %v1015 = vld [vmem:[%s383 + $0x98] sm:$0xff]
  %v1016 = vld [vmem:[%s383 + $0xa0] sm:$0xff]
  %v1017 = vld [vmem:[%s383 + $0xa8] sm:$0xff]
  %v1018 = vld [vmem:[%s383 + $0xb0] sm:$0xff]
  %v1019 = vld [vmem:[%s383 + $0xb8] sm:$0xff]
  %v1020 = vld [vmem:[%s383 + $0xc0] sm:$0xff]
  %v1021 = vld [vmem:[%s383 + $0xc8] sm:$0xff]
  %v1022 = vld [vmem:[%s383 + $0xd0] sm:$0xff]
  %v1023 = vld [vmem:[%s383 + $0xd8] sm:$0xff]
  %v1024 = vld [vmem:[%s383 + $0xe0] sm:$0xff]
  %v1025 = vld [vmem:[%s383 + $0xe8] sm:$0xff]
  %v1026 = vld [vmem:[%s383 + $0xf0] sm:$0xff]
  %v1027 = vld [vmem:[%s383 + $0xf8] sm:$0xff]
  %v1060 = vunpack.c.l.b16 %v996
  %v1061 = vunpack.c.h.b16 %v996
  %v1062 = vunpack.c.l.b16 %v997
  %v1063 = vunpack.c.h.b16 %v997
  %v1064 = vunpack.c.l.b16 %v998
  %v1065 = vunpack.c.h.b16 %v998
  %v1066 = vunpack.c.l.b16 %v999
  %v1067 = vunpack.c.h.b16 %v999
  %v1068 = vunpack.c.l.b16 %v1000
  %v1069 = vunpack.c.h.b16 %v1000
  %v1070 = vunpack.c.l.b16 %v1001
  %v1071 = vunpack.c.h.b16 %v1001
  %v1072 = vunpack.c.l.b16 %v1002
  %v1073 = vunpack.c.h.b16 %v1002
  %v1074 = vunpack.c.l.b16 %v1003
  %v1075 = vunpack.c.h.b16 %v1003
  %v1076 = vunpack.c.l.b16 %v1004
  %v1077 = vunpack.c.h.b16 %v1004
  %v1078 = vunpack.c.l.b16 %v1005
  %v1079 = vunpack.c.h.b16 %v1005
  %v1080 = vunpack.c.l.b16 %v1006
  %v1081 = vunpack.c.h.b16 %v1006
  %v1082 = vunpack.c.l.b16 %v1007
  %v1083 = vunpack.c.h.b16 %v1007
  %v1084 = vunpack.c.l.b16 %v1008
  %v1085 = vunpack.c.h.b16 %v1008
  %v1086 = vunpack.c.l.b16 %v1009
  %v1087 = vunpack.c.h.b16 %v1009
  %v1088 = vunpack.c.l.b16 %v1010
  %v1089 = vunpack.c.h.b16 %v1010
  %v1090 = vunpack.c.l.b16 %v1011
  %v1091 = vunpack.c.h.b16 %v1011
  %v1092 = vunpack.c.l.b16 %v1012
  %v1093 = vunpack.c.h.b16 %v1012
  %v1094 = vunpack.c.l.b16 %v1013
  %v1095 = vunpack.c.h.b16 %v1013
  %v1096 = vunpack.c.l.b16 %v1014
  %v1097 = vunpack.c.h.b16 %v1014
  %v1098 = vunpack.c.l.b16 %v1015
  %v1099 = vunpack.c.h.b16 %v1015
  %v1100 = vunpack.c.l.b16 %v1016
  %v1101 = vunpack.c.h.b16 %v1016
  %v1102 = vunpack.c.l.b16 %v1017
  %v1103 = vunpack.c.h.b16 %v1017
  %v1104 = vunpack.c.l.b16 %v1018
  %v1105 = vunpack.c.h.b16 %v1018
  %v1106 = vunpack.c.l.b16 %v1019
  %v1107 = vunpack.c.h.b16 %v1019
  %v1108 = vunpack.c.l.b16 %v1020
  %v1109 = vunpack.c.h.b16 %v1020
  %v1110 = vunpack.c.l.b16 %v1021
  %v1111 = vunpack.c.h.b16 %v1021
  %v1112 = vunpack.c.l.b16 %v1022
  %v1113 = vunpack.c.h.b16 %v1022
  %v1114 = vunpack.c.l.b16 %v1023
  %v1115 = vunpack.c.h.b16 %v1023
  %v1116 = vunpack.c.l.b16 %v1024
  %v1117 = vunpack.c.h.b16 %v1024
  %v1118 = vunpack.c.l.b16 %v1025
  %v1119 = vunpack.c.h.b16 %v1025
  %v1120 = vunpack.c.l.b16 %v1026
  %v1121 = vunpack.c.h.b16 %v1026
  %v1122 = vunpack.c.l.b16 %v1027
  %v1123 = vunpack.c.h.b16 %v1027
  %v1124 = vpack.c.b16 %v1064, %v1060
  %v1125 = vpack.c.b16 %v1065, %v1061
  %v1126 = vpack.c.b16 %v1066, %v1062
  %v1127 = vpack.c.b16 %v1067, %v1063
  %v1128 = vpack.c.b16 %v1072, %v1068
  %v1129 = vpack.c.b16 %v1073, %v1069
  %v1130 = vpack.c.b16 %v1074, %v1070
  %v1131 = vpack.c.b16 %v1075, %v1071
  %v1132 = vpack.c.b16 %v1080, %v1076
  %v1133 = vpack.c.b16 %v1081, %v1077
  %v1134 = vpack.c.b16 %v1082, %v1078
  %v1135 = vpack.c.b16 %v1083, %v1079
  %v1136 = vpack.c.b16 %v1088, %v1084
  %v1137 = vpack.c.b16 %v1089, %v1085
  %v1138 = vpack.c.b16 %v1090, %v1086
  %v1139 = vpack.c.b16 %v1091, %v1087
  %v1140 = vpack.c.b16 %v1096, %v1092
  %v1141 = vpack.c.b16 %v1097, %v1093
  %v1142 = vpack.c.b16 %v1098, %v1094
  %v1143 = vpack.c.b16 %v1099, %v1095
  %v1144 = vpack.c.b16 %v1104, %v1100
  %v1145 = vpack.c.b16 %v1105, %v1101
  %v1146 = vpack.c.b16 %v1106, %v1102
  %v1147 = vpack.c.b16 %v1107, %v1103
  %v1148 = vpack.c.b16 %v1112, %v1108
  %v1149 = vpack.c.b16 %v1113, %v1109
  %v1150 = vpack.c.b16 %v1114, %v1110
  %v1151 = vpack.c.b16 %v1115, %v1111
  %v1152 = vpack.c.b16 %v1120, %v1116
  %v1153 = vpack.c.b16 %v1121, %v1117
  %v1154 = vpack.c.b16 %v1122, %v1118
  %v1155 = vpack.c.b16 %v1123, %v1119
  %1188 = vmatprep.subr.bf16.mxu0 %v1125
  %1189 = vmatpush1.bf16.msra.mxu0 %v1124
  %1190 = vmatprep.subr.bf16.mxu0 %v1129
  %1191 = vmatpush1.bf16.msra.mxu0 %v1128
  %1192 = vmatprep.subr.bf16.mxu0 %v1133
  %1193 = vmatpush1.bf16.msra.mxu0 %v1132
  %1194 = vmatprep.subr.bf16.mxu0 %v1137
  %1195 = vmatpush1.bf16.msra.mxu0 %v1136
  %1196 = vmatprep.subr.bf16.mxu0 %v1141
  %1197 = vmatpush1.bf16.msra.mxu0 %v1140
  %1198 = vmatprep.subr.bf16.mxu0 %v1145
  %1199 = vmatpush1.bf16.msra.mxu0 %v1144
  %1200 = vmatprep.subr.bf16.mxu0 %v1149
  %1201 = vmatpush1.bf16.msra.mxu0 %v1148
  %1202 = vmatprep.subr.bf16.mxu0 %v1153
  %1203 = vmatpush1.bf16.msra.mxu0 %v1152
  %1204 = vmatprep.subr.bf16.mxu0 0
  %1205 = vmatpush1.bf16.msra.mxu0 0
  %1206 = vmatprep.subr.bf16.mxu0 0
  %1207 = vmatpush1.bf16.msra.mxu0 0
  %1208 = vmatprep.subr.bf16.mxu0 0
  %1209 = vmatpush1.bf16.msra.mxu0 0
  %1210 = vmatprep.subr.bf16.mxu0 0
  %1211 = vmatpush1.bf16.msra.mxu0 0
  %1212 = vmatprep.subr.bf16.mxu0 0
  %1213 = vmatpush1.bf16.msra.mxu0 0
  %1214 = vmatprep.subr.bf16.mxu0 0
  %1215 = vmatpush1.bf16.msra.mxu0 0
  %1216 = vmatprep.subr.bf16.mxu0 0
  %1217 = vmatpush1.bf16.msra.mxu0 0
  %1218 = vmatprep.subr.bf16.mxu0 0
  %1219 = vmatpush1.bf16.msra.mxu0 0
  %1220 = vmatprep.mubr.bf16.mxu0 0
  %1221 = vmatmul.mubr.bf16.gmra.mrb[0].mxu0 %v680
  %v1222 = vpop.f32.mrb[0].mxu0
  %v1223 = vadd.f32 0.0, %v1222
  %v1224 = vpop.f32.mrb[0].mxu0
  %v1225 = vadd.f32 0.0, %v1224
  %v1226 = vpop.f32.mrb[0].mxu0
  %v1227 = vpop.f32.mrb[0].mxu0
  %1228 = vdwg.mxu0
  %1229 = vmatprep.subr.bf16.mxu0 %v1127
  %1230 = vmatpush1.bf16.msra.mxu0 %v1126
  %1231 = vmatprep.subr.bf16.mxu0 %v1131
  %1232 = vmatpush1.bf16.msra.mxu0 %v1130
  %1233 = vmatprep.subr.bf16.mxu0 %v1135
  %1234 = vmatpush1.bf16.msra.mxu0 %v1134
  %1235 = vmatprep.subr.bf16.mxu0 %v1139
  %1236 = vmatpush1.bf16.msra.mxu0 %v1138
  %1237 = vmatprep.subr.bf16.mxu0 %v1143
  %1238 = vmatpush1.bf16.msra.mxu0 %v1142
  %1239 = vmatprep.subr.bf16.mxu0 %v1147
  %1240 = vmatpush1.bf16.msra.mxu0 %v1146
  %1241 = vmatprep.subr.bf16.mxu0 %v1151
  %1242 = vmatpush1.bf16.msra.mxu0 %v1150
  %1243 = vmatprep.subr.bf16.mxu0 %v1155
  %1244 = vmatpush1.bf16.msra.mxu0 %v1154
  %1245 = vmatprep.subr.bf16.mxu0 0
  %1246 = vmatpush1.bf16.msra.mxu0 0
  %1247 = vmatprep.subr.bf16.mxu0 0
  %1248 = vmatpush1.bf16.msra.mxu0 0
  %1249 = vmatprep.subr.bf16.mxu0 0
  %1250 = vmatpush1.bf16.msra.mxu0 0
  %1251 = vmatprep.subr.bf16.mxu0 0
  %1252 = vmatpush1.bf16.msra.mxu0 0
  %1253 = vmatprep.subr.bf16.mxu0 0
  %1254 = vmatpush1.bf16.msra.mxu0 0
  %1255 = vmatprep.subr.bf16.mxu0 0
  %1256 = vmatpush1.bf16.msra.mxu0 0
  %1257 = vmatprep.subr.bf16.mxu0 0
  %1258 = vmatpush1.bf16.msra.mxu0 0
  %1259 = vmatprep.subr.bf16.mxu0 0
  %1260 = vmatpush1.bf16.msra.mxu0 0
  %1261 = vmatprep.mubr.bf16.mxu0 0
  %1262 = vmatmul.mubr.bf16.gmra.mrb[0].mxu0 %v680
  %v1263 = vpop.f32.mrb[0].mxu0
  %v1264 = vadd.f32 0.0, %v1263
  %v1265 = vpop.f32.mrb[0].mxu0
  %v1266 = vadd.f32 0.0, %v1265
  %v1267 = vpop.f32.mrb[0].mxu0
  %v1268 = vpop.f32.mrb[0].mxu0
  %1269 = vdwg.mxu0
  %v1270 = vadd.f32 %v992, %v1223
  %v1271 = vadd.f32 %v993, %v1225
  %v1272 = vadd.f32 %v994, %v1264
  %v1273 = vadd.f32 %v995, %v1266
  %v1274 = vmul.f32 %v1270, 0.5
  %v1275 = vtanh.pop %v1274
  %v1276 = vmul.f32 %v1275, 0.5
  %v1277 = vadd.f32 %v1276, 0.5
  %v1278 = vmul.f32 %v1271, 0.5
  %v1279 = vtanh.pop %v1278
  %v1280 = vmul.f32 %v1279, 0.5
  %v1281 = vadd.f32 %v1280, 0.5
  %v1282 = vtanh.pop %v1272
  %v1283 = vmul.f32 %v1273, 0.5
  %v1284 = vtanh.pop %v1283
  %v1285 = vmul.f32 %v1284, 0.5
  %v1286 = vadd.f32 %v1285, 0.5
  %v1287 = vmul.f32 %v1281, %v677
  %v1288 = vmul.f32 %v1277, %v1282
  %v1289 = vadd.f32 %v1287, %v1288
  %v1290 = vtanh.pop %v1289
  %v1291 = vmul.f32 %v1286, %v1290
  %v1292 = vpack.c.bf16 %v1291, %v1291
  %s1293 = scalar_lea.vmem %s52, 24
  %1294 = vst [vmem:[%s1293] sm:$0xf] %v1292
  %s1295 = scalar_lea.vmem %s0, 32
  %v1296 = vld [vmem:[%s1295] sm:$0xff]
  %v1297 = vld [vmem:[%s1295 + $0x8] sm:$0xff]
  %v1298 = vunpack.c.l.bf16 %v1296
  %v1299 = vunpack.c.h.bf16 %v1296
  %v1300 = vunpack.c.l.bf16 %v1297
  %v1301 = vunpack.c.h.bf16 %v1297
  %v1302 = vld [vmem:[%s2] sm:$0xff]
  %v1303 = vld [vmem:[%s2 + $0x8] sm:$0xff]
  %v1304 = vld [vmem:[%s2 + $0x10] sm:$0xff]
  %v1305 = vld [vmem:[%s2 + $0x18] sm:$0xff]
  %v1306 = vld [vmem:[%s2 + $0x20] sm:$0xff]
  %v1307 = vld [vmem:[%s2 + $0x28] sm:$0xff]
  %v1308 = vld [vmem:[%s2 + $0x30] sm:$0xff]
  %v1309 = vld [vmem:[%s2 + $0x38] sm:$0xff]
  %v1310 = vld [vmem:[%s2 + $0x40] sm:$0xff]
  %v1311 = vld [vmem:[%s2 + $0x48] sm:$0xff]
  %v1312 = vld [vmem:[%s2 + $0x50] sm:$0xff]
  %v1313 = vld [vmem:[%s2 + $0x58] sm:$0xff]
  %v1314 = vld [vmem:[%s2 + $0x60] sm:$0xff]
  %v1315 = vld [vmem:[%s2 + $0x68] sm:$0xff]
  %v1316 = vld [vmem:[%s2 + $0x70] sm:$0xff]
  %v1317 = vld [vmem:[%s2 + $0x78] sm:$0xff]
  %v1318 = vld [vmem:[%s2 + $0x80] sm:$0xff]
  %v1319 = vld [vmem:[%s2 + $0x88] sm:$0xff]
  %v1320 = vld [vmem:[%s2 + $0x90] sm:$0xff]
  %v1321 = vld [vmem:[%s2 + $0x98] sm:$0xff]
  %v1322 = vld [vmem:[%s2 + $0xa0] sm:$0xff]
  %v1323 = vld [vmem:[%s2 + $0xa8] sm:$0xff]
  %v1324 = vld [vmem:[%s2 + $0xb0] sm:$0xff]
  %v1325 = vld [vmem:[%s2 + $0xb8] sm:$0xff]
  %v1326 = vld [vmem:[%s2 + $0xc0] sm:$0xff]
  %v1327 = vld [vmem:[%s2 + $0xc8] sm:$0xff]
  %v1328 = vld [vmem:[%s2 + $0xd0] sm:$0xff]
  %v1329 = vld [vmem:[%s2 + $0xd8] sm:$0xff]
  %v1330 = vld [vmem:[%s2 + $0xe0] sm:$0xff]
  %v1331 = vld [vmem:[%s2 + $0xe8] sm:$0xff]
  %v1332 = vld [vmem:[%s2 + $0xf0] sm:$0xff]
  %v1333 = vld [vmem:[%s2 + $0xf8] sm:$0xff]
  %v1366 = vunpack.c.l.b16 %v1302
  %v1367 = vunpack.c.h.b16 %v1302
  %v1368 = vunpack.c.l.b16 %v1303
  %v1369 = vunpack.c.h.b16 %v1303
  %v1370 = vunpack.c.l.b16 %v1304
  %v1371 = vunpack.c.h.b16 %v1304
  %v1372 = vunpack.c.l.b16 %v1305
  %v1373 = vunpack.c.h.b16 %v1305
  %v1374 = vunpack.c.l.b16 %v1306
  %v1375 = vunpack.c.h.b16 %v1306
  %v1376 = vunpack.c.l.b16 %v1307
  %v1377 = vunpack.c.h.b16 %v1307
  %v1378 = vunpack.c.l.b16 %v1308
  %v1379 = vunpack.c.h.b16 %v1308
  %v1380 = vunpack.c.l.b16 %v1309
  %v1381 = vunpack.c.h.b16 %v1309
  %v1382 = vunpack.c.l.b16 %v1310
  %v1383 = vunpack.c.h.b16 %v1310
  %v1384 = vunpack.c.l.b16 %v1311
  %v1385 = vunpack.c.h.b16 %v1311
  %v1386 = vunpack.c.l.b16 %v1312
  %v1387 = vunpack.c.h.b16 %v1312
  %v1388 = vunpack.c.l.b16 %v1313
  %v1389 = vunpack.c.h.b16 %v1313
  %v1390 = vunpack.c.l.b16 %v1314
  %v1391 = vunpack.c.h.b16 %v1314
  %v1392 = vunpack.c.l.b16 %v1315
  %v1393 = vunpack.c.h.b16 %v1315
  %v1394 = vunpack.c.l.b16 %v1316
  %v1395 = vunpack.c.h.b16 %v1316
  %v1396 = vunpack.c.l.b16 %v1317
  %v1397 = vunpack.c.h.b16 %v1317
  %v1398 = vunpack.c.l.b16 %v1318
  %v1399 = vunpack.c.h.b16 %v1318
  %v1400 = vunpack.c.l.b16 %v1319
  %v1401 = vunpack.c.h.b16 %v1319
  %v1402 = vunpack.c.l.b16 %v1320
  %v1403 = vunpack.c.h.b16 %v1320
  %v1404 = vunpack.c.l.b16 %v1321
  %v1405 = vunpack.c.h.b16 %v1321
  %v1406 = vunpack.c.l.b16 %v1322
  %v1407 = vunpack.c.h.b16 %v1322
  %v1408 = vunpack.c.l.b16 %v1323
  %v1409 = vunpack.c.h.b16 %v1323
  %v1410 = vunpack.c.l.b16 %v1324
  %v1411 = vunpack.c.h.b16 %v1324
  %v1412 = vunpack.c.l.b16 %v1325
  %v1413 = vunpack.c.h.b16 %v1325
  %v1414 = vunpack.c.l.b16 %v1326
  %v1415 = vunpack.c.h.b16 %v1326
  %v1416 = vunpack.c.l.b16 %v1327
  %v1417 = vunpack.c.h.b16 %v1327
  %v1418 = vunpack.c.l.b16 %v1328
  %v1419 = vunpack.c.h.b16 %v1328
  %v1420 = vunpack.c.l.b16 %v1329
  %v1421 = vunpack.c.h.b16 %v1329
  %v1422 = vunpack.c.l.b16 %v1330
  %v1423 = vunpack.c.h.b16 %v1330
  %v1424 = vunpack.c.l.b16 %v1331
  %v1425 = vunpack.c.h.b16 %v1331
  %v1426 = vunpack.c.l.b16 %v1332
  %v1427 = vunpack.c.h.b16 %v1332
  %v1428 = vunpack.c.l.b16 %v1333
  %v1429 = vunpack.c.h.b16 %v1333
  %v1430 = vpack.c.b16 %v1370, %v1366
  %v1431 = vpack.c.b16 %v1371, %v1367
  %v1432 = vpack.c.b16 %v1372, %v1368
  %v1433 = vpack.c.b16 %v1373, %v1369
  %v1434 = vpack.c.b16 %v1378, %v1374
  %v1435 = vpack.c.b16 %v1379, %v1375
  %v1436 = vpack.c.b16 %v1380, %v1376
  %v1437 = vpack.c.b16 %v1381, %v1377
  %v1438 = vpack.c.b16 %v1386, %v1382
  %v1439 = vpack.c.b16 %v1387, %v1383
  %v1440 = vpack.c.b16 %v1388, %v1384
  %v1441 = vpack.c.b16 %v1389, %v1385
  %v1442 = vpack.c.b16 %v1394, %v1390
  %v1443 = vpack.c.b16 %v1395, %v1391
  %v1444 = vpack.c.b16 %v1396, %v1392
  %v1445 = vpack.c.b16 %v1397, %v1393
  %v1446 = vpack.c.b16 %v1402, %v1398
  %v1447 = vpack.c.b16 %v1403, %v1399
  %v1448 = vpack.c.b16 %v1404, %v1400
  %v1449 = vpack.c.b16 %v1405, %v1401
  %v1450 = vpack.c.b16 %v1410, %v1406
  %v1451 = vpack.c.b16 %v1411, %v1407
  %v1452 = vpack.c.b16 %v1412, %v1408
  %v1453 = vpack.c.b16 %v1413, %v1409
  %v1454 = vpack.c.b16 %v1418, %v1414
  %v1455 = vpack.c.b16 %v1419, %v1415
  %v1456 = vpack.c.b16 %v1420, %v1416
  %v1457 = vpack.c.b16 %v1421, %v1417
  %v1458 = vpack.c.b16 %v1426, %v1422
  %v1459 = vpack.c.b16 %v1427, %v1423
  %v1460 = vpack.c.b16 %v1428, %v1424
  %v1461 = vpack.c.b16 %v1429, %v1425
  %1494 = vmatprep.subr.bf16.mxu0 %v1431
  %1495 = vmatpush1.bf16.msra.mxu0 %v1430
  %1496 = vmatprep.subr.bf16.mxu0 %v1435
  %1497 = vmatpush1.bf16.msra.mxu0 %v1434
  %1498 = vmatprep.subr.bf16.mxu0 %v1439
  %1499 = vmatpush1.bf16.msra.mxu0 %v1438
  %1500 = vmatprep.subr.bf16.mxu0 %v1443
  %1501 = vmatpush1.bf16.msra.mxu0 %v1442
  %1502 = vmatprep.subr.bf16.mxu0 %v1447
  %1503 = vmatpush1.bf16.msra.mxu0 %v1446
  %1504 = vmatprep.subr.bf16.mxu0 %v1451
  %1505 = vmatpush1.bf16.msra.mxu0 %v1450
  %1506 = vmatprep.subr.bf16.mxu0 %v1455
  %1507 = vmatpush1.bf16.msra.mxu0 %v1454
  %1508 = vmatprep.subr.bf16.mxu0 %v1459
  %1509 = vmatpush1.bf16.msra.mxu0 %v1458
  %1510 = vmatprep.subr.bf16.mxu0 0
  %1511 = vmatpush1.bf16.msra.mxu0 0
  %1512 = vmatprep.subr.bf16.mxu0 0
  %1513 = vmatpush1.bf16.msra.mxu0 0
  %1514 = vmatprep.subr.bf16.mxu0 0
  %1515 = vmatpush1.bf16.msra.mxu0 0
  %1516 = vmatprep.subr.bf16.mxu0 0
  %1517 = vmatpush1.bf16.msra.mxu0 0
  %1518 = vmatprep.subr.bf16.mxu0 0
  %1519 = vmatpush1.bf16.msra.mxu0 0
  %1520 = vmatprep.subr.bf16.mxu0 0
  %1521 = vmatpush1.bf16.msra.mxu0 0
  %1522 = vmatprep.subr.bf16.mxu0 0
  %1523 = vmatpush1.bf16.msra.mxu0 0
  %1524 = vmatprep.subr.bf16.mxu0 0
  %1525 = vmatpush1.bf16.msra.mxu0 0
  %1526 = vmatprep.mubr.bf16.mxu0 0
  %1527 = vmatmul.mubr.bf16.gmra.mrb[0].mxu0 %v986
  %v1528 = vpop.f32.mrb[0].mxu0
  %v1529 = vadd.f32 0.0, %v1528
  %v1530 = vpop.f32.mrb[0].mxu0
  %v1531 = vadd.f32 0.0, %v1530
  %v1532 = vpop.f32.mrb[0].mxu0
  %v1533 = vpop.f32.mrb[0].mxu0
  %1534 = vdwg.mxu0
  %1535 = vmatprep.subr.bf16.mxu0 %v1433
  %1536 = vmatpush1.bf16.msra.mxu0 %v1432
  %1537 = vmatprep.subr.bf16.mxu0 %v1437
  %1538 = vmatpush1.bf16.msra.mxu0 %v1436
  %1539 = vmatprep.subr.bf16.mxu0 %v1441
  %1540 = vmatpush1.bf16.msra.mxu0 %v1440
  %1541 = vmatprep.subr.bf16.mxu0 %v1445
  %1542 = vmatpush1.bf16.msra.mxu0 %v1444
  %1543 = vmatprep.subr.bf16.mxu0 %v1449
  %1544 = vmatpush1.bf16.msra.mxu0 %v1448
  %1545 = vmatprep.subr.bf16.mxu0 %v1453
  %1546 = vmatpush1.bf16.msra.mxu0 %v1452
  %1547 = vmatprep.subr.bf16.mxu0 %v1457
  %1548 = vmatpush1.bf16.msra.mxu0 %v1456
  %1549 = vmatprep.subr.bf16.mxu0 %v1461
  %1550 = vmatpush1.bf16.msra.mxu0 %v1460
  %1551 = vmatprep.subr.bf16.mxu0 0
  %1552 = vmatpush1.bf16.msra.mxu0 0
  %1553 = vmatprep.subr.bf16.mxu0 0
  %1554 = vmatpush1.bf16.msra.mxu0 0
  %1555 = vmatprep.subr.bf16.mxu0 0
  %1556 = vmatpush1.bf16.msra.mxu0 0
  %1557 = vmatprep.subr.bf16.mxu0 0
  %1558 = vmatpush1.bf16.msra.mxu0 0
  %1559 = vmatprep.subr.bf16.mxu0 0
  %1560 = vmatpush1.bf16.msra.mxu0 0
  %1561 = vmatprep.subr.bf16.mxu0 0
  %1562 = vmatpush1.bf16.msra.mxu0 0
  %1563 = vmatprep.subr.bf16.mxu0 0
  %1564 = vmatpush1.bf16.msra.mxu0 0
  %1565 = vmatprep.subr.bf16.mxu0 0
  %1566 = vmatpush1.bf16.msra.mxu0 0
  %1567 = vmatprep.mubr.bf16.mxu0 0
  %1568 = vmatmul.mubr.bf16.gmra.mrb[0].mxu0 %v986
  %v1569 = vpop.f32.mrb[0].mxu0
  %v1570 = vadd.f32 0.0, %v1569
  %v1571 = vpop.f32.mrb[0].mxu0
  %v1572 = vadd.f32 0.0, %v1571
  %v1573 = vpop.f32.mrb[0].mxu0
  %v1574 = vpop.f32.mrb[0].mxu0
  %1575 = vdwg.mxu0
  %v1576 = vadd.f32 %v1298, %v1529
  %v1577 = vadd.f32 %v1299, %v1531
  %v1578 = vadd.f32 %v1300, %v1570
  %v1579 = vadd.f32 %v1301, %v1572
  %v1580 = vmul.f32 %v1576, 0.5
  %v1581 = vtanh.pop %v1580
  %v1582 = vmul.f32 %v1581, 0.5
  %v1583 = vadd.f32 %v1582, 0.5
  %v1584 = vmul.f32 %v1577, 0.5
  %v1585 = vtanh.pop %v1584
  %v1586 = vmul.f32 %v1585, 0.5
  %v1587 = vadd.f32 %v1586, 0.5
  %v1588 = vtanh.pop %v1578
  %v1589 = vmul.f32 %v1579, 0.5
  %v1590 = vtanh.pop %v1589
  %v1591 = vmul.f32 %v1590, 0.5
  %v1592 = vadd.f32 %v1591, 0.5
  %v1593 = vmul.f32 %v1587, %v983
  %v1594 = vmul.f32 %v1583, %v1588
  %v1595 = vadd.f32 %v1593, %v1594
  %v1596 = vtanh.pop %v1595
  %v1597 = vmul.f32 %v1592, %v1596
  %v1598 = vpack.c.bf16 %v1597, %v1597
  %s1599 = scalar_lea.vmem %s3, 8
  %1600 = vst [vmem:[%s1599] sm:$0xf] %v1598
  %s1601 = scalar_lea.vmem %s44, 80
  %v1602 = vld [vmem:[%s1601] sm:$0xff]
  %v1603 = vld [vmem:[%s1601 + $0x8] sm:$0xff]
  %v1604 = vunpack.c.l.bf16 %v1602
  %v1605 = vunpack.c.h.bf16 %v1602
  %v1606 = vunpack.c.l.bf16 %v1603
  %v1607 = vunpack.c.h.bf16 %v1603
  %v1608 = vld [vmem:[%s383] sm:$0xff]
  %v1609 = vld [vmem:[%s383 + $0x8] sm:$0xff]
  %v1610 = vld [vmem:[%s383 + $0x10] sm:$0xff]
  %v1611 = vld [vmem:[%s383 + $0x18] sm:$0xff]
  %v1612 = vld [vmem:[%s383 + $0x20] sm:$0xff]
  %v1613 = vld [vmem:[%s383 + $0x28] sm:$0xff]
  %v1614 = vld [vmem:[%s383 + $0x30] sm:$0xff]
  %v1615 = vld [vmem:[%s383 + $0x38] sm:$0xff]
  %v1616 = vld [vmem:[%s383 + $0x40] sm:$0xff]
  %v1617 = vld [vmem:[%s383 + $0x48] sm:$0xff]
  %v1618 = vld [vmem:[%s383 + $0x50] sm:$0xff]
  %v1619 = vld [vmem:[%s383 + $0x58] sm:$0xff]
  %v1620 = vld [vmem:[%s383 + $0x60] sm:$0xff]
  %v1621 = vld [vmem:[%s383 + $0x68] sm:$0xff]
  %v1622 = vld [vmem:[%s383 + $0x70] sm:$0xff]
  %v1623 = vld [vmem:[%s383 + $0x78] sm:$0xff]
  %v1624 = vld [vmem:[%s383 + $0x80] sm:$0xff]
  %v1625 = vld [vmem:[%s383 + $0x88] sm:$0xff]
  %v1626 = vld [vmem:[%s383 + $0x90] sm:$0xff]
  %v1627 = vld [vmem:[%s383 + $0x98] sm:$0xff]
  %v1628 = vld [vmem:[%s383 + $0xa0] sm:$0xff]
  %v1629 = vld [vmem:[%s383 + $0xa8] sm:$0xff]
  %v1630 = vld [vmem:[%s383 + $0xb0] sm:$0xff]
  %v1631 = vld [vmem:[%s383 + $0xb8] sm:$0xff]
  %v1632 = vld [vmem:[%s383 + $0xc0] sm:$0xff]
  %v1633 = vld [vmem:[%s383 + $0xc8] sm:$0xff]
  %v1634 = vld [vmem:[%s383 + $0xd0] sm:$0xff]
  %v1635 = vld [vmem:[%s383 + $0xd8] sm:$0xff]
  %v1636 = vld [vmem:[%s383 + $0xe0] sm:$0xff]
  %v1637 = vld [vmem:[%s383 + $0xe8] sm:$0xff]
  %v1638 = vld [vmem:[%s383 + $0xf0] sm:$0xff]
  %v1639 = vld [vmem:[%s383 + $0xf8] sm:$0xff]
  %v1672 = vunpack.c.l.b16 %v1608
  %v1673 = vunpack.c.h.b16 %v1608
  %v1674 = vunpack.c.l.b16 %v1609
  %v1675 = vunpack.c.h.b16 %v1609
  %v1676 = vunpack.c.l.b16 %v1610
  %v1677 = vunpack.c.h.b16 %v1610
  %v1678 = vunpack.c.l.b16 %v1611
  %v1679 = vunpack.c.h.b16 %v1611
  %v1680 = vunpack.c.l.b16 %v1612
  %v1681 = vunpack.c.h.b16 %v1612
  %v1682 = vunpack.c.l.b16 %v1613
  %v1683 = vunpack.c.h.b16 %v1613
  %v1684 = vunpack.c.l.b16 %v1614
  %v1685 = vunpack.c.h.b16 %v1614
  %v1686 = vunpack.c.l.b16 %v1615
  %v1687 = vunpack.c.h.b16 %v1615
  %v1688 = vunpack.c.l.b16 %v1616
  %v1689 = vunpack.c.h.b16 %v1616
  %v1690 = vunpack.c.l.b16 %v1617
  %v1691 = vunpack.c.h.b16 %v1617
  %v1692 = vunpack.c.l.b16 %v1618
  %v1693 = vunpack.c.h.b16 %v1618
  %v1694 = vunpack.c.l.b16 %v1619
  %v1695 = vunpack.c.h.b16 %v1619
  %v1696 = vunpack.c.l.b16 %v1620
  %v1697 = vunpack.c.h.b16 %v1620
  %v1698 = vunpack.c.l.b16 %v1621
  %v1699 = vunpack.c.h.b16 %v1621
  %v1700 = vunpack.c.l.b16 %v1622
  %v1701 = vunpack.c.h.b16 %v1622
  %v1702 = vunpack.c.l.b16 %v1623
  %v1703 = vunpack.c.h.b16 %v1623
  %v1704 = vunpack.c.l.b16 %v1624
  %v1705 = vunpack.c.h.b16 %v1624
  %v1706 = vunpack.c.l.b16 %v1625
  %v1707 = vunpack.c.h.b16 %v1625
  %v1708 = vunpack.c.l.b16 %v1626
  %v1709 = vunpack.c.h.b16 %v1626
  %v1710 = vunpack.c.l.b16 %v1627
  %v1711 = vunpack.c.h.b16 %v1627
  %v1712 = vunpack.c.l.b16 %v1628
  %v1713 = vunpack.c.h.b16 %v1628
  %v1714 = vunpack.c.l.b16 %v1629
  %v1715 = vunpack.c.h.b16 %v1629
  %v1716 = vunpack.c.l.b16 %v1630
  %v1717 = vunpack.c.h.b16 %v1630
  %v1718 = vunpack.c.l.b16 %v1631
  %v1719 = vunpack.c.h.b16 %v1631
  %v1720 = vunpack.c.l.b16 %v1632
  %v1721 = vunpack.c.h.b16 %v1632
  %v1722 = vunpack.c.l.b16 %v1633
  %v1723 = vunpack.c.h.b16 %v1633
  %v1724 = vunpack.c.l.b16 %v1634
  %v1725 = vunpack.c.h.b16 %v1634
  %v1726 = vunpack.c.l.b16 %v1635
  %v1727 = vunpack.c.h.b16 %v1635
  %v1728 = vunpack.c.l.b16 %v1636
  %v1729 = vunpack.c.h.b16 %v1636
  %v1730 = vunpack.c.l.b16 %v1637
  %v1731 = vunpack.c.h.b16 %v1637
  %v1732 = vunpack.c.l.b16 %v1638
  %v1733 = vunpack.c.h.b16 %v1638
  %v1734 = vunpack.c.l.b16 %v1639
  %v1735 = vunpack.c.h.b16 %v1639
  %v1736 = vpack.c.b16 %v1676, %v1672
  %v1737 = vpack.c.b16 %v1677, %v1673
  %v1738 = vpack.c.b16 %v1678, %v1674
  %v1739 = vpack.c.b16 %v1679, %v1675
  %v1740 = vpack.c.b16 %v1684, %v1680
  %v1741 = vpack.c.b16 %v1685, %v1681
  %v1742 = vpack.c.b16 %v1686, %v1682
  %v1743 = vpack.c.b16 %v1687, %v1683
  %v1744 = vpack.c.b16 %v1692, %v1688
  %v1745 = vpack.c.b16 %v1693, %v1689
  %v1746 = vpack.c.b16 %v1694, %v1690
  %v1747 = vpack.c.b16 %v1695, %v1691
  %v1748 = vpack.c.b16 %v1700, %v1696
  %v1749 = vpack.c.b16 %v1701, %v1697
  %v1750 = vpack.c.b16 %v1702, %v1698
  %v1751 = vpack.c.b16 %v1703, %v1699
  %v1752 = vpack.c.b16 %v1708, %v1704
  %v1753 = vpack.c.b16 %v1709, %v1705
  %v1754 = vpack.c.b16 %v1710, %v1706
  %v1755 = vpack.c.b16 %v1711, %v1707
  %v1756 = vpack.c.b16 %v1716, %v1712
  %v1757 = vpack.c.b16 %v1717, %v1713
  %v1758 = vpack.c.b16 %v1718, %v1714
  %v1759 = vpack.c.b16 %v1719, %v1715
  %v1760 = vpack.c.b16 %v1724, %v1720
  %v1761 = vpack.c.b16 %v1725, %v1721
  %v1762 = vpack.c.b16 %v1726, %v1722
  %v1763 = vpack.c.b16 %v1727, %v1723
  %v1764 = vpack.c.b16 %v1732, %v1728
  %v1765 = vpack.c.b16 %v1733, %v1729
  %v1766 = vpack.c.b16 %v1734, %v1730
  %v1767 = vpack.c.b16 %v1735, %v1731
  %1800 = vmatprep.subr.bf16.mxu0 %v1737
  %1801 = vmatpush1.bf16.msra.mxu0 %v1736
  %1802 = vmatprep.subr.bf16.mxu0 %v1741
  %1803 = vmatpush1.bf16.msra.mxu0 %v1740
  %1804 = vmatprep.subr.bf16.mxu0 %v1745
  %1805 = vmatpush1.bf16.msra.mxu0 %v1744
  %1806 = vmatprep.subr.bf16.mxu0 %v1749
  %1807 = vmatpush1.bf16.msra.mxu0 %v1748
  %1808 = vmatprep.subr.bf16.mxu0 %v1753
  %1809 = vmatpush1.bf16.msra.mxu0 %v1752
  %1810 = vmatprep.subr.bf16.mxu0 %v1757
  %1811 = vmatpush1.bf16.msra.mxu0 %v1756
  %1812 = vmatprep.subr.bf16.mxu0 %v1761
  %1813 = vmatpush1.bf16.msra.mxu0 %v1760
  %1814 = vmatprep.subr.bf16.mxu0 %v1765
  %1815 = vmatpush1.bf16.msra.mxu0 %v1764
  %1816 = vmatprep.subr.bf16.mxu0 0
  %1817 = vmatpush1.bf16.msra.mxu0 0
  %1818 = vmatprep.subr.bf16.mxu0 0
  %1819 = vmatpush1.bf16.msra.mxu0 0
  %1820 = vmatprep.subr.bf16.mxu0 0
  %1821 = vmatpush1.bf16.msra.mxu0 0
  %1822 = vmatprep.subr.bf16.mxu0 0
  %1823 = vmatpush1.bf16.msra.mxu0 0
  %1824 = vmatprep.subr.bf16.mxu0 0
  %1825 = vmatpush1.bf16.msra.mxu0 0
  %1826 = vmatprep.subr.bf16.mxu0 0
  %1827 = vmatpush1.bf16.msra.mxu0 0
  %1828 = vmatprep.subr.bf16.mxu0 0
  %1829 = vmatpush1.bf16.msra.mxu0 0
  %1830 = vmatprep.subr.bf16.mxu0 0
  %1831 = vmatpush1.bf16.msra.mxu0 0
  %1832 = vmatprep.mubr.bf16.mxu0 0
  %1833 = vmatmul.mubr.bf16.gmra.mrb[0].mxu0 %v1292
  %v1834 = vpop.f32.mrb[0].mxu0
  %v1835 = vadd.f32 0.0, %v1834
  %v1836 = vpop.f32.mrb[0].mxu0
  %v1837 = vadd.f32 0.0, %v1836
  %v1838 = vpop.f32.mrb[0].mxu0
  %v1839 = vpop.f32.mrb[0].mxu0
  %1840 = vdwg.mxu0
  %1841 = vmatprep.subr.bf16.mxu0 %v1739
  %1842 = vmatpush1.bf16.msra.mxu0 %v1738
  %1843 = vmatprep.subr.bf16.mxu0 %v1743
  %1844 = vmatpush1.bf16.msra.mxu0 %v1742
  %1845 = vmatprep.subr.bf16.mxu0 %v1747
  %1846 = vmatpush1.bf16.msra.mxu0 %v1746
  %1847 = vmatprep.subr.bf16.mxu0 %v1751
  %1848 = vmatpush1.bf16.msra.mxu0 %v1750
  %1849 = vmatprep.subr.bf16.mxu0 %v1755
  %1850 = vmatpush1.bf16.msra.mxu0 %v1754
  %1851 = vmatprep.subr.bf16.mxu0 %v1759
  %1852 = vmatpush1.bf16.msra.mxu0 %v1758
  %1853 = vmatprep.subr.bf16.mxu0 %v1763
  %1854 = vmatpush1.bf16.msra.mxu0 %v1762
  %1855 = vmatprep.subr.bf16.mxu0 %v1767
  %1856 = vmatpush1.bf16.msra.mxu0 %v1766
  %1857 = vmatprep.subr.bf16.mxu0 0
  %1858 = vmatpush1.bf16.msra.mxu0 0
  %1859 = vmatprep.subr.bf16.mxu0 0
  %1860 = vmatpush1.bf16.msra.mxu0 0
  %1861 = vmatprep.subr.bf16.mxu0 0
  %1862 = vmatpush1.bf16.msra.mxu0 0
  %1863 = vmatprep.subr.bf16.mxu0 0
  %1864 = vmatpush1.bf16.msra.mxu0 0
  %1865 = vmatprep.subr.bf16.mxu0 0
  %1866 = vmatpush1.bf16.msra.mxu0 0
  %1867 = vmatprep.subr.bf16.mxu0 0
  %1868 = vmatpush1.bf16.msra.mxu0 0
  %1869 = vmatprep.subr.bf16.mxu0 0
  %1870 = vmatpush1.bf16.msra.mxu0 0
  %1871 = vmatprep.subr.bf16.mxu0 0
  %1872 = vmatpush1.bf16.msra.mxu0 0
  %1873 = vmatprep.mubr.bf16.mxu0 0
  %1874 = vmatmul.mubr.bf16.gmra.mrb[0].mxu0 %v1292
  %v1875 = vpop.f32.mrb[0].mxu0
  %v1876 = vadd.f32 0.0, %v1875
  %v1877 = vpop.f32.mrb[0].mxu0
  %v1878 = vadd.f32 0.0, %v1877
  %v1879 = vpop.f32.mrb[0].mxu0
  %v1880 = vpop.f32.mrb[0].mxu0
  %1881 = vdwg.mxu0
  %v1882 = vadd.f32 %v1604, %v1835
  %v1883 = vadd.f32 %v1605, %v1837
  %v1884 = vadd.f32 %v1606, %v1876
  %v1885 = vadd.f32 %v1607, %v1878
  %v1886 = vmul.f32 %v1882, 0.5
  %v1887 = vtanh.pop %v1886
  %v1888 = vmul.f32 %v1887, 0.5
  %v1889 = vadd.f32 %v1888, 0.5
  %v1890 = vmul.f32 %v1883, 0.5
  %v1891 = vtanh.pop %v1890
  %v1892 = vmul.f32 %v1891, 0.5
  %v1893 = vadd.f32 %v1892, 0.5
  %v1894 = vtanh.pop %v1884
  %v1895 = vmul.f32 %v1885, 0.5
  %v1896 = vtanh.pop %v1895
  %v1897 = vmul.f32 %v1896, 0.5
  %v1898 = vadd.f32 %v1897, 0.5
  %v1899 = vmul.f32 %v1893, %v1289
  %v1900 = vmul.f32 %v1889, %v1894
  %v1901 = vadd.f32 %v1899, %v1900
  %v1902 = vtanh.pop %v1901
  %v1903 = vmul.f32 %v1898, %v1902
  %v1904 = vpack.c.bf16 %v1903, %v1903
  %s1905 = scalar_lea.vmem %s52, 20
  %1906 = vst [vmem:[%s1905] sm:$0xf] %v1904
  %s1907 = scalar_lea.vmem %s0, 48
  %v1908 = vld [vmem:[%s1907] sm:$0xff]
  %v1909 = vld [vmem:[%s1907 + $0x8] sm:$0xff]
  %v1910 = vunpack.c.l.bf16 %v1908
  %v1911 = vunpack.c.h.bf16 %v1908
  %v1912 = vunpack.c.l.bf16 %v1909
  %v1913 = vunpack.c.h.bf16 %v1909
  %v1914 = vld [vmem:[%s2] sm:$0xff]
  %v1915 = vld [vmem:[%s2 + $0x8] sm:$0xff]
  %v1916 = vld [vmem:[%s2 + $0x10] sm:$0xff]
  %v1917 = vld [vmem:[%s2 + $0x18] sm:$0xff]
  %v1918 = vld [vmem:[%s2 + $0x20] sm:$0xff]
  %v1919 = vld [vmem:[%s2 + $0x28] sm:$0xff]
  %v1920 = vld [vmem:[%s2 + $0x30] sm:$0xff]
  %v1921 = vld [vmem:[%s2 + $0x38] sm:$0xff]
  %v1922 = vld [vmem:[%s2 + $0x40] sm:$0xff]
  %v1923 = vld [vmem:[%s2 + $0x48] sm:$0xff]
  %v1924 = vld [vmem:[%s2 + $0x50] sm:$0xff]
  %v1925 = vld [vmem:[%s2 + $0x58] sm:$0xff]
  %v1926 = vld [vmem:[%s2 + $0x60] sm:$0xff]
  %v1927 = vld [vmem:[%s2 + $0x68] sm:$0xff]
  %v1928 = vld [vmem:[%s2 + $0x70] sm:$0xff]
  %v1929 = vld [vmem:[%s2 + $0x78] sm:$0xff]
  %v1930 = vld [vmem:[%s2 + $0x80] sm:$0xff]
  %v1931 = vld [vmem:[%s2 + $0x88] sm:$0xff]
  %v1932 = vld [vmem:[%s2 + $0x90] sm:$0xff]
  %v1933 = vld [vmem:[%s2 + $0x98] sm:$0xff]
  %v1934 = vld [vmem:[%s2 + $0xa0] sm:$0xff]
  %v1935 = vld [vmem:[%s2 + $0xa8] sm:$0xff]
  %v1936 = vld [vmem:[%s2 + $0xb0] sm:$0xff]
  %v1937 = vld [vmem:[%s2 + $0xb8] sm:$0xff]
  %v1938 = vld [vmem:[%s2 + $0xc0] sm:$0xff]
  %v1939 = vld [vmem:[%s2 + $0xc8] sm:$0xff]
  %v1940 = vld [vmem:[%s2 + $0xd0] sm:$0xff]
  %v1941 = vld [vmem:[%s2 + $0xd8] sm:$0xff]
  %v1942 = vld [vmem:[%s2 + $0xe0] sm:$0xff]
  %v1943 = vld [vmem:[%s2 + $0xe8] sm:$0xff]
  %v1944 = vld [vmem:[%s2 + $0xf0] sm:$0xff]
  %v1945 = vld [vmem:[%s2 + $0xf8] sm:$0xff]
  %v1978 = vunpack.c.l.b16 %v1914
  %v1979 = vunpack.c.h.b16 %v1914
  %v1980 = vunpack.c.l.b16 %v1915
  %v1981 = vunpack.c.h.b16 %v1915
  %v1982 = vunpack.c.l.b16 %v1916
  %v1983 = vunpack.c.h.b16 %v1916
  %v1984 = vunpack.c.l.b16 %v1917
  %v1985 = vunpack.c.h.b16 %v1917
  %v1986 = vunpack.c.l.b16 %v1918
  %v1987 = vunpack.c.h.b16 %v1918
  %v1988 = vunpack.c.l.b16 %v1919
  %v1989 = vunpack.c.h.b16 %v1919
  %v1990 = vunpack.c.l.b16 %v1920
  %v1991 = vunpack.c.h.b16 %v1920
  %v1992 = vunpack.c.l.b16 %v1921
  %v1993 = vunpack.c.h.b16 %v1921
  %v1994 = vunpack.c.l.b16 %v1922
  %v1995 = vunpack.c.h.b16 %v1922
  %v1996 = vunpack.c.l.b16 %v1923
  %v1997 = vunpack.c.h.b16 %v1923
  %v1998 = vunpack.c.l.b16 %v1924
  %v1999 = vunpack.c.h.b16 %v1924
  %v2000 = vunpack.c.l.b16 %v1925
  %v2001 = vunpack.c.h.b16 %v1925
  %v2002 = vunpack.c.l.b16 %v1926
  %v2003 = vunpack.c.h.b16 %v1926
  %v2004 = vunpack.c.l.b16 %v1927
  %v2005 = vunpack.c.h.b16 %v1927
  %v2006 = vunpack.c.l.b16 %v1928
  %v2007 = vunpack.c.h.b16 %v1928
  %v2008 = vunpack.c.l.b16 %v1929
  %v2009 = vunpack.c.h.b16 %v1929
  %v2010 = vunpack.c.l.b16 %v1930
  %v2011 = vunpack.c.h.b16 %v1930
  %v2012 = vunpack.c.l.b16 %v1931
  %v2013 = vunpack.c.h.b16 %v1931
  %v2014 = vunpack.c.l.b16 %v1932
  %v2015 = vunpack.c.h.b16 %v1932
  %v2016 = vunpack.c.l.b16 %v1933
  %v2017 = vunpack.c.h.b16 %v1933
  %v2018 = vunpack.c.l.b16 %v1934
  %v2019 = vunpack.c.h.b16 %v1934
  %v2020 = vunpack.c.l.b16 %v1935
  %v2021 = vunpack.c.h.b16 %v1935
  %v2022 = vunpack.c.l.b16 %v1936
  %v2023 = vunpack.c.h.b16 %v1936
  %v2024 = vunpack.c.l.b16 %v1937
  %v2025 = vunpack.c.h.b16 %v1937
  %v2026 = vunpack.c.l.b16 %v1938
  %v2027 = vunpack.c.h.b16 %v1938
  %v2028 = vunpack.c.l.b16 %v1939
  %v2029 = vunpack.c.h.b16 %v1939
  %v2030 = vunpack.c.l.b16 %v1940
  %v2031 = vunpack.c.h.b16 %v1940
  %v2032 = vunpack.c.l.b16 %v1941
  %v2033 = vunpack.c.h.b16 %v1941
  %v2034 = vunpack.c.l.b16 %v1942
  %v2035 = vunpack.c.h.b16 %v1942
  %v2036 = vunpack.c.l.b16 %v1943
  %v2037 = vunpack.c.h.b16 %v1943
  %v2038 = vunpack.c.l.b16 %v1944
  %v2039 = vunpack.c.h.b16 %v1944
  %v2040 = vunpack.c.l.b16 %v1945
  %v2041 = vunpack.c.h.b16 %v1945
  %v2042 = vpack.c.b16 %v1982, %v1978
  %v2043 = vpack.c.b16 %v1983, %v1979
  %v2044 = vpack.c.b16 %v1984, %v1980
  %v2045 = vpack.c.b16 %v1985, %v1981
  %v2046 = vpack.c.b16 %v1990, %v1986
  %v2047 = vpack.c.b16 %v1991, %v1987
  %v2048 = vpack.c.b16 %v1992, %v1988
  %v2049 = vpack.c.b16 %v1993, %v1989
  %v2050 = vpack.c.b16 %v1998, %v1994
  %v2051 = vpack.c.b16 %v1999, %v1995
  %v2052 = vpack.c.b16 %v2000, %v1996
  %v2053 = vpack.c.b16 %v2001, %v1997
  %v2054 = vpack.c.b16 %v2006, %v2002
  %v2055 = vpack.c.b16 %v2007, %v2003
  %v2056 = vpack.c.b16 %v2008, %v2004
  %v2057 = vpack.c.b16 %v2009, %v2005
  %v2058 = vpack.c.b16 %v2014, %v2010
  %v2059 = vpack.c.b16 %v2015, %v2011
  %v2060 = vpack.c.b16 %v2016, %v2012
  %v2061 = vpack.c.b16 %v2017, %v2013
  %v2062 = vpack.c.b16 %v2022, %v2018
  %v2063 = vpack.c.b16 %v2023, %v2019
  %v2064 = vpack.c.b16 %v2024, %v2020
  %v2065 = vpack.c.b16 %v2025, %v2021
  %v2066 = vpack.c.b16 %v2030, %v2026
  %v2067 = vpack.c.b16 %v2031, %v2027
  %v2068 = vpack.c.b16 %v2032, %v2028
  %v2069 = vpack.c.b16 %v2033, %v2029
  %v2070 = vpack.c.b16 %v2038, %v2034
  %v2071 = vpack.c.b16 %v2039, %v2035
  %v2072 = vpack.c.b16 %v2040, %v2036
  %v2073 = vpack.c.b16 %v2041, %v2037
  %2106 = vmatprep.subr.bf16.mxu0 %v2043
  %2107 = vmatpush1.bf16.msra.mxu0 %v2042
  %2108 = vmatprep.subr.bf16.mxu0 %v2047
  %2109 = vmatpush1.bf16.msra.mxu0 %v2046
  %2110 = vmatprep.subr.bf16.mxu0 %v2051
  %2111 = vmatpush1.bf16.msra.mxu0 %v2050
  %2112 = vmatprep.subr.bf16.mxu0 %v2055
  %2113 = vmatpush1.bf16.msra.mxu0 %v2054
  %2114 = vmatprep.subr.bf16.mxu0 %v2059
  %2115 = vmatpush1.bf16.msra.mxu0 %v2058
  %2116 = vmatprep.subr.bf16.mxu0 %v2063
  %2117 = vmatpush1.bf16.msra.mxu0 %v2062
  %2118 = vmatprep.subr.bf16.mxu0 %v2067
  %2119 = vmatpush1.bf16.msra.mxu0 %v2066
  %2120 = vmatprep.subr.bf16.mxu0 %v2071
  %2121 = vmatpush1.bf16.msra.mxu0 %v2070
  %2122 = vmatprep.subr.bf16.mxu0 0
  %2123 = vmatpush1.bf16.msra.mxu0 0
  %2124 = vmatprep.subr.bf16.mxu0 0
  %2125 = vmatpush1.bf16.msra.mxu0 0
  %2126 = vmatprep.subr.bf16.mxu0 0
  %2127 = vmatpush1.bf16.msra.mxu0 0
  %2128 = vmatprep.subr.bf16.mxu0 0
  %2129 = vmatpush1.bf16.msra.mxu0 0
  %2130 = vmatprep.subr.bf16.mxu0 0
  %2131 = vmatpush1.bf16.msra.mxu0 0
  %2132 = vmatprep.subr.bf16.mxu0 0
  %2133 = vmatpush1.bf16.msra.mxu0 0
  %2134 = vmatprep.subr.bf16.mxu0 0
  %2135 = vmatpush1.bf16.msra.mxu0 0
  %2136 = vmatprep.subr.bf16.mxu0 0
  %2137 = vmatpush1.bf16.msra.mxu0 0
  %2138 = vmatprep.mubr.bf16.mxu0 0
  %2139 = vmatmul.mubr.bf16.gmra.mrb[0].mxu0 %v1598
  %v2140 = vpop.f32.mrb[0].mxu0
  %v2141 = vadd.f32 0.0, %v2140
  %v2142 = vpop.f32.mrb[0].mxu0
  %v2143 = vadd.f32 0.0, %v2142
  %v2144 = vpop.f32.mrb[0].mxu0
  %v2145 = vpop.f32.mrb[0].mxu0
  %2146 = vdwg.mxu0
  %2147 = vmatprep.subr.bf16.mxu0 %v2045
  %2148 = vmatpush1.bf16.msra.mxu0 %v2044
  %2149 = vmatprep.subr.bf16.mxu0 %v2049
  %2150 = vmatpush1.bf16.msra.mxu0 %v2048
  %2151 = vmatprep.subr.bf16.mxu0 %v2053
  %2152 = vmatpush1.bf16.msra.mxu0 %v2052
  %2153 = vmatprep.subr.bf16.mxu0 %v2057
  %2154 = vmatpush1.bf16.msra.mxu0 %v2056
  %2155 = vmatprep.subr.bf16.mxu0 %v2061
  %2156 = vmatpush1.bf16.msra.mxu0 %v2060
  %2157 = vmatprep.subr.bf16.mxu0 %v2065
  %2158 = vmatpush1.bf16.msra.mxu0 %v2064
  %2159 = vmatprep.subr.bf16.mxu0 %v2069
  %2160 = vmatpush1.bf16.msra.mxu0 %v2068
  %2161 = vmatprep.subr.bf16.mxu0 %v2073
  %2162 = vmatpush1.bf16.msra.mxu0 %v2072
  %2163 = vmatprep.subr.bf16.mxu0 0
  %2164 = vmatpush1.bf16.msra.mxu0 0
  %2165 = vmatprep.subr.bf16.mxu0 0
  %2166 = vmatpush1.bf16.msra.mxu0 0
  %2167 = vmatprep.subr.bf16.mxu0 0
  %2168 = vmatpush1.bf16.msra.mxu0 0
  %2169 = vmatprep.subr.bf16.mxu0 0
  %2170 = vmatpush1.bf16.msra.mxu0 0
  %2171 = vmatprep.subr.bf16.mxu0 0
  %2172 = vmatpush1.bf16.msra.mxu0 0
  %2173 = vmatprep.subr.bf16.mxu0 0
  %2174 = vmatpush1.bf16.msra.mxu0 0
  %2175 = vmatprep.subr.bf16.mxu0 0
  %2176 = vmatpush1.bf16.msra.mxu0 0
  %2177 = vmatprep.subr.bf16.mxu0 0
  %2178 = vmatpush1.bf16.msra.mxu0 0
  %2179 = vmatprep.mubr.bf16.mxu0 0
  %2180 = vmatmul.mubr.bf16.gmra.mrb[0].mxu0 %v1598
  %v2181 = vpop.f32.mrb[0].mxu0
  %v2182 = vadd.f32 0.0, %v2181
  %v2183 = vpop.f32.mrb[0].mxu0
  %v2184 = vadd.f32 0.0, %v2183
  %v2185 = vpop.f32.mrb[0].mxu0
  %v2186 = vpop.f32.mrb[0].mxu0
  %2187 = vdwg.mxu0
  %v2188 = vadd.f32 %v1910, %v2141
  %v2189 = vadd.f32 %v1911, %v2143
  %v2190 = vadd.f32 %v1912, %v2182
  %v2191 = vadd.f32 %v1913, %v2184
  %v2192 = vmul.f32 %v2188, 0.5
  %v2193 = vtanh.pop %v2192
  %v2194 = vmul.f32 %v2193, 0.5
  %v2195 = vadd.f32 %v2194, 0.5
  %v2196 = vmul.f32 %v2189, 0.5
  %v2197 = vtanh.pop %v2196
  %v2198 = vmul.f32 %v2197, 0.5
  %v2199 = vadd.f32 %v2198, 0.5
  %v2200 = vtanh.pop %v2190
  %v2201 = vmul.f32 %v2191, 0.5
  %v2202 = vtanh.pop %v2201
  %v2203 = vmul.f32 %v2202, 0.5
  %v2204 = vadd.f32 %v2203, 0.5
  %v2205 = vmul.f32 %v2199, %v1595
  %v2206 = vmul.f32 %v2195, %v2200
  %v2207 = vadd.f32 %v2205, %v2206
  %v2208 = vtanh.pop %v2207
  %v2209 = vmul.f32 %v2204, %v2208
  %v2210 = vpack.c.bf16 %v2209, %v2209
  %s2211 = scalar_lea.vmem %s3, 12
  %2212 = vst [vmem:[%s2211] sm:$0xf] %v2210
  %s2213 = scalar_lea.vmem %s44, 64
  %v2214 = vld [vmem:[%s2213] sm:$0xff]
  %v2215 = vld [vmem:[%s2213 + $0x8] sm:$0xff]
  %v2216 = vunpack.c.l.bf16 %v2214
  %v2217 = vunpack.c.h.bf16 %v2214
  %v2218 = vunpack.c.l.bf16 %v2215
  %v2219 = vunpack.c.h.bf16 %v2215
  %v2220 = vld [vmem:[%s383] sm:$0xff]
  %v2221 = vld [vmem:[%s383 + $0x8] sm:$0xff]
  %v2222 = vld [vmem:[%s383 + $0x10] sm:$0xff]
  %v2223 = vld [vmem:[%s383 + $0x18] sm:$0xff]
  %v2224 = vld [vmem:[%s383 + $0x20] sm:$0xff]
  %v2225 = vld [vmem:[%s383 + $0x28] sm:$0xff]
  %v2226 = vld [vmem:[%s383 + $0x30] sm:$0xff]
  %v2227 = vld [vmem:[%s383 + $0x38] sm:$0xff]
  %v2228 = vld [vmem:[%s383 + $0x40] sm:$0xff]
  %v2229 = vld [vmem:[%s383 + $0x48] sm:$0xff]
  %v2230 = vld [vmem:[%s383 + $0x50] sm:$0xff]
  %v2231 = vld [vmem:[%s383 + $0x58] sm:$0xff]
  %v2232 = vld [vmem:[%s383 + $0x60] sm:$0xff]
  %v2233 = vld [vmem:[%s383 + $0x68] sm:$0xff]
  %v2234 = vld [vmem:[%s383 + $0x70] sm:$0xff]
  %v2235 = vld [vmem:[%s383 + $0x78] sm:$0xff]
  %v2236 = vld [vmem:[%s383 + $0x80] sm:$0xff]
  %v2237 = vld [vmem:[%s383 + $0x88] sm:$0xff]
  %v2238 = vld [vmem:[%s383 + $0x90] sm:$0xff]
  %v2239 = vld [vmem:[%s383 + $0x98] sm:$0xff]
  %v2240 = vld [vmem:[%s383 + $0xa0] sm:$0xff]
  %v2241 = vld [vmem:[%s383 + $0xa8] sm:$0xff]
  %v2242 = vld [vmem:[%s383 + $0xb0] sm:$0xff]
  %v2243 = vld [vmem:[%s383 + $0xb8] sm:$0xff]
  %v2244 = vld [vmem:[%s383 + $0xc0] sm:$0xff]
  %v2245 = vld [vmem:[%s383 + $0xc8] sm:$0xff]
  %v2246 = vld [vmem:[%s383 + $0xd0] sm:$0xff]
  %v2247 = vld [vmem:[%s383 + $0xd8] sm:$0xff]
  %v2248 = vld [vmem:[%s383 + $0xe0] sm:$0xff]
  %v2249 = vld [vmem:[%s383 + $0xe8] sm:$0xff]
  %v2250 = vld [vmem:[%s383 + $0xf0] sm:$0xff]
  %v2251 = vld [vmem:[%s383 + $0xf8] sm:$0xff]
  %v2284 = vunpack.c.l.b16 %v2220
  %v2285 = vunpack.c.h.b16 %v2220
  %v2286 = vunpack.c.l.b16 %v2221
  %v2287 = vunpack.c.h.b16 %v2221
  %v2288 = vunpack.c.l.b16 %v2222
  %v2289 = vunpack.c.h.b16 %v2222
  %v2290 = vunpack.c.l.b16 %v2223
  %v2291 = vunpack.c.h.b16 %v2223
  %v2292 = vunpack.c.l.b16 %v2224
  %v2293 = vunpack.c.h.b16 %v2224
  %v2294 = vunpack.c.l.b16 %v2225
  %v2295 = vunpack.c.h.b16 %v2225
  %v2296 = vunpack.c.l.b16 %v2226
  %v2297 = vunpack.c.h.b16 %v2226
  %v2298 = vunpack.c.l.b16 %v2227
  %v2299 = vunpack.c.h.b16 %v2227
  %v2300 = vunpack.c.l.b16 %v2228
  %v2301 = vunpack.c.h.b16 %v2228
  %v2302 = vunpack.c.l.b16 %v2229
  %v2303 = vunpack.c.h.b16 %v2229
  %v2304 = vunpack.c.l.b16 %v2230
  %v2305 = vunpack.c.h.b16 %v2230
  %v2306 = vunpack.c.l.b16 %v2231
  %v2307 = vunpack.c.h.b16 %v2231
  %v2308 = vunpack.c.l.b16 %v2232
  %v2309 = vunpack.c.h.b16 %v2232
  %v2310 = vunpack.c.l.b16 %v2233
  %v2311 = vunpack.c.h.b16 %v2233
  %v2312 = vunpack.c.l.b16 %v2234
  %v2313 = vunpack.c.h.b16 %v2234
  %v2314 = vunpack.c.l.b16 %v2235
  %v2315 = vunpack.c.h.b16 %v2235
  %v2316 = vunpack.c.l.b16 %v2236
  %v2317 = vunpack.c.h.b16 %v2236
  %v2318 = vunpack.c.l.b16 %v2237
  %v2319 = vunpack.c.h.b16 %v2237
  %v2320 = vunpack.c.l.b16 %v2238
  %v2321 = vunpack.c.h.b16 %v2238
  %v2322 = vunpack.c.l.b16 %v2239
  %v2323 = vunpack.c.h.b16 %v2239
  %v2324 = vunpack.c.l.b16 %v2240
  %v2325 = vunpack.c.h.b16 %v2240
  %v2326 = vunpack.c.l.b16 %v2241
  %v2327 = vunpack.c.h.b16 %v2241
  %v2328 = vunpack.c.l.b16 %v2242
  %v2329 = vunpack.c.h.b16 %v2242
  %v2330 = vunpack.c.l.b16 %v2243
  %v2331 = vunpack.c.h.b16 %v2243
  %v2332 = vunpack.c.l.b16 %v2244
  %v2333 = vunpack.c.h.b16 %v2244
  %v2334 = vunpack.c.l.b16 %v2245
  %v2335 = vunpack.c.h.b16 %v2245
  %v2336 = vunpack.c.l.b16 %v2246
  %v2337 = vunpack.c.h.b16 %v2246
  %v2338 = vunpack.c.l.b16 %v2247
  %v2339 = vunpack.c.h.b16 %v2247
  %v2340 = vunpack.c.l.b16 %v2248
  %v2341 = vunpack.c.h.b16 %v2248
  %v2342 = vunpack.c.l.b16 %v2249
  %v2343 = vunpack.c.h.b16 %v2249
  %v2344 = vunpack.c.l.b16 %v2250
  %v2345 = vunpack.c.h.b16 %v2250
  %v2346 = vunpack.c.l.b16 %v2251
  %v2347 = vunpack.c.h.b16 %v2251
  %v2348 = vpack.c.b16 %v2288, %v2284
  %v2349 = vpack.c.b16 %v2289, %v2285
  %v2350 = vpack.c.b16 %v2290, %v2286
  %v2351 = vpack.c.b16 %v2291, %v2287
  %v2352 = vpack.c.b16 %v2296, %v2292
  %v2353 = vpack.c.b16 %v2297, %v2293
  %v2354 = vpack.c.b16 %v2298, %v2294
  %v2355 = vpack.c.b16 %v2299, %v2295
  %v2356 = vpack.c.b16 %v2304, %v2300
  %v2357 = vpack.c.b16 %v2305, %v2301
  %v2358 = vpack.c.b16 %v2306, %v2302
  %v2359 = vpack.c.b16 %v2307, %v2303
  %v2360 = vpack.c.b16 %v2312, %v2308
  %v2361 = vpack.c.b16 %v2313, %v2309
  %v2362 = vpack.c.b16 %v2314, %v2310
  %v2363 = vpack.c.b16 %v2315, %v2311
  %v2364 = vpack.c.b16 %v2320, %v2316
  %v2365 = vpack.c.b16 %v2321, %v2317
  %v2366 = vpack.c.b16 %v2322, %v2318
  %v2367 = vpack.c.b16 %v2323, %v2319
  %v2368 = vpack.c.b16 %v2328, %v2324
  %v2369 = vpack.c.b16 %v2329, %v2325
  %v2370 = vpack.c.b16 %v2330, %v2326
  %v2371 = vpack.c.b16 %v2331, %v2327
  %v2372 = vpack.c.b16 %v2336, %v2332
  %v2373 = vpack.c.b16 %v2337, %v2333
  %v2374 = vpack.c.b16 %v2338, %v2334
  %v2375 = vpack.c.b16 %v2339, %v2335
  %v2376 = vpack.c.b16 %v2344, %v2340
  %v2377 = vpack.c.b16 %v2345, %v2341
  %v2378 = vpack.c.b16 %v2346, %v2342
  %v2379 = vpack.c.b16 %v2347, %v2343
  %2412 = vmatprep.subr.bf16.mxu0 %v2349
  %2413 = vmatpush1.bf16.msra.mxu0 %v2348
  %2414 = vmatprep.subr.bf16.mxu0 %v2353
  %2415 = vmatpush1.bf16.msra.mxu0 %v2352
  %2416 = vmatprep.subr.bf16.mxu0 %v2357
  %2417 = vmatpush1.bf16.msra.mxu0 %v2356
  %2418 = vmatprep.subr.bf16.mxu0 %v2361
  %2419 = vmatpush1.bf16.msra.mxu0 %v2360
  %2420 = vmatprep.subr.bf16.mxu0 %v2365
  %2421 = vmatpush1.bf16.msra.mxu0 %v2364
  %2422 = vmatprep.subr.bf16.mxu0 %v2369
  %2423 = vmatpush1.bf16.msra.mxu0 %v2368
  %2424 = vmatprep.subr.bf16.mxu0 %v2373
  %2425 = vmatpush1.bf16.msra.mxu0 %v2372
  %2426 = vmatprep.subr.bf16.mxu0 %v2377
  %2427 = vmatpush1.bf16.msra.mxu0 %v2376
  %2428 = vmatprep.subr.bf16.mxu0 0
  %2429 = vmatpush1.bf16.msra.mxu0 0
  %2430 = vmatprep.subr.bf16.mxu0 0
  %2431 = vmatpush1.bf16.msra.mxu0 0
  %2432 = vmatprep.subr.bf16.mxu0 0
  %2433 = vmatpush1.bf16.msra.mxu0 0
  %2434 = vmatprep.subr.bf16.mxu0 0
  %2435 = vmatpush1.bf16.msra.mxu0 0
  %2436 = vmatprep.subr.bf16.mxu0 0
  %2437 = vmatpush1.bf16.msra.mxu0 0
  %2438 = vmatprep.subr.bf16.mxu0 0
  %2439 = vmatpush1.bf16.msra.mxu0 0
  %2440 = vmatprep.subr.bf16.mxu0 0
  %2441 = vmatpush1.bf16.msra.mxu0 0
  %2442 = vmatprep.subr.bf16.mxu0 0
  %2443 = vmatpush1.bf16.msra.mxu0 0
  %2444 = vmatprep.mubr.bf16.mxu0 0
  %2445 = vmatmul.mubr.bf16.gmra.mrb[0].mxu0 %v1904
  %v2446 = vpop.f32.mrb[0].mxu0
  %v2447 = vadd.f32 0.0, %v2446
  %v2448 = vpop.f32.mrb[0].mxu0
  %v2449 = vadd.f32 0.0, %v2448
  %v2450 = vpop.f32.mrb[0].mxu0
  %v2451 = vpop.f32.mrb[0].mxu0
  %2452 = vdwg.mxu0
  %2453 = vmatprep.subr.bf16.mxu0 %v2351
  %2454 = vmatpush1.bf16.msra.mxu0 %v2350
  %2455 = vmatprep.subr.bf16.mxu0 %v2355
  %2456 = vmatpush1.bf16.msra.mxu0 %v2354
  %2457 = vmatprep.subr.bf16.mxu0 %v2359
  %2458 = vmatpush1.bf16.msra.mxu0 %v2358
  %2459 = vmatprep.subr.bf16.mxu0 %v2363
  %2460 = vmatpush1.bf16.msra.mxu0 %v2362
  %2461 = vmatprep.subr.bf16.mxu0 %v2367
  %2462 = vmatpush1.bf16.msra.mxu0 %v2366
  %2463 = vmatprep.subr.bf16.mxu0 %v2371
  %2464 = vmatpush1.bf16.msra.mxu0 %v2370
  %2465 = vmatprep.subr.bf16.mxu0 %v2375
  %2466 = vmatpush1.bf16.msra.mxu0 %v2374
  %2467 = vmatprep.subr.bf16.mxu0 %v2379
  %2468 = vmatpush1.bf16.msra.mxu0 %v2378
  %2469 = vmatprep.subr.bf16.mxu0 0
  %2470 = vmatpush1.bf16.msra.mxu0 0
  %2471 = vmatprep.subr.bf16.mxu0 0
  %2472 = vmatpush1.bf16.msra.mxu0 0
  %2473 = vmatprep.subr.bf16.mxu0 0
  %2474 = vmatpush1.bf16.msra.mxu0 0
  %2475 = vmatprep.subr.bf16.mxu0 0
  %2476 = vmatpush1.bf16.msra.mxu0 0
  %2477 = vmatprep.subr.bf16.mxu0 0
  %2478 = vmatpush1.bf16.msra.mxu0 0
  %2479 = vmatprep.subr.bf16.mxu0 0
  %2480 = vmatpush1.bf16.msra.mxu0 0
  %2481 = vmatprep.subr.bf16.mxu0 0
  %2482 = vmatpush1.bf16.msra.mxu0 0
  %2483 = vmatprep.subr.bf16.mxu0 0
  %2484 = vmatpush1.bf16.msra.mxu0 0
  %2485 = vmatprep.mubr.bf16.mxu0 0
  %2486 = vmatmul.mubr.bf16.gmra.mrb[0].mxu0 %v1904
  %v2487 = vpop.f32.mrb[0].mxu0
  %v2488 = vadd.f32 0.0, %v2487
  %v2489 = vpop.f32.mrb[0].mxu0
  %v2490 = vadd.f32 0.0, %v2489
  %v2491 = vpop.f32.mrb[0].mxu0
  %v2492 = vpop.f32.mrb[0].mxu0
  %2493 = vdwg.mxu0
  %v2494 = vadd.f32 %v2216, %v2447
  %v2495 = vadd.f32 %v2217, %v2449
  %v2496 = vadd.f32 %v2218, %v2488
  %v2497 = vadd.f32 %v2219, %v2490
  %v2498 = vmul.f32 %v2494, 0.5
  %v2499 = vtanh.pop %v2498
  %v2500 = vmul.f32 %v2499, 0.5
  %v2501 = vadd.f32 %v2500, 0.5
  %v2502 = vmul.f32 %v2495, 0.5
  %v2503 = vtanh.pop %v2502
  %v2504 = vmul.f32 %v2503, 0.5
  %v2505 = vadd.f32 %v2504, 0.5
  %v2506 = vtanh.pop %v2496
  %v2507 = vmul.f32 %v2497, 0.5
  %v2508 = vtanh.pop %v2507
  %v2509 = vmul.f32 %v2508, 0.5
  %v2510 = vadd.f32 %v2509, 0.5
  %v2511 = vmul.f32 %v2505, %v1901
  %v2512 = vmul.f32 %v2501, %v2506
  %v2513 = vadd.f32 %v2511, %v2512
  %v2514 = vtanh.pop %v2513
  %v2515 = vmul.f32 %v2510, %v2514
  %v2516 = vpack.c.bf16 %v2515, %v2515
  %s2517 = scalar_lea.vmem %s52, 16
  %2518 = vst [vmem:[%s2517] sm:$0xf] %v2516
  %s2519 = scalar_lea.vmem %s0, 64
  %v2520 = vld [vmem:[%s2519] sm:$0xff]
  %v2521 = vld [vmem:[%s2519 + $0x8] sm:$0xff]
  %v2522 = vunpack.c.l.bf16 %v2520
  %v2523 = vunpack.c.h.bf16 %v2520
  %v2524 = vunpack.c.l.bf16 %v2521
  %v2525 = vunpack.c.h.bf16 %v2521
  %v2526 = vld [vmem:[%s2] sm:$0xff]
  %v2527 = vld [vmem:[%s2 + $0x8] sm:$0xff]
  %v2528 = vld [vmem:[%s2 + $0x10] sm:$0xff]
  %v2529 = vld [vmem:[%s2 + $0x18] sm:$0xff]
  %v2530 = vld [vmem:[%s2 + $0x20] sm:$0xff]
  %v2531 = vld [vmem:[%s2 + $0x28] sm:$0xff]
  %v2532 = vld [vmem:[%s2 + $0x30] sm:$0xff]
  %v2533 = vld [vmem:[%s2 + $0x38] sm:$0xff]
  %v2534 = vld [vmem:[%s2 + $0x40] sm:$0xff]
  %v2535 = vld [vmem:[%s2 + $0x48] sm:$0xff]
  %v2536 = vld [vmem:[%s2 + $0x50] sm:$0xff]
  %v2537 = vld [vmem:[%s2 + $0x58] sm:$0xff]
  %v2538 = vld [vmem:[%s2 + $0x60] sm:$0xff]
  %v2539 = vld [vmem:[%s2 + $0x68] sm:$0xff]
  %v2540 = vld [vmem:[%s2 + $0x70] sm:$0xff]
  %v2541 = vld [vmem:[%s2 + $0x78] sm:$0xff]
  %v2542 = vld [vmem:[%s2 + $0x80] sm:$0xff]
  %v2543 = vld [vmem:[%s2 + $0x88] sm:$0xff]
  %v2544 = vld [vmem:[%s2 + $0x90] sm:$0xff]
  %v2545 = vld [vmem:[%s2 + $0x98] sm:$0xff]
  %v2546 = vld [vmem:[%s2 + $0xa0] sm:$0xff]
  %v2547 = vld [vmem:[%s2 + $0xa8] sm:$0xff]
  %v2548 = vld [vmem:[%s2 + $0xb0] sm:$0xff]
  %v2549 = vld [vmem:[%s2 + $0xb8] sm:$0xff]
  %v2550 = vld [vmem:[%s2 + $0xc0] sm:$0xff]
  %v2551 = vld [vmem:[%s2 + $0xc8] sm:$0xff]
  %v2552 = vld [vmem:[%s2 + $0xd0] sm:$0xff]
  %v2553 = vld [vmem:[%s2 + $0xd8] sm:$0xff]
  %v2554 = vld [vmem:[%s2 + $0xe0] sm:$0xff]
  %v2555 = vld [vmem:[%s2 + $0xe8] sm:$0xff]
  %v2556 = vld [vmem:[%s2 + $0xf0] sm:$0xff]
  %v2557 = vld [vmem:[%s2 + $0xf8] sm:$0xff]
  %v2590 = vunpack.c.l.b16 %v2526
  %v2591 = vunpack.c.h.b16 %v2526
  %v2592 = vunpack.c.l.b16 %v2527
  %v2593 = vunpack.c.h.b16 %v2527
  %v2594 = vunpack.c.l.b16 %v2528
  %v2595 = vunpack.c.h.b16 %v2528
  %v2596 = vunpack.c.l.b16 %v2529
  %v2597 = vunpack.c.h.b16 %v2529
  %v2598 = vunpack.c.l.b16 %v2530
  %v2599 = vunpack.c.h.b16 %v2530
  %v2600 = vunpack.c.l.b16 %v2531
  %v2601 = vunpack.c.h.b16 %v2531
  %v2602 = vunpack.c.l.b16 %v2532
  %v2603 = vunpack.c.h.b16 %v2532
  %v2604 = vunpack.c.l.b16 %v2533
  %v2605 = vunpack.c.h.b16 %v2533
  %v2606 = vunpack.c.l.b16 %v2534
  %v2607 = vunpack.c.h.b16 %v2534
  %v2608 = vunpack.c.l.b16 %v2535
  %v2609 = vunpack.c.h.b16 %v2535
  %v2610 = vunpack.c.l.b16 %v2536
  %v2611 = vunpack.c.h.b16 %v2536
  %v2612 = vunpack.c.l.b16 %v2537
  %v2613 = vunpack.c.h.b16 %v2537
  %v2614 = vunpack.c.l.b16 %v2538
  %v2615 = vunpack.c.h.b16 %v2538
  %v2616 = vunpack.c.l.b16 %v2539
  %v2617 = vunpack.c.h.b16 %v2539
  %v2618 = vunpack.c.l.b16 %v2540
  %v2619 = vunpack.c.h.b16 %v2540
  %v2620 = vunpack.c.l.b16 %v2541
  %v2621 = vunpack.c.h.b16 %v2541
  %v2622 = vunpack.c.l.b16 %v2542
  %v2623 = vunpack.c.h.b16 %v2542
  %v2624 = vunpack.c.l.b16 %v2543
  %v2625 = vunpack.c.h.b16 %v2543
  %v2626 = vunpack.c.l.b16 %v2544
  %v2627 = vunpack.c.h.b16 %v2544
  %v2628 = vunpack.c.l.b16 %v2545
  %v2629 = vunpack.c.h.b16 %v2545
  %v2630 = vunpack.c.l.b16 %v2546
  %v2631 = vunpack.c.h.b16 %v2546
  %v2632 = vunpack.c.l.b16 %v2547
  %v2633 = vunpack.c.h.b16 %v2547
  %v2634 = vunpack.c.l.b16 %v2548
  %v2635 = vunpack.c.h.b16 %v2548
  %v2636 = vunpack.c.l.b16 %v2549
  %v2637 = vunpack.c.h.b16 %v2549
  %v2638 = vunpack.c.l.b16 %v2550
  %v2639 = vunpack.c.h.b16 %v2550
  %v2640 = vunpack.c.l.b16 %v2551
  %v2641 = vunpack.c.h.b16 %v2551
  %v2642 = vunpack.c.l.b16 %v2552
  %v2643 = vunpack.c.h.b16 %v2552
  %v2644 = vunpack.c.l.b16 %v2553
  %v2645 = vunpack.c.h.b16 %v2553
  %v2646 = vunpack.c.l.b16 %v2554
  %v2647 = vunpack.c.h.b16 %v2554
  %v2648 = vunpack.c.l.b16 %v2555
  %v2649 = vunpack.c.h.b16 %v2555
  %v2650 = vunpack.c.l.b16 %v2556
  %v2651 = vunpack.c.h.b16 %v2556
  %v2652 = vunpack.c.l.b16 %v2557
  %v2653 = vunpack.c.h.b16 %v2557
  %v2654 = vpack.c.b16 %v2594, %v2590
  %v2655 = vpack.c.b16 %v2595, %v2591
  %v2656 = vpack.c.b16 %v2596, %v2592
  %v2657 = vpack.c.b16 %v2597, %v2593
  %v2658 = vpack.c.b16 %v2602, %v2598
  %v2659 = vpack.c.b16 %v2603, %v2599
  %v2660 = vpack.c.b16 %v2604, %v2600
  %v2661 = vpack.c.b16 %v2605, %v2601
  %v2662 = vpack.c.b16 %v2610, %v2606
  %v2663 = vpack.c.b16 %v2611, %v2607
  %v2664 = vpack.c.b16 %v2612, %v2608
  %v2665 = vpack.c.b16 %v2613, %v2609
  %v2666 = vpack.c.b16 %v2618, %v2614
  %v2667 = vpack.c.b16 %v2619, %v2615
  %v2668 = vpack.c.b16 %v2620, %v2616
  %v2669 = vpack.c.b16 %v2621, %v2617
  %v2670 = vpack.c.b16 %v2626, %v2622
  %v2671 = vpack.c.b16 %v2627, %v2623
  %v2672 = vpack.c.b16 %v2628, %v2624
  %v2673 = vpack.c.b16 %v2629, %v2625
  %v2674 = vpack.c.b16 %v2634, %v2630
  %v2675 = vpack.c.b16 %v2635, %v2631
  %v2676 = vpack.c.b16 %v2636, %v2632
  %v2677 = vpack.c.b16 %v2637, %v2633
  %v2678 = vpack.c.b16 %v2642, %v2638
  %v2679 = vpack.c.b16 %v2643, %v2639
  %v2680 = vpack.c.b16 %v2644, %v2640
  %v2681 = vpack.c.b16 %v2645, %v2641
  %v2682 = vpack.c.b16 %v2650, %v2646
  %v2683 = vpack.c.b16 %v2651, %v2647
  %v2684 = vpack.c.b16 %v2652, %v2648
  %v2685 = vpack.c.b16 %v2653, %v2649
  %2718 = vmatprep.subr.bf16.mxu0 %v2655
  %2719 = vmatpush1.bf16.msra.mxu0 %v2654
  %2720 = vmatprep.subr.bf16.mxu0 %v2659
  %2721 = vmatpush1.bf16.msra.mxu0 %v2658
  %2722 = vmatprep.subr.bf16.mxu0 %v2663
  %2723 = vmatpush1.bf16.msra.mxu0 %v2662
  %2724 = vmatprep.subr.bf16.mxu0 %v2667
  %2725 = vmatpush1.bf16.msra.mxu0 %v2666
  %2726 = vmatprep.subr.bf16.mxu0 %v2671
  %2727 = vmatpush1.bf16.msra.mxu0 %v2670
  %2728 = vmatprep.subr.bf16.mxu0 %v2675
  %2729 = vmatpush1.bf16.msra.mxu0 %v2674
  %2730 = vmatprep.subr.bf16.mxu0 %v2679
  %2731 = vmatpush1.bf16.msra.mxu0 %v2678
  %2732 = vmatprep.subr.bf16.mxu0 %v2683
  %2733 = vmatpush1.bf16.msra.mxu0 %v2682
  %2734 = vmatprep.subr.bf16.mxu0 0
  %2735 = vmatpush1.bf16.msra.mxu0 0
  %2736 = vmatprep.subr.bf16.mxu0 0
  %2737 = vmatpush1.bf16.msra.mxu0 0
  %2738 = vmatprep.subr.bf16.mxu0 0
  %2739 = vmatpush1.bf16.msra.mxu0 0
  %2740 = vmatprep.subr.bf16.mxu0 0
  %2741 = vmatpush1.bf16.msra.mxu0 0
  %2742 = vmatprep.subr.bf16.mxu0 0
  %2743 = vmatpush1.bf16.msra.mxu0 0
  %2744 = vmatprep.subr.bf16.mxu0 0
  %2745 = vmatpush1.bf16.msra.mxu0 0
  %2746 = vmatprep.subr.bf16.mxu0 0
  %2747 = vmatpush1.bf16.msra.mxu0 0
  %2748 = vmatprep.subr.bf16.mxu0 0
  %2749 = vmatpush1.bf16.msra.mxu0 0
  %2750 = vmatprep.mubr.bf16.mxu0 0
  %2751 = vmatmul.mubr.bf16.gmra.mrb[0].mxu0 %v2210
  %v2752 = vpop.f32.mrb[0].mxu0
  %v2753 = vadd.f32 0.0, %v2752
  %v2754 = vpop.f32.mrb[0].mxu0
  %v2755 = vadd.f32 0.0, %v2754
  %v2756 = vpop.f32.mrb[0].mxu0
  %v2757 = vpop.f32.mrb[0].mxu0
  %2758 = vdwg.mxu0
  %2759 = vmatprep.subr.bf16.mxu0 %v2657
  %2760 = vmatpush1.bf16.msra.mxu0 %v2656
  %2761 = vmatprep.subr.bf16.mxu0 %v2661
  %2762 = vmatpush1.bf16.msra.mxu0 %v2660
  %2763 = vmatprep.subr.bf16.mxu0 %v2665
  %2764 = vmatpush1.bf16.msra.mxu0 %v2664
  %2765 = vmatprep.subr.bf16.mxu0 %v2669
  %2766 = vmatpush1.bf16.msra.mxu0 %v2668
  %2767 = vmatprep.subr.bf16.mxu0 %v2673
  %2768 = vmatpush1.bf16.msra.mxu0 %v2672
  %2769 = vmatprep.subr.bf16.mxu0 %v2677
  %2770 = vmatpush1.bf16.msra.mxu0 %v2676
  %2771 = vmatprep.subr.bf16.mxu0 %v2681
  %2772 = vmatpush1.bf16.msra.mxu0 %v2680
  %2773 = vmatprep.subr.bf16.mxu0 %v2685
  %2774 = vmatpush1.bf16.msra.mxu0 %v2684
  %2775 = vmatprep.subr.bf16.mxu0 0
  %2776 = vmatpush1.bf16.msra.mxu0 0
  %2777 = vmatprep.subr.bf16.mxu0 0
  %2778 = vmatpush1.bf16.msra.mxu0 0
  %2779 = vmatprep.subr.bf16.mxu0 0
  %2780 = vmatpush1.bf16.msra.mxu0 0
  %2781 = vmatprep.subr.bf16.mxu0 0
  %2782 = vmatpush1.bf16.msra.mxu0 0
  %2783 = vmatprep.subr.bf16.mxu0 0
  %2784 = vmatpush1.bf16.msra.mxu0 0
  %2785 = vmatprep.subr.bf16.mxu0 0
  %2786 = vmatpush1.bf16.msra.mxu0 0
  %2787 = vmatprep.subr.bf16.mxu0 0
  %2788 = vmatpush1.bf16.msra.mxu0 0
  %2789 = vmatprep.subr.bf16.mxu0 0
  %2790 = vmatpush1.bf16.msra.mxu0 0
  %2791 = vmatprep.mubr.bf16.mxu0 0
  %2792 = vmatmul.mubr.bf16.gmra.mrb[0].mxu0 %v2210
  %v2793 = vpop.f32.mrb[0].mxu0
  %v2794 = vadd.f32 0.0, %v2793
  %v2795 = vpop.f32.mrb[0].mxu0
  %v2796 = vadd.f32 0.0, %v2795
  %v2797 = vpop.f32.mrb[0].mxu0
  %v2798 = vpop.f32.mrb[0].mxu0
  %2799 = vdwg.mxu0
  %v2800 = vadd.f32 %v2522, %v2753
  %v2801 = vadd.f32 %v2523, %v2755
  %v2802 = vadd.f32 %v2524, %v2794
  %v2803 = vadd.f32 %v2525, %v2796
  %v2804 = vmul.f32 %v2800, 0.5
  %v2805 = vtanh.pop %v2804
  %v2806 = vmul.f32 %v2805, 0.5
  %v2807 = vadd.f32 %v2806, 0.5
  %v2808 = vmul.f32 %v2801, 0.5
  %v2809 = vtanh.pop %v2808
  %v2810 = vmul.f32 %v2809, 0.5
  %v2811 = vadd.f32 %v2810, 0.5
  %v2812 = vtanh.pop %v2802
  %v2813 = vmul.f32 %v2803, 0.5
  %v2814 = vtanh.pop %v2813
  %v2815 = vmul.f32 %v2814, 0.5
  %v2816 = vadd.f32 %v2815, 0.5
  %v2817 = vmul.f32 %v2811, %v2207
  %v2818 = vmul.f32 %v2807, %v2812
  %v2819 = vadd.f32 %v2817, %v2818
  %v2820 = vtanh.pop %v2819
  %v2821 = vmul.f32 %v2816, %v2820
  %v2822 = vpack.c.bf16 %v2821, %v2821
  %s2823 = scalar_lea.vmem %s3, 16
  %2824 = vst [vmem:[%s2823] sm:$0xf] %v2822
  %s2825 = scalar_lea.vmem %s44, 48
  %v2826 = vld [vmem:[%s2825] sm:$0xff]
  %v2827 = vld [vmem:[%s2825 + $0x8] sm:$0xff]
  %v2828 = vunpack.c.l.bf16 %v2826
  %v2829 = vunpack.c.h.bf16 %v2826
  %v2830 = vunpack.c.l.bf16 %v2827
  %v2831 = vunpack.c.h.bf16 %v2827
  %v2832 = vld [vmem:[%s383] sm:$0xff]
  %v2833 = vld [vmem:[%s383 + $0x8] sm:$0xff]
  %v2834 = vld [vmem:[%s383 + $0x10] sm:$0xff]
  %v2835 = vld [vmem:[%s383 + $0x18] sm:$0xff]
  %v2836 = vld [vmem:[%s383 + $0x20] sm:$0xff]
  %v2837 = vld [vmem:[%s383 + $0x28] sm:$0xff]
  %v2838 = vld [vmem:[%s383 + $0x30] sm:$0xff]
  %v2839 = vld [vmem:[%s383 + $0x38] sm:$0xff]
  %v2840 = vld [vmem:[%s383 + $0x40] sm:$0xff]
  %v2841 = vld [vmem:[%s383 + $0x48] sm:$0xff]
  %v2842 = vld [vmem:[%s383 + $0x50] sm:$0xff]
  %v2843 = vld [vmem:[%s383 + $0x58] sm:$0xff]
  %v2844 = vld [vmem:[%s383 + $0x60] sm:$0xff]
  %v2845 = vld [vmem:[%s383 + $0x68] sm:$0xff]
  %v2846 = vld [vmem:[%s383 + $0x70] sm:$0xff]
  %v2847 = vld [vmem:[%s383 + $0x78] sm:$0xff]
  %v2848 = vld [vmem:[%s383 + $0x80] sm:$0xff]
  %v2849 = vld [vmem:[%s383 + $0x88] sm:$0xff]
  %v2850 = vld [vmem:[%s383 + $0x90] sm:$0xff]
  %v2851 = vld [vmem:[%s383 + $0x98] sm:$0xff]
  %v2852 = vld [vmem:[%s383 + $0xa0] sm:$0xff]
  %v2853 = vld [vmem:[%s383 + $0xa8] sm:$0xff]
  %v2854 = vld [vmem:[%s383 + $0xb0] sm:$0xff]
  %v2855 = vld [vmem:[%s383 + $0xb8] sm:$0xff]
  %v2856 = vld [vmem:[%s383 + $0xc0] sm:$0xff]
  %v2857 = vld [vmem:[%s383 + $0xc8] sm:$0xff]
  %v2858 = vld [vmem:[%s383 + $0xd0] sm:$0xff]
  %v2859 = vld [vmem:[%s383 + $0xd8] sm:$0xff]
  %v2860 = vld [vmem:[%s383 + $0xe0] sm:$0xff]
  %v2861 = vld [vmem:[%s383 + $0xe8] sm:$0xff]
  %v2862 = vld [vmem:[%s383 + $0xf0] sm:$0xff]
  %v2863 = vld [vmem:[%s383 + $0xf8] sm:$0xff]
  %v2896 = vunpack.c.l.b16 %v2832
  %v2897 = vunpack.c.h.b16 %v2832
  %v2898 = vunpack.c.l.b16 %v2833
  %v2899 = vunpack.c.h.b16 %v2833
  %v2900 = vunpack.c.l.b16 %v2834
  %v2901 = vunpack.c.h.b16 %v2834
  %v2902 = vunpack.c.l.b16 %v2835
  %v2903 = vunpack.c.h.b16 %v2835
  %v2904 = vunpack.c.l.b16 %v2836
  %v2905 = vunpack.c.h.b16 %v2836
  %v2906 = vunpack.c.l.b16 %v2837
  %v2907 = vunpack.c.h.b16 %v2837
  %v2908 = vunpack.c.l.b16 %v2838
  %v2909 = vunpack.c.h.b16 %v2838
  %v2910 = vunpack.c.l.b16 %v2839
  %v2911 = vunpack.c.h.b16 %v2839
  %v2912 = vunpack.c.l.b16 %v2840
  %v2913 = vunpack.c.h.b16 %v2840
  %v2914 = vunpack.c.l.b16 %v2841
  %v2915 = vunpack.c.h.b16 %v2841
  %v2916 = vunpack.c.l.b16 %v2842
  %v2917 = vunpack.c.h.b16 %v2842
  %v2918 = vunpack.c.l.b16 %v2843
  %v2919 = vunpack.c.h.b16 %v2843
  %v2920 = vunpack.c.l.b16 %v2844
  %v2921 = vunpack.c.h.b16 %v2844
  %v2922 = vunpack.c.l.b16 %v2845
  %v2923 = vunpack.c.h.b16 %v2845
  %v2924 = vunpack.c.l.b16 %v2846
  %v2925 = vunpack.c.h.b16 %v2846
  %v2926 = vunpack.c.l.b16 %v2847
  %v2927 = vunpack.c.h.b16 %v2847
  %v2928 = vunpack.c.l.b16 %v2848
  %v2929 = vunpack.c.h.b16 %v2848
  %v2930 = vunpack.c.l.b16 %v2849
  %v2931 = vunpack.c.h.b16 %v2849
  %v2932 = vunpack.c.l.b16 %v2850
  %v2933 = vunpack.c.h.b16 %v2850
  %v2934 = vunpack.c.l.b16 %v2851
  %v2935 = vunpack.c.h.b16 %v2851
  %v2936 = vunpack.c.l.b16 %v2852
  %v2937 = vunpack.c.h.b16 %v2852
  %v2938 = vunpack.c.l.b16 %v2853
  %v2939 = vunpack.c.h.b16 %v2853
  %v2940 = vunpack.c.l.b16 %v2854
  %v2941 = vunpack.c.h.b16 %v2854
  %v2942 = vunpack.c.l.b16 %v2855
  %v2943 = vunpack.c.h.b16 %v2855
  %v2944 = vunpack.c.l.b16 %v2856
  %v2945 = vunpack.c.h.b16 %v2856
  %v2946 = vunpack.c.l.b16 %v2857
  %v2947 = vunpack.c.h.b16 %v2857
  %v2948 = vunpack.c.l.b16 %v2858
  %v2949 = vunpack.c.h.b16 %v2858
  %v2950 = vunpack.c.l.b16 %v2859
  %v2951 = vunpack.c.h.b16 %v2859
  %v2952 = vunpack.c.l.b16 %v2860
  %v2953 = vunpack.c.h.b16 %v2860
  %v2954 = vunpack.c.l.b16 %v2861
  %v2955 = vunpack.c.h.b16 %v2861
  %v2956 = vunpack.c.l.b16 %v2862
  %v2957 = vunpack.c.h.b16 %v2862
  %v2958 = vunpack.c.l.b16 %v2863
  %v2959 = vunpack.c.h.b16 %v2863
  %v2960 = vpack.c.b16 %v2900, %v2896
  %v2961 = vpack.c.b16 %v2901, %v2897
  %v2962 = vpack.c.b16 %v2902, %v2898
  %v2963 = vpack.c.b16 %v2903, %v2899
  %v2964 = vpack.c.b16 %v2908, %v2904
  %v2965 = vpack.c.b16 %v2909, %v2905
  %v2966 = vpack.c.b16 %v2910, %v2906
  %v2967 = vpack.c.b16 %v2911, %v2907
  %v2968 = vpack.c.b16 %v2916, %v2912
  %v2969 = vpack.c.b16 %v2917, %v2913
  %v2970 = vpack.c.b16 %v2918, %v2914
  %v2971 = vpack.c.b16 %v2919, %v2915
  %v2972 = vpack.c.b16 %v2924, %v2920
  %v2973 = vpack.c.b16 %v2925, %v2921
  %v2974 = vpack.c.b16 %v2926, %v2922
  %v2975 = vpack.c.b16 %v2927, %v2923
  %v2976 = vpack.c.b16 %v2932, %v2928
  %v2977 = vpack.c.b16 %v2933, %v2929
  %v2978 = vpack.c.b16 %v2934, %v2930
  %v2979 = vpack.c.b16 %v2935, %v2931
  %v2980 = vpack.c.b16 %v2940, %v2936
  %v2981 = vpack.c.b16 %v2941, %v2937
  %v2982 = vpack.c.b16 %v2942, %v2938
  %v2983 = vpack.c.b16 %v2943, %v2939
  %v2984 = vpack.c.b16 %v2948, %v2944
  %v2985 = vpack.c.b16 %v2949, %v2945
  %v2986 = vpack.c.b16 %v2950, %v2946
  %v2987 = vpack.c.b16 %v2951, %v2947
  %v2988 = vpack.c.b16 %v2956, %v2952
  %v2989 = vpack.c.b16 %v2957, %v2953
  %v2990 = vpack.c.b16 %v2958, %v2954
  %v2991 = vpack.c.b16 %v2959, %v2955
  %3024 = vmatprep.subr.bf16.mxu0 %v2961
  %3025 = vmatpush1.bf16.msra.mxu0 %v2960
  %3026 = vmatprep.subr.bf16.mxu0 %v2965
  %3027 = vmatpush1.bf16.msra.mxu0 %v2964
  %3028 = vmatprep.subr.bf16.mxu0 %v2969
  %3029 = vmatpush1.bf16.msra.mxu0 %v2968
  %3030 = vmatprep.subr.bf16.mxu0 %v2973
  %3031 = vmatpush1.bf16.msra.mxu0 %v2972
  %3032 = vmatprep.subr.bf16.mxu0 %v2977
  %3033 = vmatpush1.bf16.msra.mxu0 %v2976
  %3034 = vmatprep.subr.bf16.mxu0 %v2981
  %3035 = vmatpush1.bf16.msra.mxu0 %v2980
  %3036 = vmatprep.subr.bf16.mxu0 %v2985
  %3037 = vmatpush1.bf16.msra.mxu0 %v2984
  %3038 = vmatprep.subr.bf16.mxu0 %v2989
  %3039 = vmatpush1.bf16.msra.mxu0 %v2988
  %3040 = vmatprep.subr.bf16.mxu0 0
  %3041 = vmatpush1.bf16.msra.mxu0 0
  %3042 = vmatprep.subr.bf16.mxu0 0
  %3043 = vmatpush1.bf16.msra.mxu0 0
  %3044 = vmatprep.subr.bf16.mxu0 0
  %3045 = vmatpush1.bf16.msra.mxu0 0
  %3046 = vmatprep.subr.bf16.mxu0 0
  %3047 = vmatpush1.bf16.msra.mxu0 0
  %3048 = vmatprep.subr.bf16.mxu0 0
  %3049 = vmatpush1.bf16.msra.mxu0 0
  %3050 = vmatprep.subr.bf16.mxu0 0
  %3051 = vmatpush1.bf16.msra.mxu0 0
  %3052 = vmatprep.subr.bf16.mxu0 0
  %3053 = vmatpush1.bf16.msra.mxu0 0
  %3054 = vmatprep.subr.bf16.mxu0 0
  %3055 = vmatpush1.bf16.msra.mxu0 0
  %3056 = vmatprep.mubr.bf16.mxu0 0
  %3057 = vmatmul.mubr.bf16.gmra.mrb[0].mxu0 %v2516
  %v3058 = vpop.f32.mrb[0].mxu0
  %v3059 = vadd.f32 0.0, %v3058
  %v3060 = vpop.f32.mrb[0].mxu0
  %v3061 = vadd.f32 0.0, %v3060
  %v3062 = vpop.f32.mrb[0].mxu0
  %v3063 = vpop.f32.mrb[0].mxu0
  %3064 = vdwg.mxu0
  %3065 = vmatprep.subr.bf16.mxu0 %v2963
  %3066 = vmatpush1.bf16.msra.mxu0 %v2962
  %3067 = vmatprep.subr.bf16.mxu0 %v2967
  %3068 = vmatpush1.bf16.msra.mxu0 %v2966
  %3069 = vmatprep.subr.bf16.mxu0 %v2971
  %3070 = vmatpush1.bf16.msra.mxu0 %v2970
  %3071 = vmatprep.subr.bf16.mxu0 %v2975
  %3072 = vmatpush1.bf16.msra.mxu0 %v2974
  %3073 = vmatprep.subr.bf16.mxu0 %v2979
  %3074 = vmatpush1.bf16.msra.mxu0 %v2978
  %3075 = vmatprep.subr.bf16.mxu0 %v2983
  %3076 = vmatpush1.bf16.msra.mxu0 %v2982
  %3077 = vmatprep.subr.bf16.mxu0 %v2987
  %3078 = vmatpush1.bf16.msra.mxu0 %v2986
  %3079 = vmatprep.subr.bf16.mxu0 %v2991
  %3080 = vmatpush1.bf16.msra.mxu0 %v2990
  %3081 = vmatprep.subr.bf16.mxu0 0
  %3082 = vmatpush1.bf16.msra.mxu0 0
  %3083 = vmatprep.subr.bf16.mxu0 0
  %3084 = vmatpush1.bf16.msra.mxu0 0
  %3085 = vmatprep.subr.bf16.mxu0 0
  %3086 = vmatpush1.bf16.msra.mxu0 0
  %3087 = vmatprep.subr.bf16.mxu0 0
  %3088 = vmatpush1.bf16.msra.mxu0 0
  %3089 = vmatprep.subr.bf16.mxu0 0
  %3090 = vmatpush1.bf16.msra.mxu0 0
  %3091 = vmatprep.subr.bf16.mxu0 0
  %3092 = vmatpush1.bf16.msra.mxu0 0
  %3093 = vmatprep.subr.bf16.mxu0 0
  %3094 = vmatpush1.bf16.msra.mxu0 0
  %3095 = vmatprep.subr.bf16.mxu0 0
  %3096 = vmatpush1.bf16.msra.mxu0 0
  %3097 = vmatprep.mubr.bf16.mxu0 0
  %3098 = vmatmul.mubr.bf16.gmra.mrb[0].mxu0 %v2516
  %v3099 = vpop.f32.mrb[0].mxu0
  %v3100 = vadd.f32 0.0, %v3099
  %v3101 = vpop.f32.mrb[0].mxu0
  %v3102 = vadd.f32 0.0, %v3101
  %v3103 = vpop.f32.mrb[0].mxu0
  %v3104 = vpop.f32.mrb[0].mxu0
  %3105 = vdwg.mxu0
  %v3106 = vadd.f32 %v2828, %v3059
  %v3107 = vadd.f32 %v2829, %v3061
  %v3108 = vadd.f32 %v2830, %v3100
  %v3109 = vadd.f32 %v2831, %v3102
  %v3110 = vmul.f32 %v3106, 0.5
  %v3111 = vtanh.pop %v3110
  %v3112 = vmul.f32 %v3111, 0.5
  %v3113 = vadd.f32 %v3112, 0.5
  %v3114 = vmul.f32 %v3107, 0.5
  %v3115 = vtanh.pop %v3114
  %v3116 = vmul.f32 %v3115, 0.5
  %v3117 = vadd.f32 %v3116, 0.5
  %v3118 = vtanh.pop %v3108
  %v3119 = vmul.f32 %v3109, 0.5
  %v3120 = vtanh.pop %v3119
  %v3121 = vmul.f32 %v3120, 0.5
  %v3122 = vadd.f32 %v3121, 0.5
  %v3123 = vmul.f32 %v3117, %v2513
  %v3124 = vmul.f32 %v3113, %v3118
  %v3125 = vadd.f32 %v3123, %v3124
  %v3126 = vtanh.pop %v3125
  %v3127 = vmul.f32 %v3122, %v3126
  %v3128 = vpack.c.bf16 %v3127, %v3127
  %s3129 = scalar_lea.vmem %s52, 12
  %3130 = vst [vmem:[%s3129] sm:$0xf] %v3128
  %s3131 = scalar_lea.vmem %s0, 80
  %v3132 = vld [vmem:[%s3131] sm:$0xff]
  %v3133 = vld [vmem:[%s3131 + $0x8] sm:$0xff]
  %v3134 = vunpack.c.l.bf16 %v3132
  %v3135 = vunpack.c.h.bf16 %v3132
  %v3136 = vunpack.c.l.bf16 %v3133
  %v3137 = vunpack.c.h.bf16 %v3133
  %v3138 = vld [vmem:[%s2] sm:$0xff]
  %v3139 = vld [vmem:[%s2 + $0x8] sm:$0xff]
  %v3140 = vld [vmem:[%s2 + $0x10] sm:$0xff]
  %v3141 = vld [vmem:[%s2 + $0x18] sm:$0xff]
  %v3142 = vld [vmem:[%s2 + $0x20] sm:$0xff]
  %v3143 = vld [vmem:[%s2 + $0x28] sm:$0xff]
  %v3144 = vld [vmem:[%s2 + $0x30] sm:$0xff]
  %v3145 = vld [vmem:[%s2 + $0x38] sm:$0xff]
  %v3146 = vld [vmem:[%s2 + $0x40] sm:$0xff]
  %v3147 = vld [vmem:[%s2 + $0x48] sm:$0xff]
  %v3148 = vld [vmem:[%s2 + $0x50] sm:$0xff]
  %v3149 = vld [vmem:[%s2 + $0x58] sm:$0xff]
  %v3150 = vld [vmem:[%s2 + $0x60] sm:$0xff]
  %v3151 = vld [vmem:[%s2 + $0x68] sm:$0xff]
  %v3152 = vld [vmem:[%s2 + $0x70] sm:$0xff]
  %v3153 = vld [vmem:[%s2 + $0x78] sm:$0xff]
  %v3154 = vld [vmem:[%s2 + $0x80] sm:$0xff]
  %v3155 = vld [vmem:[%s2 + $0x88] sm:$0xff]
  %v3156 = vld [vmem:[%s2 + $0x90] sm:$0xff]
  %v3157 = vld [vmem:[%s2 + $0x98] sm:$0xff]
  %v3158 = vld [vmem:[%s2 + $0xa0] sm:$0xff]
  %v3159 = vld [vmem:[%s2 + $0xa8] sm:$0xff]
  %v3160 = vld [vmem:[%s2 + $0xb0] sm:$0xff]
  %v3161 = vld [vmem:[%s2 + $0xb8] sm:$0xff]
  %v3162 = vld [vmem:[%s2 + $0xc0] sm:$0xff]
  %v3163 = vld [vmem:[%s2 + $0xc8] sm:$0xff]
  %v3164 = vld [vmem:[%s2 + $0xd0] sm:$0xff]
  %v3165 = vld [vmem:[%s2 + $0xd8] sm:$0xff]
  %v3166 = vld [vmem:[%s2 + $0xe0] sm:$0xff]
  %v3167 = vld [vmem:[%s2 + $0xe8] sm:$0xff]
  %v3168 = vld [vmem:[%s2 + $0xf0] sm:$0xff]
  %v3169 = vld [vmem:[%s2 + $0xf8] sm:$0xff]
  %v3202 = vunpack.c.l.b16 %v3138
  %v3203 = vunpack.c.h.b16 %v3138
  %v3204 = vunpack.c.l.b16 %v3139
  %v3205 = vunpack.c.h.b16 %v3139
  %v3206 = vunpack.c.l.b16 %v3140
  %v3207 = vunpack.c.h.b16 %v3140
  %v3208 = vunpack.c.l.b16 %v3141
  %v3209 = vunpack.c.h.b16 %v3141
  %v3210 = vunpack.c.l.b16 %v3142
  %v3211 = vunpack.c.h.b16 %v3142
  %v3212 = vunpack.c.l.b16 %v3143
  %v3213 = vunpack.c.h.b16 %v3143
  %v3214 = vunpack.c.l.b16 %v3144
  %v3215 = vunpack.c.h.b16 %v3144
  %v3216 = vunpack.c.l.b16 %v3145
  %v3217 = vunpack.c.h.b16 %v3145
  %v3218 = vunpack.c.l.b16 %v3146
  %v3219 = vunpack.c.h.b16 %v3146
  %v3220 = vunpack.c.l.b16 %v3147
  %v3221 = vunpack.c.h.b16 %v3147
  %v3222 = vunpack.c.l.b16 %v3148
  %v3223 = vunpack.c.h.b16 %v3148
  %v3224 = vunpack.c.l.b16 %v3149
  %v3225 = vunpack.c.h.b16 %v3149
  %v3226 = vunpack.c.l.b16 %v3150
  %v3227 = vunpack.c.h.b16 %v3150
  %v3228 = vunpack.c.l.b16 %v3151
  %v3229 = vunpack.c.h.b16 %v3151
  %v3230 = vunpack.c.l.b16 %v3152
  %v3231 = vunpack.c.h.b16 %v3152
  %v3232 = vunpack.c.l.b16 %v3153
  %v3233 = vunpack.c.h.b16 %v3153
  %v3234 = vunpack.c.l.b16 %v3154
  %v3235 = vunpack.c.h.b16 %v3154
  %v3236 = vunpack.c.l.b16 %v3155
  %v3237 = vunpack.c.h.b16 %v3155
  %v3238 = vunpack.c.l.b16 %v3156
  %v3239 = vunpack.c.h.b16 %v3156
  %v3240 = vunpack.c.l.b16 %v3157
  %v3241 = vunpack.c.h.b16 %v3157
  %v3242 = vunpack.c.l.b16 %v3158
  %v3243 = vunpack.c.h.b16 %v3158
  %v3244 = vunpack.c.l.b16 %v3159
  %v3245 = vunpack.c.h.b16 %v3159
  %v3246 = vunpack.c.l.b16 %v3160
  %v3247 = vunpack.c.h.b16 %v3160
  %v3248 = vunpack.c.l.b16 %v3161
  %v3249 = vunpack.c.h.b16 %v3161
  %v3250 = vunpack.c.l.b16 %v3162
  %v3251 = vunpack.c.h.b16 %v3162
  %v3252 = vunpack.c.l.b16 %v3163
  %v3253 = vunpack.c.h.b16 %v3163
  %v3254 = vunpack.c.l.b16 %v3164
  %v3255 = vunpack.c.h.b16 %v3164
  %v3256 = vunpack.c.l.b16 %v3165
  %v3257 = vunpack.c.h.b16 %v3165
  %v3258 = vunpack.c.l.b16 %v3166
  %v3259 = vunpack.c.h.b16 %v3166
  %v3260 = vunpack.c.l.b16 %v3167
  %v3261 = vunpack.c.h.b16 %v3167
  %v3262 = vunpack.c.l.b16 %v3168
  %v3263 = vunpack.c.h.b16 %v3168
  %v3264 = vunpack.c.l.b16 %v3169
  %v3265 = vunpack.c.h.b16 %v3169
  %v3266 = vpack.c.b16 %v3206, %v3202
  %v3267 = vpack.c.b16 %v3207, %v3203
  %v3268 = vpack.c.b16 %v3208, %v3204
  %v3269 = vpack.c.b16 %v3209, %v3205
  %v3270 = vpack.c.b16 %v3214, %v3210
  %v3271 = vpack.c.b16 %v3215, %v3211
  %v3272 = vpack.c.b16 %v3216, %v3212
  %v3273 = vpack.c.b16 %v3217, %v3213
  %v3274 = vpack.c.b16 %v3222, %v3218
  %v3275 = vpack.c.b16 %v3223, %v3219
  %v3276 = vpack.c.b16 %v3224, %v3220
  %v3277 = vpack.c.b16 %v3225, %v3221
  %v3278 = vpack.c.b16 %v3230, %v3226
  %v3279 = vpack.c.b16 %v3231, %v3227
  %v3280 = vpack.c.b16 %v3232, %v3228
  %v3281 = vpack.c.b16 %v3233, %v3229
  %v3282 = vpack.c.b16 %v3238, %v3234
  %v3283 = vpack.c.b16 %v3239, %v3235
  %v3284 = vpack.c.b16 %v3240, %v3236
  %v3285 = vpack.c.b16 %v3241, %v3237
  %v3286 = vpack.c.b16 %v3246, %v3242
  %v3287 = vpack.c.b16 %v3247, %v3243
  %v3288 = vpack.c.b16 %v3248, %v3244
  %v3289 = vpack.c.b16 %v3249, %v3245
  %v3290 = vpack.c.b16 %v3254, %v3250
  %v3291 = vpack.c.b16 %v3255, %v3251
  %v3292 = vpack.c.b16 %v3256, %v3252
  %v3293 = vpack.c.b16 %v3257, %v3253
  %v3294 = vpack.c.b16 %v3262, %v3258
  %v3295 = vpack.c.b16 %v3263, %v3259
  %v3296 = vpack.c.b16 %v3264, %v3260
  %v3297 = vpack.c.b16 %v3265, %v3261
  %3330 = vmatprep.subr.bf16.mxu0 %v3267
  %3331 = vmatpush1.bf16.msra.mxu0 %v3266
  %3332 = vmatprep.subr.bf16.mxu0 %v3271
  %3333 = vmatpush1.bf16.msra.mxu0 %v3270
  %3334 = vmatprep.subr.bf16.mxu0 %v3275
  %3335 = vmatpush1.bf16.msra.mxu0 %v3274
  %3336 = vmatprep.subr.bf16.mxu0 %v3279
  %3337 = vmatpush1.bf16.msra.mxu0 %v3278
  %3338 = vmatprep.subr.bf16.mxu0 %v3283
  %3339 = vmatpush1.bf16.msra.mxu0 %v3282
  %3340 = vmatprep.subr.bf16.mxu0 %v3287
  %3341 = vmatpush1.bf16.msra.mxu0 %v3286
  %3342 = vmatprep.subr.bf16.mxu0 %v3291
  %3343 = vmatpush1.bf16.msra.mxu0 %v3290
  %3344 = vmatprep.subr.bf16.mxu0 %v3295
  %3345 = vmatpush1.bf16.msra.mxu0 %v3294
  %3346 = vmatprep.subr.bf16.mxu0 0
  %3347 = vmatpush1.bf16.msra.mxu0 0
  %3348 = vmatprep.subr.bf16.mxu0 0
  %3349 = vmatpush1.bf16.msra.mxu0 0
  %3350 = vmatprep.subr.bf16.mxu0 0
  %3351 = vmatpush1.bf16.msra.mxu0 0
  %3352 = vmatprep.subr.bf16.mxu0 0
  %3353 = vmatpush1.bf16.msra.mxu0 0
  %3354 = vmatprep.subr.bf16.mxu0 0
  %3355 = vmatpush1.bf16.msra.mxu0 0
  %3356 = vmatprep.subr.bf16.mxu0 0
  %3357 = vmatpush1.bf16.msra.mxu0 0
  %3358 = vmatprep.subr.bf16.mxu0 0
  %3359 = vmatpush1.bf16.msra.mxu0 0
  %3360 = vmatprep.subr.bf16.mxu0 0
  %3361 = vmatpush1.bf16.msra.mxu0 0
  %3362 = vmatprep.mubr.bf16.mxu0 0
  %3363 = vmatmul.mubr.bf16.gmra.mrb[0].mxu0 %v2822
  %v3364 = vpop.f32.mrb[0].mxu0
  %v3365 = vadd.f32 0.0, %v3364
  %v3366 = vpop.f32.mrb[0].mxu0
  %v3367 = vadd.f32 0.0, %v3366
  %v3368 = vpop.f32.mrb[0].mxu0
  %v3369 = vpop.f32.mrb[0].mxu0
  %3370 = vdwg.mxu0
  %3371 = vmatprep.subr.bf16.mxu0 %v3269
  %3372 = vmatpush1.bf16.msra.mxu0 %v3268
  %3373 = vmatprep.subr.bf16.mxu0 %v3273
  %3374 = vmatpush1.bf16.msra.mxu0 %v3272
  %3375 = vmatprep.subr.bf16.mxu0 %v3277
  %3376 = vmatpush1.bf16.msra.mxu0 %v3276
  %3377 = vmatprep.subr.bf16.mxu0 %v3281
  %3378 = vmatpush1.bf16.msra.mxu0 %v3280
  %3379 = vmatprep.subr.bf16.mxu0 %v3285
  %3380 = vmatpush1.bf16.msra.mxu0 %v3284
  %3381 = vmatprep.subr.bf16.mxu0 %v3289
  %3382 = vmatpush1.bf16.msra.mxu0 %v3288
  %3383 = vmatprep.subr.bf16.mxu0 %v3293
  %3384 = vmatpush1.bf16.msra.mxu0 %v3292
  %3385 = vmatprep.subr.bf16.mxu0 %v3297
  %3386 = vmatpush1.bf16.msra.mxu0 %v3296
  %3387 = vmatprep.subr.bf16.mxu0 0
  %3388 = vmatpush1.bf16.msra.mxu0 0
  %3389 = vmatprep.subr.bf16.mxu0 0
  %3390 = vmatpush1.bf16.msra.mxu0 0
  %3391 = vmatprep.subr.bf16.mxu0 0
  %3392 = vmatpush1.bf16.msra.mxu0 0
  %3393 = vmatprep.subr.bf16.mxu0 0
  %3394 = vmatpush1.bf16.msra.mxu0 0
  %3395 = vmatprep.subr.bf16.mxu0 0
  %3396 = vmatpush1.bf16.msra.mxu0 0
  %3397 = vmatprep.subr.bf16.mxu0 0
  %3398 = vmatpush1.bf16.msra.mxu0 0
  %3399 = vmatprep.subr.bf16.mxu0 0
  %3400 = vmatpush1.bf16.msra.mxu0 0
  %3401 = vmatprep.subr.bf16.mxu0 0
  %3402 = vmatpush1.bf16.msra.mxu0 0
  %3403 = vmatprep.mubr.bf16.mxu0 0
  %3404 = vmatmul.mubr.bf16.gmra.mrb[0].mxu0 %v2822
  %v3405 = vpop.f32.mrb[0].mxu0
  %v3406 = vadd.f32 0.0, %v3405
  %v3407 = vpop.f32.mrb[0].mxu0
  %v3408 = vadd.f32 0.0, %v3407
  %v3409 = vpop.f32.mrb[0].mxu0
  %v3410 = vpop.f32.mrb[0].mxu0
  %3411 = vdwg.mxu0
  %v3412 = vadd.f32 %v3134, %v3365
  %v3413 = vadd.f32 %v3135, %v3367
  %v3414 = vadd.f32 %v3136, %v3406
  %v3415 = vadd.f32 %v3137, %v3408
  %v3416 = vmul.f32 %v3412, 0.5
  %v3417 = vtanh.pop %v3416
  %v3418 = vmul.f32 %v3417, 0.5
  %v3419 = vadd.f32 %v3418, 0.5
  %v3420 = vmul.f32 %v3413, 0.5
  %v3421 = vtanh.pop %v3420
  %v3422 = vmul.f32 %v3421, 0.5
  %v3423 = vadd.f32 %v3422, 0.5
  %v3424 = vtanh.pop %v3414
  %v3425 = vmul.f32 %v3415, 0.5
  %v3426 = vtanh.pop %v3425
  %v3427 = vmul.f32 %v3426, 0.5
  %v3428 = vadd.f32 %v3427, 0.5
  %v3429 = vmul.f32 %v3423, %v2819
  %v3430 = vmul.f32 %v3419, %v3424
  %v3431 = vadd.f32 %v3429, %v3430
  %v3432 = vtanh.pop %v3431
  %v3433 = vmul.f32 %v3428, %v3432
  %v3434 = vpack.c.bf16 %v3433, %v3433
  %s3435 = scalar_lea.vmem %s3, 20
  %3436 = vst [vmem:[%s3435] sm:$0xf] %v3434
  %s3437 = scalar_lea.vmem %s44, 32
  %v3438 = vld [vmem:[%s3437] sm:$0xff]
  %v3439 = vld [vmem:[%s3437 + $0x8] sm:$0xff]
  %v3440 = vunpack.c.l.bf16 %v3438
  %v3441 = vunpack.c.h.bf16 %v3438
  %v3442 = vunpack.c.l.bf16 %v3439
  %v3443 = vunpack.c.h.bf16 %v3439
  %v3444 = vld [vmem:[%s383] sm:$0xff]
  %v3445 = vld [vmem:[%s383 + $0x8] sm:$0xff]
  %v3446 = vld [vmem:[%s383 + $0x10] sm:$0xff]
  %v3447 = vld [vmem:[%s383 + $0x18] sm:$0xff]
  %v3448 = vld [vmem:[%s383 + $0x20] sm:$0xff]
  %v3449 = vld [vmem:[%s383 + $0x28] sm:$0xff]
  %v3450 = vld [vmem:[%s383 + $0x30] sm:$0xff]
  %v3451 = vld [vmem:[%s383 + $0x38] sm:$0xff]
  %v3452 = vld [vmem:[%s383 + $0x40] sm:$0xff]
  %v3453 = vld [vmem:[%s383 + $0x48] sm:$0xff]
  %v3454 = vld [vmem:[%s383 + $0x50] sm:$0xff]
  %v3455 = vld [vmem:[%s383 + $0x58] sm:$0xff]
  %v3456 = vld [vmem:[%s383 + $0x60] sm:$0xff]
  %v3457 = vld [vmem:[%s383 + $0x68] sm:$0xff]
  %v3458 = vld [vmem:[%s383 + $0x70] sm:$0xff]
  %v3459 = vld [vmem:[%s383 + $0x78] sm:$0xff]
  %v3460 = vld [vmem:[%s383 + $0x80] sm:$0xff]
  %v3461 = vld [vmem:[%s383 + $0x88] sm:$0xff]
  %v3462 = vld [vmem:[%s383 + $0x90] sm:$0xff]
  %v3463 = vld [vmem:[%s383 + $0x98] sm:$0xff]
  %v3464 = vld [vmem:[%s383 + $0xa0] sm:$0xff]
  %v3465 = vld [vmem:[%s383 + $0xa8] sm:$0xff]
  %v3466 = vld [vmem:[%s383 + $0xb0] sm:$0xff]
  %v3467 = vld [vmem:[%s383 + $0xb8] sm:$0xff]
  %v3468 = vld [vmem:[%s383 + $0xc0] sm:$0xff]
  %v3469 = vld [vmem:[%s383 + $0xc8] sm:$0xff]
  %v3470 = vld [vmem:[%s383 + $0xd0] sm:$0xff]
  %v3471 = vld [vmem:[%s383 + $0xd8] sm:$0xff]
  %v3472 = vld [vmem:[%s383 + $0xe0] sm:$0xff]
  %v3473 = vld [vmem:[%s383 + $0xe8] sm:$0xff]
  %v3474 = vld [vmem:[%s383 + $0xf0] sm:$0xff]
  %v3475 = vld [vmem:[%s383 + $0xf8] sm:$0xff]
  %v3508 = vunpack.c.l.b16 %v3444
  %v3509 = vunpack.c.h.b16 %v3444
  %v3510 = vunpack.c.l.b16 %v3445
  %v3511 = vunpack.c.h.b16 %v3445
  %v3512 = vunpack.c.l.b16 %v3446
  %v3513 = vunpack.c.h.b16 %v3446
  %v3514 = vunpack.c.l.b16 %v3447
  %v3515 = vunpack.c.h.b16 %v3447
  %v3516 = vunpack.c.l.b16 %v3448
  %v3517 = vunpack.c.h.b16 %v3448
  %v3518 = vunpack.c.l.b16 %v3449
  %v3519 = vunpack.c.h.b16 %v3449
  %v3520 = vunpack.c.l.b16 %v3450
  %v3521 = vunpack.c.h.b16 %v3450
  %v3522 = vunpack.c.l.b16 %v3451
  %v3523 = vunpack.c.h.b16 %v3451
  %v3524 = vunpack.c.l.b16 %v3452
  %v3525 = vunpack.c.h.b16 %v3452
  %v3526 = vunpack.c.l.b16 %v3453
  %v3527 = vunpack.c.h.b16 %v3453
  %v3528 = vunpack.c.l.b16 %v3454
  %v3529 = vunpack.c.h.b16 %v3454
  %v3530 = vunpack.c.l.b16 %v3455
  %v3531 = vunpack.c.h.b16 %v3455
  %v3532 = vunpack.c.l.b16 %v3456
  %v3533 = vunpack.c.h.b16 %v3456
  %v3534 = vunpack.c.l.b16 %v3457
  %v3535 = vunpack.c.h.b16 %v3457
  %v3536 = vunpack.c.l.b16 %v3458
  %v3537 = vunpack.c.h.b16 %v3458
  %v3538 = vunpack.c.l.b16 %v3459
  %v3539 = vunpack.c.h.b16 %v3459
  %v3540 = vunpack.c.l.b16 %v3460
  %v3541 = vunpack.c.h.b16 %v3460
  %v3542 = vunpack.c.l.b16 %v3461
  %v3543 = vunpack.c.h.b16 %v3461
  %v3544 = vunpack.c.l.b16 %v3462
  %v3545 = vunpack.c.h.b16 %v3462
  %v3546 = vunpack.c.l.b16 %v3463
  %v3547 = vunpack.c.h.b16 %v3463
  %v3548 = vunpack.c.l.b16 %v3464
  %v3549 = vunpack.c.h.b16 %v3464
  %v3550 = vunpack.c.l.b16 %v3465
  %v3551 = vunpack.c.h.b16 %v3465
  %v3552 = vunpack.c.l.b16 %v3466
  %v3553 = vunpack.c.h.b16 %v3466
  %v3554 = vunpack.c.l.b16 %v3467
  %v3555 = vunpack.c.h.b16 %v3467
  %v3556 = vunpack.c.l.b16 %v3468
  %v3557 = vunpack.c.h.b16 %v3468
  %v3558 = vunpack.c.l.b16 %v3469
  %v3559 = vunpack.c.h.b16 %v3469
  %v3560 = vunpack.c.l.b16 %v3470
  %v3561 = vunpack.c.h.b16 %v3470
  %v3562 = vunpack.c.l.b16 %v3471
  %v3563 = vunpack.c.h.b16 %v3471
  %v3564 = vunpack.c.l.b16 %v3472
  %v3565 = vunpack.c.h.b16 %v3472
  %v3566 = vunpack.c.l.b16 %v3473
  %v3567 = vunpack.c.h.b16 %v3473
  %v3568 = vunpack.c.l.b16 %v3474
  %v3569 = vunpack.c.h.b16 %v3474
  %v3570 = vunpack.c.l.b16 %v3475
  %v3571 = vunpack.c.h.b16 %v3475
  %v3572 = vpack.c.b16 %v3512, %v3508
  %v3573 = vpack.c.b16 %v3513, %v3509
  %v3574 = vpack.c.b16 %v3514, %v3510
  %v3575 = vpack.c.b16 %v3515, %v3511
  %v3576 = vpack.c.b16 %v3520, %v3516
  %v3577 = vpack.c.b16 %v3521, %v3517
  %v3578 = vpack.c.b16 %v3522, %v3518
  %v3579 = vpack.c.b16 %v3523, %v3519
  %v3580 = vpack.c.b16 %v3528, %v3524
  %v3581 = vpack.c.b16 %v3529, %v3525
  %v3582 = vpack.c.b16 %v3530, %v3526
  %v3583 = vpack.c.b16 %v3531, %v3527
  %v3584 = vpack.c.b16 %v3536, %v3532
  %v3585 = vpack.c.b16 %v3537, %v3533
  %v3586 = vpack.c.b16 %v3538, %v3534
  %v3587 = vpack.c.b16 %v3539, %v3535
  %v3588 = vpack.c.b16 %v3544, %v3540
  %v3589 = vpack.c.b16 %v3545, %v3541
  %v3590 = vpack.c.b16 %v3546, %v3542
  %v3591 = vpack.c.b16 %v3547, %v3543
  %v3592 = vpack.c.b16 %v3552, %v3548
  %v3593 = vpack.c.b16 %v3553, %v3549
  %v3594 = vpack.c.b16 %v3554, %v3550
  %v3595 = vpack.c.b16 %v3555, %v3551
  %v3596 = vpack.c.b16 %v3560, %v3556
  %v3597 = vpack.c.b16 %v3561, %v3557
  %v3598 = vpack.c.b16 %v3562, %v3558
  %v3599 = vpack.c.b16 %v3563, %v3559
  %v3600 = vpack.c.b16 %v3568, %v3564
  %v3601 = vpack.c.b16 %v3569, %v3565
  %v3602 = vpack.c.b16 %v3570, %v3566
  %v3603 = vpack.c.b16 %v3571, %v3567
  %3636 = vmatprep.subr.bf16.mxu0 %v3573
  %3637 = vmatpush1.bf16.msra.mxu0 %v3572
  %3638 = vmatprep.subr.bf16.mxu0 %v3577
  %3639 = vmatpush1.bf16.msra.mxu0 %v3576
  %3640 = vmatprep.subr.bf16.mxu0 %v3581
  %3641 = vmatpush1.bf16.msra.mxu0 %v3580
  %3642 = vmatprep.subr.bf16.mxu0 %v3585
  %3643 = vmatpush1.bf16.msra.mxu0 %v3584
  %3644 = vmatprep.subr.bf16.mxu0 %v3589
  %3645 = vmatpush1.bf16.msra.mxu0 %v3588
  %3646 = vmatprep.subr.bf16.mxu0 %v3593
  %3647 = vmatpush1.bf16.msra.mxu0 %v3592
  %3648 = vmatprep.subr.bf16.mxu0 %v3597
  %3649 = vmatpush1.bf16.msra.mxu0 %v3596
  %3650 = vmatprep.subr.bf16.mxu0 %v3601
  %3651 = vmatpush1.bf16.msra.mxu0 %v3600
  %3652 = vmatprep.subr.bf16.mxu0 0
  %3653 = vmatpush1.bf16.msra.mxu0 0
  %3654 = vmatprep.subr.bf16.mxu0 0
  %3655 = vmatpush1.bf16.msra.mxu0 0
  %3656 = vmatprep.subr.bf16.mxu0 0
  %3657 = vmatpush1.bf16.msra.mxu0 0
  %3658 = vmatprep.subr.bf16.mxu0 0
  %3659 = vmatpush1.bf16.msra.mxu0 0
  %3660 = vmatprep.subr.bf16.mxu0 0
  %3661 = vmatpush1.bf16.msra.mxu0 0
  %3662 = vmatprep.subr.bf16.mxu0 0
  %3663 = vmatpush1.bf16.msra.mxu0 0
  %3664 = vmatprep.subr.bf16.mxu0 0
  %3665 = vmatpush1.bf16.msra.mxu0 0
  %3666 = vmatprep.subr.bf16.mxu0 0
  %3667 = vmatpush1.bf16.msra.mxu0 0
  %3668 = vmatprep.mubr.bf16.mxu0 0
  %3669 = vmatmul.mubr.bf16.gmra.mrb[0].mxu0 %v3128
  %v3670 = vpop.f32.mrb[0].mxu0
  %v3671 = vadd.f32 0.0, %v3670
  %v3672 = vpop.f32.mrb[0].mxu0
  %v3673 = vadd.f32 0.0, %v3672
  %v3674 = vpop.f32.mrb[0].mxu0
  %v3675 = vpop.f32.mrb[0].mxu0
  %3676 = vdwg.mxu0
  %3677 = vmatprep.subr.bf16.mxu0 %v3575
  %3678 = vmatpush1.bf16.msra.mxu0 %v3574
  %3679 = vmatprep.subr.bf16.mxu0 %v3579
  %3680 = vmatpush1.bf16.msra.mxu0 %v3578
  %3681 = vmatprep.subr.bf16.mxu0 %v3583
  %3682 = vmatpush1.bf16.msra.mxu0 %v3582
  %3683 = vmatprep.subr.bf16.mxu0 %v3587
  %3684 = vmatpush1.bf16.msra.mxu0 %v3586
  %3685 = vmatprep.subr.bf16.mxu0 %v3591
  %3686 = vmatpush1.bf16.msra.mxu0 %v3590
  %3687 = vmatprep.subr.bf16.mxu0 %v3595
  %3688 = vmatpush1.bf16.msra.mxu0 %v3594
  %3689 = vmatprep.subr.bf16.mxu0 %v3599
  %3690 = vmatpush1.bf16.msra.mxu0 %v3598
  %3691 = vmatprep.subr.bf16.mxu0 %v3603
  %3692 = vmatpush1.bf16.msra.mxu0 %v3602
  %3693 = vmatprep.subr.bf16.mxu0 0
  %3694 = vmatpush1.bf16.msra.mxu0 0
  %3695 = vmatprep.subr.bf16.mxu0 0
  %3696 = vmatpush1.bf16.msra.mxu0 0
  %3697 = vmatprep.subr.bf16.mxu0 0
  %3698 = vmatpush1.bf16.msra.mxu0 0
  %3699 = vmatprep.subr.bf16.mxu0 0
  %3700 = vmatpush1.bf16.msra.mxu0 0
  %3701 = vmatprep.subr.bf16.mxu0 0
  %3702 = vmatpush1.bf16.msra.mxu0 0
  %3703 = vmatprep.subr.bf16.mxu0 0
  %3704 = vmatpush1.bf16.msra.mxu0 0
  %3705 = vmatprep.subr.bf16.mxu0 0
  %3706 = vmatpush1.bf16.msra.mxu0 0
  %3707 = vmatprep.subr.bf16.mxu0 0
  %3708 = vmatpush1.bf16.msra.mxu0 0
  %3709 = vmatprep.mubr.bf16.mxu0 0
  %3710 = vmatmul.mubr.bf16.gmra.mrb[0].mxu0 %v3128
  %v3711 = vpop.f32.mrb[0].mxu0
  %v3712 = vadd.f32 0.0, %v3711
  %v3713 = vpop.f32.mrb[0].mxu0
  %v3714 = vadd.f32 0.0, %v3713
  %v3715 = vpop.f32.mrb[0].mxu0
  %v3716 = vpop.f32.mrb[0].mxu0
  %3717 = vdwg.mxu0
  %v3718 = vadd.f32 %v3440, %v3671
  %v3719 = vadd.f32 %v3441, %v3673
  %v3720 = vadd.f32 %v3442, %v3712
  %v3721 = vadd.f32 %v3443, %v3714
  %v3722 = vmul.f32 %v3718, 0.5
  %v3723 = vtanh.pop %v3722
  %v3724 = vmul.f32 %v3723, 0.5
  %v3725 = vadd.f32 %v3724, 0.5
  %v3726 = vmul.f32 %v3719, 0.5
  %v3727 = vtanh.pop %v3726
  %v3728 = vmul.f32 %v3727, 0.5
  %v3729 = vadd.f32 %v3728, 0.5
  %v3730 = vtanh.pop %v3720
  %v3731 = vmul.f32 %v3721, 0.5
  %v3732 = vtanh.pop %v3731
  %v3733 = vmul.f32 %v3732, 0.5
  %v3734 = vadd.f32 %v3733, 0.5
  %v3735 = vmul.f32 %v3729, %v3125
  %v3736 = vmul.f32 %v3725, %v3730
  %v3737 = vadd.f32 %v3735, %v3736
  %v3738 = vtanh.pop %v3737
  %v3739 = vmul.f32 %v3734, %v3738
  %v3740 = vpack.c.bf16 %v3739, %v3739
  %s3741 = scalar_lea.vmem %s52, 8
  %3742 = vst [vmem:[%s3741] sm:$0xf] %v3740
  %s3743 = scalar_lea.vmem %s0, 96
  %v3744 = vld [vmem:[%s3743] sm:$0xff]
  %v3745 = vld [vmem:[%s3743 + $0x8] sm:$0xff]
  %v3746 = vunpack.c.l.bf16 %v3744
  %v3747 = vunpack.c.h.bf16 %v3744
  %v3748 = vunpack.c.l.bf16 %v3745
  %v3749 = vunpack.c.h.bf16 %v3745
  %v3750 = vld [vmem:[%s2] sm:$0xff]
  %v3751 = vld [vmem:[%s2 + $0x8] sm:$0xff]
  %v3752 = vld [vmem:[%s2 + $0x10] sm:$0xff]
  %v3753 = vld [vmem:[%s2 + $0x18] sm:$0xff]
  %v3754 = vld [vmem:[%s2 + $0x20] sm:$0xff]
  %v3755 = vld [vmem:[%s2 + $0x28] sm:$0xff]
  %v3756 = vld [vmem:[%s2 + $0x30] sm:$0xff]
  %v3757 = vld [vmem:[%s2 + $0x38] sm:$0xff]
  %v3758 = vld [vmem:[%s2 + $0x40] sm:$0xff]
  %v3759 = vld [vmem:[%s2 + $0x48] sm:$0xff]
  %v3760 = vld [vmem:[%s2 + $0x50] sm:$0xff]
  %v3761 = vld [vmem:[%s2 + $0x58] sm:$0xff]
  %v3762 = vld [vmem:[%s2 + $0x60] sm:$0xff]
  %v3763 = vld [vmem:[%s2 + $0x68] sm:$0xff]
  %v3764 = vld [vmem:[%s2 + $0x70] sm:$0xff]
  %v3765 = vld [vmem:[%s2 + $0x78] sm:$0xff]
  %v3766 = vld [vmem:[%s2 + $0x80] sm:$0xff]
  %v3767 = vld [vmem:[%s2 + $0x88] sm:$0xff]
  %v3768 = vld [vmem:[%s2 + $0x90] sm:$0xff]
  %v3769 = vld [vmem:[%s2 + $0x98] sm:$0xff]
  %v3770 = vld [vmem:[%s2 + $0xa0] sm:$0xff]
  %v3771 = vld [vmem:[%s2 + $0xa8] sm:$0xff]
  %v3772 = vld [vmem:[%s2 + $0xb0] sm:$0xff]
  %v3773 = vld [vmem:[%s2 + $0xb8] sm:$0xff]
  %v3774 = vld [vmem:[%s2 + $0xc0] sm:$0xff]
  %v3775 = vld [vmem:[%s2 + $0xc8] sm:$0xff]
  %v3776 = vld [vmem:[%s2 + $0xd0] sm:$0xff]
  %v3777 = vld [vmem:[%s2 + $0xd8] sm:$0xff]
  %v3778 = vld [vmem:[%s2 + $0xe0] sm:$0xff]
  %v3779 = vld [vmem:[%s2 + $0xe8] sm:$0xff]
  %v3780 = vld [vmem:[%s2 + $0xf0] sm:$0xff]
  %v3781 = vld [vmem:[%s2 + $0xf8] sm:$0xff]
  %v3814 = vunpack.c.l.b16 %v3750
  %v3815 = vunpack.c.h.b16 %v3750
  %v3816 = vunpack.c.l.b16 %v3751
  %v3817 = vunpack.c.h.b16 %v3751
  %v3818 = vunpack.c.l.b16 %v3752
  %v3819 = vunpack.c.h.b16 %v3752
  %v3820 = vunpack.c.l.b16 %v3753
  %v3821 = vunpack.c.h.b16 %v3753
  %v3822 = vunpack.c.l.b16 %v3754
  %v3823 = vunpack.c.h.b16 %v3754
  %v3824 = vunpack.c.l.b16 %v3755
  %v3825 = vunpack.c.h.b16 %v3755
  %v3826 = vunpack.c.l.b16 %v3756
  %v3827 = vunpack.c.h.b16 %v3756
  %v3828 = vunpack.c.l.b16 %v3757
  %v3829 = vunpack.c.h.b16 %v3757
  %v3830 = vunpack.c.l.b16 %v3758
  %v3831 = vunpack.c.h.b16 %v3758
  %v3832 = vunpack.c.l.b16 %v3759
  %v3833 = vunpack.c.h.b16 %v3759
  %v3834 = vunpack.c.l.b16 %v3760
  %v3835 = vunpack.c.h.b16 %v3760
  %v3836 = vunpack.c.l.b16 %v3761
  %v3837 = vunpack.c.h.b16 %v3761
  %v3838 = vunpack.c.l.b16 %v3762
  %v3839 = vunpack.c.h.b16 %v3762
  %v3840 = vunpack.c.l.b16 %v3763
  %v3841 = vunpack.c.h.b16 %v3763
  %v3842 = vunpack.c.l.b16 %v3764
  %v3843 = vunpack.c.h.b16 %v3764
  %v3844 = vunpack.c.l.b16 %v3765
  %v3845 = vunpack.c.h.b16 %v3765
  %v3846 = vunpack.c.l.b16 %v3766
  %v3847 = vunpack.c.h.b16 %v3766
  %v3848 = vunpack.c.l.b16 %v3767
  %v3849 = vunpack.c.h.b16 %v3767
  %v3850 = vunpack.c.l.b16 %v3768
  %v3851 = vunpack.c.h.b16 %v3768
  %v3852 = vunpack.c.l.b16 %v3769
  %v3853 = vunpack.c.h.b16 %v3769
  %v3854 = vunpack.c.l.b16 %v3770
  %v3855 = vunpack.c.h.b16 %v3770
  %v3856 = vunpack.c.l.b16 %v3771
  %v3857 = vunpack.c.h.b16 %v3771
  %v3858 = vunpack.c.l.b16 %v3772
  %v3859 = vunpack.c.h.b16 %v3772
  %v3860 = vunpack.c.l.b16 %v3773
  %v3861 = vunpack.c.h.b16 %v3773
  %v3862 = vunpack.c.l.b16 %v3774
  %v3863 = vunpack.c.h.b16 %v3774
  %v3864 = vunpack.c.l.b16 %v3775
  %v3865 = vunpack.c.h.b16 %v3775
  %v3866 = vunpack.c.l.b16 %v3776
  %v3867 = vunpack.c.h.b16 %v3776
  %v3868 = vunpack.c.l.b16 %v3777
  %v3869 = vunpack.c.h.b16 %v3777
  %v3870 = vunpack.c.l.b16 %v3778
  %v3871 = vunpack.c.h.b16 %v3778
  %v3872 = vunpack.c.l.b16 %v3779
  %v3873 = vunpack.c.h.b16 %v3779
  %v3874 = vunpack.c.l.b16 %v3780
  %v3875 = vunpack.c.h.b16 %v3780
  %v3876 = vunpack.c.l.b16 %v3781
  %v3877 = vunpack.c.h.b16 %v3781
  %v3878 = vpack.c.b16 %v3818, %v3814
  %v3879 = vpack.c.b16 %v3819, %v3815
  %v3880 = vpack.c.b16 %v3820, %v3816
  %v3881 = vpack.c.b16 %v3821, %v3817
  %v3882 = vpack.c.b16 %v3826, %v3822
  %v3883 = vpack.c.b16 %v3827, %v3823
  %v3884 = vpack.c.b16 %v3828, %v3824
  %v3885 = vpack.c.b16 %v3829, %v3825
  %v3886 = vpack.c.b16 %v3834, %v3830
  %v3887 = vpack.c.b16 %v3835, %v3831
  %v3888 = vpack.c.b16 %v3836, %v3832
  %v3889 = vpack.c.b16 %v3837, %v3833
  %v3890 = vpack.c.b16 %v3842, %v3838
  %v3891 = vpack.c.b16 %v3843, %v3839
  %v3892 = vpack.c.b16 %v3844, %v3840
  %v3893 = vpack.c.b16 %v3845, %v3841
  %v3894 = vpack.c.b16 %v3850, %v3846
  %v3895 = vpack.c.b16 %v3851, %v3847
  %v3896 = vpack.c.b16 %v3852, %v3848
  %v3897 = vpack.c.b16 %v3853, %v3849
  %v3898 = vpack.c.b16 %v3858, %v3854
  %v3899 = vpack.c.b16 %v3859, %v3855
  %v3900 = vpack.c.b16 %v3860, %v3856
  %v3901 = vpack.c.b16 %v3861, %v3857
  %v3902 = vpack.c.b16 %v3866, %v3862
  %v3903 = vpack.c.b16 %v3867, %v3863
  %v3904 = vpack.c.b16 %v3868, %v3864
  %v3905 = vpack.c.b16 %v3869, %v3865
  %v3906 = vpack.c.b16 %v3874, %v3870
  %v3907 = vpack.c.b16 %v3875, %v3871
  %v3908 = vpack.c.b16 %v3876, %v3872
  %v3909 = vpack.c.b16 %v3877, %v3873
  %3942 = vmatprep.subr.bf16.mxu0 %v3879
  %3943 = vmatpush1.bf16.msra.mxu0 %v3878
  %3944 = vmatprep.subr.bf16.mxu0 %v3883
  %3945 = vmatpush1.bf16.msra.mxu0 %v3882
  %3946 = vmatprep.subr.bf16.mxu0 %v3887
  %3947 = vmatpush1.bf16.msra.mxu0 %v3886
  %3948 = vmatprep.subr.bf16.mxu0 %v3891
  %3949 = vmatpush1.bf16.msra.mxu0 %v3890
  %3950 = vmatprep.subr.bf16.mxu0 %v3895
  %3951 = vmatpush1.bf16.msra.mxu0 %v3894
  %3952 = vmatprep.subr.bf16.mxu0 %v3899
  %3953 = vmatpush1.bf16.msra.mxu0 %v3898
  %3954 = vmatprep.subr.bf16.mxu0 %v3903
  %3955 = vmatpush1.bf16.msra.mxu0 %v3902
  %3956 = vmatprep.subr.bf16.mxu0 %v3907
  %3957 = vmatpush1.bf16.msra.mxu0 %v3906
  %3958 = vmatprep.subr.bf16.mxu0 0
  %3959 = vmatpush1.bf16.msra.mxu0 0
  %3960 = vmatprep.subr.bf16.mxu0 0
  %3961 = vmatpush1.bf16.msra.mxu0 0
  %3962 = vmatprep.subr.bf16.mxu0 0
  %3963 = vmatpush1.bf16.msra.mxu0 0
  %3964 = vmatprep.subr.bf16.mxu0 0
  %3965 = vmatpush1.bf16.msra.mxu0 0
  %3966 = vmatprep.subr.bf16.mxu0 0
  %3967 = vmatpush1.bf16.msra.mxu0 0
  %3968 = vmatprep.subr.bf16.mxu0 0
  %3969 = vmatpush1.bf16.msra.mxu0 0
  %3970 = vmatprep.subr.bf16.mxu0 0
  %3971 = vmatpush1.bf16.msra.mxu0 0
  %3972 = vmatprep.subr.bf16.mxu0 0
  %3973 = vmatpush1.bf16.msra.mxu0 0
  %3974 = vmatprep.mubr.bf16.mxu0 0
  %3975 = vmatmul.mubr.bf16.gmra.mrb[0].mxu0 %v3434
  %v3976 = vpop.f32.mrb[0].mxu0
  %v3977 = vadd.f32 0.0, %v3976
  %v3978 = vpop.f32.mrb[0].mxu0
  %v3979 = vadd.f32 0.0, %v3978
  %v3980 = vpop.f32.mrb[0].mxu0
  %v3981 = vpop.f32.mrb[0].mxu0
  %3982 = vdwg.mxu0
  %3983 = vmatprep.subr.bf16.mxu0 %v3881
  %3984 = vmatpush1.bf16.msra.mxu0 %v3880
  %3985 = vmatprep.subr.bf16.mxu0 %v3885
  %3986 = vmatpush1.bf16.msra.mxu0 %v3884
  %3987 = vmatprep.subr.bf16.mxu0 %v3889
  %3988 = vmatpush1.bf16.msra.mxu0 %v3888
  %3989 = vmatprep.subr.bf16.mxu0 %v3893
  %3990 = vmatpush1.bf16.msra.mxu0 %v3892
  %3991 = vmatprep.subr.bf16.mxu0 %v3897
  %3992 = vmatpush1.bf16.msra.mxu0 %v3896
  %3993 = vmatprep.subr.bf16.mxu0 %v3901
  %3994 = vmatpush1.bf16.msra.mxu0 %v3900
  %3995 = vmatprep.subr.bf16.mxu0 %v3905
  %3996 = vmatpush1.bf16.msra.mxu0 %v3904
  %3997 = vmatprep.subr.bf16.mxu0 %v3909
  %3998 = vmatpush1.bf16.msra.mxu0 %v3908
  %3999 = vmatprep.subr.bf16.mxu0 0
  %4000 = vmatpush1.bf16.msra.mxu0 0
  %4001 = vmatprep.subr.bf16.mxu0 0
  %4002 = vmatpush1.bf16.msra.mxu0 0
  %4003 = vmatprep.subr.bf16.mxu0 0
  %4004 = vmatpush1.bf16.msra.mxu0 0
  %4005 = vmatprep.subr.bf16.mxu0 0
  %4006 = vmatpush1.bf16.msra.mxu0 0
  %4007 = vmatprep.subr.bf16.mxu0 0
  %4008 = vmatpush1.bf16.msra.mxu0 0
  %4009 = vmatprep.subr.bf16.mxu0 0
  %4010 = vmatpush1.bf16.msra.mxu0 0
  %4011 = vmatprep.subr.bf16.mxu0 0
  %4012 = vmatpush1.bf16.msra.mxu0 0
  %4013 = vmatprep.subr.bf16.mxu0 0
  %4014 = vmatpush1.bf16.msra.mxu0 0
  %4015 = vmatprep.mubr.bf16.mxu0 0
  %4016 = vmatmul.mubr.bf16.gmra.mrb[0].mxu0 %v3434
  %v4017 = vpop.f32.mrb[0].mxu0
  %v4018 = vadd.f32 0.0, %v4017
  %v4019 = vpop.f32.mrb[0].mxu0
  %v4020 = vadd.f32 0.0, %v4019
  %v4021 = vpop.f32.mrb[0].mxu0
  %v4022 = vpop.f32.mrb[0].mxu0
  %4023 = vdwg.mxu0
  %v4024 = vadd.f32 %v3746, %v3977
  %v4025 = vadd.f32 %v3747, %v3979
  %v4026 = vadd.f32 %v3748, %v4018
  %v4027 = vadd.f32 %v3749, %v4020
  %v4028 = vmul.f32 %v4024, 0.5
  %v4029 = vtanh.pop %v4028
  %v4030 = vmul.f32 %v4029, 0.5
  %v4031 = vadd.f32 %v4030, 0.5
  %v4032 = vmul.f32 %v4025, 0.5
  %v4033 = vtanh.pop %v4032
  %v4034 = vmul.f32 %v4033, 0.5
  %v4035 = vadd.f32 %v4034, 0.5
  %v4036 = vtanh.pop %v4026
  %v4037 = vmul.f32 %v4027, 0.5
  %v4038 = vtanh.pop %v4037
  %v4039 = vmul.f32 %v4038, 0.5
  %v4040 = vadd.f32 %v4039, 0.5
  %v4041 = vmul.f32 %v4035, %v3431
  %v4042 = vmul.f32 %v4031, %v4036
  %v4043 = vadd.f32 %v4041, %v4042
  %v4044 = vtanh.pop %v4043
  %v4045 = vmul.f32 %v4040, %v4044
  %v4046 = vpack.c.bf16 %v4045, %v4045
  %s4047 = scalar_lea.vmem %s3, 24
  %4048 = vst [vmem:[%s4047] sm:$0xf] %v4046
  %s4049 = scalar_lea.vmem %s44, 16
  %v4050 = vld [vmem:[%s4049] sm:$0xff]
  %v4051 = vld [vmem:[%s4049 + $0x8] sm:$0xff]
  %v4052 = vunpack.c.l.bf16 %v4050
  %v4053 = vunpack.c.h.bf16 %v4050
  %v4054 = vunpack.c.l.bf16 %v4051
  %v4055 = vunpack.c.h.bf16 %v4051
  %v4056 = vld [vmem:[%s383] sm:$0xff]
  %v4057 = vld [vmem:[%s383 + $0x8] sm:$0xff]
  %v4058 = vld [vmem:[%s383 + $0x10] sm:$0xff]
  %v4059 = vld [vmem:[%s383 + $0x18] sm:$0xff]
  %v4060 = vld [vmem:[%s383 + $0x20] sm:$0xff]
  %v4061 = vld [vmem:[%s383 + $0x28] sm:$0xff]
  %v4062 = vld [vmem:[%s383 + $0x30] sm:$0xff]
  %v4063 = vld [vmem:[%s383 + $0x38] sm:$0xff]
  %v4064 = vld [vmem:[%s383 + $0x40] sm:$0xff]
  %v4065 = vld [vmem:[%s383 + $0x48] sm:$0xff]
  %v4066 = vld [vmem:[%s383 + $0x50] sm:$0xff]
  %v4067 = vld [vmem:[%s383 + $0x58] sm:$0xff]
  %v4068 = vld [vmem:[%s383 + $0x60] sm:$0xff]
  %v4069 = vld [vmem:[%s383 + $0x68] sm:$0xff]
  %v4070 = vld [vmem:[%s383 + $0x70] sm:$0xff]
  %v4071 = vld [vmem:[%s383 + $0x78] sm:$0xff]
  %v4072 = vld [vmem:[%s383 + $0x80] sm:$0xff]
  %v4073 = vld [vmem:[%s383 + $0x88] sm:$0xff]
  %v4074 = vld [vmem:[%s383 + $0x90] sm:$0xff]
  %v4075 = vld [vmem:[%s383 + $0x98] sm:$0xff]
  %v4076 = vld [vmem:[%s383 + $0xa0] sm:$0xff]
  %v4077 = vld [vmem:[%s383 + $0xa8] sm:$0xff]
  %v4078 = vld [vmem:[%s383 + $0xb0] sm:$0xff]
  %v4079 = vld [vmem:[%s383 + $0xb8] sm:$0xff]
  %v4080 = vld [vmem:[%s383 + $0xc0] sm:$0xff]
  %v4081 = vld [vmem:[%s383 + $0xc8] sm:$0xff]
  %v4082 = vld [vmem:[%s383 + $0xd0] sm:$0xff]
  %v4083 = vld [vmem:[%s383 + $0xd8] sm:$0xff]
  %v4084 = vld [vmem:[%s383 + $0xe0] sm:$0xff]
  %v4085 = vld [vmem:[%s383 + $0xe8] sm:$0xff]
  %v4086 = vld [vmem:[%s383 + $0xf0] sm:$0xff]
  %v4087 = vld [vmem:[%s383 + $0xf8] sm:$0xff]
  %v4120 = vunpack.c.l.b16 %v4056
  %v4121 = vunpack.c.h.b16 %v4056
  %v4122 = vunpack.c.l.b16 %v4057
  %v4123 = vunpack.c.h.b16 %v4057
  %v4124 = vunpack.c.l.b16 %v4058
  %v4125 = vunpack.c.h.b16 %v4058
  %v4126 = vunpack.c.l.b16 %v4059
  %v4127 = vunpack.c.h.b16 %v4059
  %v4128 = vunpack.c.l.b16 %v4060
  %v4129 = vunpack.c.h.b16 %v4060
  %v4130 = vunpack.c.l.b16 %v4061
  %v4131 = vunpack.c.h.b16 %v4061
  %v4132 = vunpack.c.l.b16 %v4062
  %v4133 = vunpack.c.h.b16 %v4062
  %v4134 = vunpack.c.l.b16 %v4063
  %v4135 = vunpack.c.h.b16 %v4063
  %v4136 = vunpack.c.l.b16 %v4064
  %v4137 = vunpack.c.h.b16 %v4064
  %v4138 = vunpack.c.l.b16 %v4065
  %v4139 = vunpack.c.h.b16 %v4065
  %v4140 = vunpack.c.l.b16 %v4066
  %v4141 = vunpack.c.h.b16 %v4066
  %v4142 = vunpack.c.l.b16 %v4067
  %v4143 = vunpack.c.h.b16 %v4067
  %v4144 = vunpack.c.l.b16 %v4068
  %v4145 = vunpack.c.h.b16 %v4068
  %v4146 = vunpack.c.l.b16 %v4069
  %v4147 = vunpack.c.h.b16 %v4069
  %v4148 = vunpack.c.l.b16 %v4070
  %v4149 = vunpack.c.h.b16 %v4070
  %v4150 = vunpack.c.l.b16 %v4071
  %v4151 = vunpack.c.h.b16 %v4071
  %v4152 = vunpack.c.l.b16 %v4072
  %v4153 = vunpack.c.h.b16 %v4072
  %v4154 = vunpack.c.l.b16 %v4073
  %v4155 = vunpack.c.h.b16 %v4073
  %v4156 = vunpack.c.l.b16 %v4074
  %v4157 = vunpack.c.h.b16 %v4074
  %v4158 = vunpack.c.l.b16 %v4075
  %v4159 = vunpack.c.h.b16 %v4075
  %v4160 = vunpack.c.l.b16 %v4076
  %v4161 = vunpack.c.h.b16 %v4076
  %v4162 = vunpack.c.l.b16 %v4077
  %v4163 = vunpack.c.h.b16 %v4077
  %v4164 = vunpack.c.l.b16 %v4078
  %v4165 = vunpack.c.h.b16 %v4078
  %v4166 = vunpack.c.l.b16 %v4079
  %v4167 = vunpack.c.h.b16 %v4079
  %v4168 = vunpack.c.l.b16 %v4080
  %v4169 = vunpack.c.h.b16 %v4080
  %v4170 = vunpack.c.l.b16 %v4081
  %v4171 = vunpack.c.h.b16 %v4081
  %v4172 = vunpack.c.l.b16 %v4082
  %v4173 = vunpack.c.h.b16 %v4082
  %v4174 = vunpack.c.l.b16 %v4083
  %v4175 = vunpack.c.h.b16 %v4083
  %v4176 = vunpack.c.l.b16 %v4084
  %v4177 = vunpack.c.h.b16 %v4084
  %v4178 = vunpack.c.l.b16 %v4085
  %v4179 = vunpack.c.h.b16 %v4085
  %v4180 = vunpack.c.l.b16 %v4086
  %v4181 = vunpack.c.h.b16 %v4086
  %v4182 = vunpack.c.l.b16 %v4087
  %v4183 = vunpack.c.h.b16 %v4087
  %v4184 = vpack.c.b16 %v4124, %v4120
  %v4185 = vpack.c.b16 %v4125, %v4121
  %v4186 = vpack.c.b16 %v4126, %v4122
  %v4187 = vpack.c.b16 %v4127, %v4123
  %v4188 = vpack.c.b16 %v4132, %v4128
  %v4189 = vpack.c.b16 %v4133, %v4129
  %v4190 = vpack.c.b16 %v4134, %v4130
  %v4191 = vpack.c.b16 %v4135, %v4131
  %v4192 = vpack.c.b16 %v4140, %v4136
  %v4193 = vpack.c.b16 %v4141, %v4137
  %v4194 = vpack.c.b16 %v4142, %v4138
  %v4195 = vpack.c.b16 %v4143, %v4139
  %v4196 = vpack.c.b16 %v4148, %v4144
  %v4197 = vpack.c.b16 %v4149, %v4145
  %v4198 = vpack.c.b16 %v4150, %v4146
  %v4199 = vpack.c.b16 %v4151, %v4147
  %v4200 = vpack.c.b16 %v4156, %v4152
  %v4201 = vpack.c.b16 %v4157, %v4153
  %v4202 = vpack.c.b16 %v4158, %v4154
  %v4203 = vpack.c.b16 %v4159, %v4155
  %v4204 = vpack.c.b16 %v4164, %v4160
  %v4205 = vpack.c.b16 %v4165, %v4161
  %v4206 = vpack.c.b16 %v4166, %v4162
  %v4207 = vpack.c.b16 %v4167, %v4163
  %v4208 = vpack.c.b16 %v4172, %v4168
  %v4209 = vpack.c.b16 %v4173, %v4169
  %v4210 = vpack.c.b16 %v4174, %v4170
  %v4211 = vpack.c.b16 %v4175, %v4171
  %v4212 = vpack.c.b16 %v4180, %v4176
  %v4213 = vpack.c.b16 %v4181, %v4177
  %v4214 = vpack.c.b16 %v4182, %v4178
  %v4215 = vpack.c.b16 %v4183, %v4179
  %4248 = vmatprep.subr.bf16.mxu0 %v4185
  %4249 = vmatpush1.bf16.msra.mxu0 %v4184
  %4250 = vmatprep.subr.bf16.mxu0 %v4189
  %4251 = vmatpush1.bf16.msra.mxu0 %v4188
  %4252 = vmatprep.subr.bf16.mxu0 %v4193
  %4253 = vmatpush1.bf16.msra.mxu0 %v4192
  %4254 = vmatprep.subr.bf16.mxu0 %v4197
  %4255 = vmatpush1.bf16.msra.mxu0 %v4196
  %4256 = vmatprep.subr.bf16.mxu0 %v4201
  %4257 = vmatpush1.bf16.msra.mxu0 %v4200
  %4258 = vmatprep.subr.bf16.mxu0 %v4205
  %4259 = vmatpush1.bf16.msra.mxu0 %v4204
  %4260 = vmatprep.subr.bf16.mxu0 %v4209
  %4261 = vmatpush1.bf16.msra.mxu0 %v4208
  %4262 = vmatprep.subr.bf16.mxu0 %v4213
  %4263 = vmatpush1.bf16.msra.mxu0 %v4212
  %4264 = vmatprep.subr.bf16.mxu0 0
  %4265 = vmatpush1.bf16.msra.mxu0 0
  %4266 = vmatprep.subr.bf16.mxu0 0
  %4267 = vmatpush1.bf16.msra.mxu0 0
  %4268 = vmatprep.subr.bf16.mxu0 0
  %4269 = vmatpush1.bf16.msra.mxu0 0
  %4270 = vmatprep.subr.bf16.mxu0 0
  %4271 = vmatpush1.bf16.msra.mxu0 0
  %4272 = vmatprep.subr.bf16.mxu0 0
  %4273 = vmatpush1.bf16.msra.mxu0 0
  %4274 = vmatprep.subr.bf16.mxu0 0
  %4275 = vmatpush1.bf16.msra.mxu0 0
  %4276 = vmatprep.subr.bf16.mxu0 0
  %4277 = vmatpush1.bf16.msra.mxu0 0
  %4278 = vmatprep.subr.bf16.mxu0 0
  %4279 = vmatpush1.bf16.msra.mxu0 0
  %4280 = vmatprep.mubr.bf16.mxu0 0
  %4281 = vmatmul.mubr.bf16.gmra.mrb[0].mxu0 %v3740
  %v4282 = vpop.f32.mrb[0].mxu0
  %v4283 = vadd.f32 0.0, %v4282
  %v4284 = vpop.f32.mrb[0].mxu0
  %v4285 = vadd.f32 0.0, %v4284
  %v4286 = vpop.f32.mrb[0].mxu0
  %v4287 = vpop.f32.mrb[0].mxu0
  %4288 = vdwg.mxu0
  %4289 = vmatprep.subr.bf16.mxu0 %v4187
  %4290 = vmatpush1.bf16.msra.mxu0 %v4186
  %4291 = vmatprep.subr.bf16.mxu0 %v4191
  %4292 = vmatpush1.bf16.msra.mxu0 %v4190
  %4293 = vmatprep.subr.bf16.mxu0 %v4195
  %4294 = vmatpush1.bf16.msra.mxu0 %v4194
  %4295 = vmatprep.subr.bf16.mxu0 %v4199
  %4296 = vmatpush1.bf16.msra.mxu0 %v4198
  %4297 = vmatprep.subr.bf16.mxu0 %v4203
  %4298 = vmatpush1.bf16.msra.mxu0 %v4202
  %4299 = vmatprep.subr.bf16.mxu0 %v4207
  %4300 = vmatpush1.bf16.msra.mxu0 %v4206
  %4301 = vmatprep.subr.bf16.mxu0 %v4211
  %4302 = vmatpush1.bf16.msra.mxu0 %v4210
  %4303 = vmatprep.subr.bf16.mxu0 %v4215
  %4304 = vmatpush1.bf16.msra.mxu0 %v4214
  %4305 = vmatprep.subr.bf16.mxu0 0
  %4306 = vmatpush1.bf16.msra.mxu0 0
  %4307 = vmatprep.subr.bf16.mxu0 0
  %4308 = vmatpush1.bf16.msra.mxu0 0
  %4309 = vmatprep.subr.bf16.mxu0 0
  %4310 = vmatpush1.bf16.msra.mxu0 0
  %4311 = vmatprep.subr.bf16.mxu0 0
  %4312 = vmatpush1.bf16.msra.mxu0 0
  %4313 = vmatprep.subr.bf16.mxu0 0
  %4314 = vmatpush1.bf16.msra.mxu0 0
  %4315 = vmatprep.subr.bf16.mxu0 0
  %4316 = vmatpush1.bf16.msra.mxu0 0
  %4317 = vmatprep.subr.bf16.mxu0 0
  %4318 = vmatpush1.bf16.msra.mxu0 0
  %4319 = vmatprep.subr.bf16.mxu0 0
  %4320 = vmatpush1.bf16.msra.mxu0 0
  %4321 = vmatprep.mubr.bf16.mxu0 0
  %4322 = vmatmul.mubr.bf16.gmra.mrb[0].mxu0 %v3740
  %v4323 = vpop.f32.mrb[0].mxu0
  %v4324 = vadd.f32 0.0, %v4323
  %v4325 = vpop.f32.mrb[0].mxu0
  %v4326 = vadd.f32 0.0, %v4325
  %v4327 = vpop.f32.mrb[0].mxu0
  %v4328 = vpop.f32.mrb[0].mxu0
  %4329 = vdwg.mxu0
  %v4330 = vadd.f32 %v4052, %v4283
  %v4331 = vadd.f32 %v4053, %v4285
  %v4332 = vadd.f32 %v4054, %v4324
  %v4333 = vadd.f32 %v4055, %v4326
  %v4334 = vmul.f32 %v4330, 0.5
  %v4335 = vtanh.pop %v4334
  %v4336 = vmul.f32 %v4335, 0.5
  %v4337 = vadd.f32 %v4336, 0.5
  %v4338 = vmul.f32 %v4331, 0.5
  %v4339 = vtanh.pop %v4338
  %v4340 = vmul.f32 %v4339, 0.5
  %v4341 = vadd.f32 %v4340, 0.5
  %v4342 = vtanh.pop %v4332
  %v4343 = vmul.f32 %v4333, 0.5
  %v4344 = vtanh.pop %v4343
  %v4345 = vmul.f32 %v4344, 0.5
  %v4346 = vadd.f32 %v4345, 0.5
  %v4347 = vmul.f32 %v4341, %v3737
  %v4348 = vmul.f32 %v4337, %v4342
  %v4349 = vadd.f32 %v4347, %v4348
  %v4350 = vtanh.pop %v4349
  %v4351 = vmul.f32 %v4346, %v4350
  %v4352 = vpack.c.bf16 %v4351, %v4351
  %s4353 = scalar_lea.vmem %s52, 4
  %4354 = vst [vmem:[%s4353] sm:$0xf] %v4352
  %s4355 = scalar_lea.vmem %s0, 112
  %v4356 = vld [vmem:[%s4355] sm:$0xff]
  %v4357 = vld [vmem:[%s4355 + $0x8] sm:$0xff]
  %v4358 = vunpack.c.l.bf16 %v4356
  %v4359 = vunpack.c.h.bf16 %v4356
  %v4360 = vunpack.c.l.bf16 %v4357
  %v4361 = vunpack.c.h.bf16 %v4357
  %v4362 = vld [vmem:[%s2] sm:$0xff]
  %v4363 = vld [vmem:[%s2 + $0x8] sm:$0xff]
  %v4364 = vld [vmem:[%s2 + $0x10] sm:$0xff]
  %v4365 = vld [vmem:[%s2 + $0x18] sm:$0xff]
  %v4366 = vld [vmem:[%s2 + $0x20] sm:$0xff]
  %v4367 = vld [vmem:[%s2 + $0x28] sm:$0xff]
  %v4368 = vld [vmem:[%s2 + $0x30] sm:$0xff]
  %v4369 = vld [vmem:[%s2 + $0x38] sm:$0xff]
  %v4370 = vld [vmem:[%s2 + $0x40] sm:$0xff]
  %v4371 = vld [vmem:[%s2 + $0x48] sm:$0xff]
  %v4372 = vld [vmem:[%s2 + $0x50] sm:$0xff]
  %v4373 = vld [vmem:[%s2 + $0x58] sm:$0xff]
  %v4374 = vld [vmem:[%s2 + $0x60] sm:$0xff]
  %v4375 = vld [vmem:[%s2 + $0x68] sm:$0xff]
  %v4376 = vld [vmem:[%s2 + $0x70] sm:$0xff]
  %v4377 = vld [vmem:[%s2 + $0x78] sm:$0xff]
  %v4378 = vld [vmem:[%s2 + $0x80] sm:$0xff]
  %v4379 = vld [vmem:[%s2 + $0x88] sm:$0xff]
  %v4380 = vld [vmem:[%s2 + $0x90] sm:$0xff]
  %v4381 = vld [vmem:[%s2 + $0x98] sm:$0xff]
  %v4382 = vld [vmem:[%s2 + $0xa0] sm:$0xff]
  %v4383 = vld [vmem:[%s2 + $0xa8] sm:$0xff]
  %v4384 = vld [vmem:[%s2 + $0xb0] sm:$0xff]
  %v4385 = vld [vmem:[%s2 + $0xb8] sm:$0xff]
  %v4386 = vld [vmem:[%s2 + $0xc0] sm:$0xff]
  %v4387 = vld [vmem:[%s2 + $0xc8] sm:$0xff]
  %v4388 = vld [vmem:[%s2 + $0xd0] sm:$0xff]
  %v4389 = vld [vmem:[%s2 + $0xd8] sm:$0xff]
  %v4390 = vld [vmem:[%s2 + $0xe0] sm:$0xff]
  %v4391 = vld [vmem:[%s2 + $0xe8] sm:$0xff]
  %v4392 = vld [vmem:[%s2 + $0xf0] sm:$0xff]
  %v4393 = vld [vmem:[%s2 + $0xf8] sm:$0xff]
  %v4426 = vunpack.c.l.b16 %v4362
  %v4427 = vunpack.c.h.b16 %v4362
  %v4428 = vunpack.c.l.b16 %v4363
  %v4429 = vunpack.c.h.b16 %v4363
  %v4430 = vunpack.c.l.b16 %v4364
  %v4431 = vunpack.c.h.b16 %v4364
  %v4432 = vunpack.c.l.b16 %v4365
  %v4433 = vunpack.c.h.b16 %v4365
  %v4434 = vunpack.c.l.b16 %v4366
  %v4435 = vunpack.c.h.b16 %v4366
  %v4436 = vunpack.c.l.b16 %v4367
  %v4437 = vunpack.c.h.b16 %v4367
  %v4438 = vunpack.c.l.b16 %v4368
  %v4439 = vunpack.c.h.b16 %v4368
  %v4440 = vunpack.c.l.b16 %v4369
  %v4441 = vunpack.c.h.b16 %v4369
  %v4442 = vunpack.c.l.b16 %v4370
  %v4443 = vunpack.c.h.b16 %v4370
  %v4444 = vunpack.c.l.b16 %v4371
  %v4445 = vunpack.c.h.b16 %v4371
  %v4446 = vunpack.c.l.b16 %v4372
  %v4447 = vunpack.c.h.b16 %v4372
  %v4448 = vunpack.c.l.b16 %v4373
  %v4449 = vunpack.c.h.b16 %v4373
  %v4450 = vunpack.c.l.b16 %v4374
  %v4451 = vunpack.c.h.b16 %v4374
  %v4452 = vunpack.c.l.b16 %v4375
  %v4453 = vunpack.c.h.b16 %v4375
  %v4454 = vunpack.c.l.b16 %v4376
  %v4455 = vunpack.c.h.b16 %v4376
  %v4456 = vunpack.c.l.b16 %v4377
  %v4457 = vunpack.c.h.b16 %v4377
  %v4458 = vunpack.c.l.b16 %v4378
  %v4459 = vunpack.c.h.b16 %v4378
  %v4460 = vunpack.c.l.b16 %v4379
  %v4461 = vunpack.c.h.b16 %v4379
  %v4462 = vunpack.c.l.b16 %v4380
  %v4463 = vunpack.c.h.b16 %v4380
  %v4464 = vunpack.c.l.b16 %v4381
  %v4465 = vunpack.c.h.b16 %v4381
  %v4466 = vunpack.c.l.b16 %v4382
  %v4467 = vunpack.c.h.b16 %v4382
  %v4468 = vunpack.c.l.b16 %v4383
  %v4469 = vunpack.c.h.b16 %v4383
  %v4470 = vunpack.c.l.b16 %v4384
  %v4471 = vunpack.c.h.b16 %v4384
  %v4472 = vunpack.c.l.b16 %v4385
  %v4473 = vunpack.c.h.b16 %v4385
  %v4474 = vunpack.c.l.b16 %v4386
  %v4475 = vunpack.c.h.b16 %v4386
  %v4476 = vunpack.c.l.b16 %v4387
  %v4477 = vunpack.c.h.b16 %v4387
  %v4478 = vunpack.c.l.b16 %v4388
  %v4479 = vunpack.c.h.b16 %v4388
  %v4480 = vunpack.c.l.b16 %v4389
  %v4481 = vunpack.c.h.b16 %v4389
  %v4482 = vunpack.c.l.b16 %v4390
  %v4483 = vunpack.c.h.b16 %v4390
  %v4484 = vunpack.c.l.b16 %v4391
  %v4485 = vunpack.c.h.b16 %v4391
  %v4486 = vunpack.c.l.b16 %v4392
  %v4487 = vunpack.c.h.b16 %v4392
  %v4488 = vunpack.c.l.b16 %v4393
  %v4489 = vunpack.c.h.b16 %v4393
  %v4490 = vpack.c.b16 %v4430, %v4426
  %v4491 = vpack.c.b16 %v4431, %v4427
  %v4492 = vpack.c.b16 %v4432, %v4428
  %v4493 = vpack.c.b16 %v4433, %v4429
  %v4494 = vpack.c.b16 %v4438, %v4434
  %v4495 = vpack.c.b16 %v4439, %v4435
  %v4496 = vpack.c.b16 %v4440, %v4436
  %v4497 = vpack.c.b16 %v4441, %v4437
  %v4498 = vpack.c.b16 %v4446, %v4442
  %v4499 = vpack.c.b16 %v4447, %v4443
  %v4500 = vpack.c.b16 %v4448, %v4444
  %v4501 = vpack.c.b16 %v4449, %v4445
  %v4502 = vpack.c.b16 %v4454, %v4450
  %v4503 = vpack.c.b16 %v4455, %v4451
  %v4504 = vpack.c.b16 %v4456, %v4452
  %v4505 = vpack.c.b16 %v4457, %v4453
  %v4506 = vpack.c.b16 %v4462, %v4458
  %v4507 = vpack.c.b16 %v4463, %v4459
  %v4508 = vpack.c.b16 %v4464, %v4460
  %v4509 = vpack.c.b16 %v4465, %v4461
  %v4510 = vpack.c.b16 %v4470, %v4466
  %v4511 = vpack.c.b16 %v4471, %v4467
  %v4512 = vpack.c.b16 %v4472, %v4468
  %v4513 = vpack.c.b16 %v4473, %v4469
  %v4514 = vpack.c.b16 %v4478, %v4474
  %v4515 = vpack.c.b16 %v4479, %v4475
  %v4516 = vpack.c.b16 %v4480, %v4476
  %v4517 = vpack.c.b16 %v4481, %v4477
  %v4518 = vpack.c.b16 %v4486, %v4482
  %v4519 = vpack.c.b16 %v4487, %v4483
  %v4520 = vpack.c.b16 %v4488, %v4484
  %v4521 = vpack.c.b16 %v4489, %v4485
  %4554 = vmatprep.subr.bf16.mxu0 %v4491
  %4555 = vmatpush1.bf16.msra.mxu0 %v4490
  %4556 = vmatprep.subr.bf16.mxu0 %v4495
  %4557 = vmatpush1.bf16.msra.mxu0 %v4494
  %4558 = vmatprep.subr.bf16.mxu0 %v4499
  %4559 = vmatpush1.bf16.msra.mxu0 %v4498
  %4560 = vmatprep.subr.bf16.mxu0 %v4503
  %4561 = vmatpush1.bf16.msra.mxu0 %v4502
  %4562 = vmatprep.subr.bf16.mxu0 %v4507
  %4563 = vmatpush1.bf16.msra.mxu0 %v4506
  %4564 = vmatprep.subr.bf16.mxu0 %v4511
  %4565 = vmatpush1.bf16.msra.mxu0 %v4510
  %4566 = vmatprep.subr.bf16.mxu0 %v4515
  %4567 = vmatpush1.bf16.msra.mxu0 %v4514
  %4568 = vmatprep.subr.bf16.mxu0 %v4519
  %4569 = vmatpush1.bf16.msra.mxu0 %v4518
  %4570 = vmatprep.subr.bf16.mxu0 0
  %4571 = vmatpush1.bf16.msra.mxu0 0
  %4572 = vmatprep.subr.bf16.mxu0 0
  %4573 = vmatpush1.bf16.msra.mxu0 0
  %4574 = vmatprep.subr.bf16.mxu0 0
  %4575 = vmatpush1.bf16.msra.mxu0 0
  %4576 = vmatprep.subr.bf16.mxu0 0
  %4577 = vmatpush1.bf16.msra.mxu0 0
  %4578 = vmatprep.subr.bf16.mxu0 0
  %4579 = vmatpush1.bf16.msra.mxu0 0
  %4580 = vmatprep.subr.bf16.mxu0 0
  %4581 = vmatpush1.bf16.msra.mxu0 0
  %4582 = vmatprep.subr.bf16.mxu0 0
  %4583 = vmatpush1.bf16.msra.mxu0 0
  %4584 = vmatprep.subr.bf16.mxu0 0
  %4585 = vmatpush1.bf16.msra.mxu0 0
  %4586 = vmatprep.mubr.bf16.mxu0 0
  %4587 = vmatmul.mubr.bf16.gmra.mrb[0].mxu0 %v4046
  %v4588 = vpop.f32.mrb[0].mxu0
  %v4589 = vadd.f32 0.0, %v4588
  %v4590 = vpop.f32.mrb[0].mxu0
  %v4591 = vadd.f32 0.0, %v4590
  %v4592 = vpop.f32.mrb[0].mxu0
  %v4593 = vpop.f32.mrb[0].mxu0
  %4594 = vdwg.mxu0
  %4595 = vmatprep.subr.bf16.mxu0 %v4493
  %4596 = vmatpush1.bf16.msra.mxu0 %v4492
  %4597 = vmatprep.subr.bf16.mxu0 %v4497
  %4598 = vmatpush1.bf16.msra.mxu0 %v4496
  %4599 = vmatprep.subr.bf16.mxu0 %v4501
  %4600 = vmatpush1.bf16.msra.mxu0 %v4500
  %4601 = vmatprep.subr.bf16.mxu0 %v4505
  %4602 = vmatpush1.bf16.msra.mxu0 %v4504
  %4603 = vmatprep.subr.bf16.mxu0 %v4509
  %4604 = vmatpush1.bf16.msra.mxu0 %v4508
  %4605 = vmatprep.subr.bf16.mxu0 %v4513
  %4606 = vmatpush1.bf16.msra.mxu0 %v4512
  %4607 = vmatprep.subr.bf16.mxu0 %v4517
  %4608 = vmatpush1.bf16.msra.mxu0 %v4516
  %4609 = vmatprep.subr.bf16.mxu0 %v4521
  %4610 = vmatpush1.bf16.msra.mxu0 %v4520
  %4611 = vmatprep.subr.bf16.mxu0 0
  %4612 = vmatpush1.bf16.msra.mxu0 0
  %4613 = vmatprep.subr.bf16.mxu0 0
  %4614 = vmatpush1.bf16.msra.mxu0 0
  %4615 = vmatprep.subr.bf16.mxu0 0
  %4616 = vmatpush1.bf16.msra.mxu0 0
  %4617 = vmatprep.subr.bf16.mxu0 0
  %4618 = vmatpush1.bf16.msra.mxu0 0
  %4619 = vmatprep.subr.bf16.mxu0 0
  %4620 = vmatpush1.bf16.msra.mxu0 0
  %4621 = vmatprep.subr.bf16.mxu0 0
  %4622 = vmatpush1.bf16.msra.mxu0 0
  %4623 = vmatprep.subr.bf16.mxu0 0
  %4624 = vmatpush1.bf16.msra.mxu0 0
  %4625 = vmatprep.subr.bf16.mxu0 0
  %4626 = vmatpush1.bf16.msra.mxu0 0
  %4627 = vmatprep.mubr.bf16.mxu0 0
  %4628 = vmatmul.mubr.bf16.gmra.mrb[0].mxu0 %v4046
  %v4629 = vpop.f32.mrb[0].mxu0
  %v4630 = vadd.f32 0.0, %v4629
  %v4631 = vpop.f32.mrb[0].mxu0
  %v4632 = vadd.f32 0.0, %v4631
  %v4633 = vpop.f32.mrb[0].mxu0
  %v4634 = vpop.f32.mrb[0].mxu0
  %4635 = vdwg.mxu0
  %v4636 = vadd.f32 %v4358, %v4589
  %v4637 = vadd.f32 %v4359, %v4591
  %v4638 = vadd.f32 %v4360, %v4630
  %v4639 = vadd.f32 %v4361, %v4632
  %v4640 = vmul.f32 %v4636, 0.5
  %v4641 = vtanh.pop %v4640
  %v4642 = vmul.f32 %v4641, 0.5
  %v4643 = vadd.f32 %v4642, 0.5
  %v4644 = vmul.f32 %v4637, 0.5
  %v4645 = vtanh.pop %v4644
  %v4646 = vmul.f32 %v4645, 0.5
  %v4647 = vadd.f32 %v4646, 0.5
  %v4648 = vtanh.pop %v4638
  %v4649 = vmul.f32 %v4639, 0.5
  %v4650 = vtanh.pop %v4649
  %v4651 = vmul.f32 %v4650, 0.5
  %v4652 = vadd.f32 %v4651, 0.5
  %v4653 = vmul.f32 %v4647, %v4043
  %v4654 = vmul.f32 %v4643, %v4648
  %v4655 = vadd.f32 %v4653, %v4654
  %v4656 = vtanh.pop %v4655
  %v4657 = vmul.f32 %v4652, %v4656
  %v4658 = vpack.c.bf16 %v4657, %v4657
  %s4659 = scalar_lea.vmem %s3, 28
  %4660 = vst [vmem:[%s4659] sm:$0xf] %v4658
  %v4661 = vld [vmem:[%s44] sm:$0xff]
  %v4662 = vld [vmem:[%s44 + $0x8] sm:$0xff]
  %v4663 = vunpack.c.l.bf16 %v4661
  %v4664 = vunpack.c.h.bf16 %v4661
  %v4665 = vunpack.c.l.bf16 %v4662
  %v4666 = vunpack.c.h.bf16 %v4662
  %v4667 = vld [vmem:[%s383] sm:$0xff]
  %v4668 = vld [vmem:[%s383 + $0x8] sm:$0xff]
  %v4669 = vld [vmem:[%s383 + $0x10] sm:$0xff]
  %v4670 = vld [vmem:[%s383 + $0x18] sm:$0xff]
  %v4671 = vld [vmem:[%s383 + $0x20] sm:$0xff]
  %v4672 = vld [vmem:[%s383 + $0x28] sm:$0xff]
  %v4673 = vld [vmem:[%s383 + $0x30] sm:$0xff]
  %v4674 = vld [vmem:[%s383 + $0x38] sm:$0xff]
  %v4675 = vld [vmem:[%s383 + $0x40] sm:$0xff]
  %v4676 = vld [vmem:[%s383 + $0x48] sm:$0xff]
  %v4677 = vld [vmem:[%s383 + $0x50] sm:$0xff]
  %v4678 = vld [vmem:[%s383 + $0x58] sm:$0xff]
  %v4679 = vld [vmem:[%s383 + $0x60] sm:$0xff]
  %v4680 = vld [vmem:[%s383 + $0x68] sm:$0xff]
  %v4681 = vld [vmem:[%s383 + $0x70] sm:$0xff]
  %v4682 = vld [vmem:[%s383 + $0x78] sm:$0xff]
  %v4683 = vld [vmem:[%s383 + $0x80] sm:$0xff]
  %v4684 = vld [vmem:[%s383 + $0x88] sm:$0xff]
  %v4685 = vld [vmem:[%s383 + $0x90] sm:$0xff]
  %v4686 = vld [vmem:[%s383 + $0x98] sm:$0xff]
  %v4687 = vld [vmem:[%s383 + $0xa0] sm:$0xff]
  %v4688 = vld [vmem:[%s383 + $0xa8] sm:$0xff]
  %v4689 = vld [vmem:[%s383 + $0xb0] sm:$0xff]
  %v4690 = vld [vmem:[%s383 + $0xb8] sm:$0xff]
  %v4691 = vld [vmem:[%s383 + $0xc0] sm:$0xff]
  %v4692 = vld [vmem:[%s383 + $0xc8] sm:$0xff]
  %v4693 = vld [vmem:[%s383 + $0xd0] sm:$0xff]
  %v4694 = vld [vmem:[%s383 + $0xd8] sm:$0xff]
  %v4695 = vld [vmem:[%s383 + $0xe0] sm:$0xff]
  %v4696 = vld [vmem:[%s383 + $0xe8] sm:$0xff]
  %v4697 = vld [vmem:[%s383 + $0xf0] sm:$0xff]
  %v4698 = vld [vmem:[%s383 + $0xf8] sm:$0xff]
  %v4731 = vunpack.c.l.b16 %v4667
  %v4732 = vunpack.c.h.b16 %v4667
  %v4733 = vunpack.c.l.b16 %v4668
  %v4734 = vunpack.c.h.b16 %v4668
  %v4735 = vunpack.c.l.b16 %v4669
  %v4736 = vunpack.c.h.b16 %v4669
  %v4737 = vunpack.c.l.b16 %v4670
  %v4738 = vunpack.c.h.b16 %v4670
  %v4739 = vunpack.c.l.b16 %v4671
  %v4740 = vunpack.c.h.b16 %v4671
  %v4741 = vunpack.c.l.b16 %v4672
  %v4742 = vunpack.c.h.b16 %v4672
  %v4743 = vunpack.c.l.b16 %v4673
  %v4744 = vunpack.c.h.b16 %v4673
  %v4745 = vunpack.c.l.b16 %v4674
  %v4746 = vunpack.c.h.b16 %v4674
  %v4747 = vunpack.c.l.b16 %v4675
  %v4748 = vunpack.c.h.b16 %v4675
  %v4749 = vunpack.c.l.b16 %v4676
  %v4750 = vunpack.c.h.b16 %v4676
  %v4751 = vunpack.c.l.b16 %v4677
  %v4752 = vunpack.c.h.b16 %v4677
  %v4753 = vunpack.c.l.b16 %v4678
  %v4754 = vunpack.c.h.b16 %v4678
  %v4755 = vunpack.c.l.b16 %v4679
  %v4756 = vunpack.c.h.b16 %v4679
  %v4757 = vunpack.c.l.b16 %v4680
  %v4758 = vunpack.c.h.b16 %v4680
  %v4759 = vunpack.c.l.b16 %v4681
  %v4760 = vunpack.c.h.b16 %v4681
  %v4761 = vunpack.c.l.b16 %v4682
  %v4762 = vunpack.c.h.b16 %v4682
  %v4763 = vunpack.c.l.b16 %v4683
  %v4764 = vunpack.c.h.b16 %v4683
  %v4765 = vunpack.c.l.b16 %v4684
  %v4766 = vunpack.c.h.b16 %v4684
  %v4767 = vunpack.c.l.b16 %v4685
  %v4768 = vunpack.c.h.b16 %v4685
  %v4769 = vunpack.c.l.b16 %v4686
  %v4770 = vunpack.c.h.b16 %v4686
  %v4771 = vunpack.c.l.b16 %v4687
  %v4772 = vunpack.c.h.b16 %v4687
  %v4773 = vunpack.c.l.b16 %v4688
  %v4774 = vunpack.c.h.b16 %v4688
  %v4775 = vunpack.c.l.b16 %v4689
  %v4776 = vunpack.c.h.b16 %v4689
  %v4777 = vunpack.c.l.b16 %v4690
  %v4778 = vunpack.c.h.b16 %v4690
  %v4779 = vunpack.c.l.b16 %v4691
  %v4780 = vunpack.c.h.b16 %v4691
  %v4781 = vunpack.c.l.b16 %v4692
  %v4782 = vunpack.c.h.b16 %v4692
  %v4783 = vunpack.c.l.b16 %v4693
  %v4784 = vunpack.c.h.b16 %v4693
  %v4785 = vunpack.c.l.b16 %v4694
  %v4786 = vunpack.c.h.b16 %v4694
  %v4787 = vunpack.c.l.b16 %v4695
  %v4788 = vunpack.c.h.b16 %v4695
  %v4789 = vunpack.c.l.b16 %v4696
  %v4790 = vunpack.c.h.b16 %v4696
  %v4791 = vunpack.c.l.b16 %v4697
  %v4792 = vunpack.c.h.b16 %v4697
  %v4793 = vunpack.c.l.b16 %v4698
  %v4794 = vunpack.c.h.b16 %v4698
  %v4795 = vpack.c.b16 %v4735, %v4731
  %v4796 = vpack.c.b16 %v4736, %v4732
  %v4797 = vpack.c.b16 %v4737, %v4733
  %v4798 = vpack.c.b16 %v4738, %v4734
  %v4799 = vpack.c.b16 %v4743, %v4739
  %v4800 = vpack.c.b16 %v4744, %v4740
  %v4801 = vpack.c.b16 %v4745, %v4741
  %v4802 = vpack.c.b16 %v4746, %v4742
  %v4803 = vpack.c.b16 %v4751, %v4747
  %v4804 = vpack.c.b16 %v4752, %v4748
  %v4805 = vpack.c.b16 %v4753, %v4749
  %v4806 = vpack.c.b16 %v4754, %v4750
  %v4807 = vpack.c.b16 %v4759, %v4755
  %v4808 = vpack.c.b16 %v4760, %v4756
  %v4809 = vpack.c.b16 %v4761, %v4757
  %v4810 = vpack.c.b16 %v4762, %v4758
  %v4811 = vpack.c.b16 %v4767, %v4763
  %v4812 = vpack.c.b16 %v4768, %v4764
  %v4813 = vpack.c.b16 %v4769, %v4765
  %v4814 = vpack.c.b16 %v4770, %v4766
  %v4815 = vpack.c.b16 %v4775, %v4771
  %v4816 = vpack.c.b16 %v4776, %v4772
  %v4817 = vpack.c.b16 %v4777, %v4773
  %v4818 = vpack.c.b16 %v4778, %v4774
  %v4819 = vpack.c.b16 %v4783, %v4779
  %v4820 = vpack.c.b16 %v4784, %v4780
  %v4821 = vpack.c.b16 %v4785, %v4781
  %v4822 = vpack.c.b16 %v4786, %v4782
  %v4823 = vpack.c.b16 %v4791, %v4787
  %v4824 = vpack.c.b16 %v4792, %v4788
  %v4825 = vpack.c.b16 %v4793, %v4789
  %v4826 = vpack.c.b16 %v4794, %v4790
  %4859 = vmatprep.subr.bf16.mxu0 %v4796
  %4860 = vmatpush1.bf16.msra.mxu0 %v4795
  %4861 = vmatprep.subr.bf16.mxu0 %v4800
  %4862 = vmatpush1.bf16.msra.mxu0 %v4799
  %4863 = vmatprep.subr.bf16.mxu0 %v4804
  %4864 = vmatpush1.bf16.msra.mxu0 %v4803
  %4865 = vmatprep.subr.bf16.mxu0 %v4808
  %4866 = vmatpush1.bf16.msra.mxu0 %v4807
  %4867 = vmatprep.subr.bf16.mxu0 %v4812
  %4868 = vmatpush1.bf16.msra.mxu0 %v4811
  %4869 = vmatprep.subr.bf16.mxu0 %v4816
  %4870 = vmatpush1.bf16.msra.mxu0 %v4815
  %4871 = vmatprep.subr.bf16.mxu0 %v4820
  %4872 = vmatpush1.bf16.msra.mxu0 %v4819
  %4873 = vmatprep.subr.bf16.mxu0 %v4824
  %4874 = vmatpush1.bf16.msra.mxu0 %v4823
  %4875 = vmatprep.subr.bf16.mxu0 0
  %4876 = vmatpush1.bf16.msra.mxu0 0
  %4877 = vmatprep.subr.bf16.mxu0 0
  %4878 = vmatpush1.bf16.msra.mxu0 0
  %4879 = vmatprep.subr.bf16.mxu0 0
  %4880 = vmatpush1.bf16.msra.mxu0 0
  %4881 = vmatprep.subr.bf16.mxu0 0
  %4882 = vmatpush1.bf16.msra.mxu0 0
  %4883 = vmatprep.subr.bf16.mxu0 0
  %4884 = vmatpush1.bf16.msra.mxu0 0
  %4885 = vmatprep.subr.bf16.mxu0 0
  %4886 = vmatpush1.bf16.msra.mxu0 0
  %4887 = vmatprep.subr.bf16.mxu0 0
  %4888 = vmatpush1.bf16.msra.mxu0 0
  %4889 = vmatprep.subr.bf16.mxu0 0
  %4890 = vmatpush1.bf16.msra.mxu0 0
  %4891 = vmatprep.mubr.bf16.mxu0 0
  %4892 = vmatmul.mubr.bf16.gmra.mrb[0].mxu0 %v4352
  %v4893 = vpop.f32.mrb[0].mxu0
  %v4894 = vadd.f32 0.0, %v4893
  %v4895 = vpop.f32.mrb[0].mxu0
  %v4896 = vadd.f32 0.0, %v4895
  %v4897 = vpop.f32.mrb[0].mxu0
  %v4898 = vpop.f32.mrb[0].mxu0
  %4899 = vdwg.mxu0
  %4900 = vmatprep.subr.bf16.mxu0 %v4798
  %4901 = vmatpush1.bf16.msra.mxu0 %v4797
  %4902 = vmatprep.subr.bf16.mxu0 %v4802
  %4903 = vmatpush1.bf16.msra.mxu0 %v4801
  %4904 = vmatprep.subr.bf16.mxu0 %v4806
  %4905 = vmatpush1.bf16.msra.mxu0 %v4805
  %4906 = vmatprep.subr.bf16.mxu0 %v4810
  %4907 = vmatpush1.bf16.msra.mxu0 %v4809
  %4908 = vmatprep.subr.bf16.mxu0 %v4814
  %4909 = vmatpush1.bf16.msra.mxu0 %v4813
  %4910 = vmatprep.subr.bf16.mxu0 %v4818
  %4911 = vmatpush1.bf16.msra.mxu0 %v4817
  %4912 = vmatprep.subr.bf16.mxu0 %v4822
  %4913 = vmatpush1.bf16.msra.mxu0 %v4821
  %4914 = vmatprep.subr.bf16.mxu0 %v4826
  %4915 = vmatpush1.bf16.msra.mxu0 %v4825
  %4916 = vmatprep.subr.bf16.mxu0 0
  %4917 = vmatpush1.bf16.msra.mxu0 0
  %4918 = vmatprep.subr.bf16.mxu0 0
  %4919 = vmatpush1.bf16.msra.mxu0 0
  %4920 = vmatprep.subr.bf16.mxu0 0
  %4921 = vmatpush1.bf16.msra.mxu0 0
  %4922 = vmatprep.subr.bf16.mxu0 0
  %4923 = vmatpush1.bf16.msra.mxu0 0
  %4924 = vmatprep.subr.bf16.mxu0 0
  %4925 = vmatpush1.bf16.msra.mxu0 0
  %4926 = vmatprep.subr.bf16.mxu0 0
  %4927 = vmatpush1.bf16.msra.mxu0 0
  %4928 = vmatprep.subr.bf16.mxu0 0
  %4929 = vmatpush1.bf16.msra.mxu0 0
  %4930 = vmatprep.subr.bf16.mxu0 0
  %4931 = vmatpush1.bf16.msra.mxu0 0
  %4932 = vmatprep.mubr.bf16.mxu0 0
  %4933 = vmatmul.mubr.bf16.gmra.mrb[0].mxu0 %v4352
  %v4934 = vpop.f32.mrb[0].mxu0
  %v4935 = vadd.f32 0.0, %v4934
  %v4936 = vpop.f32.mrb[0].mxu0
  %v4937 = vadd.f32 0.0, %v4936
  %v4938 = vpop.f32.mrb[0].mxu0
  %v4939 = vpop.f32.mrb[0].mxu0
  %4940 = vdwg.mxu0
  %v4941 = vadd.f32 %v4663, %v4894
  %v4942 = vadd.f32 %v4664, %v4896
  %v4943 = vadd.f32 %v4665, %v4935
  %v4944 = vadd.f32 %v4666, %v4937
  %v4945 = vmul.f32 %v4941, 0.5
  %v4946 = vtanh.pop %v4945
  %v4947 = vmul.f32 %v4946, 0.5
  %v4948 = vadd.f32 %v4947, 0.5
  %v4949 = vmul.f32 %v4942, 0.5
  %v4950 = vtanh.pop %v4949
  %v4951 = vmul.f32 %v4950, 0.5
  %v4952 = vadd.f32 %v4951, 0.5
  %v4953 = vtanh.pop %v4943
  %v4954 = vmul.f32 %v4944, 0.5
  %v4955 = vtanh.pop %v4954
  %v4956 = vmul.f32 %v4955, 0.5
  %v4957 = vadd.f32 %v4956, 0.5
  %v4958 = vmul.f32 %v4952, %v4349
  %v4959 = vmul.f32 %v4948, %v4953
  %v4960 = vadd.f32 %v4958, %v4959
  %v4961 = vtanh.pop %v4960
  %v4962 = vmul.f32 %v4957, %v4961
  %v4963 = vpack.c.bf16 %v4962, %v4962
  %4964 = vst [vmem:[%s52] sm:$0xf] %v4963
  %4965 = vst [vmem:[#allocation2] sm:$0xff] %v4657
  %4966 = vst [vmem:[#allocation3] sm:$0xff] %v4655
  %4967 = vst [vmem:[%s66] sm:$0xff] %v4962
  %4968 = vst [vmem:[%s68] sm:$0xff] %v4960
  %s4969 = ssub.s32 0, 0
  %s4970 = smul.u32 8, %s4969
  %p4971 = scmp.lt.s32.totalorder %s4970, 7
  %s4972 = scalar_select %p4971, %s4970, 7
  %s4973 = smul.addr %s4972, 4
  %s4974 = scalar_lea.vmem %s4, %s4973
  // Predicated region
  $region18: #{vanilla_lstm_forward.9} parent=0 // pred_check
    _
  $region19: #{vanilla_lstm_forward.9} parent=0 // pred_check_branch
    %4976 = sbr.rel (0) target = $region21
  $region20: #{vanilla_lstm_forward.9} parent=0 // pred_region
    _
  $region21: #{vanilla_lstm_forward.9} parent=0 // pred_fallthru
    _
  // Predicated region
  $region22: #{vanilla_lstm_forward.9} parent=0 // pred_check
    _
  $region23: #{vanilla_lstm_forward.9} parent=0 // pred_check_branch
    %4978 = sbr.rel (0) target = $region25
  $region24: #{vanilla_lstm_forward.9} parent=0 // pred_region
    %s4979 = ssub.s32 0, 0
    %s4980 = smul.u32 8, %s4979
  $region25: #{vanilla_lstm_forward.9} parent=0 // pred_fallthru
    _
  // Predicated region
  $region26: #{vanilla_lstm_forward.9} parent=0 // pred_check
    _
  $region27: #{vanilla_lstm_forward.9} parent=0 // pred_check_branch
    %4982 = sbr.rel (0) target = $region29
  $region28: #{vanilla_lstm_forward.9} parent=0 // pred_region
    _
  $region29: #{vanilla_lstm_forward.9} parent=0 // pred_fallthru
    _
  // Predicated region
  $region30: #{vanilla_lstm_forward.9} parent=0 // pred_check
    _
  $region31: #{vanilla_lstm_forward.9} parent=0 // pred_check_branch
    %4984 = sbr.rel (0) target = $region33
  $region32: #{vanilla_lstm_forward.9} parent=0 // pred_region
    %s4985 = ssub.s32 0, 0
    %s4986 = smul.u32 8, %s4985
    %p4987 = scmp.lt.s32.totalorder %s4986, 7
    %s4988 = scalar_select %p4987, %s4986, 7
    %s4989 = smul.addr %s4988, 4
    %s4990 = scalar_lea.vmem %s4, %s4989
  $region33: #{vanilla_lstm_forward.9} parent=0 // pred_fallthru
    _

</llo_original>
